<compile_context>
chip_gen: v7x
topology: tpu7x:2x2x1
jax: 0.10.0
libtpu: 0.0.40
codegen_flags: <defaults>
</compile_context>

<pallas_src>
import jax
import jax.numpy as jnp
from jax.experimental import pallas as pl
from jax.experimental.pallas import tpu as pltpu

# ---------------- model hyperparameters (small, consistent with the module) ----
VOCAB_SIZE = 256
EMBEDDING_DIM = 128
HIDDEN_DIM = 128          # == EMBEDDING_DIM (required by the weight tying)
NUM_LAYERS = 2
BATCH = 2
SEQ = 8
B_PAD = 8                 # batch padded to a full sublane tile inside the kernel
DTYPE = jnp.float32
WDTYPE = jnp.bfloat16     # matmul-operand dtype (accumulation stays f32)

assert EMBEDDING_DIM == HIDDEN_DIM, "weight tying / layer stacking requires E == H"
assert NUM_LAYERS == 2, "wavefront schedule below is written for exactly 2 layers"
assert BATCH <= B_PAD


# ---------------- fused Pallas kernel ------------------------------------------
def fused_lstm_lm_kernel(x_ref, h0_ref, c0_ref, wih_ref, whh_ref, b_ref,
                         fcw_ref, fcb_ref,
                         logits_ref, hn_ref, cn_ref,
                         gx_scr, y_scr):
    """Entire forward pass (2-layer LSTM + tied FC) on one VMEM-resident chunk.

    x_ref:      (T*B_PAD, E)   bf16, time-major, batch padded to 8 sublanes
    h0_ref:     (L*B_PAD, H)   f32 initial hidden states (layer-major)
    c0_ref:     (L*B_PAD, H)   f32 initial cell states
    wih_ref:    (L, H, 4H)     bf16 input->gate weights^T, gate order (i, f, o, g)
    whh_ref:    (L, H, 4H)     bf16 hidden->gate weights^T, gate order (i, f, o, g)
    b_ref:      (L, 1, 4H)     f32 b_ih + b_hh, gate order (i, f, o, g)
    fcw_ref:    (H, V)         bf16 tied output-projection weight (pre-transposed)
    fcb_ref:    (1, V)         f32 output-projection bias
    logits_ref: (T*B_PAD, V)   f32 time-major logits
    hn_ref/cn_ref: (L*B_PAD, H) f32 final states (aliased onto h0/c0 buffers)
    gx_scr:     (T*B_PAD, 4H)  f32 scratch: hoisted layer-0 input projections
    y_scr:      (T*B_PAD, H)   f32 scratch: layer-1 (top) output sequence
    """
    TBP, _ = x_ref.shape
    H = hn_ref.shape[-1]
    BP = B_PAD
    T = TBP // BP

    # Hoisted layer-0 input projection + folded bias: one (T*BP, H)x(H, 4H)
    # bf16 matmul, entirely off the recurrent chain.
    gx_scr[...] = (jnp.dot(x_ref[...], wih_ref[0],
                           preferred_element_type=jnp.float32)
                   + b_ref[0])

    # Per-layer states live in registers for the whole recurrence (8x128 each).
    h_a = h0_ref[pl.ds(0, BP), :]
    c_a = c0_ref[pl.ds(0, BP), :]
    h_b = h0_ref[pl.ds(BP, BP), :]
    c_b = c0_ref[pl.ds(BP, BP), :]

    def lstm_cell(gates, c):
        # Gates arrive packed (i, f, o, g): one wide sigmoid over the first 3H.
        sig = jax.nn.sigmoid(gates[:, :3 * H])
        i_g = sig[:, 0 * H:1 * H]
        f_g = sig[:, 1 * H:2 * H]
        o_g = sig[:, 2 * H:3 * H]
        g_g = jnp.tanh(gates[:, 3 * H:4 * H])
        c_new = f_g * c + i_g * g_g
        h_new = o_g * jnp.tanh(c_new)
        return h_new, c_new

    # Wavefront: iteration s runs layer-0 at time s and layer-1 at time s-1,
    # so the two recurrent matmuls in each iteration are independent and the
    # MXU pipeline stays fed.  Static unroll keeps full LLO visibility.
    prev_y0 = None
    for s in range(T + 1):
        new_y0 = None
        if s < T:
            # Layer 0, time s: only h_a @ W_hh0 is on the serial chain.
            gates_a = (gx_scr[pl.ds(s * BP, BP), :]
                       + jnp.dot(h_a.astype(WDTYPE), whh_ref[0],
                                 preferred_element_type=jnp.float32))
            h_a, c_a = lstm_cell(gates_a, c_a)
            new_y0 = h_a          # inter-layer dropout -> identity in eval mode
        if s >= 1:
            t = s - 1
            # Layer 1, time t: input projection uses layer-0's output from the
            # PREVIOUS wavefront iteration (independent of layer-1's chain).
            gates_b = (jnp.dot(prev_y0.astype(WDTYPE), wih_ref[1],
                               preferred_element_type=jnp.float32)
                       + b_ref[1]
                       + jnp.dot(h_b.astype(WDTYPE), whh_ref[1],
                                 preferred_element_type=jnp.float32))
            h_b, c_b = lstm_cell(gates_b, c_b)
            y_scr[pl.ds(t * BP, BP), :] = h_b     # aligned full-tile store
        prev_y0 = new_y0

    # Final states written in place over the aliased h0/c0 buffers.
    hn_ref[pl.ds(0, BP), :] = h_a
    hn_ref[pl.ds(BP, BP), :] = h_b
    cn_ref[pl.ds(0, BP), :] = c_a
    cn_ref[pl.ds(BP, BP), :] = c_b

    # Output dropout -> identity in eval mode.
    # Tied output projection: one lane-dense (T*B_PAD, V) slab write.
    logits_ref[...] = (jnp.dot(y_scr[...].astype(WDTYPE), fcw_ref[...],
                               preferred_element_type=jnp.float32)
                       + fcb_ref[...]).astype(logits_ref.dtype)


# ---------------- wrappers ------------------------------------------------------
def run_fused_forward(x_flat, h0p, c0p, wih_all, whh_all, b_all, fc_w_t, fc_b):
    """x_flat: (T*B_PAD, E) bf16 time-major; h0p/c0p: (L*B_PAD, H) f32."""
    TBP, E = x_flat.shape
    LBP, H = h0p.shape
    L = NUM_LAYERS
    V = fc_w_t.shape[1]

    out_shapes = (
        jax.ShapeDtypeStruct((TBP, V), DTYPE),
        jax.ShapeDtypeStruct((LBP, H), DTYPE),
        jax.ShapeDtypeStruct((LBP, H), DTYPE),
    )
    grid_spec = pltpu.PrefetchScalarGridSpec(
        num_scalar_prefetch=0,
        grid=(1,),                                            # time unrolled in-kernel
        in_specs=[
            pl.BlockSpec((TBP, E), lambda i: (0, 0)),         # x (flattened, bf16)
            pl.BlockSpec((LBP, H), lambda i: (0, 0)),         # h0 (padded slab)
            pl.BlockSpec((LBP, H), lambda i: (0, 0)),         # c0 (padded slab)
            pl.BlockSpec((L, H, 4 * H), lambda i: (0, 0, 0)), # W_ih^T (bf16)
            pl.BlockSpec((L, H, 4 * H), lambda i: (0, 0, 0)), # W_hh^T (bf16)
            pl.BlockSpec((L, 1, 4 * H), lambda i: (0, 0, 0)), # bias (f32)
            pl.BlockSpec((H, V), lambda i: (0, 0)),           # FC weight (bf16)
            pl.BlockSpec((1, V), lambda i: (0, 0)),           # FC bias (f32)
        ],
        out_specs=[
            pl.BlockSpec((TBP, V), lambda i: (0, 0)),         # logits
            pl.BlockSpec((LBP, H), lambda i: (0, 0)),         # h_n (aliases h0)
            pl.BlockSpec((LBP, H), lambda i: (0, 0)),         # c_n (aliases c0)
        ],
        scratch_shapes=[
            pltpu.VMEM((TBP, 4 * H), jnp.float32),            # hoisted layer-0 gate proj
            pltpu.VMEM((TBP, H), jnp.float32),                # top-layer output sequence
        ],
    )
    return pl.pallas_call(
        fused_lstm_lm_kernel,
        out_shape=out_shapes,
        grid_spec=grid_spec,
        input_output_aliases={1: 1, 2: 2},                    # h0->h_n, c0->c_n in place
        compiler_params=pltpu.CompilerParams(
            dimension_semantics=("arbitrary",)),
    )(x_flat, h0p, c0p, wih_all, whh_all, b_all, fc_w_t, fc_b)


@jax.jit
def lstm_lm_forward(params, src, hidden):
    """Forward pass equivalent to LSTM.forward(src, hidden) in eval mode.

    src:    (B, T) int32 token ids
    hidden: tuple of (h0, c0), each (num_layers, B, H)
    returns (prediction (B, T, V), (h_n, c_n))
    """
    h0, c0 = hidden
    B, T = src.shape
    L = NUM_LAYERS

    # Embedding lookup with the tied weight (glue: gather), dropout -> identity.
    emb = jnp.take(params["tied_weight"], src, axis=0)            # (B, T, E)
    x_tm = jnp.transpose(emb, (1, 0, 2))                          # (T, B, E) time-major
    x_pad = jnp.pad(x_tm, ((0, 0), (0, B_PAD - B), (0, 0)))       # pad batch -> 8 sublanes
    x_flat = x_pad.reshape(T * B_PAD, EMBEDDING_DIM).astype(WDTYPE)

    def pad_state(s):                                             # (L,B,H) -> (L*B_PAD,H)
        sp = jnp.pad(s, ((0, 0), (0, B_PAD - B), (0, 0)))
        return sp.reshape(L * B_PAD, HIDDEN_DIM)

    logits_flat, h_np, c_np = run_fused_forward(
        x_flat, pad_state(h0), pad_state(c0),
        params["w_ih_t"], params["w_hh_t"], params["b"],
        params["fc_w_t"], params["fc_b"])

    # Un-pad / re-layout outputs (glue ops outside the kernel).
    prediction = jnp.transpose(
        logits_flat.reshape(T, B_PAD, VOCAB_SIZE)[:, :B, :], (1, 0, 2))
    h_n = h_np.reshape(L, B_PAD, HIDDEN_DIM)[:, :B, :]
    c_n = c_np.reshape(L, B_PAD, HIDDEN_DIM)[:, :B, :]
    return prediction, (h_n, c_n)


# ---------------- parameter prep ------------------------------------------------
def _repack_gates(arr):
    """Reorder PyTorch LSTM gate packing (i, f, g, o) -> (i, f, o, g) on axis 0."""
    H = HIDDEN_DIM
    i, f, g, o = (arr[0 * H:1 * H], arr[1 * H:2 * H],
                  arr[2 * H:3 * H], arr[3 * H:4 * H])
    return jnp.concatenate([i, f, o, g], axis=0)


def init_params(key):
    """Deterministic parameter init with the same shapes as the PyTorch module."""
    keys = jax.random.split(key, 2 + 4 * NUM_LAYERS)
    scale = 1.0 / jnp.sqrt(jnp.float32(HIDDEN_DIM))

    # Tied weight: embedding.weight == fc.weight, shape (V, E) (E == H).
    tied_weight = jax.random.normal(keys[0], (VOCAB_SIZE, EMBEDDING_DIM), DTYPE) * 0.1
    fc_b = jax.random.uniform(keys[1], (VOCAB_SIZE,), DTYPE, -scale, scale)

    w_ih_t, w_hh_t, biases = [], [], []
    for layer in range(NUM_LAYERS):
        in_dim = EMBEDDING_DIM if layer == 0 else HIDDEN_DIM
        k = keys[2 + 4 * layer: 2 + 4 * (layer + 1)]
        # PyTorch stores (4H, in_dim)/(4H, H) with gate order (i, f, g, o).
        w_ih = jax.random.uniform(k[0], (4 * HIDDEN_DIM, in_dim), DTYPE, -scale, scale)
        w_hh = jax.random.uniform(k[1], (4 * HIDDEN_DIM, HIDDEN_DIM), DTYPE, -scale, scale)
        b_ih = jax.random.uniform(k[2], (4 * HIDDEN_DIM,), DTYPE, -scale, scale)
        b_hh = jax.random.uniform(k[3], (4 * HIDDEN_DIM,), DTYPE, -scale, scale)
        # Repack gates to (i, f, o, g), fold the two biases, transpose for the MXU,
        # cast matmul operands to bf16 (accumulation stays f32 in-kernel).
        w_ih_t.append(_repack_gates(w_ih).T.astype(WDTYPE))       # (in_dim, 4H) bf16
        w_hh_t.append(_repack_gates(w_hh).T.astype(WDTYPE))       # (H, 4H) bf16
        biases.append(_repack_gates(b_ih + b_hh).reshape(1, 4 * HIDDEN_DIM))

    return {
        "tied_weight": tied_weight,                               # (V, E) f32 embedding table
        "fc_w_t": tied_weight.T.astype(WDTYPE),                   # (H, V) bf16 pre-transposed
        "fc_b": fc_b.reshape(1, VOCAB_SIZE),                      # (1, V) f32
        "w_ih_t": jnp.stack(w_ih_t, axis=0),                      # (L, H, 4H) bf16
        "w_hh_t": jnp.stack(w_hh_t, axis=0),                      # (L, H, 4H) bf16
        "b": jnp.stack(biases, axis=0),                           # (L, 1, 4H) f32
    }


def init_hidden(batch_size):
    h = jnp.zeros((NUM_LAYERS, batch_size, HIDDEN_DIM), DTYPE)
    c = jnp.zeros((NUM_LAYERS, batch_size, HIDDEN_DIM), DTYPE)
    return h, c


if __name__ == "__main__":
    key = jax.random.PRNGKey(0)
    pkey, skey = jax.random.split(key)

    params = init_params(pkey)
    src = jax.random.randint(skey, (BATCH, SEQ), 0, VOCAB_SIZE, dtype=jnp.int32)
    hidden = init_hidden(BATCH)

    prediction, (h_n, c_n) = lstm_lm_forward(params, src, hidden)
    jax.block_until_ready((prediction, h_n, c_n))

    assert prediction.shape == (BATCH, SEQ, VOCAB_SIZE)
    assert h_n.shape == (NUM_LAYERS, BATCH, HIDDEN_DIM)
    assert c_n.shape == (NUM_LAYERS, BATCH, HIDDEN_DIM)
    assert bool(jnp.all(jnp.isfinite(prediction)))
    assert bool(jnp.all(jnp.isfinite(h_n))) and bool(jnp.all(jnp.isfinite(c_n)))

    print("KERNEL_OK")
</pallas_src>

<mosaic_0001>
module attributes {stable_mosaic.version = 11 : i64} {
  func.func @fused_lstm_lm_kernel(%arg0: i32, %arg1: memref<64x128xbf16, #tpu.memory_space<vmem>>, %arg2: memref<16x128xf32, #tpu.memory_space<vmem>>, %arg3: memref<16x128xf32, #tpu.memory_space<vmem>>, %arg4: memref<2x128x512xbf16, #tpu.memory_space<vmem>>, %arg5: memref<2x128x512xbf16, #tpu.memory_space<vmem>>, %arg6: memref<2x1x512xf32, #tpu.memory_space<vmem>>, %arg7: memref<128x256xbf16, #tpu.memory_space<vmem>>, %arg8: memref<1x256xf32, #tpu.memory_space<vmem>>, %arg9: memref<64x256xf32, #tpu.memory_space<vmem>>, %arg10: memref<16x128xf32, #tpu.memory_space<vmem>>, %arg11: memref<16x128xf32, #tpu.memory_space<vmem>>, %arg12: memref<64x512xf32, #tpu.memory_space<vmem>>, %arg13: memref<64x128xf32, #tpu.memory_space<vmem>>) attributes {dimension_semantics = [#tpu.dimension_semantics<arbitrary>], iteration_bounds = array<i64: 1>, scalar_prefetch = 0 : i64, scratch_operands = 2 : i64, tpu.core_type = #tpu.core_type<tc>, window_params = [{pipeline_mode = #tpu.pipeline_mode<synchronous>, transform_indices = @transform_0, window_bounds = array<i64: 64, 128>}, {pipeline_mode = #tpu.pipeline_mode<synchronous>, transform_indices = @transform_1, window_bounds = array<i64: 16, 128>}, {pipeline_mode = #tpu.pipeline_mode<synchronous>, transform_indices = @transform_2, window_bounds = array<i64: 16, 128>}, {pipeline_mode = #tpu.pipeline_mode<synchronous>, transform_indices = @transform_3, window_bounds = array<i64: 2, 128, 512>}, {pipeline_mode = #tpu.pipeline_mode<synchronous>, transform_indices = @transform_4, window_bounds = array<i64: 2, 128, 512>}, {pipeline_mode = #tpu.pipeline_mode<synchronous>, transform_indices = @transform_5, window_bounds = array<i64: 2, 1, 512>}, {pipeline_mode = #tpu.pipeline_mode<synchronous>, transform_indices = @transform_6, window_bounds = array<i64: 128, 256>}, {pipeline_mode = #tpu.pipeline_mode<synchronous>, transform_indices = @transform_7, window_bounds = array<i64: 1, 256>}, {pipeline_mode = #tpu.pipeline_mode<synchronous>, transform_indices = @transform_8, window_bounds = array<i64: 64, 256>}, {pipeline_mode = #tpu.pipeline_mode<synchronous>, transform_indices = @transform_9, window_bounds = array<i64: 16, 128>}, {pipeline_mode = #tpu.pipeline_mode<synchronous>, transform_indices = @transform_10, window_bounds = array<i64: 16, 128>}]} {
    %c0 = arith.constant 0 : index
    %c0_0 = arith.constant 0 : index
    %0 = vector.load %arg1[%c0, %c0_0] : memref<64x128xbf16, #tpu.memory_space<vmem>>, vector<64x128xbf16>
    %c0_1 = arith.constant 0 : index
    %c0_2 = arith.constant 0 : index
    %c0_3 = arith.constant 0 : index
    %1 = vector.load %arg4[%c0_1, %c0_2, %c0_3] : memref<2x128x512xbf16, #tpu.memory_space<vmem>>, vector<1x128x512xbf16>
    %2 = vector.shape_cast %1 : vector<1x128x512xbf16> to vector<128x512xbf16>
    %cst = arith.constant dense<0.000000e+00> : vector<64x512xf32>
    %3 = tpu.matmul %0, %2, %cst {dimension_numbers = #tpu.dot_dimension_numbers<[1], [0], [0], [1], [0, 0, 1, 1], [], []>} : vector<64x128xbf16>, vector<128x512xbf16>, vector<64x512xf32> -> vector<64x512xf32>
    %c0_4 = arith.constant 0 : index
    %c0_5 = arith.constant 0 : index
    %c0_6 = arith.constant 0 : index
    %4 = vector.load %arg6[%c0_4, %c0_5, %c0_6] : memref<2x1x512xf32, #tpu.memory_space<vmem>>, vector<1x1x512xf32>
    %5 = vector.shape_cast %4 : vector<1x1x512xf32> to vector<1x512xf32>
    %6 = vector.broadcast %5 : vector<1x512xf32> to vector<64x512xf32>
    %7 = arith.addf %3, %6 : vector<64x512xf32>
    %c0_7 = arith.constant 0 : index
    %c0_8 = arith.constant 0 : index
    %8 = vector.load %arg12[%c0_7, %c0_8] : memref<64x512xf32, #tpu.memory_space<vmem>>, vector<64x512xf32>
    tpu.vector_store %arg12[%c0_7, %c0_8], %7 {strides = array<i32>} : memref<64x512xf32, #tpu.memory_space<vmem>>, vector<64x512xf32>,
    %c0_9 = arith.constant 0 : index
    %c0_10 = arith.constant 0 : index
    %9 = vector.load %arg2[%c0_9, %c0_10] : memref<16x128xf32, #tpu.memory_space<vmem>>, vector<8x128xf32>
    %c0_11 = arith.constant 0 : index
    %c0_12 = arith.constant 0 : index
    %10 = vector.load %arg3[%c0_11, %c0_12] : memref<16x128xf32, #tpu.memory_space<vmem>>, vector<8x128xf32>
    %c8 = arith.constant 8 : index
    %c0_13 = arith.constant 0 : index
    %11 = vector.load %arg2[%c8, %c0_13] : memref<16x128xf32, #tpu.memory_space<vmem>>, vector<8x128xf32>
    %c8_14 = arith.constant 8 : index
    %c0_15 = arith.constant 0 : index
    %12 = vector.load %arg3[%c8_14, %c0_15] : memref<16x128xf32, #tpu.memory_space<vmem>>, vector<8x128xf32>
    %c0_16 = arith.constant 0 : index
    %c0_17 = arith.constant 0 : index
    %13 = vector.load %arg12[%c0_16, %c0_17] : memref<64x512xf32, #tpu.memory_space<vmem>>, vector<8x512xf32>
    %14 = arith.truncf %9 : vector<8x128xf32> to vector<8x128xbf16>
    %c0_18 = arith.constant 0 : index
    %c0_19 = arith.constant 0 : index
    %c0_20 = arith.constant 0 : index
    %15 = vector.load %arg5[%c0_18, %c0_19, %c0_20] : memref<2x128x512xbf16, #tpu.memory_space<vmem>>, vector<1x128x512xbf16>
    %16 = vector.shape_cast %15 : vector<1x128x512xbf16> to vector<128x512xbf16>
    %cst_21 = arith.constant dense<0.000000e+00> : vector<8x512xf32>
    %17 = tpu.matmul %14, %16, %cst_21 {dimension_numbers = #tpu.dot_dimension_numbers<[1], [0], [0], [1], [0, 0, 1, 1], [], []>} : vector<8x128xbf16>, vector<128x512xbf16>, vector<8x512xf32> -> vector<8x512xf32>
    %18 = arith.addf %13, %17 : vector<8x512xf32>
    %19 = vector.extract_strided_slice %18 {offsets = [0, 0], sizes = [8, 384], strides = [1, 1]} : vector<8x512xf32> to vector<8x384xf32>
    %20 = arith.negf %19 : vector<8x384xf32>
    %21 = math.exp %20 : vector<8x384xf32>
    %cst_22 = arith.constant 1.000000e+00 : f32
    %22 = vector.broadcast %cst_22 : f32 to vector<8x384xf32>
    %23 = arith.addf %22, %21 : vector<8x384xf32>
    %24 = arith.divf %22, %23 : vector<8x384xf32>
    %25 = vector.extract_strided_slice %24 {offsets = [0, 0], sizes = [8, 128], strides = [1, 1]} : vector<8x384xf32> to vector<8x128xf32>
    %26 = vector.extract_strided_slice %24 {offsets = [0, 128], sizes = [8, 128], strides = [1, 1]} : vector<8x384xf32> to vector<8x128xf32>
    %27 = vector.extract_strided_slice %24 {offsets = [0, 256], sizes = [8, 128], strides = [1, 1]} : vector<8x384xf32> to vector<8x128xf32>
    %28 = vector.extract_strided_slice %18 {offsets = [0, 384], sizes = [8, 128], strides = [1, 1]} : vector<8x512xf32> to vector<8x128xf32>
    %29 = math.tanh %28 : vector<8x128xf32>
    %30 = arith.mulf %26, %10 : vector<8x128xf32>
    %31 = arith.mulf %25, %29 : vector<8x128xf32>
    %32 = arith.addf %30, %31 : vector<8x128xf32>
    %33 = math.tanh %32 : vector<8x128xf32>
    %34 = arith.mulf %27, %33 : vector<8x128xf32>
    %c8_23 = arith.constant 8 : index
    %c0_24 = arith.constant 0 : index
    %35 = vector.load %arg12[%c8_23, %c0_24] : memref<64x512xf32, #tpu.memory_space<vmem>>, vector<8x512xf32>
    %36 = arith.truncf %34 : vector<8x128xf32> to vector<8x128xbf16>
    %c0_25 = arith.constant 0 : index
    %c0_26 = arith.constant 0 : index
    %c0_27 = arith.constant 0 : index
    %37 = vector.load %arg5[%c0_25, %c0_26, %c0_27] : memref<2x128x512xbf16, #tpu.memory_space<vmem>>, vector<1x128x512xbf16>
    %38 = vector.shape_cast %37 : vector<1x128x512xbf16> to vector<128x512xbf16>
    %cst_28 = arith.constant dense<0.000000e+00> : vector<8x512xf32>
    %39 = tpu.matmul %36, %38, %cst_28 {dimension_numbers = #tpu.dot_dimension_numbers<[1], [0], [0], [1], [0, 0, 1, 1], [], []>} : vector<8x128xbf16>, vector<128x512xbf16>, vector<8x512xf32> -> vector<8x512xf32>
    %40 = arith.addf %35, %39 : vector<8x512xf32>
    %41 = vector.extract_strided_slice %40 {offsets = [0, 0], sizes = [8, 384], strides = [1, 1]} : vector<8x512xf32> to vector<8x384xf32>
    %42 = arith.negf %41 : vector<8x384xf32>
    %43 = math.exp %42 : vector<8x384xf32>
    %cst_29 = arith.constant 1.000000e+00 : f32
    %44 = vector.broadcast %cst_29 : f32 to vector<8x384xf32>
    %45 = arith.addf %44, %43 : vector<8x384xf32>
    %46 = arith.divf %44, %45 : vector<8x384xf32>
    %47 = vector.extract_strided_slice %46 {offsets = [0, 0], sizes = [8, 128], strides = [1, 1]} : vector<8x384xf32> to vector<8x128xf32>
    %48 = vector.extract_strided_slice %46 {offsets = [0, 128], sizes = [8, 128], strides = [1, 1]} : vector<8x384xf32> to vector<8x128xf32>
    %49 = vector.extract_strided_slice %46 {offsets = [0, 256], sizes = [8, 128], strides = [1, 1]} : vector<8x384xf32> to vector<8x128xf32>
    %50 = vector.extract_strided_slice %40 {offsets = [0, 384], sizes = [8, 128], strides = [1, 1]} : vector<8x512xf32> to vector<8x128xf32>
    %51 = math.tanh %50 : vector<8x128xf32>
    %52 = arith.mulf %48, %32 : vector<8x128xf32>
    %53 = arith.mulf %47, %51 : vector<8x128xf32>
    %54 = arith.addf %52, %53 : vector<8x128xf32>
    %55 = math.tanh %54 : vector<8x128xf32>
    %56 = arith.mulf %49, %55 : vector<8x128xf32>
    %57 = arith.truncf %34 : vector<8x128xf32> to vector<8x128xbf16>
    %c1 = arith.constant 1 : index
    %c0_30 = arith.constant 0 : index
    %c0_31 = arith.constant 0 : index
    %58 = vector.load %arg4[%c1, %c0_30, %c0_31] : memref<2x128x512xbf16, #tpu.memory_space<vmem>>, vector<1x128x512xbf16>
    %59 = vector.shape_cast %58 : vector<1x128x512xbf16> to vector<128x512xbf16>
    %cst_32 = arith.constant dense<0.000000e+00> : vector<8x512xf32>
    %60 = tpu.matmul %57, %59, %cst_32 {dimension_numbers = #tpu.dot_dimension_numbers<[1], [0], [0], [1], [0, 0, 1, 1], [], []>} : vector<8x128xbf16>, vector<128x512xbf16>, vector<8x512xf32> -> vector<8x512xf32>
    %c1_33 = arith.constant 1 : index
    %c0_34 = arith.constant 0 : index
    %c0_35 = arith.constant 0 : index
    %61 = vector.load %arg6[%c1_33, %c0_34, %c0_35] : memref<2x1x512xf32, #tpu.memory_space<vmem>>, vector<1x1x512xf32>
    %62 = vector.shape_cast %61 : vector<1x1x512xf32> to vector<1x512xf32>
    %63 = vector.broadcast %62 : vector<1x512xf32> to vector<8x512xf32>
    %64 = arith.addf %60, %63 : vector<8x512xf32>
    %65 = arith.truncf %11 : vector<8x128xf32> to vector<8x128xbf16>
    %c1_36 = arith.constant 1 : index
    %c0_37 = arith.constant 0 : index
    %c0_38 = arith.constant 0 : index
    %66 = vector.load %arg5[%c1_36, %c0_37, %c0_38] : memref<2x128x512xbf16, #tpu.memory_space<vmem>>, vector<1x128x512xbf16>
    %67 = vector.shape_cast %66 : vector<1x128x512xbf16> to vector<128x512xbf16>
    %cst_39 = arith.constant dense<0.000000e+00> : vector<8x512xf32>
    %68 = tpu.matmul %65, %67, %cst_39 {dimension_numbers = #tpu.dot_dimension_numbers<[1], [0], [0], [1], [0, 0, 1, 1], [], []>} : vector<8x128xbf16>, vector<128x512xbf16>, vector<8x512xf32> -> vector<8x512xf32>
    %69 = arith.addf %64, %68 : vector<8x512xf32>
    %70 = vector.extract_strided_slice %69 {offsets = [0, 0], sizes = [8, 384], strides = [1, 1]} : vector<8x512xf32> to vector<8x384xf32>
    %71 = arith.negf %70 : vector<8x384xf32>
    %72 = math.exp %71 : vector<8x384xf32>
    %cst_40 = arith.constant 1.000000e+00 : f32
    %73 = vector.broadcast %cst_40 : f32 to vector<8x384xf32>
    %74 = arith.addf %73, %72 : vector<8x384xf32>
    %75 = arith.divf %73, %74 : vector<8x384xf32>
    %76 = vector.extract_strided_slice %75 {offsets = [0, 0], sizes = [8, 128], strides = [1, 1]} : vector<8x384xf32> to vector<8x128xf32>
    %77 = vector.extract_strided_slice %75 {offsets = [0, 128], sizes = [8, 128], strides = [1, 1]} : vector<8x384xf32> to vector<8x128xf32>
    %78 = vector.extract_strided_slice %75 {offsets = [0, 256], sizes = [8, 128], strides = [1, 1]} : vector<8x384xf32> to vector<8x128xf32>
    %79 = vector.extract_strided_slice %69 {offsets = [0, 384], sizes = [8, 128], strides = [1, 1]} : vector<8x512xf32> to vector<8x128xf32>
    %80 = math.tanh %79 : vector<8x128xf32>
    %81 = arith.mulf %77, %12 : vector<8x128xf32>
    %82 = arith.mulf %76, %80 : vector<8x128xf32>
    %83 = arith.addf %81, %82 : vector<8x128xf32>
    %84 = math.tanh %83 : vector<8x128xf32>
    %85 = arith.mulf %78, %84 : vector<8x128xf32>
    %c0_41 = arith.constant 0 : index
    %c0_42 = arith.constant 0 : index
    %86 = vector.load %arg13[%c0_41, %c0_42] : memref<64x128xf32, #tpu.memory_space<vmem>>, vector<8x128xf32>
    tpu.vector_store %arg13[%c0_41, %c0_42], %85 {strides = array<i32>} : memref<64x128xf32, #tpu.memory_space<vmem>>, vector<8x128xf32>,
    %c16 = arith.constant 16 : index
    %c0_43 = arith.constant 0 : index
    %87 = vector.load %arg12[%c16, %c0_43] : memref<64x512xf32, #tpu.memory_space<vmem>>, vector<8x512xf32>
    %88 = arith.truncf %56 : vector<8x128xf32> to vector<8x128xbf16>
    %c0_44 = arith.constant 0 : index
    %c0_45 = arith.constant 0 : index
    %c0_46 = arith.constant 0 : index
    %89 = vector.load %arg5[%c0_44, %c0_45, %c0_46] : memref<2x128x512xbf16, #tpu.memory_space<vmem>>, vector<1x128x512xbf16>
    %90 = vector.shape_cast %89 : vector<1x128x512xbf16> to vector<128x512xbf16>
    %cst_47 = arith.constant dense<0.000000e+00> : vector<8x512xf32>
    %91 = tpu.matmul %88, %90, %cst_47 {dimension_numbers = #tpu.dot_dimension_numbers<[1], [0], [0], [1], [0, 0, 1, 1], [], []>} : vector<8x128xbf16>, vector<128x512xbf16>, vector<8x512xf32> -> vector<8x512xf32>
    %92 = arith.addf %87, %91 : vector<8x512xf32>
    %93 = vector.extract_strided_slice %92 {offsets = [0, 0], sizes = [8, 384], strides = [1, 1]} : vector<8x512xf32> to vector<8x384xf32>
    %94 = arith.negf %93 : vector<8x384xf32>
    %95 = math.exp %94 : vector<8x384xf32>
    %cst_48 = arith.constant 1.000000e+00 : f32
    %96 = vector.broadcast %cst_48 : f32 to vector<8x384xf32>
    %97 = arith.addf %96, %95 : vector<8x384xf32>
    %98 = arith.divf %96, %97 : vector<8x384xf32>
    %99 = vector.extract_strided_slice %98 {offsets = [0, 0], sizes = [8, 128], strides = [1, 1]} : vector<8x384xf32> to vector<8x128xf32>
    %100 = vector.extract_strided_slice %98 {offsets = [0, 128], sizes = [8, 128], strides = [1, 1]} : vector<8x384xf32> to vector<8x128xf32>
    %101 = vector.extract_strided_slice %98 {offsets = [0, 256], sizes = [8, 128], strides = [1, 1]} : vector<8x384xf32> to vector<8x128xf32>
    %102 = vector.extract_strided_slice %92 {offsets = [0, 384], sizes = [8, 128], strides = [1, 1]} : vector<8x512xf32> to vector<8x128xf32>
    %103 = math.tanh %102 : vector<8x128xf32>
    %104 = arith.mulf %100, %54 : vector<8x128xf32>
    %105 = arith.mulf %99, %103 : vector<8x128xf32>
    %106 = arith.addf %104, %105 : vector<8x128xf32>
    %107 = math.tanh %106 : vector<8x128xf32>
    %108 = arith.mulf %101, %107 : vector<8x128xf32>
    %109 = arith.truncf %56 : vector<8x128xf32> to vector<8x128xbf16>
    %c1_49 = arith.constant 1 : index
    %c0_50 = arith.constant 0 : index
    %c0_51 = arith.constant 0 : index
    %110 = vector.load %arg4[%c1_49, %c0_50, %c0_51] : memref<2x128x512xbf16, #tpu.memory_space<vmem>>, vector<1x128x512xbf16>
    %111 = vector.shape_cast %110 : vector<1x128x512xbf16> to vector<128x512xbf16>
    %cst_52 = arith.constant dense<0.000000e+00> : vector<8x512xf32>
    %112 = tpu.matmul %109, %111, %cst_52 {dimension_numbers = #tpu.dot_dimension_numbers<[1], [0], [0], [1], [0, 0, 1, 1], [], []>} : vector<8x128xbf16>, vector<128x512xbf16>, vector<8x512xf32> -> vector<8x512xf32>
    %c1_53 = arith.constant 1 : index
    %c0_54 = arith.constant 0 : index
    %c0_55 = arith.constant 0 : index
    %113 = vector.load %arg6[%c1_53, %c0_54, %c0_55] : memref<2x1x512xf32, #tpu.memory_space<vmem>>, vector<1x1x512xf32>
    %114 = vector.shape_cast %113 : vector<1x1x512xf32> to vector<1x512xf32>
    %115 = vector.broadcast %114 : vector<1x512xf32> to vector<8x512xf32>
    %116 = arith.addf %112, %115 : vector<8x512xf32>
    %117 = arith.truncf %85 : vector<8x128xf32> to vector<8x128xbf16>
    %c1_56 = arith.constant 1 : index
    %c0_57 = arith.constant 0 : index
    %c0_58 = arith.constant 0 : index
    %118 = vector.load %arg5[%c1_56, %c0_57, %c0_58] : memref<2x128x512xbf16, #tpu.memory_space<vmem>>, vector<1x128x512xbf16>
    %119 = vector.shape_cast %118 : vector<1x128x512xbf16> to vector<128x512xbf16>
    %cst_59 = arith.constant dense<0.000000e+00> : vector<8x512xf32>
    %120 = tpu.matmul %117, %119, %cst_59 {dimension_numbers = #tpu.dot_dimension_numbers<[1], [0], [0], [1], [0, 0, 1, 1], [], []>} : vector<8x128xbf16>, vector<128x512xbf16>, vector<8x512xf32> -> vector<8x512xf32>
    %121 = arith.addf %116, %120 : vector<8x512xf32>
    %122 = vector.extract_strided_slice %121 {offsets = [0, 0], sizes = [8, 384], strides = [1, 1]} : vector<8x512xf32> to vector<8x384xf32>
    %123 = arith.negf %122 : vector<8x384xf32>
    %124 = math.exp %123 : vector<8x384xf32>
    %cst_60 = arith.constant 1.000000e+00 : f32
    %125 = vector.broadcast %cst_60 : f32 to vector<8x384xf32>
    %126 = arith.addf %125, %124 : vector<8x384xf32>
    %127 = arith.divf %125, %126 : vector<8x384xf32>
    %128 = vector.extract_strided_slice %127 {offsets = [0, 0], sizes = [8, 128], strides = [1, 1]} : vector<8x384xf32> to vector<8x128xf32>
    %129 = vector.extract_strided_slice %127 {offsets = [0, 128], sizes = [8, 128], strides = [1, 1]} : vector<8x384xf32> to vector<8x128xf32>
    %130 = vector.extract_strided_slice %127 {offsets = [0, 256], sizes = [8, 128], strides = [1, 1]} : vector<8x384xf32> to vector<8x128xf32>
    %131 = vector.extract_strided_slice %121 {offsets = [0, 384], sizes = [8, 128], strides = [1, 1]} : vector<8x512xf32> to vector<8x128xf32>
    %132 = math.tanh %131 : vector<8x128xf32>
    %133 = arith.mulf %129, %83 : vector<8x128xf32>
    %134 = arith.mulf %128, %132 : vector<8x128xf32>
    %135 = arith.addf %133, %134 : vector<8x128xf32>
    %136 = math.tanh %135 : vector<8x128xf32>
    %137 = arith.mulf %130, %136 : vector<8x128xf32>
    %c8_61 = arith.constant 8 : index
    %c0_62 = arith.constant 0 : index
    %138 = vector.load %arg13[%c8_61, %c0_62] : memref<64x128xf32, #tpu.memory_space<vmem>>, vector<8x128xf32>
    tpu.vector_store %arg13[%c8_61, %c0_62], %137 {strides = array<i32>} : memref<64x128xf32, #tpu.memory_space<vmem>>, vector<8x128xf32>,
    %c24 = arith.constant 24 : index
    %c0_63 = arith.constant 0 : index
    %139 = vector.load %arg12[%c24, %c0_63] : memref<64x512xf32, #tpu.memory_space<vmem>>, vector<8x512xf32>
    %140 = arith.truncf %108 : vector<8x128xf32> to vector<8x128xbf16>
    %c0_64 = arith.constant 0 : index
    %c0_65 = arith.constant 0 : index
    %c0_66 = arith.constant 0 : index
    %141 = vector.load %arg5[%c0_64, %c0_65, %c0_66] : memref<2x128x512xbf16, #tpu.memory_space<vmem>>, vector<1x128x512xbf16>
    %142 = vector.shape_cast %141 : vector<1x128x512xbf16> to vector<128x512xbf16>
    %cst_67 = arith.constant dense<0.000000e+00> : vector<8x512xf32>
    %143 = tpu.matmul %140, %142, %cst_67 {dimension_numbers = #tpu.dot_dimension_numbers<[1], [0], [0], [1], [0, 0, 1, 1], [], []>} : vector<8x128xbf16>, vector<128x512xbf16>, vector<8x512xf32> -> vector<8x512xf32>
    %144 = arith.addf %139, %143 : vector<8x512xf32>
    %145 = vector.extract_strided_slice %144 {offsets = [0, 0], sizes = [8, 384], strides = [1, 1]} : vector<8x512xf32> to vector<8x384xf32>
    %146 = arith.negf %145 : vector<8x384xf32>
    %147 = math.exp %146 : vector<8x384xf32>
    %cst_68 = arith.constant 1.000000e+00 : f32
    %148 = vector.broadcast %cst_68 : f32 to vector<8x384xf32>
    %149 = arith.addf %148, %147 : vector<8x384xf32>
    %150 = arith.divf %148, %149 : vector<8x384xf32>
    %151 = vector.extract_strided_slice %150 {offsets = [0, 0], sizes = [8, 128], strides = [1, 1]} : vector<8x384xf32> to vector<8x128xf32>
    %152 = vector.extract_strided_slice %150 {offsets = [0, 128], sizes = [8, 128], strides = [1, 1]} : vector<8x384xf32> to vector<8x128xf32>
    %153 = vector.extract_strided_slice %150 {offsets = [0, 256], sizes = [8, 128], strides = [1, 1]} : vector<8x384xf32> to vector<8x128xf32>
    %154 = vector.extract_strided_slice %144 {offsets = [0, 384], sizes = [8, 128], strides = [1, 1]} : vector<8x512xf32> to vector<8x128xf32>
    %155 = math.tanh %154 : vector<8x128xf32>
    %156 = arith.mulf %152, %106 : vector<8x128xf32>
    %157 = arith.mulf %151, %155 : vector<8x128xf32>
    %158 = arith.addf %156, %157 : vector<8x128xf32>
    %159 = math.tanh %158 : vector<8x128xf32>
    %160 = arith.mulf %153, %159 : vector<8x128xf32>
    %161 = arith.truncf %108 : vector<8x128xf32> to vector<8x128xbf16>
    %c1_69 = arith.constant 1 : index
    %c0_70 = arith.constant 0 : index
    %c0_71 = arith.constant 0 : index
    %162 = vector.load %arg4[%c1_69, %c0_70, %c0_71] : memref<2x128x512xbf16, #tpu.memory_space<vmem>>, vector<1x128x512xbf16>
    %163 = vector.shape_cast %162 : vector<1x128x512xbf16> to vector<128x512xbf16>
    %cst_72 = arith.constant dense<0.000000e+00> : vector<8x512xf32>
    %164 = tpu.matmul %161, %163, %cst_72 {dimension_numbers = #tpu.dot_dimension_numbers<[1], [0], [0], [1], [0, 0, 1, 1], [], []>} : vector<8x128xbf16>, vector<128x512xbf16>, vector<8x512xf32> -> vector<8x512xf32>
    %c1_73 = arith.constant 1 : index
    %c0_74 = arith.constant 0 : index
    %c0_75 = arith.constant 0 : index
    %165 = vector.load %arg6[%c1_73, %c0_74, %c0_75] : memref<2x1x512xf32, #tpu.memory_space<vmem>>, vector<1x1x512xf32>
    %166 = vector.shape_cast %165 : vector<1x1x512xf32> to vector<1x512xf32>
    %167 = vector.broadcast %166 : vector<1x512xf32> to vector<8x512xf32>
    %168 = arith.addf %164, %167 : vector<8x512xf32>
    %169 = arith.truncf %137 : vector<8x128xf32> to vector<8x128xbf16>
    %c1_76 = arith.constant 1 : index
    %c0_77 = arith.constant 0 : index
    %c0_78 = arith.constant 0 : index
    %170 = vector.load %arg5[%c1_76, %c0_77, %c0_78] : memref<2x128x512xbf16, #tpu.memory_space<vmem>>, vector<1x128x512xbf16>
    %171 = vector.shape_cast %170 : vector<1x128x512xbf16> to vector<128x512xbf16>
    %cst_79 = arith.constant dense<0.000000e+00> : vector<8x512xf32>
    %172 = tpu.matmul %169, %171, %cst_79 {dimension_numbers = #tpu.dot_dimension_numbers<[1], [0], [0], [1], [0, 0, 1, 1], [], []>} : vector<8x128xbf16>, vector<128x512xbf16>, vector<8x512xf32> -> vector<8x512xf32>
    %173 = arith.addf %168, %172 : vector<8x512xf32>
    %174 = vector.extract_strided_slice %173 {offsets = [0, 0], sizes = [8, 384], strides = [1, 1]} : vector<8x512xf32> to vector<8x384xf32>
    %175 = arith.negf %174 : vector<8x384xf32>
    %176 = math.exp %175 : vector<8x384xf32>
    %cst_80 = arith.constant 1.000000e+00 : f32
    %177 = vector.broadcast %cst_80 : f32 to vector<8x384xf32>
    %178 = arith.addf %177, %176 : vector<8x384xf32>
    %179 = arith.divf %177, %178 : vector<8x384xf32>
    %180 = vector.extract_strided_slice %179 {offsets = [0, 0], sizes = [8, 128], strides = [1, 1]} : vector<8x384xf32> to vector<8x128xf32>
    %181 = vector.extract_strided_slice %179 {offsets = [0, 128], sizes = [8, 128], strides = [1, 1]} : vector<8x384xf32> to vector<8x128xf32>
    %182 = vector.extract_strided_slice %179 {offsets = [0, 256], sizes = [8, 128], strides = [1, 1]} : vector<8x384xf32> to vector<8x128xf32>
    %183 = vector.extract_strided_slice %173 {offsets = [0, 384], sizes = [8, 128], strides = [1, 1]} : vector<8x512xf32> to vector<8x128xf32>
    %184 = math.tanh %183 : vector<8x128xf32>
    %185 = arith.mulf %181, %135 : vector<8x128xf32>
    %186 = arith.mulf %180, %184 : vector<8x128xf32>
    %187 = arith.addf %185, %186 : vector<8x128xf32>
    %188 = math.tanh %187 : vector<8x128xf32>
    %189 = arith.mulf %182, %188 : vector<8x128xf32>
    %c16_81 = arith.constant 16 : index
    %c0_82 = arith.constant 0 : index
    %190 = vector.load %arg13[%c16_81, %c0_82] : memref<64x128xf32, #tpu.memory_space<vmem>>, vector<8x128xf32>
    tpu.vector_store %arg13[%c16_81, %c0_82], %189 {strides = array<i32>} : memref<64x128xf32, #tpu.memory_space<vmem>>, vector<8x128xf32>,
    %c32 = arith.constant 32 : index
    %c0_83 = arith.constant 0 : index
    %191 = vector.load %arg12[%c32, %c0_83] : memref<64x512xf32, #tpu.memory_space<vmem>>, vector<8x512xf32>
    %192 = arith.truncf %160 : vector<8x128xf32> to vector<8x128xbf16>
    %c0_84 = arith.constant 0 : index
    %c0_85 = arith.constant 0 : index
    %c0_86 = arith.constant 0 : index
    %193 = vector.load %arg5[%c0_84, %c0_85, %c0_86] : memref<2x128x512xbf16, #tpu.memory_space<vmem>>, vector<1x128x512xbf16>
    %194 = vector.shape_cast %193 : vector<1x128x512xbf16> to vector<128x512xbf16>
    %cst_87 = arith.constant dense<0.000000e+00> : vector<8x512xf32>
    %195 = tpu.matmul %192, %194, %cst_87 {dimension_numbers = #tpu.dot_dimension_numbers<[1], [0], [0], [1], [0, 0, 1, 1], [], []>} : vector<8x128xbf16>, vector<128x512xbf16>, vector<8x512xf32> -> vector<8x512xf32>
    %196 = arith.addf %191, %195 : vector<8x512xf32>
    %197 = vector.extract_strided_slice %196 {offsets = [0, 0], sizes = [8, 384], strides = [1, 1]} : vector<8x512xf32> to vector<8x384xf32>
    %198 = arith.negf %197 : vector<8x384xf32>
    %199 = math.exp %198 : vector<8x384xf32>
    %cst_88 = arith.constant 1.000000e+00 : f32
    %200 = vector.broadcast %cst_88 : f32 to vector<8x384xf32>
    %201 = arith.addf %200, %199 : vector<8x384xf32>
    %202 = arith.divf %200, %201 : vector<8x384xf32>
    %203 = vector.extract_strided_slice %202 {offsets = [0, 0], sizes = [8, 128], strides = [1, 1]} : vector<8x384xf32> to vector<8x128xf32>
    %204 = vector.extract_strided_slice %202 {offsets = [0, 128], sizes = [8, 128], strides = [1, 1]} : vector<8x384xf32> to vector<8x128xf32>
    %205 = vector.extract_strided_slice %202 {offsets = [0, 256], sizes = [8, 128], strides = [1, 1]} : vector<8x384xf32> to vector<8x128xf32>
    %206 = vector.extract_strided_slice %196 {offsets = [0, 384], sizes = [8, 128], strides = [1, 1]} : vector<8x512xf32> to vector<8x128xf32>
    %207 = math.tanh %206 : vector<8x128xf32>
    %208 = arith.mulf %204, %158 : vector<8x128xf32>
    %209 = arith.mulf %203, %207 : vector<8x128xf32>
    %210 = arith.addf %208, %209 : vector<8x128xf32>
    %211 = math.tanh %210 : vector<8x128xf32>
    %212 = arith.mulf %205, %211 : vector<8x128xf32>
    %213 = arith.truncf %160 : vector<8x128xf32> to vector<8x128xbf16>
    %c1_89 = arith.constant 1 : index
    %c0_90 = arith.constant 0 : index
    %c0_91 = arith.constant 0 : index
    %214 = vector.load %arg4[%c1_89, %c0_90, %c0_91] : memref<2x128x512xbf16, #tpu.memory_space<vmem>>, vector<1x128x512xbf16>
    %215 = vector.shape_cast %214 : vector<1x128x512xbf16> to vector<128x512xbf16>
    %cst_92 = arith.constant dense<0.000000e+00> : vector<8x512xf32>
    %216 = tpu.matmul %213, %215, %cst_92 {dimension_numbers = #tpu.dot_dimension_numbers<[1], [0], [0], [1], [0, 0, 1, 1], [], []>} : vector<8x128xbf16>, vector<128x512xbf16>, vector<8x512xf32> -> vector<8x512xf32>
    %c1_93 = arith.constant 1 : index
    %c0_94 = arith.constant 0 : index
    %c0_95 = arith.constant 0 : index
    %217 = vector.load %arg6[%c1_93, %c0_94, %c0_95] : memref<2x1x512xf32, #tpu.memory_space<vmem>>, vector<1x1x512xf32>
    %218 = vector.shape_cast %217 : vector<1x1x512xf32> to vector<1x512xf32>
    %219 = vector.broadcast %218 : vector<1x512xf32> to vector<8x512xf32>
    %220 = arith.addf %216, %219 : vector<8x512xf32>
    %221 = arith.truncf %189 : vector<8x128xf32> to vector<8x128xbf16>
    %c1_96 = arith.constant 1 : index
    %c0_97 = arith.constant 0 : index
    %c0_98 = arith.constant 0 : index
    %222 = vector.load %arg5[%c1_96, %c0_97, %c0_98] : memref<2x128x512xbf16, #tpu.memory_space<vmem>>, vector<1x128x512xbf16>
    %223 = vector.shape_cast %222 : vector<1x128x512xbf16> to vector<128x512xbf16>
    %cst_99 = arith.constant dense<0.000000e+00> : vector<8x512xf32>
    %224 = tpu.matmul %221, %223, %cst_99 {dimension_numbers = #tpu.dot_dimension_numbers<[1], [0], [0], [1], [0, 0, 1, 1], [], []>} : vector<8x128xbf16>, vector<128x512xbf16>, vector<8x512xf32> -> vector<8x512xf32>
    %225 = arith.addf %220, %224 : vector<8x512xf32>
    %226 = vector.extract_strided_slice %225 {offsets = [0, 0], sizes = [8, 384], strides = [1, 1]} : vector<8x512xf32> to vector<8x384xf32>
    %227 = arith.negf %226 : vector<8x384xf32>
    %228 = math.exp %227 : vector<8x384xf32>
    %cst_100 = arith.constant 1.000000e+00 : f32
    %229 = vector.broadcast %cst_100 : f32 to vector<8x384xf32>
    %230 = arith.addf %229, %228 : vector<8x384xf32>
    %231 = arith.divf %229, %230 : vector<8x384xf32>
    %232 = vector.extract_strided_slice %231 {offsets = [0, 0], sizes = [8, 128], strides = [1, 1]} : vector<8x384xf32> to vector<8x128xf32>
    %233 = vector.extract_strided_slice %231 {offsets = [0, 128], sizes = [8, 128], strides = [1, 1]} : vector<8x384xf32> to vector<8x128xf32>
    %234 = vector.extract_strided_slice %231 {offsets = [0, 256], sizes = [8, 128], strides = [1, 1]} : vector<8x384xf32> to vector<8x128xf32>
    %235 = vector.extract_strided_slice %225 {offsets = [0, 384], sizes = [8, 128], strides = [1, 1]} : vector<8x512xf32> to vector<8x128xf32>
    %236 = math.tanh %235 : vector<8x128xf32>
    %237 = arith.mulf %233, %187 : vector<8x128xf32>
    %238 = arith.mulf %232, %236 : vector<8x128xf32>
    %239 = arith.addf %237, %238 : vector<8x128xf32>
    %240 = math.tanh %239 : vector<8x128xf32>
    %241 = arith.mulf %234, %240 : vector<8x128xf32>
    %c24_101 = arith.constant 24 : index
    %c0_102 = arith.constant 0 : index
    %242 = vector.load %arg13[%c24_101, %c0_102] : memref<64x128xf32, #tpu.memory_space<vmem>>, vector<8x128xf32>
    tpu.vector_store %arg13[%c24_101, %c0_102], %241 {strides = array<i32>} : memref<64x128xf32, #tpu.memory_space<vmem>>, vector<8x128xf32>,
    %c40 = arith.constant 40 : index
    %c0_103 = arith.constant 0 : index
    %243 = vector.load %arg12[%c40, %c0_103] : memref<64x512xf32, #tpu.memory_space<vmem>>, vector<8x512xf32>
    %244 = arith.truncf %212 : vector<8x128xf32> to vector<8x128xbf16>
    %c0_104 = arith.constant 0 : index
    %c0_105 = arith.constant 0 : index
    %c0_106 = arith.constant 0 : index
    %245 = vector.load %arg5[%c0_104, %c0_105, %c0_106] : memref<2x128x512xbf16, #tpu.memory_space<vmem>>, vector<1x128x512xbf16>
    %246 = vector.shape_cast %245 : vector<1x128x512xbf16> to vector<128x512xbf16>
    %cst_107 = arith.constant dense<0.000000e+00> : vector<8x512xf32>
    %247 = tpu.matmul %244, %246, %cst_107 {dimension_numbers = #tpu.dot_dimension_numbers<[1], [0], [0], [1], [0, 0, 1, 1], [], []>} : vector<8x128xbf16>, vector<128x512xbf16>, vector<8x512xf32> -> vector<8x512xf32>
    %248 = arith.addf %243, %247 : vector<8x512xf32>
    %249 = vector.extract_strided_slice %248 {offsets = [0, 0], sizes = [8, 384], strides = [1, 1]} : vector<8x512xf32> to vector<8x384xf32>
    %250 = arith.negf %249 : vector<8x384xf32>
    %251 = math.exp %250 : vector<8x384xf32>
    %cst_108 = arith.constant 1.000000e+00 : f32
    %252 = vector.broadcast %cst_108 : f32 to vector<8x384xf32>
    %253 = arith.addf %252, %251 : vector<8x384xf32>
    %254 = arith.divf %252, %253 : vector<8x384xf32>
    %255 = vector.extract_strided_slice %254 {offsets = [0, 0], sizes = [8, 128], strides = [1, 1]} : vector<8x384xf32> to vector<8x128xf32>
    %256 = vector.extract_strided_slice %254 {offsets = [0, 128], sizes = [8, 128], strides = [1, 1]} : vector<8x384xf32> to vector<8x128xf32>
    %257 = vector.extract_strided_slice %254 {offsets = [0, 256], sizes = [8, 128], strides = [1, 1]} : vector<8x384xf32> to vector<8x128xf32>
    %258 = vector.extract_strided_slice %248 {offsets = [0, 384], sizes = [8, 128], strides = [1, 1]} : vector<8x512xf32> to vector<8x128xf32>
    %259 = math.tanh %258 : vector<8x128xf32>
    %260 = arith.mulf %256, %210 : vector<8x128xf32>
    %261 = arith.mulf %255, %259 : vector<8x128xf32>
    %262 = arith.addf %260, %261 : vector<8x128xf32>
    %263 = math.tanh %262 : vector<8x128xf32>
    %264 = arith.mulf %257, %263 : vector<8x128xf32>
    %265 = arith.truncf %212 : vector<8x128xf32> to vector<8x128xbf16>
    %c1_109 = arith.constant 1 : index
    %c0_110 = arith.constant 0 : index
    %c0_111 = arith.constant 0 : index
    %266 = vector.load %arg4[%c1_109, %c0_110, %c0_111] : memref<2x128x512xbf16, #tpu.memory_space<vmem>>, vector<1x128x512xbf16>
    %267 = vector.shape_cast %266 : vector<1x128x512xbf16> to vector<128x512xbf16>
    %cst_112 = arith.constant dense<0.000000e+00> : vector<8x512xf32>
    %268 = tpu.matmul %265, %267, %cst_112 {dimension_numbers = #tpu.dot_dimension_numbers<[1], [0], [0], [1], [0, 0, 1, 1], [], []>} : vector<8x128xbf16>, vector<128x512xbf16>, vector<8x512xf32> -> vector<8x512xf32>
    %c1_113 = arith.constant 1 : index
    %c0_114 = arith.constant 0 : index
    %c0_115 = arith.constant 0 : index
    %269 = vector.load %arg6[%c1_113, %c0_114, %c0_115] : memref<2x1x512xf32, #tpu.memory_space<vmem>>, vector<1x1x512xf32>
    %270 = vector.shape_cast %269 : vector<1x1x512xf32> to vector<1x512xf32>
    %271 = vector.broadcast %270 : vector<1x512xf32> to vector<8x512xf32>
    %272 = arith.addf %268, %271 : vector<8x512xf32>
    %273 = arith.truncf %241 : vector<8x128xf32> to vector<8x128xbf16>
    %c1_116 = arith.constant 1 : index
    %c0_117 = arith.constant 0 : index
    %c0_118 = arith.constant 0 : index
    %274 = vector.load %arg5[%c1_116, %c0_117, %c0_118] : memref<2x128x512xbf16, #tpu.memory_space<vmem>>, vector<1x128x512xbf16>
    %275 = vector.shape_cast %274 : vector<1x128x512xbf16> to vector<128x512xbf16>
    %cst_119 = arith.constant dense<0.000000e+00> : vector<8x512xf32>
    %276 = tpu.matmul %273, %275, %cst_119 {dimension_numbers = #tpu.dot_dimension_numbers<[1], [0], [0], [1], [0, 0, 1, 1], [], []>} : vector<8x128xbf16>, vector<128x512xbf16>, vector<8x512xf32> -> vector<8x512xf32>
    %277 = arith.addf %272, %276 : vector<8x512xf32>
    %278 = vector.extract_strided_slice %277 {offsets = [0, 0], sizes = [8, 384], strides = [1, 1]} : vector<8x512xf32> to vector<8x384xf32>
    %279 = arith.negf %278 : vector<8x384xf32>
    %280 = math.exp %279 : vector<8x384xf32>
    %cst_120 = arith.constant 1.000000e+00 : f32
    %281 = vector.broadcast %cst_120 : f32 to vector<8x384xf32>
    %282 = arith.addf %281, %280 : vector<8x384xf32>
    %283 = arith.divf %281, %282 : vector<8x384xf32>
    %284 = vector.extract_strided_slice %283 {offsets = [0, 0], sizes = [8, 128], strides = [1, 1]} : vector<8x384xf32> to vector<8x128xf32>
    %285 = vector.extract_strided_slice %283 {offsets = [0, 128], sizes = [8, 128], strides = [1, 1]} : vector<8x384xf32> to vector<8x128xf32>
    %286 = vector.extract_strided_slice %283 {offsets = [0, 256], sizes = [8, 128], strides = [1, 1]} : vector<8x384xf32> to vector<8x128xf32>
    %287 = vector.extract_strided_slice %277 {offsets = [0, 384], sizes = [8, 128], strides = [1, 1]} : vector<8x512xf32> to vector<8x128xf32>
    %288 = math.tanh %287 : vector<8x128xf32>
    %289 = arith.mulf %285, %239 : vector<8x128xf32>
    %290 = arith.mulf %284, %288 : vector<8x128xf32>
    %291 = arith.addf %289, %290 : vector<8x128xf32>
    %292 = math.tanh %291 : vector<8x128xf32>
    %293 = arith.mulf %286, %292 : vector<8x128xf32>
    %c32_121 = arith.constant 32 : index
    %c0_122 = arith.constant 0 : index
    %294 = vector.load %arg13[%c32_121, %c0_122] : memref<64x128xf32, #tpu.memory_space<vmem>>, vector<8x128xf32>
    tpu.vector_store %arg13[%c32_121, %c0_122], %293 {strides = array<i32>} : memref<64x128xf32, #tpu.memory_space<vmem>>, vector<8x128xf32>,
    %c48 = arith.constant 48 : index
    %c0_123 = arith.constant 0 : index
    %295 = vector.load %arg12[%c48, %c0_123] : memref<64x512xf32, #tpu.memory_space<vmem>>, vector<8x512xf32>
    %296 = arith.truncf %264 : vector<8x128xf32> to vector<8x128xbf16>
    %c0_124 = arith.constant 0 : index
    %c0_125 = arith.constant 0 : index
    %c0_126 = arith.constant 0 : index
    %297 = vector.load %arg5[%c0_124, %c0_125, %c0_126] : memref<2x128x512xbf16, #tpu.memory_space<vmem>>, vector<1x128x512xbf16>
    %298 = vector.shape_cast %297 : vector<1x128x512xbf16> to vector<128x512xbf16>
    %cst_127 = arith.constant dense<0.000000e+00> : vector<8x512xf32>
    %299 = tpu.matmul %296, %298, %cst_127 {dimension_numbers = #tpu.dot_dimension_numbers<[1], [0], [0], [1], [0, 0, 1, 1], [], []>} : vector<8x128xbf16>, vector<128x512xbf16>, vector<8x512xf32> -> vector<8x512xf32>
    %300 = arith.addf %295, %299 : vector<8x512xf32>
    %301 = vector.extract_strided_slice %300 {offsets = [0, 0], sizes = [8, 384], strides = [1, 1]} : vector<8x512xf32> to vector<8x384xf32>
    %302 = arith.negf %301 : vector<8x384xf32>
    %303 = math.exp %302 : vector<8x384xf32>
    %cst_128 = arith.constant 1.000000e+00 : f32
    %304 = vector.broadcast %cst_128 : f32 to vector<8x384xf32>
    %305 = arith.addf %304, %303 : vector<8x384xf32>
    %306 = arith.divf %304, %305 : vector<8x384xf32>
    %307 = vector.extract_strided_slice %306 {offsets = [0, 0], sizes = [8, 128], strides = [1, 1]} : vector<8x384xf32> to vector<8x128xf32>
    %308 = vector.extract_strided_slice %306 {offsets = [0, 128], sizes = [8, 128], strides = [1, 1]} : vector<8x384xf32> to vector<8x128xf32>
    %309 = vector.extract_strided_slice %306 {offsets = [0, 256], sizes = [8, 128], strides = [1, 1]} : vector<8x384xf32> to vector<8x128xf32>
    %310 = vector.extract_strided_slice %300 {offsets = [0, 384], sizes = [8, 128], strides = [1, 1]} : vector<8x512xf32> to vector<8x128xf32>
    %311 = math.tanh %310 : vector<8x128xf32>
    %312 = arith.mulf %308, %262 : vector<8x128xf32>
    %313 = arith.mulf %307, %311 : vector<8x128xf32>
    %314 = arith.addf %312, %313 : vector<8x128xf32>
    %315 = math.tanh %314 : vector<8x128xf32>
    %316 = arith.mulf %309, %315 : vector<8x128xf32>
    %317 = arith.truncf %264 : vector<8x128xf32> to vector<8x128xbf16>
    %c1_129 = arith.constant 1 : index
    %c0_130 = arith.constant 0 : index
    %c0_131 = arith.constant 0 : index
    %318 = vector.load %arg4[%c1_129, %c0_130, %c0_131] : memref<2x128x512xbf16, #tpu.memory_space<vmem>>, vector<1x128x512xbf16>
    %319 = vector.shape_cast %318 : vector<1x128x512xbf16> to vector<128x512xbf16>
    %cst_132 = arith.constant dense<0.000000e+00> : vector<8x512xf32>
    %320 = tpu.matmul %317, %319, %cst_132 {dimension_numbers = #tpu.dot_dimension_numbers<[1], [0], [0], [1], [0, 0, 1, 1], [], []>} : vector<8x128xbf16>, vector<128x512xbf16>, vector<8x512xf32> -> vector<8x512xf32>
    %c1_133 = arith.constant 1 : index
    %c0_134 = arith.constant 0 : index
    %c0_135 = arith.constant 0 : index
    %321 = vector.load %arg6[%c1_133, %c0_134, %c0_135] : memref<2x1x512xf32, #tpu.memory_space<vmem>>, vector<1x1x512xf32>
    %322 = vector.shape_cast %321 : vector<1x1x512xf32> to vector<1x512xf32>
    %323 = vector.broadcast %322 : vector<1x512xf32> to vector<8x512xf32>
    %324 = arith.addf %320, %323 : vector<8x512xf32>
    %325 = arith.truncf %293 : vector<8x128xf32> to vector<8x128xbf16>
    %c1_136 = arith.constant 1 : index
    %c0_137 = arith.constant 0 : index
    %c0_138 = arith.constant 0 : index
    %326 = vector.load %arg5[%c1_136, %c0_137, %c0_138] : memref<2x128x512xbf16, #tpu.memory_space<vmem>>, vector<1x128x512xbf16>
    %327 = vector.shape_cast %326 : vector<1x128x512xbf16> to vector<128x512xbf16>
    %cst_139 = arith.constant dense<0.000000e+00> : vector<8x512xf32>
    %328 = tpu.matmul %325, %327, %cst_139 {dimension_numbers = #tpu.dot_dimension_numbers<[1], [0], [0], [1], [0, 0, 1, 1], [], []>} : vector<8x128xbf16>, vector<128x512xbf16>, vector<8x512xf32> -> vector<8x512xf32>
    %329 = arith.addf %324, %328 : vector<8x512xf32>
    %330 = vector.extract_strided_slice %329 {offsets = [0, 0], sizes = [8, 384], strides = [1, 1]} : vector<8x512xf32> to vector<8x384xf32>
    %331 = arith.negf %330 : vector<8x384xf32>
    %332 = math.exp %331 : vector<8x384xf32>
    %cst_140 = arith.constant 1.000000e+00 : f32
    %333 = vector.broadcast %cst_140 : f32 to vector<8x384xf32>
    %334 = arith.addf %333, %332 : vector<8x384xf32>
    %335 = arith.divf %333, %334 : vector<8x384xf32>
    %336 = vector.extract_strided_slice %335 {offsets = [0, 0], sizes = [8, 128], strides = [1, 1]} : vector<8x384xf32> to vector<8x128xf32>
    %337 = vector.extract_strided_slice %335 {offsets = [0, 128], sizes = [8, 128], strides = [1, 1]} : vector<8x384xf32> to vector<8x128xf32>
    %338 = vector.extract_strided_slice %335 {offsets = [0, 256], sizes = [8, 128], strides = [1, 1]} : vector<8x384xf32> to vector<8x128xf32>
    %339 = vector.extract_strided_slice %329 {offsets = [0, 384], sizes = [8, 128], strides = [1, 1]} : vector<8x512xf32> to vector<8x128xf32>
    %340 = math.tanh %339 : vector<8x128xf32>
    %341 = arith.mulf %337, %291 : vector<8x128xf32>
    %342 = arith.mulf %336, %340 : vector<8x128xf32>
    %343 = arith.addf %341, %342 : vector<8x128xf32>
    %344 = math.tanh %343 : vector<8x128xf32>
    %345 = arith.mulf %338, %344 : vector<8x128xf32>
    %c40_141 = arith.constant 40 : index
    %c0_142 = arith.constant 0 : index
    %346 = vector.load %arg13[%c40_141, %c0_142] : memref<64x128xf32, #tpu.memory_space<vmem>>, vector<8x128xf32>
    tpu.vector_store %arg13[%c40_141, %c0_142], %345 {strides = array<i32>} : memref<64x128xf32, #tpu.memory_space<vmem>>, vector<8x128xf32>,
    %c56 = arith.constant 56 : index
    %c0_143 = arith.constant 0 : index
    %347 = vector.load %arg12[%c56, %c0_143] : memref<64x512xf32, #tpu.memory_space<vmem>>, vector<8x512xf32>
    %348 = arith.truncf %316 : vector<8x128xf32> to vector<8x128xbf16>
    %c0_144 = arith.constant 0 : index
    %c0_145 = arith.constant 0 : index
    %c0_146 = arith.constant 0 : index
    %349 = vector.load %arg5[%c0_144, %c0_145, %c0_146] : memref<2x128x512xbf16, #tpu.memory_space<vmem>>, vector<1x128x512xbf16>
    %350 = vector.shape_cast %349 : vector<1x128x512xbf16> to vector<128x512xbf16>
    %cst_147 = arith.constant dense<0.000000e+00> : vector<8x512xf32>
    %351 = tpu.matmul %348, %350, %cst_147 {dimension_numbers = #tpu.dot_dimension_numbers<[1], [0], [0], [1], [0, 0, 1, 1], [], []>} : vector<8x128xbf16>, vector<128x512xbf16>, vector<8x512xf32> -> vector<8x512xf32>
    %352 = arith.addf %347, %351 : vector<8x512xf32>
    %353 = vector.extract_strided_slice %352 {offsets = [0, 0], sizes = [8, 384], strides = [1, 1]} : vector<8x512xf32> to vector<8x384xf32>
    %354 = arith.negf %353 : vector<8x384xf32>
    %355 = math.exp %354 : vector<8x384xf32>
    %cst_148 = arith.constant 1.000000e+00 : f32
    %356 = vector.broadcast %cst_148 : f32 to vector<8x384xf32>
    %357 = arith.addf %356, %355 : vector<8x384xf32>
    %358 = arith.divf %356, %357 : vector<8x384xf32>
    %359 = vector.extract_strided_slice %358 {offsets = [0, 0], sizes = [8, 128], strides = [1, 1]} : vector<8x384xf32> to vector<8x128xf32>
    %360 = vector.extract_strided_slice %358 {offsets = [0, 128], sizes = [8, 128], strides = [1, 1]} : vector<8x384xf32> to vector<8x128xf32>
    %361 = vector.extract_strided_slice %358 {offsets = [0, 256], sizes = [8, 128], strides = [1, 1]} : vector<8x384xf32> to vector<8x128xf32>
    %362 = vector.extract_strided_slice %352 {offsets = [0, 384], sizes = [8, 128], strides = [1, 1]} : vector<8x512xf32> to vector<8x128xf32>
    %363 = math.tanh %362 : vector<8x128xf32>
    %364 = arith.mulf %360, %314 : vector<8x128xf32>
    %365 = arith.mulf %359, %363 : vector<8x128xf32>
    %366 = arith.addf %364, %365 : vector<8x128xf32>
    %367 = math.tanh %366 : vector<8x128xf32>
    %368 = arith.mulf %361, %367 : vector<8x128xf32>
    %369 = arith.truncf %316 : vector<8x128xf32> to vector<8x128xbf16>
    %c1_149 = arith.constant 1 : index
    %c0_150 = arith.constant 0 : index
    %c0_151 = arith.constant 0 : index
    %370 = vector.load %arg4[%c1_149, %c0_150, %c0_151] : memref<2x128x512xbf16, #tpu.memory_space<vmem>>, vector<1x128x512xbf16>
    %371 = vector.shape_cast %370 : vector<1x128x512xbf16> to vector<128x512xbf16>
    %cst_152 = arith.constant dense<0.000000e+00> : vector<8x512xf32>
    %372 = tpu.matmul %369, %371, %cst_152 {dimension_numbers = #tpu.dot_dimension_numbers<[1], [0], [0], [1], [0, 0, 1, 1], [], []>} : vector<8x128xbf16>, vector<128x512xbf16>, vector<8x512xf32> -> vector<8x512xf32>
    %c1_153 = arith.constant 1 : index
    %c0_154 = arith.constant 0 : index
    %c0_155 = arith.constant 0 : index
    %373 = vector.load %arg6[%c1_153, %c0_154, %c0_155] : memref<2x1x512xf32, #tpu.memory_space<vmem>>, vector<1x1x512xf32>
    %374 = vector.shape_cast %373 : vector<1x1x512xf32> to vector<1x512xf32>
    %375 = vector.broadcast %374 : vector<1x512xf32> to vector<8x512xf32>
    %376 = arith.addf %372, %375 : vector<8x512xf32>
    %377 = arith.truncf %345 : vector<8x128xf32> to vector<8x128xbf16>
    %c1_156 = arith.constant 1 : index
    %c0_157 = arith.constant 0 : index
    %c0_158 = arith.constant 0 : index
    %378 = vector.load %arg5[%c1_156, %c0_157, %c0_158] : memref<2x128x512xbf16, #tpu.memory_space<vmem>>, vector<1x128x512xbf16>
    %379 = vector.shape_cast %378 : vector<1x128x512xbf16> to vector<128x512xbf16>
    %cst_159 = arith.constant dense<0.000000e+00> : vector<8x512xf32>
    %380 = tpu.matmul %377, %379, %cst_159 {dimension_numbers = #tpu.dot_dimension_numbers<[1], [0], [0], [1], [0, 0, 1, 1], [], []>} : vector<8x128xbf16>, vector<128x512xbf16>, vector<8x512xf32> -> vector<8x512xf32>
    %381 = arith.addf %376, %380 : vector<8x512xf32>
    %382 = vector.extract_strided_slice %381 {offsets = [0, 0], sizes = [8, 384], strides = [1, 1]} : vector<8x512xf32> to vector<8x384xf32>
    %383 = arith.negf %382 : vector<8x384xf32>
    %384 = math.exp %383 : vector<8x384xf32>
    %cst_160 = arith.constant 1.000000e+00 : f32
    %385 = vector.broadcast %cst_160 : f32 to vector<8x384xf32>
    %386 = arith.addf %385, %384 : vector<8x384xf32>
    %387 = arith.divf %385, %386 : vector<8x384xf32>
    %388 = vector.extract_strided_slice %387 {offsets = [0, 0], sizes = [8, 128], strides = [1, 1]} : vector<8x384xf32> to vector<8x128xf32>
    %389 = vector.extract_strided_slice %387 {offsets = [0, 128], sizes = [8, 128], strides = [1, 1]} : vector<8x384xf32> to vector<8x128xf32>
    %390 = vector.extract_strided_slice %387 {offsets = [0, 256], sizes = [8, 128], strides = [1, 1]} : vector<8x384xf32> to vector<8x128xf32>
    %391 = vector.extract_strided_slice %381 {offsets = [0, 384], sizes = [8, 128], strides = [1, 1]} : vector<8x512xf32> to vector<8x128xf32>
    %392 = math.tanh %391 : vector<8x128xf32>
    %393 = arith.mulf %389, %343 : vector<8x128xf32>
    %394 = arith.mulf %388, %392 : vector<8x128xf32>
    %395 = arith.addf %393, %394 : vector<8x128xf32>
    %396 = math.tanh %395 : vector<8x128xf32>
    %397 = arith.mulf %390, %396 : vector<8x128xf32>
    %c48_161 = arith.constant 48 : index
    %c0_162 = arith.constant 0 : index
    %398 = vector.load %arg13[%c48_161, %c0_162] : memref<64x128xf32, #tpu.memory_space<vmem>>, vector<8x128xf32>
    tpu.vector_store %arg13[%c48_161, %c0_162], %397 {strides = array<i32>} : memref<64x128xf32, #tpu.memory_space<vmem>>, vector<8x128xf32>,
    %399 = arith.truncf %368 : vector<8x128xf32> to vector<8x128xbf16>
    %c1_163 = arith.constant 1 : index
    %c0_164 = arith.constant 0 : index
    %c0_165 = arith.constant 0 : index
    %400 = vector.load %arg4[%c1_163, %c0_164, %c0_165] : memref<2x128x512xbf16, #tpu.memory_space<vmem>>, vector<1x128x512xbf16>
    %401 = vector.shape_cast %400 : vector<1x128x512xbf16> to vector<128x512xbf16>
    %cst_166 = arith.constant dense<0.000000e+00> : vector<8x512xf32>
    %402 = tpu.matmul %399, %401, %cst_166 {dimension_numbers = #tpu.dot_dimension_numbers<[1], [0], [0], [1], [0, 0, 1, 1], [], []>} : vector<8x128xbf16>, vector<128x512xbf16>, vector<8x512xf32> -> vector<8x512xf32>
    %c1_167 = arith.constant 1 : index
    %c0_168 = arith.constant 0 : index
    %c0_169 = arith.constant 0 : index
    %403 = vector.load %arg6[%c1_167, %c0_168, %c0_169] : memref<2x1x512xf32, #tpu.memory_space<vmem>>, vector<1x1x512xf32>
    %404 = vector.shape_cast %403 : vector<1x1x512xf32> to vector<1x512xf32>
    %405 = vector.broadcast %404 : vector<1x512xf32> to vector<8x512xf32>
    %406 = arith.addf %402, %405 : vector<8x512xf32>
    %407 = arith.truncf %397 : vector<8x128xf32> to vector<8x128xbf16>
    %c1_170 = arith.constant 1 : index
    %c0_171 = arith.constant 0 : index
    %c0_172 = arith.constant 0 : index
    %408 = vector.load %arg5[%c1_170, %c0_171, %c0_172] : memref<2x128x512xbf16, #tpu.memory_space<vmem>>, vector<1x128x512xbf16>
    %409 = vector.shape_cast %408 : vector<1x128x512xbf16> to vector<128x512xbf16>
    %cst_173 = arith.constant dense<0.000000e+00> : vector<8x512xf32>
    %410 = tpu.matmul %407, %409, %cst_173 {dimension_numbers = #tpu.dot_dimension_numbers<[1], [0], [0], [1], [0, 0, 1, 1], [], []>} : vector<8x128xbf16>, vector<128x512xbf16>, vector<8x512xf32> -> vector<8x512xf32>
    %411 = arith.addf %406, %410 : vector<8x512xf32>
    %412 = vector.extract_strided_slice %411 {offsets = [0, 0], sizes = [8, 384], strides = [1, 1]} : vector<8x512xf32> to vector<8x384xf32>
    %413 = arith.negf %412 : vector<8x384xf32>
    %414 = math.exp %413 : vector<8x384xf32>
    %cst_174 = arith.constant 1.000000e+00 : f32
    %415 = vector.broadcast %cst_174 : f32 to vector<8x384xf32>
    %416 = arith.addf %415, %414 : vector<8x384xf32>
    %417 = arith.divf %415, %416 : vector<8x384xf32>
    %418 = vector.extract_strided_slice %417 {offsets = [0, 0], sizes = [8, 128], strides = [1, 1]} : vector<8x384xf32> to vector<8x128xf32>
    %419 = vector.extract_strided_slice %417 {offsets = [0, 128], sizes = [8, 128], strides = [1, 1]} : vector<8x384xf32> to vector<8x128xf32>
    %420 = vector.extract_strided_slice %417 {offsets = [0, 256], sizes = [8, 128], strides = [1, 1]} : vector<8x384xf32> to vector<8x128xf32>
    %421 = vector.extract_strided_slice %411 {offsets = [0, 384], sizes = [8, 128], strides = [1, 1]} : vector<8x512xf32> to vector<8x128xf32>
    %422 = math.tanh %421 : vector<8x128xf32>
    %423 = arith.mulf %419, %395 : vector<8x128xf32>
    %424 = arith.mulf %418, %422 : vector<8x128xf32>
    %425 = arith.addf %423, %424 : vector<8x128xf32>
    %426 = math.tanh %425 : vector<8x128xf32>
    %427 = arith.mulf %420, %426 : vector<8x128xf32>
    %c56_175 = arith.constant 56 : index
    %c0_176 = arith.constant 0 : index
    %428 = vector.load %arg13[%c56_175, %c0_176] : memref<64x128xf32, #tpu.memory_space<vmem>>, vector<8x128xf32>
    tpu.vector_store %arg13[%c56_175, %c0_176], %427 {strides = array<i32>} : memref<64x128xf32, #tpu.memory_space<vmem>>, vector<8x128xf32>,
    %c0_177 = arith.constant 0 : index
    %c0_178 = arith.constant 0 : index
    %429 = vector.load %arg10[%c0_177, %c0_178] : memref<16x128xf32, #tpu.memory_space<vmem>>, vector<8x128xf32>
    tpu.vector_store %arg10[%c0_177, %c0_178], %368 {strides = array<i32>} : memref<16x128xf32, #tpu.memory_space<vmem>>, vector<8x128xf32>,
    %c8_179 = arith.constant 8 : index
    %c0_180 = arith.constant 0 : index
    %430 = vector.load %arg10[%c8_179, %c0_180] : memref<16x128xf32, #tpu.memory_space<vmem>>, vector<8x128xf32>
    tpu.vector_store %arg10[%c8_179, %c0_180], %427 {strides = array<i32>} : memref<16x128xf32, #tpu.memory_space<vmem>>, vector<8x128xf32>,
    %c0_181 = arith.constant 0 : index
    %c0_182 = arith.constant 0 : index
    %431 = vector.load %arg11[%c0_181, %c0_182] : memref<16x128xf32, #tpu.memory_space<vmem>>, vector<8x128xf32>
    tpu.vector_store %arg11[%c0_181, %c0_182], %366 {strides = array<i32>} : memref<16x128xf32, #tpu.memory_space<vmem>>, vector<8x128xf32>,
    %c8_183 = arith.constant 8 : index
    %c0_184 = arith.constant 0 : index
    %432 = vector.load %arg11[%c8_183, %c0_184] : memref<16x128xf32, #tpu.memory_space<vmem>>, vector<8x128xf32>
    tpu.vector_store %arg11[%c8_183, %c0_184], %425 {strides = array<i32>} : memref<16x128xf32, #tpu.memory_space<vmem>>, vector<8x128xf32>,
    %c0_185 = arith.constant 0 : index
    %c0_186 = arith.constant 0 : index
    %433 = vector.load %arg13[%c0_185, %c0_186] : memref<64x128xf32, #tpu.memory_space<vmem>>, vector<64x128xf32>
    %434 = arith.truncf %433 : vector<64x128xf32> to vector<64x128xbf16>
    %c0_187 = arith.constant 0 : index
    %c0_188 = arith.constant 0 : index
    %435 = vector.load %arg7[%c0_187, %c0_188] : memref<128x256xbf16, #tpu.memory_space<vmem>>, vector<128x256xbf16>
    %cst_189 = arith.constant dense<0.000000e+00> : vector<64x256xf32>
    %436 = tpu.matmul %434, %435, %cst_189 {dimension_numbers = #tpu.dot_dimension_numbers<[1], [0], [0], [1], [0, 0, 1, 1], [], []>} : vector<64x128xbf16>, vector<128x256xbf16>, vector<64x256xf32> -> vector<64x256xf32>
    %c0_190 = arith.constant 0 : index
    %c0_191 = arith.constant 0 : index
    %437 = vector.load %arg8[%c0_190, %c0_191] : memref<1x256xf32, #tpu.memory_space<vmem>>, vector<1x256xf32>
    %438 = vector.broadcast %437 : vector<1x256xf32> to vector<64x256xf32>
    %439 = arith.addf %436, %438 : vector<64x256xf32>
    %c0_192 = arith.constant 0 : index
    %c0_193 = arith.constant 0 : index
    %440 = vector.load %arg9[%c0_192, %c0_193] : memref<64x256xf32, #tpu.memory_space<vmem>>, vector<64x256xf32>
    tpu.vector_store %arg9[%c0_192, %c0_193], %439 {strides = array<i32>} : memref<64x256xf32, #tpu.memory_space<vmem>>, vector<64x256xf32>,
    return
  }
  func.func @transform_0(%arg0: i32) -> (i32, i32) {
    %c0_i32 = arith.constant 0 : i32
    %c0_i32_0 = arith.constant 0 : i32
    %c0_i32_1 = arith.constant 0 : i32
    return %c0_i32, %c0_i32_0 : i32, i32
  }
  func.func @transform_1(%arg0: i32) -> (i32, i32) {
    %c0_i32 = arith.constant 0 : i32
    %c0_i32_0 = arith.constant 0 : i32
    %c0_i32_1 = arith.constant 0 : i32
    return %c0_i32, %c0_i32_0 : i32, i32
  }
  func.func @transform_2(%arg0: i32) -> (i32, i32) {
    %c0_i32 = arith.constant 0 : i32
    %c0_i32_0 = arith.constant 0 : i32
    %c0_i32_1 = arith.constant 0 : i32
    return %c0_i32, %c0_i32_0 : i32, i32
  }
  func.func @transform_3(%arg0: i32) -> (i32, i32, i32) {
    %c0_i32 = arith.constant 0 : i32
    %c0_i32_0 = arith.constant 0 : i32
    %c0_i32_1 = arith.constant 0 : i32
    %c0_i32_2 = arith.constant 0 : i32
    return %c0_i32, %c0_i32_0, %c0_i32_1 : i32, i32, i32
  }
  func.func @transform_4(%arg0: i32) -> (i32, i32, i32) {
    %c0_i32 = arith.constant 0 : i32
    %c0_i32_0 = arith.constant 0 : i32
    %c0_i32_1 = arith.constant 0 : i32
    %c0_i32_2 = arith.constant 0 : i32
    return %c0_i32, %c0_i32_0, %c0_i32_1 : i32, i32, i32
  }
  func.func @transform_5(%arg0: i32) -> (i32, i32, i32) {
    %c0_i32 = arith.constant 0 : i32
    %c0_i32_0 = arith.constant 0 : i32
    %c0_i32_1 = arith.constant 0 : i32
    %c0_i32_2 = arith.constant 0 : i32
    return %c0_i32, %c0_i32_0, %c0_i32_1 : i32, i32, i32
  }
  func.func @transform_6(%arg0: i32) -> (i32, i32) {
    %c0_i32 = arith.constant 0 : i32
    %c0_i32_0 = arith.constant 0 : i32
    %c0_i32_1 = arith.constant 0 : i32
    return %c0_i32, %c0_i32_0 : i32, i32
  }
  func.func @transform_7(%arg0: i32) -> (i32, i32) {
    %c0_i32 = arith.constant 0 : i32
    %c0_i32_0 = arith.constant 0 : i32
    %c0_i32_1 = arith.constant 0 : i32
    return %c0_i32, %c0_i32_0 : i32, i32
  }
  func.func @transform_8(%arg0: i32) -> (i32, i32) {
    %c0_i32 = arith.constant 0 : i32
    %c0_i32_0 = arith.constant 0 : i32
    %c0_i32_1 = arith.constant 0 : i32
    return %c0_i32, %c0_i32_0 : i32, i32
  }
  func.func @transform_9(%arg0: i32) -> (i32, i32) {
    %c0_i32 = arith.constant 0 : i32
    %c0_i32_0 = arith.constant 0 : i32
    %c0_i32_1 = arith.constant 0 : i32
    return %c0_i32, %c0_i32_0 : i32, i32
  }
  func.func @transform_10(%arg0: i32) -> (i32, i32) {
    %c0_i32 = arith.constant 0 : i32
    %c0_i32_0 = arith.constant 0 : i32
    %c0_i32_1 = arith.constant 0 : i32
    return %c0_i32, %c0_i32_0 : i32, i32
  }
}

</mosaic_0001>

<llo_original>
// kernel: lstm_lm_forward.1
$region0: #{lstm_lm_forward.1}
  #allocation0 [shape = 'u32[]', space=smem, size = 0x4, offset = 0x4, fixed_abs, tag = 'smem constant byte address 0x4 - core index']
  #allocation1 [shape = 'u32[144,128]{1,0:T(1,128)}', space=vmem, size = 0x12000, scoped, tag = 'internal scratch']
  #allocation2 [shape = 'f32[64,512]{1,0:T(8,128)}', space=vmem, size = 0x20000, scoped, tag = 'scratch operand']
  #allocation3 [shape = 'f32[64,128]{1,0:T(8,128)}', space=vmem, size = 0x8000, scoped, tag = 'scratch operand']
  %s0 = inlined_call_operand.vmem [shape: bf16[64,128], index: 0, kind: input, shape index: {}]
  %s1 = inlined_call_operand.vmem [shape: f32[16,128], index: 1, kind: input, shape index: {}, may-alias: {1,9}]
  %s2 = inlined_call_operand.vmem [shape: f32[16,128], index: 2, kind: input, shape index: {}, may-alias: {2,10}]
  %s3 = inlined_call_operand.hbm [shape: bf16[2,128,512], index: 3, kind: input, shape index: {}]
  %s4 = inlined_call_operand.hbm [shape: bf16[2,128,512], index: 4, kind: input, shape index: {}]
  %s5 = inlined_call_operand.vmem [shape: f32[2,1,512], index: 5, kind: input, shape index: {}]
  %s6 = inlined_call_operand.vmem [shape: bf16[128,256], index: 6, kind: input, shape index: {}]
  %s7 = inlined_call_operand.vmem [shape: f32[1,256], index: 7, kind: input, shape index: {}]
  %s8 = inlined_call_operand.vmem [shape: f32[64,256], index: 8, kind: output, shape index: {0}]
  %s9 = inlined_call_operand.vmem [shape: f32[16,128], index: 9, kind: output, shape index: {1}, may-alias: {1,9}]
  %s10 = inlined_call_operand.vmem [shape: f32[16,128], index: 10, kind: output, shape index: {2}, may-alias: {2,10}]
  %11 = xla_tuple %s8, %s9, %s10
  %s12 = sld [smem:[#allocation0]]
  $region66: #{lstm_lm_forward.1} parent=0
    _
  %s14 = ssub.s32 1, %s12
  %s15 = scalar_select 0, %s14, %s12
  $region1: #{lstm_lm_forward.1} parent=0
    #allocation4 [shape = 'u8[262144]{0}', space=vmem, size = 0x40000, scoped, tag = 'input window, operand 3, single buffered']
    #allocation5 [shape = 's32[1]{0}', space=sflag, size = 0x4, scoped, tag = 'scoped memory for lstm_lm_forward.1']
    #allocation6 [shape = 'u8[262144]{0}', space=vmem, size = 0x40000, scoped, tag = 'input window, operand 4, single buffered']
    #allocation7 [shape = 's32[1]{0}', space=sflag, size = 0x4, scoped, tag = 'scoped memory for lstm_lm_forward.1']
    %16 = vsyncpa [#allocation5], 0
    %17 = vsyncpa [#allocation7], 0
    // Predicated region
    $region2: #{lstm_lm_forward.1} parent=1 // pred_check
      _
    $region3: #{lstm_lm_forward.1} parent=1 // pred_check_branch
      %19 = sbr.rel (0) target = $region5
    $region4: #{lstm_lm_forward.1} parent=1 // pred_region
      _
    $region5: #{lstm_lm_forward.1} parent=1 // pred_fallthru
      _
    // Predicated region
    $region6: #{lstm_lm_forward.1} parent=1 // pred_check
      _
    $region7: #{lstm_lm_forward.1} parent=1 // pred_check_branch
      %21 = sbr.rel (0) target = $region9
    $region8: #{lstm_lm_forward.1} parent=1 // pred_region
      _
    $region9: #{lstm_lm_forward.1} parent=1 // pred_fallthru
      _
    // Predicated region
    $region10: #{lstm_lm_forward.1} parent=1 // pred_check
      _
    $region11: #{lstm_lm_forward.1} parent=1 // pred_check_branch
      %23 = sbr.rel (0) target = $region13
    $region12: #{lstm_lm_forward.1} parent=1 // pred_region
      _
    $region13: #{lstm_lm_forward.1} parent=1 // pred_fallthru
      _
    // Predicated region
    $region14: #{lstm_lm_forward.1} parent=1 // pred_check
      _
    $region15: #{lstm_lm_forward.1} parent=1 // pred_check_branch
      %25 = sbr.rel (0) target = $region17
    $region16: #{lstm_lm_forward.1} parent=1 // pred_region
      %s27 = ssub.s32 8192, 8192
      %28 = vsyncadd [#allocation5], %s27
      %s29 = sshll.u32 [#allocation4], 4
      %s30 = int_to_ptr.vmem [resolvable:$true] %s29
      %35 = dma.hbm_to_vmem [thread:$0]  %s3, 8192, %s30, [#allocation5], 256, 256, 16
    $region17: #{lstm_lm_forward.1} parent=1 // pred_fallthru
      _
    // Predicated region
    $region18: #{lstm_lm_forward.1} parent=1 // pred_check
      _
    $region19: #{lstm_lm_forward.1} parent=1 // pred_check_branch
      %37 = sbr.rel (0) target = $region21
    $region20: #{lstm_lm_forward.1} parent=1 // pred_region
      %s39 = ssub.s32 8192, 8192
      %40 = vsyncadd [#allocation7], %s39
      %s41 = sshll.u32 [#allocation6], 4
      %s42 = int_to_ptr.vmem [resolvable:$true] %s41
      %47 = dma.hbm_to_vmem [thread:$0]  %s4, 8192, %s42, [#allocation7], 256, 256, 16
    $region21: #{lstm_lm_forward.1} parent=1 // pred_fallthru
      _
    // Predicated region
    $region22: #{lstm_lm_forward.1} parent=1 // pred_check
      _
    $region23: #{lstm_lm_forward.1} parent=1 // pred_check_branch
      %49 = sbr.rel (0) target = $region25
    $region24: #{lstm_lm_forward.1} parent=1 // pred_region
      _
    $region25: #{lstm_lm_forward.1} parent=1 // pred_fallthru
      _
    // Predicated region
    $region26: #{lstm_lm_forward.1} parent=1 // pred_check
      _
    $region27: #{lstm_lm_forward.1} parent=1 // pred_check_branch
      %51 = sbr.rel (0) target = $region29
    $region28: #{lstm_lm_forward.1} parent=1 // pred_region
      _
    $region29: #{lstm_lm_forward.1} parent=1 // pred_fallthru
      _
    // Predicated region
    $region30: #{lstm_lm_forward.1} parent=1 // pred_check
      _
    $region31: #{lstm_lm_forward.1} parent=1 // pred_check_branch
      %53 = sbr.rel (0) target = $region33
    $region32: #{lstm_lm_forward.1} parent=1 // pred_region
      _
    $region33: #{lstm_lm_forward.1} parent=1 // pred_fallthru
      _
    // Predicated region
    $region34: #{lstm_lm_forward.1} parent=1 // pred_check
      _
    $region35: #{lstm_lm_forward.1} parent=1 // pred_check_branch
      %55 = sbr.rel (0) target = $region37
    $region36: #{lstm_lm_forward.1} parent=1 // pred_region
      %56 = dma.done [#allocation5], 8192
    $region37: #{lstm_lm_forward.1} parent=1 // pred_fallthru
      _
    // Predicated region
    $region38: #{lstm_lm_forward.1} parent=1 // pred_check
      _
    $region39: #{lstm_lm_forward.1} parent=1 // pred_check_branch
      %58 = sbr.rel (0) target = $region41
    $region40: #{lstm_lm_forward.1} parent=1 // pred_region
      %59 = dma.done [#allocation7], 8192
    $region41: #{lstm_lm_forward.1} parent=1 // pred_fallthru
      _
    %v61 = vld [vmem:[%s0] sm:$0xf]
    %v62 = vld [vmem:[%s0 + $0x4] sm:$0xf]
    %v63 = vld [vmem:[%s0 + $0x8] sm:$0xf]
    %v64 = vld [vmem:[%s0 + $0xc] sm:$0xf]
    %v65 = vld [vmem:[%s0 + $0x10] sm:$0xf]
    %v66 = vld [vmem:[%s0 + $0x14] sm:$0xf]
    %v67 = vld [vmem:[%s0 + $0x18] sm:$0xf]
    %v68 = vld [vmem:[%s0 + $0x1c] sm:$0xf]
    %v69 = vld [vmem:[#allocation4] sm:$0xff]
    %v70 = vld [vmem:[#allocation4 + $0x8] sm:$0xff]
    %v71 = vld [vmem:[#allocation4 + $0x10] sm:$0xff]
    %v72 = vld [vmem:[#allocation4 + $0x18] sm:$0xff]
    %v73 = vld [vmem:[#allocation4 + $0x20] sm:$0xff]
    %v74 = vld [vmem:[#allocation4 + $0x28] sm:$0xff]
    %v75 = vld [vmem:[#allocation4 + $0x30] sm:$0xff]
    %v76 = vld [vmem:[#allocation4 + $0x38] sm:$0xff]
    %v77 = vld [vmem:[#allocation4 + $0x40] sm:$0xff]
    %v78 = vld [vmem:[#allocation4 + $0x48] sm:$0xff]
    %v79 = vld [vmem:[#allocation4 + $0x50] sm:$0xff]
    %v80 = vld [vmem:[#allocation4 + $0x58] sm:$0xff]
    %v81 = vld [vmem:[#allocation4 + $0x60] sm:$0xff]
    %v82 = vld [vmem:[#allocation4 + $0x68] sm:$0xff]
    %v83 = vld [vmem:[#allocation4 + $0x70] sm:$0xff]
    %v84 = vld [vmem:[#allocation4 + $0x78] sm:$0xff]
    %v85 = vld [vmem:[#allocation4 + $0x80] sm:$0xff]
    %v86 = vld [vmem:[#allocation4 + $0x88] sm:$0xff]
    %v87 = vld [vmem:[#allocation4 + $0x90] sm:$0xff]
    %v88 = vld [vmem:[#allocation4 + $0x98] sm:$0xff]
    %v89 = vld [vmem:[#allocation4 + $0xa0] sm:$0xff]
    %v90 = vld [vmem:[#allocation4 + $0xa8] sm:$0xff]
    %v91 = vld [vmem:[#allocation4 + $0xb0] sm:$0xff]
    %v92 = vld [vmem:[#allocation4 + $0xb8] sm:$0xff]
    %v93 = vld [vmem:[#allocation4 + $0xc0] sm:$0xff]
    %v94 = vld [vmem:[#allocation4 + $0xc8] sm:$0xff]
    %v95 = vld [vmem:[#allocation4 + $0xd0] sm:$0xff]
    %v96 = vld [vmem:[#allocation4 + $0xd8] sm:$0xff]
    %v97 = vld [vmem:[#allocation4 + $0xe0] sm:$0xff]
    %v98 = vld [vmem:[#allocation4 + $0xe8] sm:$0xff]
    %v99 = vld [vmem:[#allocation4 + $0xf0] sm:$0xff]
    %v100 = vld [vmem:[#allocation4 + $0xf8] sm:$0xff]
    %v101 = vld [vmem:[%s5] sm:$0xf]
    %v103 = vlaneseq
    %v104 = vshrl.u32 %v103, 7
    %v105 = vsub.s32 0, %v104
    %v106 = vrot.slane %v101, %v105
    %v107 = vlaneseq
    %v108 = vshrl.u32 %v107, 7
    %v109 = vsub.s32 1, %v108
    %v110 = vrot.slane %v101, %v109
    %v111 = vlaneseq
    %v112 = vshrl.u32 %v111, 7
    %v113 = vsub.s32 2, %v112
    %v114 = vrot.slane %v101, %v113
    %v115 = vlaneseq
    %v116 = vshrl.u32 %v115, 7
    %v117 = vsub.s32 3, %v116
    %v118 = vrot.slane %v101, %v117
    %v131 = vunpack.c.l.b16 %v61
    %v132 = vunpack.c.l.b16 %v62
    %v133 = vunpack.c.l.b16 %v63
    %v134 = vunpack.c.l.b16 %v64
    %v135 = vunpack.c.l.b16 %v65
    %v136 = vunpack.c.l.b16 %v66
    %v137 = vunpack.c.l.b16 %v67
    %v138 = vunpack.c.l.b16 %v68
    %v139 = vpack.c.b16 %v132, %v131
    %v140 = vpack.c.b16 %v134, %v133
    %v141 = vpack.c.b16 %v136, %v135
    %v142 = vpack.c.b16 %v138, %v137
    %v179 = vunpack.c.l.b16 %v69
    %v180 = vunpack.c.h.b16 %v69
    %v181 = vunpack.c.l.b16 %v70
    %v182 = vunpack.c.h.b16 %v70
    %v183 = vunpack.c.l.b16 %v71
    %v184 = vunpack.c.h.b16 %v71
    %v185 = vunpack.c.l.b16 %v72
    %v186 = vunpack.c.h.b16 %v72
    %v187 = vunpack.c.l.b16 %v73
    %v188 = vunpack.c.h.b16 %v73
    %v189 = vunpack.c.l.b16 %v74
    %v190 = vunpack.c.h.b16 %v74
    %v191 = vunpack.c.l.b16 %v75
    %v192 = vunpack.c.h.b16 %v75
    %v193 = vunpack.c.l.b16 %v76
    %v194 = vunpack.c.h.b16 %v76
    %v195 = vunpack.c.l.b16 %v77
    %v196 = vunpack.c.h.b16 %v77
    %v197 = vunpack.c.l.b16 %v78
    %v198 = vunpack.c.h.b16 %v78
    %v199 = vunpack.c.l.b16 %v79
    %v200 = vunpack.c.h.b16 %v79
    %v201 = vunpack.c.l.b16 %v80
    %v202 = vunpack.c.h.b16 %v80
    %v203 = vunpack.c.l.b16 %v81
    %v204 = vunpack.c.h.b16 %v81
    %v205 = vunpack.c.l.b16 %v82
    %v206 = vunpack.c.h.b16 %v82
    %v207 = vunpack.c.l.b16 %v83
    %v208 = vunpack.c.h.b16 %v83
    %v209 = vunpack.c.l.b16 %v84
    %v210 = vunpack.c.h.b16 %v84
    %v211 = vunpack.c.l.b16 %v85
    %v212 = vunpack.c.h.b16 %v85
    %v213 = vunpack.c.l.b16 %v86
    %v214 = vunpack.c.h.b16 %v86
    %v215 = vunpack.c.l.b16 %v87
    %v216 = vunpack.c.h.b16 %v87
    %v217 = vunpack.c.l.b16 %v88
    %v218 = vunpack.c.h.b16 %v88
    %v219 = vunpack.c.l.b16 %v89
    %v220 = vunpack.c.h.b16 %v89
    %v221 = vunpack.c.l.b16 %v90
    %v222 = vunpack.c.h.b16 %v90
    %v223 = vunpack.c.l.b16 %v91
    %v224 = vunpack.c.h.b16 %v91
    %v225 = vunpack.c.l.b16 %v92
    %v226 = vunpack.c.h.b16 %v92
    %v227 = vunpack.c.l.b16 %v93
    %v228 = vunpack.c.h.b16 %v93
    %v229 = vunpack.c.l.b16 %v94
    %v230 = vunpack.c.h.b16 %v94
    %v231 = vunpack.c.l.b16 %v95
    %v232 = vunpack.c.h.b16 %v95
    %v233 = vunpack.c.l.b16 %v96
    %v234 = vunpack.c.h.b16 %v96
    %v235 = vunpack.c.l.b16 %v97
    %v236 = vunpack.c.h.b16 %v97
    %v237 = vunpack.c.l.b16 %v98
    %v238 = vunpack.c.h.b16 %v98
    %v239 = vunpack.c.l.b16 %v99
    %v240 = vunpack.c.h.b16 %v99
    %v241 = vunpack.c.l.b16 %v100
    %v242 = vunpack.c.h.b16 %v100
    %v243 = vpack.c.b16 %v183, %v179
    %v244 = vpack.c.b16 %v184, %v180
    %v245 = vpack.c.b16 %v185, %v181
    %v246 = vpack.c.b16 %v186, %v182
    %v247 = vpack.c.b16 %v191, %v187
    %v248 = vpack.c.b16 %v192, %v188
    %v249 = vpack.c.b16 %v193, %v189
    %v250 = vpack.c.b16 %v194, %v190
    %v251 = vpack.c.b16 %v199, %v195
    %v252 = vpack.c.b16 %v200, %v196
    %v253 = vpack.c.b16 %v201, %v197
    %v254 = vpack.c.b16 %v202, %v198
    %v255 = vpack.c.b16 %v207, %v203
    %v256 = vpack.c.b16 %v208, %v204
    %v257 = vpack.c.b16 %v209, %v205
    %v258 = vpack.c.b16 %v210, %v206
    %v259 = vpack.c.b16 %v215, %v211
    %v260 = vpack.c.b16 %v216, %v212
    %v261 = vpack.c.b16 %v217, %v213
    %v262 = vpack.c.b16 %v218, %v214
    %v263 = vpack.c.b16 %v223, %v219
    %v264 = vpack.c.b16 %v224, %v220
    %v265 = vpack.c.b16 %v225, %v221
    %v266 = vpack.c.b16 %v226, %v222
    %v267 = vpack.c.b16 %v231, %v227
    %v268 = vpack.c.b16 %v232, %v228
    %v269 = vpack.c.b16 %v233, %v229
    %v270 = vpack.c.b16 %v234, %v230
    %v271 = vpack.c.b16 %v239, %v235
    %v272 = vpack.c.b16 %v240, %v236
    %v273 = vpack.c.b16 %v241, %v237
    %v274 = vpack.c.b16 %v242, %v238
    %307 = vmatprep.subr.bf16.mxu0 %v244
    %308 = vmatpush1.bf16.msra.mxu0 %v243
    %309 = vmatprep.subr.bf16.mxu0 %v248
    %310 = vmatpush1.bf16.msra.mxu0 %v247
    %311 = vmatprep.subr.bf16.mxu0 %v252
    %312 = vmatpush1.bf16.msra.mxu0 %v251
    %313 = vmatprep.subr.bf16.mxu0 %v256
    %314 = vmatpush1.bf16.msra.mxu0 %v255
    %315 = vmatprep.subr.bf16.mxu0 %v260
    %316 = vmatpush1.bf16.msra.mxu0 %v259
    %317 = vmatprep.subr.bf16.mxu0 %v264
    %318 = vmatpush1.bf16.msra.mxu0 %v263
    %319 = vmatprep.subr.bf16.mxu0 %v268
    %320 = vmatpush1.bf16.msra.mxu0 %v267
    %321 = vmatprep.subr.bf16.mxu0 %v272
    %322 = vmatpush1.bf16.msra.mxu0 %v271
    %323 = vmatprep.subr.bf16.mxu0 0
    %324 = vmatpush1.bf16.msra.mxu0 0
    %325 = vmatprep.subr.bf16.mxu0 0
    %326 = vmatpush1.bf16.msra.mxu0 0
    %327 = vmatprep.subr.bf16.mxu0 0
    %328 = vmatpush1.bf16.msra.mxu0 0
    %329 = vmatprep.subr.bf16.mxu0 0
    %330 = vmatpush1.bf16.msra.mxu0 0
    %331 = vmatprep.subr.bf16.mxu0 0
    %332 = vmatpush1.bf16.msra.mxu0 0
    %333 = vmatprep.subr.bf16.mxu0 0
    %334 = vmatpush1.bf16.msra.mxu0 0
    %335 = vmatprep.subr.bf16.mxu0 0
    %336 = vmatpush1.bf16.msra.mxu0 0
    %337 = vmatprep.subr.bf16.mxu0 0
    %338 = vmatpush1.bf16.msra.mxu0 0
    %339 = vmatprep.mubr.bf16.mxu0 0
    %340 = vmatmul.mubr.bf16.gmra.mrb[0].mxu0 %v139
    %v341 = vpop.f32.mrb[0].mxu0
    %v342 = vadd.f32 %v106, %v341
    %v343 = vpop.f32.mrb[0].mxu0
    %v344 = vadd.f32 %v110, %v343
    %v345 = vpop.f32.mrb[0].mxu0
    %v346 = vadd.f32 %v106, %v345
    %v347 = vpop.f32.mrb[0].mxu0
    %v348 = vadd.f32 %v110, %v347
    %349 = vmatprep.mubr.bf16.mxu0 0
    %350 = vmatmul.mubr.bf16.gmra.mrb[0].mxu0 %v140
    %v351 = vpop.f32.mrb[0].mxu0
    %v352 = vadd.f32 %v106, %v351
    %v353 = vpop.f32.mrb[0].mxu0
    %v354 = vadd.f32 %v110, %v353
    %v355 = vpop.f32.mrb[0].mxu0
    %v356 = vadd.f32 %v106, %v355
    %v357 = vpop.f32.mrb[0].mxu0
    %v358 = vadd.f32 %v110, %v357
    %359 = vmatprep.mubr.bf16.mxu0 0
    %360 = vmatmul.mubr.bf16.gmra.mrb[0].mxu0 %v141
    %v361 = vpop.f32.mrb[0].mxu0
    %v362 = vadd.f32 %v106, %v361
    %v363 = vpop.f32.mrb[0].mxu0
    %v364 = vadd.f32 %v110, %v363
    %v365 = vpop.f32.mrb[0].mxu0
    %v366 = vadd.f32 %v106, %v365
    %v367 = vpop.f32.mrb[0].mxu0
    %v368 = vadd.f32 %v110, %v367
    %369 = vmatprep.mubr.bf16.mxu0 0
    %370 = vmatmul.mubr.bf16.gmra.mrb[0].mxu0 %v142
    %v371 = vpop.f32.mrb[0].mxu0
    %v372 = vadd.f32 %v106, %v371
    %v373 = vpop.f32.mrb[0].mxu0
    %v374 = vadd.f32 %v110, %v373
    %v375 = vpop.f32.mrb[0].mxu0
    %v376 = vadd.f32 %v106, %v375
    %v377 = vpop.f32.mrb[0].mxu0
    %v378 = vadd.f32 %v110, %v377
    %379 = vdwg.mxu0
    %380 = vmatprep.subr.bf16.mxu0 %v246
    %381 = vmatpush1.bf16.msra.mxu0 %v245
    %382 = vmatprep.subr.bf16.mxu0 %v250
    %383 = vmatpush1.bf16.msra.mxu0 %v249
    %384 = vmatprep.subr.bf16.mxu0 %v254
    %385 = vmatpush1.bf16.msra.mxu0 %v253
    %386 = vmatprep.subr.bf16.mxu0 %v258
    %387 = vmatpush1.bf16.msra.mxu0 %v257
    %388 = vmatprep.subr.bf16.mxu0 %v262
    %389 = vmatpush1.bf16.msra.mxu0 %v261
    %390 = vmatprep.subr.bf16.mxu0 %v266
    %391 = vmatpush1.bf16.msra.mxu0 %v265
    %392 = vmatprep.subr.bf16.mxu0 %v270
    %393 = vmatpush1.bf16.msra.mxu0 %v269
    %394 = vmatprep.subr.bf16.mxu0 %v274
    %395 = vmatpush1.bf16.msra.mxu0 %v273
    %396 = vmatprep.subr.bf16.mxu0 0
    %397 = vmatpush1.bf16.msra.mxu0 0
    %398 = vmatprep.subr.bf16.mxu0 0
    %399 = vmatpush1.bf16.msra.mxu0 0
    %400 = vmatprep.subr.bf16.mxu0 0
    %401 = vmatpush1.bf16.msra.mxu0 0
    %402 = vmatprep.subr.bf16.mxu0 0
    %403 = vmatpush1.bf16.msra.mxu0 0
    %404 = vmatprep.subr.bf16.mxu0 0
    %405 = vmatpush1.bf16.msra.mxu0 0
    %406 = vmatprep.subr.bf16.mxu0 0
    %407 = vmatpush1.bf16.msra.mxu0 0
    %408 = vmatprep.subr.bf16.mxu0 0
    %409 = vmatpush1.bf16.msra.mxu0 0
    %410 = vmatprep.subr.bf16.mxu0 0
    %411 = vmatpush1.bf16.msra.mxu0 0
    %412 = vmatprep.mubr.bf16.mxu0 0
    %413 = vmatmul.mubr.bf16.gmra.mrb[0].mxu0 %v139
    %v414 = vpop.f32.mrb[0].mxu0
    %v415 = vadd.f32 %v114, %v414
    %v416 = vpop.f32.mrb[0].mxu0
    %v417 = vadd.f32 %v118, %v416
    %v418 = vpop.f32.mrb[0].mxu0
    %v419 = vadd.f32 %v114, %v418
    %v420 = vpop.f32.mrb[0].mxu0
    %v421 = vadd.f32 %v118, %v420
    %422 = vmatprep.mubr.bf16.mxu0 0
    %423 = vmatmul.mubr.bf16.gmra.mrb[0].mxu0 %v140
    %v424 = vpop.f32.mrb[0].mxu0
    %v425 = vadd.f32 %v114, %v424
    %v426 = vpop.f32.mrb[0].mxu0
    %v427 = vadd.f32 %v118, %v426
    %v428 = vpop.f32.mrb[0].mxu0
    %v429 = vadd.f32 %v114, %v428
    %v430 = vpop.f32.mrb[0].mxu0
    %v431 = vadd.f32 %v118, %v430
    %432 = vmatprep.mubr.bf16.mxu0 0
    %433 = vmatmul.mubr.bf16.gmra.mrb[0].mxu0 %v141
    %v434 = vpop.f32.mrb[0].mxu0
    %v435 = vadd.f32 %v114, %v434
    %v436 = vpop.f32.mrb[0].mxu0
    %v437 = vadd.f32 %v118, %v436
    %v438 = vpop.f32.mrb[0].mxu0
    %v439 = vadd.f32 %v114, %v438
    %v440 = vpop.f32.mrb[0].mxu0
    %v441 = vadd.f32 %v118, %v440
    %442 = vmatprep.mubr.bf16.mxu0 0
    %443 = vmatmul.mubr.bf16.gmra.mrb[0].mxu0 %v142
    %v444 = vpop.f32.mrb[0].mxu0
    %v445 = vadd.f32 %v114, %v444
    %v446 = vpop.f32.mrb[0].mxu0
    %v447 = vadd.f32 %v118, %v446
    %v448 = vpop.f32.mrb[0].mxu0
    %v449 = vadd.f32 %v114, %v448
    %v450 = vpop.f32.mrb[0].mxu0
    %v451 = vadd.f32 %v118, %v450
    %452 = vdwg.mxu0
    %453 = vst [vmem:[#allocation2] sm:$0xff] %v342
    %454 = vst [vmem:[#allocation2 + $0x8] sm:$0xff] %v344
    %455 = vst [vmem:[#allocation2 + $0x10] sm:$0xff] %v415
    %456 = vst [vmem:[#allocation2 + $0x18] sm:$0xff] %v417
    %457 = vst [vmem:[#allocation2 + $0x20] sm:$0xff] %v346
    %458 = vst [vmem:[#allocation2 + $0x28] sm:$0xff] %v348
    %459 = vst [vmem:[#allocation2 + $0x30] sm:$0xff] %v419
    %460 = vst [vmem:[#allocation2 + $0x38] sm:$0xff] %v421
    %461 = vst [vmem:[#allocation2 + $0x40] sm:$0xff] %v352
    %462 = vst [vmem:[#allocation2 + $0x48] sm:$0xff] %v354
    %463 = vst [vmem:[#allocation2 + $0x50] sm:$0xff] %v425
    %464 = vst [vmem:[#allocation2 + $0x58] sm:$0xff] %v427
    %465 = vst [vmem:[#allocation2 + $0x60] sm:$0xff] %v356
    %466 = vst [vmem:[#allocation2 + $0x68] sm:$0xff] %v358
    %467 = vst [vmem:[#allocation2 + $0x70] sm:$0xff] %v429
    %468 = vst [vmem:[#allocation2 + $0x78] sm:$0xff] %v431
    %469 = vst [vmem:[#allocation2 + $0x80] sm:$0xff] %v362
    %470 = vst [vmem:[#allocation2 + $0x88] sm:$0xff] %v364
    %471 = vst [vmem:[#allocation2 + $0x90] sm:$0xff] %v435
    %472 = vst [vmem:[#allocation2 + $0x98] sm:$0xff] %v437
    %473 = vst [vmem:[#allocation2 + $0xa0] sm:$0xff] %v366
    %474 = vst [vmem:[#allocation2 + $0xa8] sm:$0xff] %v368
    %475 = vst [vmem:[#allocation2 + $0xb0] sm:$0xff] %v439
    %476 = vst [vmem:[#allocation2 + $0xb8] sm:$0xff] %v441
    %477 = vst [vmem:[#allocation2 + $0xc0] sm:$0xff] %v372
    %478 = vst [vmem:[#allocation2 + $0xc8] sm:$0xff] %v374
    %479 = vst [vmem:[#allocation2 + $0xd0] sm:$0xff] %v445
    %480 = vst [vmem:[#allocation2 + $0xd8] sm:$0xff] %v447
    %481 = vst [vmem:[#allocation2 + $0xe0] sm:$0xff] %v376
    %482 = vst [vmem:[#allocation2 + $0xe8] sm:$0xff] %v378
    %483 = vst [vmem:[#allocation2 + $0xf0] sm:$0xff] %v449
    %484 = vst [vmem:[#allocation2 + $0xf8] sm:$0xff] %v451
    %v485 = vld [vmem:[%s1] sm:$0xff]
    %v486 = vld [vmem:[%s2] sm:$0xff]
    %v487 = vld [vmem:[%s1 + $0x8] sm:$0xff]
    %v488 = vld [vmem:[%s2 + $0x8] sm:$0xff]
    %v489 = vld [vmem:[#allocation2] sm:$0xff]
    %v490 = vld [vmem:[#allocation2 + $0x8] sm:$0xff]
    %v491 = vld [vmem:[#allocation2 + $0x10] sm:$0xff]
    %v492 = vld [vmem:[#allocation2 + $0x18] sm:$0xff]
    %v493 = vpack.c.bf16 %v485, %v485
    %v494 = vld [vmem:[#allocation6] sm:$0xff]
    %v495 = vld [vmem:[#allocation6 + $0x8] sm:$0xff]
    %v496 = vld [vmem:[#allocation6 + $0x10] sm:$0xff]
    %v497 = vld [vmem:[#allocation6 + $0x18] sm:$0xff]
    %v498 = vld [vmem:[#allocation6 + $0x20] sm:$0xff]
    %v499 = vld [vmem:[#allocation6 + $0x28] sm:$0xff]
    %v500 = vld [vmem:[#allocation6 + $0x30] sm:$0xff]
    %v501 = vld [vmem:[#allocation6 + $0x38] sm:$0xff]
    %v502 = vld [vmem:[#allocation6 + $0x40] sm:$0xff]
    %v503 = vld [vmem:[#allocation6 + $0x48] sm:$0xff]
    %v504 = vld [vmem:[#allocation6 + $0x50] sm:$0xff]
    %v505 = vld [vmem:[#allocation6 + $0x58] sm:$0xff]
    %v506 = vld [vmem:[#allocation6 + $0x60] sm:$0xff]
    %v507 = vld [vmem:[#allocation6 + $0x68] sm:$0xff]
    %v508 = vld [vmem:[#allocation6 + $0x70] sm:$0xff]
    %v509 = vld [vmem:[#allocation6 + $0x78] sm:$0xff]
    %v510 = vld [vmem:[#allocation6 + $0x80] sm:$0xff]
    %v511 = vld [vmem:[#allocation6 + $0x88] sm:$0xff]
    %v512 = vld [vmem:[#allocation6 + $0x90] sm:$0xff]
    %v513 = vld [vmem:[#allocation6 + $0x98] sm:$0xff]
    %v514 = vld [vmem:[#allocation6 + $0xa0] sm:$0xff]
    %v515 = vld [vmem:[#allocation6 + $0xa8] sm:$0xff]
    %v516 = vld [vmem:[#allocation6 + $0xb0] sm:$0xff]
    %v517 = vld [vmem:[#allocation6 + $0xb8] sm:$0xff]
    %v518 = vld [vmem:[#allocation6 + $0xc0] sm:$0xff]
    %v519 = vld [vmem:[#allocation6 + $0xc8] sm:$0xff]
    %v520 = vld [vmem:[#allocation6 + $0xd0] sm:$0xff]
    %v521 = vld [vmem:[#allocation6 + $0xd8] sm:$0xff]
    %v522 = vld [vmem:[#allocation6 + $0xe0] sm:$0xff]
    %v523 = vld [vmem:[#allocation6 + $0xe8] sm:$0xff]
    %v524 = vld [vmem:[#allocation6 + $0xf0] sm:$0xff]
    %v525 = vld [vmem:[#allocation6 + $0xf8] sm:$0xff]
    %v558 = vunpack.c.l.b16 %v494
    %v559 = vunpack.c.h.b16 %v494
    %v560 = vunpack.c.l.b16 %v495
    %v561 = vunpack.c.h.b16 %v495
    %v562 = vunpack.c.l.b16 %v496
    %v563 = vunpack.c.h.b16 %v496
    %v564 = vunpack.c.l.b16 %v497
    %v565 = vunpack.c.h.b16 %v497
    %v566 = vunpack.c.l.b16 %v498
    %v567 = vunpack.c.h.b16 %v498
    %v568 = vunpack.c.l.b16 %v499
    %v569 = vunpack.c.h.b16 %v499
    %v570 = vunpack.c.l.b16 %v500
    %v571 = vunpack.c.h.b16 %v500
    %v572 = vunpack.c.l.b16 %v501
    %v573 = vunpack.c.h.b16 %v501
    %v574 = vunpack.c.l.b16 %v502
    %v575 = vunpack.c.h.b16 %v502
    %v576 = vunpack.c.l.b16 %v503
    %v577 = vunpack.c.h.b16 %v503
    %v578 = vunpack.c.l.b16 %v504
    %v579 = vunpack.c.h.b16 %v504
    %v580 = vunpack.c.l.b16 %v505
    %v581 = vunpack.c.h.b16 %v505
    %v582 = vunpack.c.l.b16 %v506
    %v583 = vunpack.c.h.b16 %v506
    %v584 = vunpack.c.l.b16 %v507
    %v585 = vunpack.c.h.b16 %v507
    %v586 = vunpack.c.l.b16 %v508
    %v587 = vunpack.c.h.b16 %v508
    %v588 = vunpack.c.l.b16 %v509
    %v589 = vunpack.c.h.b16 %v509
    %v590 = vunpack.c.l.b16 %v510
    %v591 = vunpack.c.h.b16 %v510
    %v592 = vunpack.c.l.b16 %v511
    %v593 = vunpack.c.h.b16 %v511
    %v594 = vunpack.c.l.b16 %v512
    %v595 = vunpack.c.h.b16 %v512
    %v596 = vunpack.c.l.b16 %v513
    %v597 = vunpack.c.h.b16 %v513
    %v598 = vunpack.c.l.b16 %v514
    %v599 = vunpack.c.h.b16 %v514
    %v600 = vunpack.c.l.b16 %v515
    %v601 = vunpack.c.h.b16 %v515
    %v602 = vunpack.c.l.b16 %v516
    %v603 = vunpack.c.h.b16 %v516
    %v604 = vunpack.c.l.b16 %v517
    %v605 = vunpack.c.h.b16 %v517
    %v606 = vunpack.c.l.b16 %v518
    %v607 = vunpack.c.h.b16 %v518
    %v608 = vunpack.c.l.b16 %v519
    %v609 = vunpack.c.h.b16 %v519
    %v610 = vunpack.c.l.b16 %v520
    %v611 = vunpack.c.h.b16 %v520
    %v612 = vunpack.c.l.b16 %v521
    %v613 = vunpack.c.h.b16 %v521
    %v614 = vunpack.c.l.b16 %v522
    %v615 = vunpack.c.h.b16 %v522
    %v616 = vunpack.c.l.b16 %v523
    %v617 = vunpack.c.h.b16 %v523
    %v618 = vunpack.c.l.b16 %v524
    %v619 = vunpack.c.h.b16 %v524
    %v620 = vunpack.c.l.b16 %v525
    %v621 = vunpack.c.h.b16 %v525
    %v622 = vpack.c.b16 %v562, %v558
    %v623 = vpack.c.b16 %v563, %v559
    %v624 = vpack.c.b16 %v564, %v560
    %v625 = vpack.c.b16 %v565, %v561
    %v626 = vpack.c.b16 %v570, %v566
    %v627 = vpack.c.b16 %v571, %v567
    %v628 = vpack.c.b16 %v572, %v568
    %v629 = vpack.c.b16 %v573, %v569
    %v630 = vpack.c.b16 %v578, %v574
    %v631 = vpack.c.b16 %v579, %v575
    %v632 = vpack.c.b16 %v580, %v576
    %v633 = vpack.c.b16 %v581, %v577
    %v634 = vpack.c.b16 %v586, %v582
    %v635 = vpack.c.b16 %v587, %v583
    %v636 = vpack.c.b16 %v588, %v584
    %v637 = vpack.c.b16 %v589, %v585
    %v638 = vpack.c.b16 %v594, %v590
    %v639 = vpack.c.b16 %v595, %v591
    %v640 = vpack.c.b16 %v596, %v592
    %v641 = vpack.c.b16 %v597, %v593
    %v642 = vpack.c.b16 %v602, %v598
    %v643 = vpack.c.b16 %v603, %v599
    %v644 = vpack.c.b16 %v604, %v600
    %v645 = vpack.c.b16 %v605, %v601
    %v646 = vpack.c.b16 %v610, %v606
    %v647 = vpack.c.b16 %v611, %v607
    %v648 = vpack.c.b16 %v612, %v608
    %v649 = vpack.c.b16 %v613, %v609
    %v650 = vpack.c.b16 %v618, %v614
    %v651 = vpack.c.b16 %v619, %v615
    %v652 = vpack.c.b16 %v620, %v616
    %v653 = vpack.c.b16 %v621, %v617
    %686 = vmatprep.subr.bf16.mxu0 %v623
    %687 = vmatpush1.bf16.msra.mxu0 %v622
    %688 = vmatprep.subr.bf16.mxu0 %v627
    %689 = vmatpush1.bf16.msra.mxu0 %v626
    %690 = vmatprep.subr.bf16.mxu0 %v631
    %691 = vmatpush1.bf16.msra.mxu0 %v630
    %692 = vmatprep.subr.bf16.mxu0 %v635
    %693 = vmatpush1.bf16.msra.mxu0 %v634
    %694 = vmatprep.subr.bf16.mxu0 %v639
    %695 = vmatpush1.bf16.msra.mxu0 %v638
    %696 = vmatprep.subr.bf16.mxu0 %v643
    %697 = vmatpush1.bf16.msra.mxu0 %v642
    %698 = vmatprep.subr.bf16.mxu0 %v647
    %699 = vmatpush1.bf16.msra.mxu0 %v646
    %700 = vmatprep.subr.bf16.mxu0 %v651
    %701 = vmatpush1.bf16.msra.mxu0 %v650
    %702 = vmatprep.subr.bf16.mxu0 0
    %703 = vmatpush1.bf16.msra.mxu0 0
    %704 = vmatprep.subr.bf16.mxu0 0
    %705 = vmatpush1.bf16.msra.mxu0 0
    %706 = vmatprep.subr.bf16.mxu0 0
    %707 = vmatpush1.bf16.msra.mxu0 0
    %708 = vmatprep.subr.bf16.mxu0 0
    %709 = vmatpush1.bf16.msra.mxu0 0
    %710 = vmatprep.subr.bf16.mxu0 0
    %711 = vmatpush1.bf16.msra.mxu0 0
    %712 = vmatprep.subr.bf16.mxu0 0
    %713 = vmatpush1.bf16.msra.mxu0 0
    %714 = vmatprep.subr.bf16.mxu0 0
    %715 = vmatpush1.bf16.msra.mxu0 0
    %716 = vmatprep.subr.bf16.mxu0 0
    %717 = vmatpush1.bf16.msra.mxu0 0
    %718 = vmatprep.mubr.bf16.mxu0 0
    %719 = vmatmul.mubr.bf16.gmra.mrb[0].mxu0 %v493
    %v720 = vpop.f32.mrb[0].mxu0
    %v721 = vadd.f32 0.0, %v720
    %v722 = vpop.f32.mrb[0].mxu0
    %v723 = vadd.f32 0.0, %v722
    %v724 = vpop.f32.mrb[0].mxu0
    %v725 = vpop.f32.mrb[0].mxu0
    %726 = vdwg.mxu0
    %727 = vmatprep.subr.bf16.mxu0 %v625
    %728 = vmatpush1.bf16.msra.mxu0 %v624
    %729 = vmatprep.subr.bf16.mxu0 %v629
    %730 = vmatpush1.bf16.msra.mxu0 %v628
    %731 = vmatprep.subr.bf16.mxu0 %v633
    %732 = vmatpush1.bf16.msra.mxu0 %v632
    %733 = vmatprep.subr.bf16.mxu0 %v637
    %734 = vmatpush1.bf16.msra.mxu0 %v636
    %735 = vmatprep.subr.bf16.mxu0 %v641
    %736 = vmatpush1.bf16.msra.mxu0 %v640
    %737 = vmatprep.subr.bf16.mxu0 %v645
    %738 = vmatpush1.bf16.msra.mxu0 %v644
    %739 = vmatprep.subr.bf16.mxu0 %v649
    %740 = vmatpush1.bf16.msra.mxu0 %v648
    %741 = vmatprep.subr.bf16.mxu0 %v653
    %742 = vmatpush1.bf16.msra.mxu0 %v652
    %743 = vmatprep.subr.bf16.mxu0 0
    %744 = vmatpush1.bf16.msra.mxu0 0
    %745 = vmatprep.subr.bf16.mxu0 0
    %746 = vmatpush1.bf16.msra.mxu0 0
    %747 = vmatprep.subr.bf16.mxu0 0
    %748 = vmatpush1.bf16.msra.mxu0 0
    %749 = vmatprep.subr.bf16.mxu0 0
    %750 = vmatpush1.bf16.msra.mxu0 0
    %751 = vmatprep.subr.bf16.mxu0 0
    %752 = vmatpush1.bf16.msra.mxu0 0
    %753 = vmatprep.subr.bf16.mxu0 0
    %754 = vmatpush1.bf16.msra.mxu0 0
    %755 = vmatprep.subr.bf16.mxu0 0
    %756 = vmatpush1.bf16.msra.mxu0 0
    %757 = vmatprep.subr.bf16.mxu0 0
    %758 = vmatpush1.bf16.msra.mxu0 0
    %759 = vmatprep.mubr.bf16.mxu0 0
    %760 = vmatmul.mubr.bf16.gmra.mrb[0].mxu0 %v493
    %v761 = vpop.f32.mrb[0].mxu0
    %v762 = vadd.f32 0.0, %v761
    %v763 = vpop.f32.mrb[0].mxu0
    %v764 = vadd.f32 0.0, %v763
    %v765 = vpop.f32.mrb[0].mxu0
    %v766 = vpop.f32.mrb[0].mxu0
    %767 = vdwg.mxu0
    %v768 = vadd.f32 %v489, %v721
    %v769 = vadd.f32 %v490, %v723
    %v770 = vadd.f32 %v491, %v762
    %v771 = vadd.f32 %v492, %v764
    %v772 = vxor.u32 %v768, 2147483648
    %v773 = vxor.u32 %v769, 2147483648
    %v774 = vxor.u32 %v770, 2147483648
    %v775 = vmul.f32 %v772, 1.442695
    %v776 = vpow.pop %v775
    %v777 = vmul.f32 %v773, 1.442695
    %v778 = vpow.pop %v777
    %v779 = vmul.f32 %v774, 1.442695
    %v780 = vpow.pop %v779
    %v781 = vadd.f32 %v776, 1.0
    %v782 = vadd.f32 %v778, 1.0
    %v783 = vadd.f32 %v780, 1.0
    %v784 = vrcp.pop %v781
    %v785 = vmul.f32 1.0, %v784
    %v786 = vrcp.pop %v782
    %v787 = vmul.f32 1.0, %v786
    %v788 = vrcp.pop %v783
    %v789 = vmul.f32 1.0, %v788
    %v790 = vtanh.pop %v771
    %v791 = vmul.f32 %v787, %v486
    %v792 = vmul.f32 %v785, %v790
    %v793 = vadd.f32 %v791, %v792
    %v794 = vtanh.pop %v793
    %v795 = vmul.f32 %v789, %v794
    %v796 = vld [vmem:[#allocation2 + $0x20] sm:$0xff]
    %v797 = vld [vmem:[#allocation2 + $0x28] sm:$0xff]
    %v798 = vld [vmem:[#allocation2 + $0x30] sm:$0xff]
    %v799 = vld [vmem:[#allocation2 + $0x38] sm:$0xff]
    %v800 = vpack.c.bf16 %v795, %v795
    %801 = vmatprep.subr.bf16.mxu0 %v623
    %802 = vmatpush1.bf16.msra.mxu0 %v622
    %803 = vmatprep.subr.bf16.mxu0 %v627
    %804 = vmatpush1.bf16.msra.mxu0 %v626
    %805 = vmatprep.subr.bf16.mxu0 %v631
    %806 = vmatpush1.bf16.msra.mxu0 %v630
    %807 = vmatprep.subr.bf16.mxu0 %v635
    %808 = vmatpush1.bf16.msra.mxu0 %v634
    %809 = vmatprep.subr.bf16.mxu0 %v639
    %810 = vmatpush1.bf16.msra.mxu0 %v638
    %811 = vmatprep.subr.bf16.mxu0 %v643
    %812 = vmatpush1.bf16.msra.mxu0 %v642
    %813 = vmatprep.subr.bf16.mxu0 %v647
    %814 = vmatpush1.bf16.msra.mxu0 %v646
    %815 = vmatprep.subr.bf16.mxu0 %v651
    %816 = vmatpush1.bf16.msra.mxu0 %v650
    %817 = vmatprep.subr.bf16.mxu0 0
    %818 = vmatpush1.bf16.msra.mxu0 0
    %819 = vmatprep.subr.bf16.mxu0 0
    %820 = vmatpush1.bf16.msra.mxu0 0
    %821 = vmatprep.subr.bf16.mxu0 0
    %822 = vmatpush1.bf16.msra.mxu0 0
    %823 = vmatprep.subr.bf16.mxu0 0
    %824 = vmatpush1.bf16.msra.mxu0 0
    %825 = vmatprep.subr.bf16.mxu0 0
    %826 = vmatpush1.bf16.msra.mxu0 0
    %827 = vmatprep.subr.bf16.mxu0 0
    %828 = vmatpush1.bf16.msra.mxu0 0
    %829 = vmatprep.subr.bf16.mxu0 0
    %830 = vmatpush1.bf16.msra.mxu0 0
    %831 = vmatprep.subr.bf16.mxu0 0
    %832 = vmatpush1.bf16.msra.mxu0 0
    %833 = vmatprep.mubr.bf16.mxu0 0
    %834 = vmatmul.mubr.bf16.gmra.mrb[0].mxu0 %v800
    %v835 = vpop.f32.mrb[0].mxu0
    %v836 = vadd.f32 0.0, %v835
    %v837 = vpop.f32.mrb[0].mxu0
    %v838 = vadd.f32 0.0, %v837
    %v839 = vpop.f32.mrb[0].mxu0
    %v840 = vpop.f32.mrb[0].mxu0
    %841 = vdwg.mxu0
    %842 = vmatprep.subr.bf16.mxu0 %v625
    %843 = vmatpush1.bf16.msra.mxu0 %v624
    %844 = vmatprep.subr.bf16.mxu0 %v629
    %845 = vmatpush1.bf16.msra.mxu0 %v628
    %846 = vmatprep.subr.bf16.mxu0 %v633
    %847 = vmatpush1.bf16.msra.mxu0 %v632
    %848 = vmatprep.subr.bf16.mxu0 %v637
    %849 = vmatpush1.bf16.msra.mxu0 %v636
    %850 = vmatprep.subr.bf16.mxu0 %v641
    %851 = vmatpush1.bf16.msra.mxu0 %v640
    %852 = vmatprep.subr.bf16.mxu0 %v645
    %853 = vmatpush1.bf16.msra.mxu0 %v644
    %854 = vmatprep.subr.bf16.mxu0 %v649
    %855 = vmatpush1.bf16.msra.mxu0 %v648
    %856 = vmatprep.subr.bf16.mxu0 %v653
    %857 = vmatpush1.bf16.msra.mxu0 %v652
    %858 = vmatprep.subr.bf16.mxu0 0
    %859 = vmatpush1.bf16.msra.mxu0 0
    %860 = vmatprep.subr.bf16.mxu0 0
    %861 = vmatpush1.bf16.msra.mxu0 0
    %862 = vmatprep.subr.bf16.mxu0 0
    %863 = vmatpush1.bf16.msra.mxu0 0
    %864 = vmatprep.subr.bf16.mxu0 0
    %865 = vmatpush1.bf16.msra.mxu0 0
    %866 = vmatprep.subr.bf16.mxu0 0
    %867 = vmatpush1.bf16.msra.mxu0 0
    %868 = vmatprep.subr.bf16.mxu0 0
    %869 = vmatpush1.bf16.msra.mxu0 0
    %870 = vmatprep.subr.bf16.mxu0 0
    %871 = vmatpush1.bf16.msra.mxu0 0
    %872 = vmatprep.subr.bf16.mxu0 0
    %873 = vmatpush1.bf16.msra.mxu0 0
    %874 = vmatprep.mubr.bf16.mxu0 0
    %875 = vmatmul.mubr.bf16.gmra.mrb[0].mxu0 %v800
    %v876 = vpop.f32.mrb[0].mxu0
    %v877 = vadd.f32 0.0, %v876
    %v878 = vpop.f32.mrb[0].mxu0
    %v879 = vadd.f32 0.0, %v878
    %v880 = vpop.f32.mrb[0].mxu0
    %v881 = vpop.f32.mrb[0].mxu0
    %882 = vdwg.mxu0
    %v883 = vadd.f32 %v796, %v836
    %v884 = vadd.f32 %v797, %v838
    %v885 = vadd.f32 %v798, %v877
    %v886 = vadd.f32 %v799, %v879
    %v887 = vxor.u32 %v883, 2147483648
    %v888 = vxor.u32 %v884, 2147483648
    %v889 = vxor.u32 %v885, 2147483648
    %v890 = vmul.f32 %v887, 1.442695
    %v891 = vpow.pop %v890
    %v892 = vmul.f32 %v888, 1.442695
    %v893 = vpow.pop %v892
    %v894 = vmul.f32 %v889, 1.442695
    %v895 = vpow.pop %v894
    %v896 = vadd.f32 %v891, 1.0
    %v897 = vadd.f32 %v893, 1.0
    %v898 = vadd.f32 %v895, 1.0
    %v899 = vrcp.pop %v896
    %v900 = vmul.f32 1.0, %v899
    %v901 = vrcp.pop %v897
    %v902 = vmul.f32 1.0, %v901
    %v903 = vrcp.pop %v898
    %v904 = vmul.f32 1.0, %v903
    %v905 = vtanh.pop %v886
    %v906 = vmul.f32 %v902, %v793
    %v907 = vmul.f32 %v900, %v905
    %v908 = vadd.f32 %v906, %v907
    %v909 = vtanh.pop %v908
    %v910 = vmul.f32 %v904, %v909
    %s911 = scalar_lea.vmem [#allocation4], 256
    %v912 = vld [vmem:[%s911] sm:$0xff]
    %v913 = vld [vmem:[%s911 + $0x8] sm:$0xff]
    %v914 = vld [vmem:[%s911 + $0x10] sm:$0xff]
    %v915 = vld [vmem:[%s911 + $0x18] sm:$0xff]
    %v916 = vld [vmem:[%s911 + $0x20] sm:$0xff]
    %v917 = vld [vmem:[%s911 + $0x28] sm:$0xff]
    %v918 = vld [vmem:[%s911 + $0x30] sm:$0xff]
    %v919 = vld [vmem:[%s911 + $0x38] sm:$0xff]
    %v920 = vld [vmem:[%s911 + $0x40] sm:$0xff]
    %v921 = vld [vmem:[%s911 + $0x48] sm:$0xff]
    %v922 = vld [vmem:[%s911 + $0x50] sm:$0xff]
    %v923 = vld [vmem:[%s911 + $0x58] sm:$0xff]
    %v924 = vld [vmem:[%s911 + $0x60] sm:$0xff]
    %v925 = vld [vmem:[%s911 + $0x68] sm:$0xff]
    %v926 = vld [vmem:[%s911 + $0x70] sm:$0xff]
    %v927 = vld [vmem:[%s911 + $0x78] sm:$0xff]
    %v928 = vld [vmem:[%s911 + $0x80] sm:$0xff]
    %v929 = vld [vmem:[%s911 + $0x88] sm:$0xff]
    %v930 = vld [vmem:[%s911 + $0x90] sm:$0xff]
    %v931 = vld [vmem:[%s911 + $0x98] sm:$0xff]
    %v932 = vld [vmem:[%s911 + $0xa0] sm:$0xff]
    %v933 = vld [vmem:[%s911 + $0xa8] sm:$0xff]
    %v934 = vld [vmem:[%s911 + $0xb0] sm:$0xff]
    %v935 = vld [vmem:[%s911 + $0xb8] sm:$0xff]
    %v936 = vld [vmem:[%s911 + $0xc0] sm:$0xff]
    %v937 = vld [vmem:[%s911 + $0xc8] sm:$0xff]
    %v938 = vld [vmem:[%s911 + $0xd0] sm:$0xff]
    %v939 = vld [vmem:[%s911 + $0xd8] sm:$0xff]
    %v940 = vld [vmem:[%s911 + $0xe0] sm:$0xff]
    %v941 = vld [vmem:[%s911 + $0xe8] sm:$0xff]
    %v942 = vld [vmem:[%s911 + $0xf0] sm:$0xff]
    %v943 = vld [vmem:[%s911 + $0xf8] sm:$0xff]
    %s944 = scalar_lea.vmem %s5, 4
    %v945 = vld [vmem:[%s944] sm:$0xf]
    %v947 = vlaneseq
    %v948 = vshrl.u32 %v947, 7
    %v949 = vsub.s32 0, %v948
    %v950 = vrot.slane %v945, %v949
    %v951 = vlaneseq
    %v952 = vshrl.u32 %v951, 7
    %v953 = vsub.s32 1, %v952
    %v954 = vrot.slane %v945, %v953
    %v955 = vlaneseq
    %v956 = vshrl.u32 %v955, 7
    %v957 = vsub.s32 2, %v956
    %v958 = vrot.slane %v945, %v957
    %v959 = vlaneseq
    %v960 = vshrl.u32 %v959, 7
    %v961 = vsub.s32 3, %v960
    %v962 = vrot.slane %v945, %v961
    %v999 = vunpack.c.l.b16 %v912
    %v1000 = vunpack.c.h.b16 %v912
    %v1001 = vunpack.c.l.b16 %v913
    %v1002 = vunpack.c.h.b16 %v913
    %v1003 = vunpack.c.l.b16 %v914
    %v1004 = vunpack.c.h.b16 %v914
    %v1005 = vunpack.c.l.b16 %v915
    %v1006 = vunpack.c.h.b16 %v915
    %v1007 = vunpack.c.l.b16 %v916
    %v1008 = vunpack.c.h.b16 %v916
    %v1009 = vunpack.c.l.b16 %v917
    %v1010 = vunpack.c.h.b16 %v917
    %v1011 = vunpack.c.l.b16 %v918
    %v1012 = vunpack.c.h.b16 %v918
    %v1013 = vunpack.c.l.b16 %v919
    %v1014 = vunpack.c.h.b16 %v919
    %v1015 = vunpack.c.l.b16 %v920
    %v1016 = vunpack.c.h.b16 %v920
    %v1017 = vunpack.c.l.b16 %v921
    %v1018 = vunpack.c.h.b16 %v921
    %v1019 = vunpack.c.l.b16 %v922
    %v1020 = vunpack.c.h.b16 %v922
    %v1021 = vunpack.c.l.b16 %v923
    %v1022 = vunpack.c.h.b16 %v923
    %v1023 = vunpack.c.l.b16 %v924
    %v1024 = vunpack.c.h.b16 %v924
    %v1025 = vunpack.c.l.b16 %v925
    %v1026 = vunpack.c.h.b16 %v925
    %v1027 = vunpack.c.l.b16 %v926
    %v1028 = vunpack.c.h.b16 %v926
    %v1029 = vunpack.c.l.b16 %v927
    %v1030 = vunpack.c.h.b16 %v927
    %v1031 = vunpack.c.l.b16 %v928
    %v1032 = vunpack.c.h.b16 %v928
    %v1033 = vunpack.c.l.b16 %v929
    %v1034 = vunpack.c.h.b16 %v929
    %v1035 = vunpack.c.l.b16 %v930
    %v1036 = vunpack.c.h.b16 %v930
    %v1037 = vunpack.c.l.b16 %v931
    %v1038 = vunpack.c.h.b16 %v931
    %v1039 = vunpack.c.l.b16 %v932
    %v1040 = vunpack.c.h.b16 %v932
    %v1041 = vunpack.c.l.b16 %v933
    %v1042 = vunpack.c.h.b16 %v933
    %v1043 = vunpack.c.l.b16 %v934
    %v1044 = vunpack.c.h.b16 %v934
    %v1045 = vunpack.c.l.b16 %v935
    %v1046 = vunpack.c.h.b16 %v935
    %v1047 = vunpack.c.l.b16 %v936
    %v1048 = vunpack.c.h.b16 %v936
    %v1049 = vunpack.c.l.b16 %v937
    %v1050 = vunpack.c.h.b16 %v937
    %v1051 = vunpack.c.l.b16 %v938
    %v1052 = vunpack.c.h.b16 %v938
    %v1053 = vunpack.c.l.b16 %v939
    %v1054 = vunpack.c.h.b16 %v939
    %v1055 = vunpack.c.l.b16 %v940
    %v1056 = vunpack.c.h.b16 %v940
    %v1057 = vunpack.c.l.b16 %v941
    %v1058 = vunpack.c.h.b16 %v941
    %v1059 = vunpack.c.l.b16 %v942
    %v1060 = vunpack.c.h.b16 %v942
    %v1061 = vunpack.c.l.b16 %v943
    %v1062 = vunpack.c.h.b16 %v943
    %v1063 = vpack.c.b16 %v1003, %v999
    %v1064 = vpack.c.b16 %v1004, %v1000
    %v1065 = vpack.c.b16 %v1005, %v1001
    %v1066 = vpack.c.b16 %v1006, %v1002
    %v1067 = vpack.c.b16 %v1011, %v1007
    %v1068 = vpack.c.b16 %v1012, %v1008
    %v1069 = vpack.c.b16 %v1013, %v1009
    %v1070 = vpack.c.b16 %v1014, %v1010
    %v1071 = vpack.c.b16 %v1019, %v1015
    %v1072 = vpack.c.b16 %v1020, %v1016
    %v1073 = vpack.c.b16 %v1021, %v1017
    %v1074 = vpack.c.b16 %v1022, %v1018
    %v1075 = vpack.c.b16 %v1027, %v1023
    %v1076 = vpack.c.b16 %v1028, %v1024
    %v1077 = vpack.c.b16 %v1029, %v1025
    %v1078 = vpack.c.b16 %v1030, %v1026
    %v1079 = vpack.c.b16 %v1035, %v1031
    %v1080 = vpack.c.b16 %v1036, %v1032
    %v1081 = vpack.c.b16 %v1037, %v1033
    %v1082 = vpack.c.b16 %v1038, %v1034
    %v1083 = vpack.c.b16 %v1043, %v1039
    %v1084 = vpack.c.b16 %v1044, %v1040
    %v1085 = vpack.c.b16 %v1045, %v1041
    %v1086 = vpack.c.b16 %v1046, %v1042
    %v1087 = vpack.c.b16 %v1051, %v1047
    %v1088 = vpack.c.b16 %v1052, %v1048
    %v1089 = vpack.c.b16 %v1053, %v1049
    %v1090 = vpack.c.b16 %v1054, %v1050
    %v1091 = vpack.c.b16 %v1059, %v1055
    %v1092 = vpack.c.b16 %v1060, %v1056
    %v1093 = vpack.c.b16 %v1061, %v1057
    %v1094 = vpack.c.b16 %v1062, %v1058
    %1127 = vmatprep.subr.bf16.mxu0 %v1064
    %1128 = vmatpush1.bf16.msra.mxu0 %v1063
    %1129 = vmatprep.subr.bf16.mxu0 %v1068
    %1130 = vmatpush1.bf16.msra.mxu0 %v1067
    %1131 = vmatprep.subr.bf16.mxu0 %v1072
    %1132 = vmatpush1.bf16.msra.mxu0 %v1071
    %1133 = vmatprep.subr.bf16.mxu0 %v1076
    %1134 = vmatpush1.bf16.msra.mxu0 %v1075
    %1135 = vmatprep.subr.bf16.mxu0 %v1080
    %1136 = vmatpush1.bf16.msra.mxu0 %v1079
    %1137 = vmatprep.subr.bf16.mxu0 %v1084
    %1138 = vmatpush1.bf16.msra.mxu0 %v1083
    %1139 = vmatprep.subr.bf16.mxu0 %v1088
    %1140 = vmatpush1.bf16.msra.mxu0 %v1087
    %1141 = vmatprep.subr.bf16.mxu0 %v1092
    %1142 = vmatpush1.bf16.msra.mxu0 %v1091
    %1143 = vmatprep.subr.bf16.mxu0 0
    %1144 = vmatpush1.bf16.msra.mxu0 0
    %1145 = vmatprep.subr.bf16.mxu0 0
    %1146 = vmatpush1.bf16.msra.mxu0 0
    %1147 = vmatprep.subr.bf16.mxu0 0
    %1148 = vmatpush1.bf16.msra.mxu0 0
    %1149 = vmatprep.subr.bf16.mxu0 0
    %1150 = vmatpush1.bf16.msra.mxu0 0
    %1151 = vmatprep.subr.bf16.mxu0 0
    %1152 = vmatpush1.bf16.msra.mxu0 0
    %1153 = vmatprep.subr.bf16.mxu0 0
    %1154 = vmatpush1.bf16.msra.mxu0 0
    %1155 = vmatprep.subr.bf16.mxu0 0
    %1156 = vmatpush1.bf16.msra.mxu0 0
    %1157 = vmatprep.subr.bf16.mxu0 0
    %1158 = vmatpush1.bf16.msra.mxu0 0
    %1159 = vmatprep.mubr.bf16.mxu0 0
    %1160 = vmatmul.mubr.bf16.gmra.mrb[0].mxu0 %v800
    %v1161 = vpop.f32.mrb[0].mxu0
    %v1162 = vadd.f32 %v950, %v1161
    %v1163 = vpop.f32.mrb[0].mxu0
    %v1164 = vadd.f32 %v954, %v1163
    %v1165 = vpop.f32.mrb[0].mxu0
    %v1166 = vpop.f32.mrb[0].mxu0
    %1167 = vdwg.mxu0
    %1168 = vmatprep.subr.bf16.mxu0 %v1066
    %1169 = vmatpush1.bf16.msra.mxu0 %v1065
    %1170 = vmatprep.subr.bf16.mxu0 %v1070
    %1171 = vmatpush1.bf16.msra.mxu0 %v1069
    %1172 = vmatprep.subr.bf16.mxu0 %v1074
    %1173 = vmatpush1.bf16.msra.mxu0 %v1073
    %1174 = vmatprep.subr.bf16.mxu0 %v1078
    %1175 = vmatpush1.bf16.msra.mxu0 %v1077
    %1176 = vmatprep.subr.bf16.mxu0 %v1082
    %1177 = vmatpush1.bf16.msra.mxu0 %v1081
    %1178 = vmatprep.subr.bf16.mxu0 %v1086
    %1179 = vmatpush1.bf16.msra.mxu0 %v1085
    %1180 = vmatprep.subr.bf16.mxu0 %v1090
    %1181 = vmatpush1.bf16.msra.mxu0 %v1089
    %1182 = vmatprep.subr.bf16.mxu0 %v1094
    %1183 = vmatpush1.bf16.msra.mxu0 %v1093
    %1184 = vmatprep.subr.bf16.mxu0 0
    %1185 = vmatpush1.bf16.msra.mxu0 0
    %1186 = vmatprep.subr.bf16.mxu0 0
    %1187 = vmatpush1.bf16.msra.mxu0 0
    %1188 = vmatprep.subr.bf16.mxu0 0
    %1189 = vmatpush1.bf16.msra.mxu0 0
    %1190 = vmatprep.subr.bf16.mxu0 0
    %1191 = vmatpush1.bf16.msra.mxu0 0
    %1192 = vmatprep.subr.bf16.mxu0 0
    %1193 = vmatpush1.bf16.msra.mxu0 0
    %1194 = vmatprep.subr.bf16.mxu0 0
    %1195 = vmatpush1.bf16.msra.mxu0 0
    %1196 = vmatprep.subr.bf16.mxu0 0
    %1197 = vmatpush1.bf16.msra.mxu0 0
    %1198 = vmatprep.subr.bf16.mxu0 0
    %1199 = vmatpush1.bf16.msra.mxu0 0
    %1200 = vmatprep.mubr.bf16.mxu0 0
    %1201 = vmatmul.mubr.bf16.gmra.mrb[0].mxu0 %v800
    %v1202 = vpop.f32.mrb[0].mxu0
    %v1203 = vadd.f32 %v958, %v1202
    %v1204 = vpop.f32.mrb[0].mxu0
    %v1205 = vadd.f32 %v962, %v1204
    %v1206 = vpop.f32.mrb[0].mxu0
    %v1207 = vpop.f32.mrb[0].mxu0
    %1208 = vdwg.mxu0
    %v1209 = vpack.c.bf16 %v487, %v487
    %s1210 = scalar_lea.vmem [#allocation6], 256
    %v1211 = vld [vmem:[%s1210] sm:$0xff]
    %v1212 = vld [vmem:[%s1210 + $0x8] sm:$0xff]
    %v1213 = vld [vmem:[%s1210 + $0x10] sm:$0xff]
    %v1214 = vld [vmem:[%s1210 + $0x18] sm:$0xff]
    %v1215 = vld [vmem:[%s1210 + $0x20] sm:$0xff]
    %v1216 = vld [vmem:[%s1210 + $0x28] sm:$0xff]
    %v1217 = vld [vmem:[%s1210 + $0x30] sm:$0xff]
    %v1218 = vld [vmem:[%s1210 + $0x38] sm:$0xff]
    %v1219 = vld [vmem:[%s1210 + $0x40] sm:$0xff]
    %v1220 = vld [vmem:[%s1210 + $0x48] sm:$0xff]
    %v1221 = vld [vmem:[%s1210 + $0x50] sm:$0xff]
    %v1222 = vld [vmem:[%s1210 + $0x58] sm:$0xff]
    %v1223 = vld [vmem:[%s1210 + $0x60] sm:$0xff]
    %v1224 = vld [vmem:[%s1210 + $0x68] sm:$0xff]
    %v1225 = vld [vmem:[%s1210 + $0x70] sm:$0xff]
    %v1226 = vld [vmem:[%s1210 + $0x78] sm:$0xff]
    %v1227 = vld [vmem:[%s1210 + $0x80] sm:$0xff]
    %v1228 = vld [vmem:[%s1210 + $0x88] sm:$0xff]
    %v1229 = vld [vmem:[%s1210 + $0x90] sm:$0xff]
    %v1230 = vld [vmem:[%s1210 + $0x98] sm:$0xff]
    %v1231 = vld [vmem:[%s1210 + $0xa0] sm:$0xff]
    %v1232 = vld [vmem:[%s1210 + $0xa8] sm:$0xff]
    %v1233 = vld [vmem:[%s1210 + $0xb0] sm:$0xff]
    %v1234 = vld [vmem:[%s1210 + $0xb8] sm:$0xff]
    %v1235 = vld [vmem:[%s1210 + $0xc0] sm:$0xff]
    %v1236 = vld [vmem:[%s1210 + $0xc8] sm:$0xff]
    %v1237 = vld [vmem:[%s1210 + $0xd0] sm:$0xff]
    %v1238 = vld [vmem:[%s1210 + $0xd8] sm:$0xff]
    %v1239 = vld [vmem:[%s1210 + $0xe0] sm:$0xff]
    %v1240 = vld [vmem:[%s1210 + $0xe8] sm:$0xff]
    %v1241 = vld [vmem:[%s1210 + $0xf0] sm:$0xff]
    %v1242 = vld [vmem:[%s1210 + $0xf8] sm:$0xff]
    %v1275 = vunpack.c.l.b16 %v1211
    %v1276 = vunpack.c.h.b16 %v1211
    %v1277 = vunpack.c.l.b16 %v1212
    %v1278 = vunpack.c.h.b16 %v1212
    %v1279 = vunpack.c.l.b16 %v1213
    %v1280 = vunpack.c.h.b16 %v1213
    %v1281 = vunpack.c.l.b16 %v1214
    %v1282 = vunpack.c.h.b16 %v1214
    %v1283 = vunpack.c.l.b16 %v1215
    %v1284 = vunpack.c.h.b16 %v1215
    %v1285 = vunpack.c.l.b16 %v1216
    %v1286 = vunpack.c.h.b16 %v1216
    %v1287 = vunpack.c.l.b16 %v1217
    %v1288 = vunpack.c.h.b16 %v1217
    %v1289 = vunpack.c.l.b16 %v1218
    %v1290 = vunpack.c.h.b16 %v1218
    %v1291 = vunpack.c.l.b16 %v1219
    %v1292 = vunpack.c.h.b16 %v1219
    %v1293 = vunpack.c.l.b16 %v1220
    %v1294 = vunpack.c.h.b16 %v1220
    %v1295 = vunpack.c.l.b16 %v1221
    %v1296 = vunpack.c.h.b16 %v1221
    %v1297 = vunpack.c.l.b16 %v1222
    %v1298 = vunpack.c.h.b16 %v1222
    %v1299 = vunpack.c.l.b16 %v1223
    %v1300 = vunpack.c.h.b16 %v1223
    %v1301 = vunpack.c.l.b16 %v1224
    %v1302 = vunpack.c.h.b16 %v1224
    %v1303 = vunpack.c.l.b16 %v1225
    %v1304 = vunpack.c.h.b16 %v1225
    %v1305 = vunpack.c.l.b16 %v1226
    %v1306 = vunpack.c.h.b16 %v1226
    %v1307 = vunpack.c.l.b16 %v1227
    %v1308 = vunpack.c.h.b16 %v1227
    %v1309 = vunpack.c.l.b16 %v1228
    %v1310 = vunpack.c.h.b16 %v1228
    %v1311 = vunpack.c.l.b16 %v1229
    %v1312 = vunpack.c.h.b16 %v1229
    %v1313 = vunpack.c.l.b16 %v1230
    %v1314 = vunpack.c.h.b16 %v1230
    %v1315 = vunpack.c.l.b16 %v1231
    %v1316 = vunpack.c.h.b16 %v1231
    %v1317 = vunpack.c.l.b16 %v1232
    %v1318 = vunpack.c.h.b16 %v1232
    %v1319 = vunpack.c.l.b16 %v1233
    %v1320 = vunpack.c.h.b16 %v1233
    %v1321 = vunpack.c.l.b16 %v1234
    %v1322 = vunpack.c.h.b16 %v1234
    %v1323 = vunpack.c.l.b16 %v1235
    %v1324 = vunpack.c.h.b16 %v1235
    %v1325 = vunpack.c.l.b16 %v1236
    %v1326 = vunpack.c.h.b16 %v1236
    %v1327 = vunpack.c.l.b16 %v1237
    %v1328 = vunpack.c.h.b16 %v1237
    %v1329 = vunpack.c.l.b16 %v1238
    %v1330 = vunpack.c.h.b16 %v1238
    %v1331 = vunpack.c.l.b16 %v1239
    %v1332 = vunpack.c.h.b16 %v1239
    %v1333 = vunpack.c.l.b16 %v1240
    %v1334 = vunpack.c.h.b16 %v1240
    %v1335 = vunpack.c.l.b16 %v1241
    %v1336 = vunpack.c.h.b16 %v1241
    %v1337 = vunpack.c.l.b16 %v1242
    %v1338 = vunpack.c.h.b16 %v1242
    %v1339 = vpack.c.b16 %v1279, %v1275
    %v1340 = vpack.c.b16 %v1280, %v1276
    %v1341 = vpack.c.b16 %v1281, %v1277
    %v1342 = vpack.c.b16 %v1282, %v1278
    %v1343 = vpack.c.b16 %v1287, %v1283
    %v1344 = vpack.c.b16 %v1288, %v1284
    %v1345 = vpack.c.b16 %v1289, %v1285
    %v1346 = vpack.c.b16 %v1290, %v1286
    %v1347 = vpack.c.b16 %v1295, %v1291
    %v1348 = vpack.c.b16 %v1296, %v1292
    %v1349 = vpack.c.b16 %v1297, %v1293
    %v1350 = vpack.c.b16 %v1298, %v1294
    %v1351 = vpack.c.b16 %v1303, %v1299
    %v1352 = vpack.c.b16 %v1304, %v1300
    %v1353 = vpack.c.b16 %v1305, %v1301
    %v1354 = vpack.c.b16 %v1306, %v1302
    %v1355 = vpack.c.b16 %v1311, %v1307
    %v1356 = vpack.c.b16 %v1312, %v1308
    %v1357 = vpack.c.b16 %v1313, %v1309
    %v1358 = vpack.c.b16 %v1314, %v1310
    %v1359 = vpack.c.b16 %v1319, %v1315
    %v1360 = vpack.c.b16 %v1320, %v1316
    %v1361 = vpack.c.b16 %v1321, %v1317
    %v1362 = vpack.c.b16 %v1322, %v1318
    %v1363 = vpack.c.b16 %v1327, %v1323
    %v1364 = vpack.c.b16 %v1328, %v1324
    %v1365 = vpack.c.b16 %v1329, %v1325
    %v1366 = vpack.c.b16 %v1330, %v1326
    %v1367 = vpack.c.b16 %v1335, %v1331
    %v1368 = vpack.c.b16 %v1336, %v1332
    %v1369 = vpack.c.b16 %v1337, %v1333
    %v1370 = vpack.c.b16 %v1338, %v1334
    %1403 = vmatprep.subr.bf16.mxu0 %v1340
    %1404 = vmatpush1.bf16.msra.mxu0 %v1339
    %1405 = vmatprep.subr.bf16.mxu0 %v1344
    %1406 = vmatpush1.bf16.msra.mxu0 %v1343
    %1407 = vmatprep.subr.bf16.mxu0 %v1348
    %1408 = vmatpush1.bf16.msra.mxu0 %v1347
    %1409 = vmatprep.subr.bf16.mxu0 %v1352
    %1410 = vmatpush1.bf16.msra.mxu0 %v1351
    %1411 = vmatprep.subr.bf16.mxu0 %v1356
    %1412 = vmatpush1.bf16.msra.mxu0 %v1355
    %1413 = vmatprep.subr.bf16.mxu0 %v1360
    %1414 = vmatpush1.bf16.msra.mxu0 %v1359
    %1415 = vmatprep.subr.bf16.mxu0 %v1364
    %1416 = vmatpush1.bf16.msra.mxu0 %v1363
    %1417 = vmatprep.subr.bf16.mxu0 %v1368
    %1418 = vmatpush1.bf16.msra.mxu0 %v1367
    %1419 = vmatprep.subr.bf16.mxu0 0
    %1420 = vmatpush1.bf16.msra.mxu0 0
    %1421 = vmatprep.subr.bf16.mxu0 0
    %1422 = vmatpush1.bf16.msra.mxu0 0
    %1423 = vmatprep.subr.bf16.mxu0 0
    %1424 = vmatpush1.bf16.msra.mxu0 0
    %1425 = vmatprep.subr.bf16.mxu0 0
    %1426 = vmatpush1.bf16.msra.mxu0 0
    %1427 = vmatprep.subr.bf16.mxu0 0
    %1428 = vmatpush1.bf16.msra.mxu0 0
    %1429 = vmatprep.subr.bf16.mxu0 0
    %1430 = vmatpush1.bf16.msra.mxu0 0
    %1431 = vmatprep.subr.bf16.mxu0 0
    %1432 = vmatpush1.bf16.msra.mxu0 0
    %1433 = vmatprep.subr.bf16.mxu0 0
    %1434 = vmatpush1.bf16.msra.mxu0 0
    %1435 = vmatprep.mubr.bf16.mxu0 0
    %1436 = vmatmul.mubr.bf16.gmra.mrb[0].mxu0 %v1209
    %v1437 = vpop.f32.mrb[0].mxu0
    %v1438 = vadd.f32 0.0, %v1437
    %v1439 = vpop.f32.mrb[0].mxu0
    %v1440 = vadd.f32 0.0, %v1439
    %v1441 = vpop.f32.mrb[0].mxu0
    %v1442 = vpop.f32.mrb[0].mxu0
    %1443 = vdwg.mxu0
    %1444 = vmatprep.subr.bf16.mxu0 %v1342
    %1445 = vmatpush1.bf16.msra.mxu0 %v1341
    %1446 = vmatprep.subr.bf16.mxu0 %v1346
    %1447 = vmatpush1.bf16.msra.mxu0 %v1345
    %1448 = vmatprep.subr.bf16.mxu0 %v1350
    %1449 = vmatpush1.bf16.msra.mxu0 %v1349
    %1450 = vmatprep.subr.bf16.mxu0 %v1354
    %1451 = vmatpush1.bf16.msra.mxu0 %v1353
    %1452 = vmatprep.subr.bf16.mxu0 %v1358
    %1453 = vmatpush1.bf16.msra.mxu0 %v1357
    %1454 = vmatprep.subr.bf16.mxu0 %v1362
    %1455 = vmatpush1.bf16.msra.mxu0 %v1361
    %1456 = vmatprep.subr.bf16.mxu0 %v1366
    %1457 = vmatpush1.bf16.msra.mxu0 %v1365
    %1458 = vmatprep.subr.bf16.mxu0 %v1370
    %1459 = vmatpush1.bf16.msra.mxu0 %v1369
    %1460 = vmatprep.subr.bf16.mxu0 0
    %1461 = vmatpush1.bf16.msra.mxu0 0
    %1462 = vmatprep.subr.bf16.mxu0 0
    %1463 = vmatpush1.bf16.msra.mxu0 0
    %1464 = vmatprep.subr.bf16.mxu0 0
    %1465 = vmatpush1.bf16.msra.mxu0 0
    %1466 = vmatprep.subr.bf16.mxu0 0
    %1467 = vmatpush1.bf16.msra.mxu0 0
    %1468 = vmatprep.subr.bf16.mxu0 0
    %1469 = vmatpush1.bf16.msra.mxu0 0
    %1470 = vmatprep.subr.bf16.mxu0 0
    %1471 = vmatpush1.bf16.msra.mxu0 0
    %1472 = vmatprep.subr.bf16.mxu0 0
    %1473 = vmatpush1.bf16.msra.mxu0 0
    %1474 = vmatprep.subr.bf16.mxu0 0
    %1475 = vmatpush1.bf16.msra.mxu0 0
    %1476 = vmatprep.mubr.bf16.mxu0 0
    %1477 = vmatmul.mubr.bf16.gmra.mrb[0].mxu0 %v1209
    %v1478 = vpop.f32.mrb[0].mxu0
    %v1479 = vadd.f32 0.0, %v1478
    %v1480 = vpop.f32.mrb[0].mxu0
    %v1481 = vadd.f32 0.0, %v1480
    %v1482 = vpop.f32.mrb[0].mxu0
    %v1483 = vpop.f32.mrb[0].mxu0
    %1484 = vdwg.mxu0
    %v1485 = vadd.f32 %v1162, %v1438
    %v1486 = vadd.f32 %v1164, %v1440
    %v1487 = vadd.f32 %v1203, %v1479
    %v1488 = vadd.f32 %v1205, %v1481
    %v1489 = vxor.u32 %v1485, 2147483648
    %v1490 = vxor.u32 %v1486, 2147483648
    %v1491 = vxor.u32 %v1487, 2147483648
    %v1492 = vmul.f32 %v1489, 1.442695
    %v1493 = vpow.pop %v1492
    %v1494 = vmul.f32 %v1490, 1.442695
    %v1495 = vpow.pop %v1494
    %v1496 = vmul.f32 %v1491, 1.442695
    %v1497 = vpow.pop %v1496
    %v1498 = vadd.f32 %v1493, 1.0
    %v1499 = vadd.f32 %v1495, 1.0
    %v1500 = vadd.f32 %v1497, 1.0
    %v1501 = vrcp.pop %v1498
    %v1502 = vmul.f32 1.0, %v1501
    %v1503 = vrcp.pop %v1499
    %v1504 = vmul.f32 1.0, %v1503
    %v1505 = vrcp.pop %v1500
    %v1506 = vmul.f32 1.0, %v1505
    %v1507 = vtanh.pop %v1488
    %v1508 = vmul.f32 %v1504, %v488
    %v1509 = vmul.f32 %v1502, %v1507
    %v1510 = vadd.f32 %v1508, %v1509
    %v1511 = vtanh.pop %v1510
    %v1512 = vmul.f32 %v1506, %v1511
    %1513 = vst [vmem:[#allocation3] sm:$0xff] %v1512
    %v1514 = vld [vmem:[#allocation2 + $0x40] sm:$0xff]
    %v1515 = vld [vmem:[#allocation2 + $0x48] sm:$0xff]
    %v1516 = vld [vmem:[#allocation2 + $0x50] sm:$0xff]
    %v1517 = vld [vmem:[#allocation2 + $0x58] sm:$0xff]
    %v1518 = vpack.c.bf16 %v910, %v910
    %v1519 = vld [vmem:[#allocation6] sm:$0xff]
    %v1520 = vld [vmem:[#allocation6 + $0x8] sm:$0xff]
    %v1521 = vld [vmem:[#allocation6 + $0x10] sm:$0xff]
    %v1522 = vld [vmem:[#allocation6 + $0x18] sm:$0xff]
    %v1523 = vld [vmem:[#allocation6 + $0x20] sm:$0xff]
    %v1524 = vld [vmem:[#allocation6 + $0x28] sm:$0xff]
    %v1525 = vld [vmem:[#allocation6 + $0x30] sm:$0xff]
    %v1526 = vld [vmem:[#allocation6 + $0x38] sm:$0xff]
    %v1527 = vld [vmem:[#allocation6 + $0x40] sm:$0xff]
    %v1528 = vld [vmem:[#allocation6 + $0x48] sm:$0xff]
    %v1529 = vld [vmem:[#allocation6 + $0x50] sm:$0xff]
    %v1530 = vld [vmem:[#allocation6 + $0x58] sm:$0xff]
    %v1531 = vld [vmem:[#allocation6 + $0x60] sm:$0xff]
    %v1532 = vld [vmem:[#allocation6 + $0x68] sm:$0xff]
    %v1533 = vld [vmem:[#allocation6 + $0x70] sm:$0xff]
    %v1534 = vld [vmem:[#allocation6 + $0x78] sm:$0xff]
    %v1535 = vld [vmem:[#allocation6 + $0x80] sm:$0xff]
    %v1536 = vld [vmem:[#allocation6 + $0x88] sm:$0xff]
    %v1537 = vld [vmem:[#allocation6 + $0x90] sm:$0xff]
    %v1538 = vld [vmem:[#allocation6 + $0x98] sm:$0xff]
    %v1539 = vld [vmem:[#allocation6 + $0xa0] sm:$0xff]
    %v1540 = vld [vmem:[#allocation6 + $0xa8] sm:$0xff]
    %v1541 = vld [vmem:[#allocation6 + $0xb0] sm:$0xff]
    %v1542 = vld [vmem:[#allocation6 + $0xb8] sm:$0xff]
    %v1543 = vld [vmem:[#allocation6 + $0xc0] sm:$0xff]
    %v1544 = vld [vmem:[#allocation6 + $0xc8] sm:$0xff]
    %v1545 = vld [vmem:[#allocation6 + $0xd0] sm:$0xff]
    %v1546 = vld [vmem:[#allocation6 + $0xd8] sm:$0xff]
    %v1547 = vld [vmem:[#allocation6 + $0xe0] sm:$0xff]
    %v1548 = vld [vmem:[#allocation6 + $0xe8] sm:$0xff]
    %v1549 = vld [vmem:[#allocation6 + $0xf0] sm:$0xff]
    %v1550 = vld [vmem:[#allocation6 + $0xf8] sm:$0xff]
    %v1583 = vunpack.c.l.b16 %v1519
    %v1584 = vunpack.c.h.b16 %v1519
    %v1585 = vunpack.c.l.b16 %v1520
    %v1586 = vunpack.c.h.b16 %v1520
    %v1587 = vunpack.c.l.b16 %v1521
    %v1588 = vunpack.c.h.b16 %v1521
    %v1589 = vunpack.c.l.b16 %v1522
    %v1590 = vunpack.c.h.b16 %v1522
    %v1591 = vunpack.c.l.b16 %v1523
    %v1592 = vunpack.c.h.b16 %v1523
    %v1593 = vunpack.c.l.b16 %v1524
    %v1594 = vunpack.c.h.b16 %v1524
    %v1595 = vunpack.c.l.b16 %v1525
    %v1596 = vunpack.c.h.b16 %v1525
    %v1597 = vunpack.c.l.b16 %v1526
    %v1598 = vunpack.c.h.b16 %v1526
    %v1599 = vunpack.c.l.b16 %v1527
    %v1600 = vunpack.c.h.b16 %v1527
    %v1601 = vunpack.c.l.b16 %v1528
    %v1602 = vunpack.c.h.b16 %v1528
    %v1603 = vunpack.c.l.b16 %v1529
    %v1604 = vunpack.c.h.b16 %v1529
    %v1605 = vunpack.c.l.b16 %v1530
    %v1606 = vunpack.c.h.b16 %v1530
    %v1607 = vunpack.c.l.b16 %v1531
    %v1608 = vunpack.c.h.b16 %v1531
    %v1609 = vunpack.c.l.b16 %v1532
    %v1610 = vunpack.c.h.b16 %v1532
    %v1611 = vunpack.c.l.b16 %v1533
    %v1612 = vunpack.c.h.b16 %v1533
    %v1613 = vunpack.c.l.b16 %v1534
    %v1614 = vunpack.c.h.b16 %v1534
    %v1615 = vunpack.c.l.b16 %v1535
    %v1616 = vunpack.c.h.b16 %v1535
    %v1617 = vunpack.c.l.b16 %v1536
    %v1618 = vunpack.c.h.b16 %v1536
    %v1619 = vunpack.c.l.b16 %v1537
    %v1620 = vunpack.c.h.b16 %v1537
    %v1621 = vunpack.c.l.b16 %v1538
    %v1622 = vunpack.c.h.b16 %v1538
    %v1623 = vunpack.c.l.b16 %v1539
    %v1624 = vunpack.c.h.b16 %v1539
    %v1625 = vunpack.c.l.b16 %v1540
    %v1626 = vunpack.c.h.b16 %v1540
    %v1627 = vunpack.c.l.b16 %v1541
    %v1628 = vunpack.c.h.b16 %v1541
    %v1629 = vunpack.c.l.b16 %v1542
    %v1630 = vunpack.c.h.b16 %v1542
    %v1631 = vunpack.c.l.b16 %v1543
    %v1632 = vunpack.c.h.b16 %v1543
    %v1633 = vunpack.c.l.b16 %v1544
    %v1634 = vunpack.c.h.b16 %v1544
    %v1635 = vunpack.c.l.b16 %v1545
    %v1636 = vunpack.c.h.b16 %v1545
    %v1637 = vunpack.c.l.b16 %v1546
    %v1638 = vunpack.c.h.b16 %v1546
    %v1639 = vunpack.c.l.b16 %v1547
    %v1640 = vunpack.c.h.b16 %v1547
    %v1641 = vunpack.c.l.b16 %v1548
    %v1642 = vunpack.c.h.b16 %v1548
    %v1643 = vunpack.c.l.b16 %v1549
    %v1644 = vunpack.c.h.b16 %v1549
    %v1645 = vunpack.c.l.b16 %v1550
    %v1646 = vunpack.c.h.b16 %v1550
    %v1647 = vpack.c.b16 %v1587, %v1583
    %v1648 = vpack.c.b16 %v1588, %v1584
    %v1649 = vpack.c.b16 %v1589, %v1585
    %v1650 = vpack.c.b16 %v1590, %v1586
    %v1651 = vpack.c.b16 %v1595, %v1591
    %v1652 = vpack.c.b16 %v1596, %v1592
    %v1653 = vpack.c.b16 %v1597, %v1593
    %v1654 = vpack.c.b16 %v1598, %v1594
    %v1655 = vpack.c.b16 %v1603, %v1599
    %v1656 = vpack.c.b16 %v1604, %v1600
    %v1657 = vpack.c.b16 %v1605, %v1601
    %v1658 = vpack.c.b16 %v1606, %v1602
    %v1659 = vpack.c.b16 %v1611, %v1607
    %v1660 = vpack.c.b16 %v1612, %v1608
    %v1661 = vpack.c.b16 %v1613, %v1609
    %v1662 = vpack.c.b16 %v1614, %v1610
    %v1663 = vpack.c.b16 %v1619, %v1615
    %v1664 = vpack.c.b16 %v1620, %v1616
    %v1665 = vpack.c.b16 %v1621, %v1617
    %v1666 = vpack.c.b16 %v1622, %v1618
    %v1667 = vpack.c.b16 %v1627, %v1623
    %v1668 = vpack.c.b16 %v1628, %v1624
    %v1669 = vpack.c.b16 %v1629, %v1625
    %v1670 = vpack.c.b16 %v1630, %v1626
    %v1671 = vpack.c.b16 %v1635, %v1631
    %v1672 = vpack.c.b16 %v1636, %v1632
    %v1673 = vpack.c.b16 %v1637, %v1633
    %v1674 = vpack.c.b16 %v1638, %v1634
    %v1675 = vpack.c.b16 %v1643, %v1639
    %v1676 = vpack.c.b16 %v1644, %v1640
    %v1677 = vpack.c.b16 %v1645, %v1641
    %v1678 = vpack.c.b16 %v1646, %v1642
    %1711 = vmatprep.subr.bf16.mxu0 %v1648
    %1712 = vmatpush1.bf16.msra.mxu0 %v1647
    %1713 = vmatprep.subr.bf16.mxu0 %v1652
    %1714 = vmatpush1.bf16.msra.mxu0 %v1651
    %1715 = vmatprep.subr.bf16.mxu0 %v1656
    %1716 = vmatpush1.bf16.msra.mxu0 %v1655
    %1717 = vmatprep.subr.bf16.mxu0 %v1660
    %1718 = vmatpush1.bf16.msra.mxu0 %v1659
    %1719 = vmatprep.subr.bf16.mxu0 %v1664
    %1720 = vmatpush1.bf16.msra.mxu0 %v1663
    %1721 = vmatprep.subr.bf16.mxu0 %v1668
    %1722 = vmatpush1.bf16.msra.mxu0 %v1667
    %1723 = vmatprep.subr.bf16.mxu0 %v1672
    %1724 = vmatpush1.bf16.msra.mxu0 %v1671
    %1725 = vmatprep.subr.bf16.mxu0 %v1676
    %1726 = vmatpush1.bf16.msra.mxu0 %v1675
    %1727 = vmatprep.subr.bf16.mxu0 0
    %1728 = vmatpush1.bf16.msra.mxu0 0
    %1729 = vmatprep.subr.bf16.mxu0 0
    %1730 = vmatpush1.bf16.msra.mxu0 0
    %1731 = vmatprep.subr.bf16.mxu0 0
    %1732 = vmatpush1.bf16.msra.mxu0 0
    %1733 = vmatprep.subr.bf16.mxu0 0
    %1734 = vmatpush1.bf16.msra.mxu0 0
    %1735 = vmatprep.subr.bf16.mxu0 0
    %1736 = vmatpush1.bf16.msra.mxu0 0
    %1737 = vmatprep.subr.bf16.mxu0 0
    %1738 = vmatpush1.bf16.msra.mxu0 0
    %1739 = vmatprep.subr.bf16.mxu0 0
    %1740 = vmatpush1.bf16.msra.mxu0 0
    %1741 = vmatprep.subr.bf16.mxu0 0
    %1742 = vmatpush1.bf16.msra.mxu0 0
    %1743 = vmatprep.mubr.bf16.mxu0 0
    %1744 = vmatmul.mubr.bf16.gmra.mrb[0].mxu0 %v1518
    %v1745 = vpop.f32.mrb[0].mxu0
    %v1746 = vadd.f32 0.0, %v1745
    %v1747 = vpop.f32.mrb[0].mxu0
    %v1748 = vadd.f32 0.0, %v1747
    %v1749 = vpop.f32.mrb[0].mxu0
    %v1750 = vpop.f32.mrb[0].mxu0
    %1751 = vdwg.mxu0
    %1752 = vmatprep.subr.bf16.mxu0 %v1650
    %1753 = vmatpush1.bf16.msra.mxu0 %v1649
    %1754 = vmatprep.subr.bf16.mxu0 %v1654
    %1755 = vmatpush1.bf16.msra.mxu0 %v1653
    %1756 = vmatprep.subr.bf16.mxu0 %v1658
    %1757 = vmatpush1.bf16.msra.mxu0 %v1657
    %1758 = vmatprep.subr.bf16.mxu0 %v1662
    %1759 = vmatpush1.bf16.msra.mxu0 %v1661
    %1760 = vmatprep.subr.bf16.mxu0 %v1666
    %1761 = vmatpush1.bf16.msra.mxu0 %v1665
    %1762 = vmatprep.subr.bf16.mxu0 %v1670
    %1763 = vmatpush1.bf16.msra.mxu0 %v1669
    %1764 = vmatprep.subr.bf16.mxu0 %v1674
    %1765 = vmatpush1.bf16.msra.mxu0 %v1673
    %1766 = vmatprep.subr.bf16.mxu0 %v1678
    %1767 = vmatpush1.bf16.msra.mxu0 %v1677
    %1768 = vmatprep.subr.bf16.mxu0 0
    %1769 = vmatpush1.bf16.msra.mxu0 0
    %1770 = vmatprep.subr.bf16.mxu0 0
    %1771 = vmatpush1.bf16.msra.mxu0 0
    %1772 = vmatprep.subr.bf16.mxu0 0
    %1773 = vmatpush1.bf16.msra.mxu0 0
    %1774 = vmatprep.subr.bf16.mxu0 0
    %1775 = vmatpush1.bf16.msra.mxu0 0
    %1776 = vmatprep.subr.bf16.mxu0 0
    %1777 = vmatpush1.bf16.msra.mxu0 0
    %1778 = vmatprep.subr.bf16.mxu0 0
    %1779 = vmatpush1.bf16.msra.mxu0 0
    %1780 = vmatprep.subr.bf16.mxu0 0
    %1781 = vmatpush1.bf16.msra.mxu0 0
    %1782 = vmatprep.subr.bf16.mxu0 0
    %1783 = vmatpush1.bf16.msra.mxu0 0
    %1784 = vmatprep.mubr.bf16.mxu0 0
    %1785 = vmatmul.mubr.bf16.gmra.mrb[0].mxu0 %v1518
    %v1786 = vpop.f32.mrb[0].mxu0
    %v1787 = vadd.f32 0.0, %v1786
    %v1788 = vpop.f32.mrb[0].mxu0
    %v1789 = vadd.f32 0.0, %v1788
    %v1790 = vpop.f32.mrb[0].mxu0
    %v1791 = vpop.f32.mrb[0].mxu0
    %1792 = vdwg.mxu0
    %v1793 = vadd.f32 %v1514, %v1746
    %v1794 = vadd.f32 %v1515, %v1748
    %v1795 = vadd.f32 %v1516, %v1787
    %v1796 = vadd.f32 %v1517, %v1789
    %v1797 = vxor.u32 %v1793, 2147483648
    %v1798 = vxor.u32 %v1794, 2147483648
    %v1799 = vxor.u32 %v1795, 2147483648
    %v1800 = vmul.f32 %v1797, 1.442695
    %v1801 = vpow.pop %v1800
    %v1802 = vmul.f32 %v1798, 1.442695
    %v1803 = vpow.pop %v1802
    %v1804 = vmul.f32 %v1799, 1.442695
    %v1805 = vpow.pop %v1804
    %v1806 = vadd.f32 %v1801, 1.0
    %v1807 = vadd.f32 %v1803, 1.0
    %v1808 = vadd.f32 %v1805, 1.0
    %v1809 = vrcp.pop %v1806
    %v1810 = vmul.f32 1.0, %v1809
    %v1811 = vrcp.pop %v1807
    %v1812 = vmul.f32 1.0, %v1811
    %v1813 = vrcp.pop %v1808
    %v1814 = vmul.f32 1.0, %v1813
    %v1815 = vtanh.pop %v1796
    %v1816 = vmul.f32 %v1812, %v908
    %v1817 = vmul.f32 %v1810, %v1815
    %v1818 = vadd.f32 %v1816, %v1817
    %v1819 = vtanh.pop %v1818
    %v1820 = vmul.f32 %v1814, %v1819
    %v1821 = vld [vmem:[%s911] sm:$0xff]
    %v1822 = vld [vmem:[%s911 + $0x8] sm:$0xff]
    %v1823 = vld [vmem:[%s911 + $0x10] sm:$0xff]
    %v1824 = vld [vmem:[%s911 + $0x18] sm:$0xff]
    %v1825 = vld [vmem:[%s911 + $0x20] sm:$0xff]
    %v1826 = vld [vmem:[%s911 + $0x28] sm:$0xff]
    %v1827 = vld [vmem:[%s911 + $0x30] sm:$0xff]
    %v1828 = vld [vmem:[%s911 + $0x38] sm:$0xff]
    %v1829 = vld [vmem:[%s911 + $0x40] sm:$0xff]
    %v1830 = vld [vmem:[%s911 + $0x48] sm:$0xff]
    %v1831 = vld [vmem:[%s911 + $0x50] sm:$0xff]
    %v1832 = vld [vmem:[%s911 + $0x58] sm:$0xff]
    %v1833 = vld [vmem:[%s911 + $0x60] sm:$0xff]
    %v1834 = vld [vmem:[%s911 + $0x68] sm:$0xff]
    %v1835 = vld [vmem:[%s911 + $0x70] sm:$0xff]
    %v1836 = vld [vmem:[%s911 + $0x78] sm:$0xff]
    %v1837 = vld [vmem:[%s911 + $0x80] sm:$0xff]
    %v1838 = vld [vmem:[%s911 + $0x88] sm:$0xff]
    %v1839 = vld [vmem:[%s911 + $0x90] sm:$0xff]
    %v1840 = vld [vmem:[%s911 + $0x98] sm:$0xff]
    %v1841 = vld [vmem:[%s911 + $0xa0] sm:$0xff]
    %v1842 = vld [vmem:[%s911 + $0xa8] sm:$0xff]
    %v1843 = vld [vmem:[%s911 + $0xb0] sm:$0xff]
    %v1844 = vld [vmem:[%s911 + $0xb8] sm:$0xff]
    %v1845 = vld [vmem:[%s911 + $0xc0] sm:$0xff]
    %v1846 = vld [vmem:[%s911 + $0xc8] sm:$0xff]
    %v1847 = vld [vmem:[%s911 + $0xd0] sm:$0xff]
    %v1848 = vld [vmem:[%s911 + $0xd8] sm:$0xff]
    %v1849 = vld [vmem:[%s911 + $0xe0] sm:$0xff]
    %v1850 = vld [vmem:[%s911 + $0xe8] sm:$0xff]
    %v1851 = vld [vmem:[%s911 + $0xf0] sm:$0xff]
    %v1852 = vld [vmem:[%s911 + $0xf8] sm:$0xff]
    %v1853 = vld [vmem:[%s944] sm:$0xf]
    %v1855 = vlaneseq
    %v1856 = vshrl.u32 %v1855, 7
    %v1857 = vsub.s32 0, %v1856
    %v1858 = vrot.slane %v1853, %v1857
    %v1859 = vlaneseq
    %v1860 = vshrl.u32 %v1859, 7
    %v1861 = vsub.s32 1, %v1860
    %v1862 = vrot.slane %v1853, %v1861
    %v1863 = vlaneseq
    %v1864 = vshrl.u32 %v1863, 7
    %v1865 = vsub.s32 2, %v1864
    %v1866 = vrot.slane %v1853, %v1865
    %v1867 = vlaneseq
    %v1868 = vshrl.u32 %v1867, 7
    %v1869 = vsub.s32 3, %v1868
    %v1870 = vrot.slane %v1853, %v1869
    %v1907 = vunpack.c.l.b16 %v1821
    %v1908 = vunpack.c.h.b16 %v1821
    %v1909 = vunpack.c.l.b16 %v1822
    %v1910 = vunpack.c.h.b16 %v1822
    %v1911 = vunpack.c.l.b16 %v1823
    %v1912 = vunpack.c.h.b16 %v1823
    %v1913 = vunpack.c.l.b16 %v1824
    %v1914 = vunpack.c.h.b16 %v1824
    %v1915 = vunpack.c.l.b16 %v1825
    %v1916 = vunpack.c.h.b16 %v1825
    %v1917 = vunpack.c.l.b16 %v1826
    %v1918 = vunpack.c.h.b16 %v1826
    %v1919 = vunpack.c.l.b16 %v1827
    %v1920 = vunpack.c.h.b16 %v1827
    %v1921 = vunpack.c.l.b16 %v1828
    %v1922 = vunpack.c.h.b16 %v1828
    %v1923 = vunpack.c.l.b16 %v1829
    %v1924 = vunpack.c.h.b16 %v1829
    %v1925 = vunpack.c.l.b16 %v1830
    %v1926 = vunpack.c.h.b16 %v1830
    %v1927 = vunpack.c.l.b16 %v1831
    %v1928 = vunpack.c.h.b16 %v1831
    %v1929 = vunpack.c.l.b16 %v1832
    %v1930 = vunpack.c.h.b16 %v1832
    %v1931 = vunpack.c.l.b16 %v1833
    %v1932 = vunpack.c.h.b16 %v1833
    %v1933 = vunpack.c.l.b16 %v1834
    %v1934 = vunpack.c.h.b16 %v1834
    %v1935 = vunpack.c.l.b16 %v1835
    %v1936 = vunpack.c.h.b16 %v1835
    %v1937 = vunpack.c.l.b16 %v1836
    %v1938 = vunpack.c.h.b16 %v1836
    %v1939 = vunpack.c.l.b16 %v1837
    %v1940 = vunpack.c.h.b16 %v1837
    %v1941 = vunpack.c.l.b16 %v1838
    %v1942 = vunpack.c.h.b16 %v1838
    %v1943 = vunpack.c.l.b16 %v1839
    %v1944 = vunpack.c.h.b16 %v1839
    %v1945 = vunpack.c.l.b16 %v1840
    %v1946 = vunpack.c.h.b16 %v1840
    %v1947 = vunpack.c.l.b16 %v1841
    %v1948 = vunpack.c.h.b16 %v1841
    %v1949 = vunpack.c.l.b16 %v1842
    %v1950 = vunpack.c.h.b16 %v1842
    %v1951 = vunpack.c.l.b16 %v1843
    %v1952 = vunpack.c.h.b16 %v1843
    %v1953 = vunpack.c.l.b16 %v1844
    %v1954 = vunpack.c.h.b16 %v1844
    %v1955 = vunpack.c.l.b16 %v1845
    %v1956 = vunpack.c.h.b16 %v1845
    %v1957 = vunpack.c.l.b16 %v1846
    %v1958 = vunpack.c.h.b16 %v1846
    %v1959 = vunpack.c.l.b16 %v1847
    %v1960 = vunpack.c.h.b16 %v1847
    %v1961 = vunpack.c.l.b16 %v1848
    %v1962 = vunpack.c.h.b16 %v1848
    %v1963 = vunpack.c.l.b16 %v1849
    %v1964 = vunpack.c.h.b16 %v1849
    %v1965 = vunpack.c.l.b16 %v1850
    %v1966 = vunpack.c.h.b16 %v1850
    %v1967 = vunpack.c.l.b16 %v1851
    %v1968 = vunpack.c.h.b16 %v1851
    %v1969 = vunpack.c.l.b16 %v1852
    %v1970 = vunpack.c.h.b16 %v1852
    %v1971 = vpack.c.b16 %v1911, %v1907
    %v1972 = vpack.c.b16 %v1912, %v1908
    %v1973 = vpack.c.b16 %v1913, %v1909
    %v1974 = vpack.c.b16 %v1914, %v1910
    %v1975 = vpack.c.b16 %v1919, %v1915
    %v1976 = vpack.c.b16 %v1920, %v1916
    %v1977 = vpack.c.b16 %v1921, %v1917
    %v1978 = vpack.c.b16 %v1922, %v1918
    %v1979 = vpack.c.b16 %v1927, %v1923
    %v1980 = vpack.c.b16 %v1928, %v1924
    %v1981 = vpack.c.b16 %v1929, %v1925
    %v1982 = vpack.c.b16 %v1930, %v1926
    %v1983 = vpack.c.b16 %v1935, %v1931
    %v1984 = vpack.c.b16 %v1936, %v1932
    %v1985 = vpack.c.b16 %v1937, %v1933
    %v1986 = vpack.c.b16 %v1938, %v1934
    %v1987 = vpack.c.b16 %v1943, %v1939
    %v1988 = vpack.c.b16 %v1944, %v1940
    %v1989 = vpack.c.b16 %v1945, %v1941
    %v1990 = vpack.c.b16 %v1946, %v1942
    %v1991 = vpack.c.b16 %v1951, %v1947
    %v1992 = vpack.c.b16 %v1952, %v1948
    %v1993 = vpack.c.b16 %v1953, %v1949
    %v1994 = vpack.c.b16 %v1954, %v1950
    %v1995 = vpack.c.b16 %v1959, %v1955
    %v1996 = vpack.c.b16 %v1960, %v1956
    %v1997 = vpack.c.b16 %v1961, %v1957
    %v1998 = vpack.c.b16 %v1962, %v1958
    %v1999 = vpack.c.b16 %v1967, %v1963
    %v2000 = vpack.c.b16 %v1968, %v1964
    %v2001 = vpack.c.b16 %v1969, %v1965
    %v2002 = vpack.c.b16 %v1970, %v1966
    %2035 = vmatprep.subr.bf16.mxu0 %v1972
    %2036 = vmatpush1.bf16.msra.mxu0 %v1971
    %2037 = vmatprep.subr.bf16.mxu0 %v1976
    %2038 = vmatpush1.bf16.msra.mxu0 %v1975
    %2039 = vmatprep.subr.bf16.mxu0 %v1980
    %2040 = vmatpush1.bf16.msra.mxu0 %v1979
    %2041 = vmatprep.subr.bf16.mxu0 %v1984
    %2042 = vmatpush1.bf16.msra.mxu0 %v1983
    %2043 = vmatprep.subr.bf16.mxu0 %v1988
    %2044 = vmatpush1.bf16.msra.mxu0 %v1987
    %2045 = vmatprep.subr.bf16.mxu0 %v1992
    %2046 = vmatpush1.bf16.msra.mxu0 %v1991
    %2047 = vmatprep.subr.bf16.mxu0 %v1996
    %2048 = vmatpush1.bf16.msra.mxu0 %v1995
    %2049 = vmatprep.subr.bf16.mxu0 %v2000
    %2050 = vmatpush1.bf16.msra.mxu0 %v1999
    %2051 = vmatprep.subr.bf16.mxu0 0
    %2052 = vmatpush1.bf16.msra.mxu0 0
    %2053 = vmatprep.subr.bf16.mxu0 0
    %2054 = vmatpush1.bf16.msra.mxu0 0
    %2055 = vmatprep.subr.bf16.mxu0 0
    %2056 = vmatpush1.bf16.msra.mxu0 0
    %2057 = vmatprep.subr.bf16.mxu0 0
    %2058 = vmatpush1.bf16.msra.mxu0 0
    %2059 = vmatprep.subr.bf16.mxu0 0
    %2060 = vmatpush1.bf16.msra.mxu0 0
    %2061 = vmatprep.subr.bf16.mxu0 0
    %2062 = vmatpush1.bf16.msra.mxu0 0
    %2063 = vmatprep.subr.bf16.mxu0 0
    %2064 = vmatpush1.bf16.msra.mxu0 0
    %2065 = vmatprep.subr.bf16.mxu0 0
    %2066 = vmatpush1.bf16.msra.mxu0 0
    %2067 = vmatprep.mubr.bf16.mxu0 0
    %2068 = vmatmul.mubr.bf16.gmra.mrb[0].mxu0 %v1518
    %v2069 = vpop.f32.mrb[0].mxu0
    %v2070 = vadd.f32 %v1858, %v2069
    %v2071 = vpop.f32.mrb[0].mxu0
    %v2072 = vadd.f32 %v1862, %v2071
    %v2073 = vpop.f32.mrb[0].mxu0
    %v2074 = vpop.f32.mrb[0].mxu0
    %2075 = vdwg.mxu0
    %2076 = vmatprep.subr.bf16.mxu0 %v1974
    %2077 = vmatpush1.bf16.msra.mxu0 %v1973
    %2078 = vmatprep.subr.bf16.mxu0 %v1978
    %2079 = vmatpush1.bf16.msra.mxu0 %v1977
    %2080 = vmatprep.subr.bf16.mxu0 %v1982
    %2081 = vmatpush1.bf16.msra.mxu0 %v1981
    %2082 = vmatprep.subr.bf16.mxu0 %v1986
    %2083 = vmatpush1.bf16.msra.mxu0 %v1985
    %2084 = vmatprep.subr.bf16.mxu0 %v1990
    %2085 = vmatpush1.bf16.msra.mxu0 %v1989
    %2086 = vmatprep.subr.bf16.mxu0 %v1994
    %2087 = vmatpush1.bf16.msra.mxu0 %v1993
    %2088 = vmatprep.subr.bf16.mxu0 %v1998
    %2089 = vmatpush1.bf16.msra.mxu0 %v1997
    %2090 = vmatprep.subr.bf16.mxu0 %v2002
    %2091 = vmatpush1.bf16.msra.mxu0 %v2001
    %2092 = vmatprep.subr.bf16.mxu0 0
    %2093 = vmatpush1.bf16.msra.mxu0 0
    %2094 = vmatprep.subr.bf16.mxu0 0
    %2095 = vmatpush1.bf16.msra.mxu0 0
    %2096 = vmatprep.subr.bf16.mxu0 0
    %2097 = vmatpush1.bf16.msra.mxu0 0
    %2098 = vmatprep.subr.bf16.mxu0 0
    %2099 = vmatpush1.bf16.msra.mxu0 0
    %2100 = vmatprep.subr.bf16.mxu0 0
    %2101 = vmatpush1.bf16.msra.mxu0 0
    %2102 = vmatprep.subr.bf16.mxu0 0
    %2103 = vmatpush1.bf16.msra.mxu0 0
    %2104 = vmatprep.subr.bf16.mxu0 0
    %2105 = vmatpush1.bf16.msra.mxu0 0
    %2106 = vmatprep.subr.bf16.mxu0 0
    %2107 = vmatpush1.bf16.msra.mxu0 0
    %2108 = vmatprep.mubr.bf16.mxu0 0
    %2109 = vmatmul.mubr.bf16.gmra.mrb[0].mxu0 %v1518
    %v2110 = vpop.f32.mrb[0].mxu0
    %v2111 = vadd.f32 %v1866, %v2110
    %v2112 = vpop.f32.mrb[0].mxu0
    %v2113 = vadd.f32 %v1870, %v2112
    %v2114 = vpop.f32.mrb[0].mxu0
    %v2115 = vpop.f32.mrb[0].mxu0
    %2116 = vdwg.mxu0
    %v2117 = vpack.c.bf16 %v1512, %v1512
    %v2118 = vld [vmem:[%s1210] sm:$0xff]
    %v2119 = vld [vmem:[%s1210 + $0x8] sm:$0xff]
    %v2120 = vld [vmem:[%s1210 + $0x10] sm:$0xff]
    %v2121 = vld [vmem:[%s1210 + $0x18] sm:$0xff]
    %v2122 = vld [vmem:[%s1210 + $0x20] sm:$0xff]
    %v2123 = vld [vmem:[%s1210 + $0x28] sm:$0xff]
    %v2124 = vld [vmem:[%s1210 + $0x30] sm:$0xff]
    %v2125 = vld [vmem:[%s1210 + $0x38] sm:$0xff]
    %v2126 = vld [vmem:[%s1210 + $0x40] sm:$0xff]
    %v2127 = vld [vmem:[%s1210 + $0x48] sm:$0xff]
    %v2128 = vld [vmem:[%s1210 + $0x50] sm:$0xff]
    %v2129 = vld [vmem:[%s1210 + $0x58] sm:$0xff]
    %v2130 = vld [vmem:[%s1210 + $0x60] sm:$0xff]
    %v2131 = vld [vmem:[%s1210 + $0x68] sm:$0xff]
    %v2132 = vld [vmem:[%s1210 + $0x70] sm:$0xff]
    %v2133 = vld [vmem:[%s1210 + $0x78] sm:$0xff]
    %v2134 = vld [vmem:[%s1210 + $0x80] sm:$0xff]
    %v2135 = vld [vmem:[%s1210 + $0x88] sm:$0xff]
    %v2136 = vld [vmem:[%s1210 + $0x90] sm:$0xff]
    %v2137 = vld [vmem:[%s1210 + $0x98] sm:$0xff]
    %v2138 = vld [vmem:[%s1210 + $0xa0] sm:$0xff]
    %v2139 = vld [vmem:[%s1210 + $0xa8] sm:$0xff]
    %v2140 = vld [vmem:[%s1210 + $0xb0] sm:$0xff]
    %v2141 = vld [vmem:[%s1210 + $0xb8] sm:$0xff]
    %v2142 = vld [vmem:[%s1210 + $0xc0] sm:$0xff]
    %v2143 = vld [vmem:[%s1210 + $0xc8] sm:$0xff]
    %v2144 = vld [vmem:[%s1210 + $0xd0] sm:$0xff]
    %v2145 = vld [vmem:[%s1210 + $0xd8] sm:$0xff]
    %v2146 = vld [vmem:[%s1210 + $0xe0] sm:$0xff]
    %v2147 = vld [vmem:[%s1210 + $0xe8] sm:$0xff]
    %v2148 = vld [vmem:[%s1210 + $0xf0] sm:$0xff]
    %v2149 = vld [vmem:[%s1210 + $0xf8] sm:$0xff]
    %v2182 = vunpack.c.l.b16 %v2118
    %v2183 = vunpack.c.h.b16 %v2118
    %v2184 = vunpack.c.l.b16 %v2119
    %v2185 = vunpack.c.h.b16 %v2119
    %v2186 = vunpack.c.l.b16 %v2120
    %v2187 = vunpack.c.h.b16 %v2120
    %v2188 = vunpack.c.l.b16 %v2121
    %v2189 = vunpack.c.h.b16 %v2121
    %v2190 = vunpack.c.l.b16 %v2122
    %v2191 = vunpack.c.h.b16 %v2122
    %v2192 = vunpack.c.l.b16 %v2123
    %v2193 = vunpack.c.h.b16 %v2123
    %v2194 = vunpack.c.l.b16 %v2124
    %v2195 = vunpack.c.h.b16 %v2124
    %v2196 = vunpack.c.l.b16 %v2125
    %v2197 = vunpack.c.h.b16 %v2125
    %v2198 = vunpack.c.l.b16 %v2126
    %v2199 = vunpack.c.h.b16 %v2126
    %v2200 = vunpack.c.l.b16 %v2127
    %v2201 = vunpack.c.h.b16 %v2127
    %v2202 = vunpack.c.l.b16 %v2128
    %v2203 = vunpack.c.h.b16 %v2128
    %v2204 = vunpack.c.l.b16 %v2129
    %v2205 = vunpack.c.h.b16 %v2129
    %v2206 = vunpack.c.l.b16 %v2130
    %v2207 = vunpack.c.h.b16 %v2130
    %v2208 = vunpack.c.l.b16 %v2131
    %v2209 = vunpack.c.h.b16 %v2131
    %v2210 = vunpack.c.l.b16 %v2132
    %v2211 = vunpack.c.h.b16 %v2132
    %v2212 = vunpack.c.l.b16 %v2133
    %v2213 = vunpack.c.h.b16 %v2133
    %v2214 = vunpack.c.l.b16 %v2134
    %v2215 = vunpack.c.h.b16 %v2134
    %v2216 = vunpack.c.l.b16 %v2135
    %v2217 = vunpack.c.h.b16 %v2135
    %v2218 = vunpack.c.l.b16 %v2136
    %v2219 = vunpack.c.h.b16 %v2136
    %v2220 = vunpack.c.l.b16 %v2137
    %v2221 = vunpack.c.h.b16 %v2137
    %v2222 = vunpack.c.l.b16 %v2138
    %v2223 = vunpack.c.h.b16 %v2138
    %v2224 = vunpack.c.l.b16 %v2139
    %v2225 = vunpack.c.h.b16 %v2139
    %v2226 = vunpack.c.l.b16 %v2140
    %v2227 = vunpack.c.h.b16 %v2140
    %v2228 = vunpack.c.l.b16 %v2141
    %v2229 = vunpack.c.h.b16 %v2141
    %v2230 = vunpack.c.l.b16 %v2142
    %v2231 = vunpack.c.h.b16 %v2142
    %v2232 = vunpack.c.l.b16 %v2143
    %v2233 = vunpack.c.h.b16 %v2143
    %v2234 = vunpack.c.l.b16 %v2144
    %v2235 = vunpack.c.h.b16 %v2144
    %v2236 = vunpack.c.l.b16 %v2145
    %v2237 = vunpack.c.h.b16 %v2145
    %v2238 = vunpack.c.l.b16 %v2146
    %v2239 = vunpack.c.h.b16 %v2146
    %v2240 = vunpack.c.l.b16 %v2147
    %v2241 = vunpack.c.h.b16 %v2147
    %v2242 = vunpack.c.l.b16 %v2148
    %v2243 = vunpack.c.h.b16 %v2148
    %v2244 = vunpack.c.l.b16 %v2149
    %v2245 = vunpack.c.h.b16 %v2149
    %v2246 = vpack.c.b16 %v2186, %v2182
    %v2247 = vpack.c.b16 %v2187, %v2183
    %v2248 = vpack.c.b16 %v2188, %v2184
    %v2249 = vpack.c.b16 %v2189, %v2185
    %v2250 = vpack.c.b16 %v2194, %v2190
    %v2251 = vpack.c.b16 %v2195, %v2191
    %v2252 = vpack.c.b16 %v2196, %v2192
    %v2253 = vpack.c.b16 %v2197, %v2193
    %v2254 = vpack.c.b16 %v2202, %v2198
    %v2255 = vpack.c.b16 %v2203, %v2199
    %v2256 = vpack.c.b16 %v2204, %v2200
    %v2257 = vpack.c.b16 %v2205, %v2201
    %v2258 = vpack.c.b16 %v2210, %v2206
    %v2259 = vpack.c.b16 %v2211, %v2207
    %v2260 = vpack.c.b16 %v2212, %v2208
    %v2261 = vpack.c.b16 %v2213, %v2209
    %v2262 = vpack.c.b16 %v2218, %v2214
    %v2263 = vpack.c.b16 %v2219, %v2215
    %v2264 = vpack.c.b16 %v2220, %v2216
    %v2265 = vpack.c.b16 %v2221, %v2217
    %v2266 = vpack.c.b16 %v2226, %v2222
    %v2267 = vpack.c.b16 %v2227, %v2223
    %v2268 = vpack.c.b16 %v2228, %v2224
    %v2269 = vpack.c.b16 %v2229, %v2225
    %v2270 = vpack.c.b16 %v2234, %v2230
    %v2271 = vpack.c.b16 %v2235, %v2231
    %v2272 = vpack.c.b16 %v2236, %v2232
    %v2273 = vpack.c.b16 %v2237, %v2233
    %v2274 = vpack.c.b16 %v2242, %v2238
    %v2275 = vpack.c.b16 %v2243, %v2239
    %v2276 = vpack.c.b16 %v2244, %v2240
    %v2277 = vpack.c.b16 %v2245, %v2241
    %2310 = vmatprep.subr.bf16.mxu0 %v2247
    %2311 = vmatpush1.bf16.msra.mxu0 %v2246
    %2312 = vmatprep.subr.bf16.mxu0 %v2251
    %2313 = vmatpush1.bf16.msra.mxu0 %v2250
    %2314 = vmatprep.subr.bf16.mxu0 %v2255
    %2315 = vmatpush1.bf16.msra.mxu0 %v2254
    %2316 = vmatprep.subr.bf16.mxu0 %v2259
    %2317 = vmatpush1.bf16.msra.mxu0 %v2258
    %2318 = vmatprep.subr.bf16.mxu0 %v2263
    %2319 = vmatpush1.bf16.msra.mxu0 %v2262
    %2320 = vmatprep.subr.bf16.mxu0 %v2267
    %2321 = vmatpush1.bf16.msra.mxu0 %v2266
    %2322 = vmatprep.subr.bf16.mxu0 %v2271
    %2323 = vmatpush1.bf16.msra.mxu0 %v2270
    %2324 = vmatprep.subr.bf16.mxu0 %v2275
    %2325 = vmatpush1.bf16.msra.mxu0 %v2274
    %2326 = vmatprep.subr.bf16.mxu0 0
    %2327 = vmatpush1.bf16.msra.mxu0 0
    %2328 = vmatprep.subr.bf16.mxu0 0
    %2329 = vmatpush1.bf16.msra.mxu0 0
    %2330 = vmatprep.subr.bf16.mxu0 0
    %2331 = vmatpush1.bf16.msra.mxu0 0
    %2332 = vmatprep.subr.bf16.mxu0 0
    %2333 = vmatpush1.bf16.msra.mxu0 0
    %2334 = vmatprep.subr.bf16.mxu0 0
    %2335 = vmatpush1.bf16.msra.mxu0 0
    %2336 = vmatprep.subr.bf16.mxu0 0
    %2337 = vmatpush1.bf16.msra.mxu0 0
    %2338 = vmatprep.subr.bf16.mxu0 0
    %2339 = vmatpush1.bf16.msra.mxu0 0
    %2340 = vmatprep.subr.bf16.mxu0 0
    %2341 = vmatpush1.bf16.msra.mxu0 0
    %2342 = vmatprep.mubr.bf16.mxu0 0
    %2343 = vmatmul.mubr.bf16.gmra.mrb[0].mxu0 %v2117
    %v2344 = vpop.f32.mrb[0].mxu0
    %v2345 = vadd.f32 0.0, %v2344
    %v2346 = vpop.f32.mrb[0].mxu0
    %v2347 = vadd.f32 0.0, %v2346
    %v2348 = vpop.f32.mrb[0].mxu0
    %v2349 = vpop.f32.mrb[0].mxu0
    %2350 = vdwg.mxu0
    %2351 = vmatprep.subr.bf16.mxu0 %v2249
    %2352 = vmatpush1.bf16.msra.mxu0 %v2248
    %2353 = vmatprep.subr.bf16.mxu0 %v2253
    %2354 = vmatpush1.bf16.msra.mxu0 %v2252
    %2355 = vmatprep.subr.bf16.mxu0 %v2257
    %2356 = vmatpush1.bf16.msra.mxu0 %v2256
    %2357 = vmatprep.subr.bf16.mxu0 %v2261
    %2358 = vmatpush1.bf16.msra.mxu0 %v2260
    %2359 = vmatprep.subr.bf16.mxu0 %v2265
    %2360 = vmatpush1.bf16.msra.mxu0 %v2264
    %2361 = vmatprep.subr.bf16.mxu0 %v2269
    %2362 = vmatpush1.bf16.msra.mxu0 %v2268
    %2363 = vmatprep.subr.bf16.mxu0 %v2273
    %2364 = vmatpush1.bf16.msra.mxu0 %v2272
    %2365 = vmatprep.subr.bf16.mxu0 %v2277
    %2366 = vmatpush1.bf16.msra.mxu0 %v2276
    %2367 = vmatprep.subr.bf16.mxu0 0
    %2368 = vmatpush1.bf16.msra.mxu0 0
    %2369 = vmatprep.subr.bf16.mxu0 0
    %2370 = vmatpush1.bf16.msra.mxu0 0
    %2371 = vmatprep.subr.bf16.mxu0 0
    %2372 = vmatpush1.bf16.msra.mxu0 0
    %2373 = vmatprep.subr.bf16.mxu0 0
    %2374 = vmatpush1.bf16.msra.mxu0 0
    %2375 = vmatprep.subr.bf16.mxu0 0
    %2376 = vmatpush1.bf16.msra.mxu0 0
    %2377 = vmatprep.subr.bf16.mxu0 0
    %2378 = vmatpush1.bf16.msra.mxu0 0
    %2379 = vmatprep.subr.bf16.mxu0 0
    %2380 = vmatpush1.bf16.msra.mxu0 0
    %2381 = vmatprep.subr.bf16.mxu0 0
    %2382 = vmatpush1.bf16.msra.mxu0 0
    %2383 = vmatprep.mubr.bf16.mxu0 0
    %2384 = vmatmul.mubr.bf16.gmra.mrb[0].mxu0 %v2117
    %v2385 = vpop.f32.mrb[0].mxu0
    %v2386 = vadd.f32 0.0, %v2385
    %v2387 = vpop.f32.mrb[0].mxu0
    %v2388 = vadd.f32 0.0, %v2387
    %v2389 = vpop.f32.mrb[0].mxu0
    %v2390 = vpop.f32.mrb[0].mxu0
    %2391 = vdwg.mxu0
    %v2392 = vadd.f32 %v2070, %v2345
    %v2393 = vadd.f32 %v2072, %v2347
    %v2394 = vadd.f32 %v2111, %v2386
    %v2395 = vadd.f32 %v2113, %v2388
    %v2396 = vxor.u32 %v2392, 2147483648
    %v2397 = vxor.u32 %v2393, 2147483648
    %v2398 = vxor.u32 %v2394, 2147483648
    %v2399 = vmul.f32 %v2396, 1.442695
    %v2400 = vpow.pop %v2399
    %v2401 = vmul.f32 %v2397, 1.442695
    %v2402 = vpow.pop %v2401
    %v2403 = vmul.f32 %v2398, 1.442695
    %v2404 = vpow.pop %v2403
    %v2405 = vadd.f32 %v2400, 1.0
    %v2406 = vadd.f32 %v2402, 1.0
    %v2407 = vadd.f32 %v2404, 1.0
    %v2408 = vrcp.pop %v2405
    %v2409 = vmul.f32 1.0, %v2408
    %v2410 = vrcp.pop %v2406
    %v2411 = vmul.f32 1.0, %v2410
    %v2412 = vrcp.pop %v2407
    %v2413 = vmul.f32 1.0, %v2412
    %v2414 = vtanh.pop %v2395
    %v2415 = vmul.f32 %v2411, %v1510
    %v2416 = vmul.f32 %v2409, %v2414
    %v2417 = vadd.f32 %v2415, %v2416
    %v2418 = vtanh.pop %v2417
    %v2419 = vmul.f32 %v2413, %v2418
    %2420 = vst [vmem:[#allocation3 + $0x8] sm:$0xff] %v2419
    %v2421 = vld [vmem:[#allocation2 + $0x60] sm:$0xff]
    %v2422 = vld [vmem:[#allocation2 + $0x68] sm:$0xff]
    %v2423 = vld [vmem:[#allocation2 + $0x70] sm:$0xff]
    %v2424 = vld [vmem:[#allocation2 + $0x78] sm:$0xff]
    %v2425 = vpack.c.bf16 %v1820, %v1820
    %v2426 = vld [vmem:[#allocation6] sm:$0xff]
    %v2427 = vld [vmem:[#allocation6 + $0x8] sm:$0xff]
    %v2428 = vld [vmem:[#allocation6 + $0x10] sm:$0xff]
    %v2429 = vld [vmem:[#allocation6 + $0x18] sm:$0xff]
    %v2430 = vld [vmem:[#allocation6 + $0x20] sm:$0xff]
    %v2431 = vld [vmem:[#allocation6 + $0x28] sm:$0xff]
    %v2432 = vld [vmem:[#allocation6 + $0x30] sm:$0xff]
    %v2433 = vld [vmem:[#allocation6 + $0x38] sm:$0xff]
    %v2434 = vld [vmem:[#allocation6 + $0x40] sm:$0xff]
    %v2435 = vld [vmem:[#allocation6 + $0x48] sm:$0xff]
    %v2436 = vld [vmem:[#allocation6 + $0x50] sm:$0xff]
    %v2437 = vld [vmem:[#allocation6 + $0x58] sm:$0xff]
    %v2438 = vld [vmem:[#allocation6 + $0x60] sm:$0xff]
    %v2439 = vld [vmem:[#allocation6 + $0x68] sm:$0xff]
    %v2440 = vld [vmem:[#allocation6 + $0x70] sm:$0xff]
    %v2441 = vld [vmem:[#allocation6 + $0x78] sm:$0xff]
    %v2442 = vld [vmem:[#allocation6 + $0x80] sm:$0xff]
    %v2443 = vld [vmem:[#allocation6 + $0x88] sm:$0xff]
    %v2444 = vld [vmem:[#allocation6 + $0x90] sm:$0xff]
    %v2445 = vld [vmem:[#allocation6 + $0x98] sm:$0xff]
    %v2446 = vld [vmem:[#allocation6 + $0xa0] sm:$0xff]
    %v2447 = vld [vmem:[#allocation6 + $0xa8] sm:$0xff]
    %v2448 = vld [vmem:[#allocation6 + $0xb0] sm:$0xff]
    %v2449 = vld [vmem:[#allocation6 + $0xb8] sm:$0xff]
    %v2450 = vld [vmem:[#allocation6 + $0xc0] sm:$0xff]
    %v2451 = vld [vmem:[#allocation6 + $0xc8] sm:$0xff]
    %v2452 = vld [vmem:[#allocation6 + $0xd0] sm:$0xff]
    %v2453 = vld [vmem:[#allocation6 + $0xd8] sm:$0xff]
    %v2454 = vld [vmem:[#allocation6 + $0xe0] sm:$0xff]
    %v2455 = vld [vmem:[#allocation6 + $0xe8] sm:$0xff]
    %v2456 = vld [vmem:[#allocation6 + $0xf0] sm:$0xff]
    %v2457 = vld [vmem:[#allocation6 + $0xf8] sm:$0xff]
    %v2490 = vunpack.c.l.b16 %v2426
    %v2491 = vunpack.c.h.b16 %v2426
    %v2492 = vunpack.c.l.b16 %v2427
    %v2493 = vunpack.c.h.b16 %v2427
    %v2494 = vunpack.c.l.b16 %v2428
    %v2495 = vunpack.c.h.b16 %v2428
    %v2496 = vunpack.c.l.b16 %v2429
    %v2497 = vunpack.c.h.b16 %v2429
    %v2498 = vunpack.c.l.b16 %v2430
    %v2499 = vunpack.c.h.b16 %v2430
    %v2500 = vunpack.c.l.b16 %v2431
    %v2501 = vunpack.c.h.b16 %v2431
    %v2502 = vunpack.c.l.b16 %v2432
    %v2503 = vunpack.c.h.b16 %v2432
    %v2504 = vunpack.c.l.b16 %v2433
    %v2505 = vunpack.c.h.b16 %v2433
    %v2506 = vunpack.c.l.b16 %v2434
    %v2507 = vunpack.c.h.b16 %v2434
    %v2508 = vunpack.c.l.b16 %v2435
    %v2509 = vunpack.c.h.b16 %v2435
    %v2510 = vunpack.c.l.b16 %v2436
    %v2511 = vunpack.c.h.b16 %v2436
    %v2512 = vunpack.c.l.b16 %v2437
    %v2513 = vunpack.c.h.b16 %v2437
    %v2514 = vunpack.c.l.b16 %v2438
    %v2515 = vunpack.c.h.b16 %v2438
    %v2516 = vunpack.c.l.b16 %v2439
    %v2517 = vunpack.c.h.b16 %v2439
    %v2518 = vunpack.c.l.b16 %v2440
    %v2519 = vunpack.c.h.b16 %v2440
    %v2520 = vunpack.c.l.b16 %v2441
    %v2521 = vunpack.c.h.b16 %v2441
    %v2522 = vunpack.c.l.b16 %v2442
    %v2523 = vunpack.c.h.b16 %v2442
    %v2524 = vunpack.c.l.b16 %v2443
    %v2525 = vunpack.c.h.b16 %v2443
    %v2526 = vunpack.c.l.b16 %v2444
    %v2527 = vunpack.c.h.b16 %v2444
    %v2528 = vunpack.c.l.b16 %v2445
    %v2529 = vunpack.c.h.b16 %v2445
    %v2530 = vunpack.c.l.b16 %v2446
    %v2531 = vunpack.c.h.b16 %v2446
    %v2532 = vunpack.c.l.b16 %v2447
    %v2533 = vunpack.c.h.b16 %v2447
    %v2534 = vunpack.c.l.b16 %v2448
    %v2535 = vunpack.c.h.b16 %v2448
    %v2536 = vunpack.c.l.b16 %v2449
    %v2537 = vunpack.c.h.b16 %v2449
    %v2538 = vunpack.c.l.b16 %v2450
    %v2539 = vunpack.c.h.b16 %v2450
    %v2540 = vunpack.c.l.b16 %v2451
    %v2541 = vunpack.c.h.b16 %v2451
    %v2542 = vunpack.c.l.b16 %v2452
    %v2543 = vunpack.c.h.b16 %v2452
    %v2544 = vunpack.c.l.b16 %v2453
    %v2545 = vunpack.c.h.b16 %v2453
    %v2546 = vunpack.c.l.b16 %v2454
    %v2547 = vunpack.c.h.b16 %v2454
    %v2548 = vunpack.c.l.b16 %v2455
    %v2549 = vunpack.c.h.b16 %v2455
    %v2550 = vunpack.c.l.b16 %v2456
    %v2551 = vunpack.c.h.b16 %v2456
    %v2552 = vunpack.c.l.b16 %v2457
    %v2553 = vunpack.c.h.b16 %v2457
    %v2554 = vpack.c.b16 %v2494, %v2490
    %v2555 = vpack.c.b16 %v2495, %v2491
    %v2556 = vpack.c.b16 %v2496, %v2492
    %v2557 = vpack.c.b16 %v2497, %v2493
    %v2558 = vpack.c.b16 %v2502, %v2498
    %v2559 = vpack.c.b16 %v2503, %v2499
    %v2560 = vpack.c.b16 %v2504, %v2500
    %v2561 = vpack.c.b16 %v2505, %v2501
    %v2562 = vpack.c.b16 %v2510, %v2506
    %v2563 = vpack.c.b16 %v2511, %v2507
    %v2564 = vpack.c.b16 %v2512, %v2508
    %v2565 = vpack.c.b16 %v2513, %v2509
    %v2566 = vpack.c.b16 %v2518, %v2514
    %v2567 = vpack.c.b16 %v2519, %v2515
    %v2568 = vpack.c.b16 %v2520, %v2516
    %v2569 = vpack.c.b16 %v2521, %v2517
    %v2570 = vpack.c.b16 %v2526, %v2522
    %v2571 = vpack.c.b16 %v2527, %v2523
    %v2572 = vpack.c.b16 %v2528, %v2524
    %v2573 = vpack.c.b16 %v2529, %v2525
    %v2574 = vpack.c.b16 %v2534, %v2530
    %v2575 = vpack.c.b16 %v2535, %v2531
    %v2576 = vpack.c.b16 %v2536, %v2532
    %v2577 = vpack.c.b16 %v2537, %v2533
    %v2578 = vpack.c.b16 %v2542, %v2538
    %v2579 = vpack.c.b16 %v2543, %v2539
    %v2580 = vpack.c.b16 %v2544, %v2540
    %v2581 = vpack.c.b16 %v2545, %v2541
    %v2582 = vpack.c.b16 %v2550, %v2546
    %v2583 = vpack.c.b16 %v2551, %v2547
    %v2584 = vpack.c.b16 %v2552, %v2548
    %v2585 = vpack.c.b16 %v2553, %v2549
    %2618 = vmatprep.subr.bf16.mxu0 %v2555
    %2619 = vmatpush1.bf16.msra.mxu0 %v2554
    %2620 = vmatprep.subr.bf16.mxu0 %v2559
    %2621 = vmatpush1.bf16.msra.mxu0 %v2558
    %2622 = vmatprep.subr.bf16.mxu0 %v2563
    %2623 = vmatpush1.bf16.msra.mxu0 %v2562
    %2624 = vmatprep.subr.bf16.mxu0 %v2567
    %2625 = vmatpush1.bf16.msra.mxu0 %v2566
    %2626 = vmatprep.subr.bf16.mxu0 %v2571
    %2627 = vmatpush1.bf16.msra.mxu0 %v2570
    %2628 = vmatprep.subr.bf16.mxu0 %v2575
    %2629 = vmatpush1.bf16.msra.mxu0 %v2574
    %2630 = vmatprep.subr.bf16.mxu0 %v2579
    %2631 = vmatpush1.bf16.msra.mxu0 %v2578
    %2632 = vmatprep.subr.bf16.mxu0 %v2583
    %2633 = vmatpush1.bf16.msra.mxu0 %v2582
    %2634 = vmatprep.subr.bf16.mxu0 0
    %2635 = vmatpush1.bf16.msra.mxu0 0
    %2636 = vmatprep.subr.bf16.mxu0 0
    %2637 = vmatpush1.bf16.msra.mxu0 0
    %2638 = vmatprep.subr.bf16.mxu0 0
    %2639 = vmatpush1.bf16.msra.mxu0 0
    %2640 = vmatprep.subr.bf16.mxu0 0
    %2641 = vmatpush1.bf16.msra.mxu0 0
    %2642 = vmatprep.subr.bf16.mxu0 0
    %2643 = vmatpush1.bf16.msra.mxu0 0
    %2644 = vmatprep.subr.bf16.mxu0 0
    %2645 = vmatpush1.bf16.msra.mxu0 0
    %2646 = vmatprep.subr.bf16.mxu0 0
    %2647 = vmatpush1.bf16.msra.mxu0 0
    %2648 = vmatprep.subr.bf16.mxu0 0
    %2649 = vmatpush1.bf16.msra.mxu0 0
    %2650 = vmatprep.mubr.bf16.mxu0 0
    %2651 = vmatmul.mubr.bf16.gmra.mrb[0].mxu0 %v2425
    %v2652 = vpop.f32.mrb[0].mxu0
    %v2653 = vadd.f32 0.0, %v2652
    %v2654 = vpop.f32.mrb[0].mxu0
    %v2655 = vadd.f32 0.0, %v2654
    %v2656 = vpop.f32.mrb[0].mxu0
    %v2657 = vpop.f32.mrb[0].mxu0
    %2658 = vdwg.mxu0
    %2659 = vmatprep.subr.bf16.mxu0 %v2557
    %2660 = vmatpush1.bf16.msra.mxu0 %v2556
    %2661 = vmatprep.subr.bf16.mxu0 %v2561
    %2662 = vmatpush1.bf16.msra.mxu0 %v2560
    %2663 = vmatprep.subr.bf16.mxu0 %v2565
    %2664 = vmatpush1.bf16.msra.mxu0 %v2564
    %2665 = vmatprep.subr.bf16.mxu0 %v2569
    %2666 = vmatpush1.bf16.msra.mxu0 %v2568
    %2667 = vmatprep.subr.bf16.mxu0 %v2573
    %2668 = vmatpush1.bf16.msra.mxu0 %v2572
    %2669 = vmatprep.subr.bf16.mxu0 %v2577
    %2670 = vmatpush1.bf16.msra.mxu0 %v2576
    %2671 = vmatprep.subr.bf16.mxu0 %v2581
    %2672 = vmatpush1.bf16.msra.mxu0 %v2580
    %2673 = vmatprep.subr.bf16.mxu0 %v2585
    %2674 = vmatpush1.bf16.msra.mxu0 %v2584
    %2675 = vmatprep.subr.bf16.mxu0 0
    %2676 = vmatpush1.bf16.msra.mxu0 0
    %2677 = vmatprep.subr.bf16.mxu0 0
    %2678 = vmatpush1.bf16.msra.mxu0 0
    %2679 = vmatprep.subr.bf16.mxu0 0
    %2680 = vmatpush1.bf16.msra.mxu0 0
    %2681 = vmatprep.subr.bf16.mxu0 0
    %2682 = vmatpush1.bf16.msra.mxu0 0
    %2683 = vmatprep.subr.bf16.mxu0 0
    %2684 = vmatpush1.bf16.msra.mxu0 0
    %2685 = vmatprep.subr.bf16.mxu0 0
    %2686 = vmatpush1.bf16.msra.mxu0 0
    %2687 = vmatprep.subr.bf16.mxu0 0
    %2688 = vmatpush1.bf16.msra.mxu0 0
    %2689 = vmatprep.subr.bf16.mxu0 0
    %2690 = vmatpush1.bf16.msra.mxu0 0
    %2691 = vmatprep.mubr.bf16.mxu0 0
    %2692 = vmatmul.mubr.bf16.gmra.mrb[0].mxu0 %v2425
    %v2693 = vpop.f32.mrb[0].mxu0
    %v2694 = vadd.f32 0.0, %v2693
    %v2695 = vpop.f32.mrb[0].mxu0
    %v2696 = vadd.f32 0.0, %v2695
    %v2697 = vpop.f32.mrb[0].mxu0
    %v2698 = vpop.f32.mrb[0].mxu0
    %2699 = vdwg.mxu0
    %v2700 = vadd.f32 %v2421, %v2653
    %v2701 = vadd.f32 %v2422, %v2655
    %v2702 = vadd.f32 %v2423, %v2694
    %v2703 = vadd.f32 %v2424, %v2696
    %v2704 = vxor.u32 %v2700, 2147483648
    %v2705 = vxor.u32 %v2701, 2147483648
    %v2706 = vxor.u32 %v2702, 2147483648
    %v2707 = vmul.f32 %v2704, 1.442695
    %v2708 = vpow.pop %v2707
    %v2709 = vmul.f32 %v2705, 1.442695
    %v2710 = vpow.pop %v2709
    %v2711 = vmul.f32 %v2706, 1.442695
    %v2712 = vpow.pop %v2711
    %v2713 = vadd.f32 %v2708, 1.0
    %v2714 = vadd.f32 %v2710, 1.0
    %v2715 = vadd.f32 %v2712, 1.0
    %v2716 = vrcp.pop %v2713
    %v2717 = vmul.f32 1.0, %v2716
    %v2718 = vrcp.pop %v2714
    %v2719 = vmul.f32 1.0, %v2718
    %v2720 = vrcp.pop %v2715
    %v2721 = vmul.f32 1.0, %v2720
    %v2722 = vtanh.pop %v2703
    %v2723 = vmul.f32 %v2719, %v1818
    %v2724 = vmul.f32 %v2717, %v2722
    %v2725 = vadd.f32 %v2723, %v2724
    %v2726 = vtanh.pop %v2725
    %v2727 = vmul.f32 %v2721, %v2726
    %v2728 = vld [vmem:[%s911] sm:$0xff]
    %v2729 = vld [vmem:[%s911 + $0x8] sm:$0xff]
    %v2730 = vld [vmem:[%s911 + $0x10] sm:$0xff]
    %v2731 = vld [vmem:[%s911 + $0x18] sm:$0xff]
    %v2732 = vld [vmem:[%s911 + $0x20] sm:$0xff]
    %v2733 = vld [vmem:[%s911 + $0x28] sm:$0xff]
    %v2734 = vld [vmem:[%s911 + $0x30] sm:$0xff]
    %v2735 = vld [vmem:[%s911 + $0x38] sm:$0xff]
    %v2736 = vld [vmem:[%s911 + $0x40] sm:$0xff]
    %v2737 = vld [vmem:[%s911 + $0x48] sm:$0xff]
    %v2738 = vld [vmem:[%s911 + $0x50] sm:$0xff]
    %v2739 = vld [vmem:[%s911 + $0x58] sm:$0xff]
    %v2740 = vld [vmem:[%s911 + $0x60] sm:$0xff]
    %v2741 = vld [vmem:[%s911 + $0x68] sm:$0xff]
    %v2742 = vld [vmem:[%s911 + $0x70] sm:$0xff]
    %v2743 = vld [vmem:[%s911 + $0x78] sm:$0xff]
    %v2744 = vld [vmem:[%s911 + $0x80] sm:$0xff]
    %v2745 = vld [vmem:[%s911 + $0x88] sm:$0xff]
    %v2746 = vld [vmem:[%s911 + $0x90] sm:$0xff]
    %v2747 = vld [vmem:[%s911 + $0x98] sm:$0xff]
    %v2748 = vld [vmem:[%s911 + $0xa0] sm:$0xff]
    %v2749 = vld [vmem:[%s911 + $0xa8] sm:$0xff]
    %v2750 = vld [vmem:[%s911 + $0xb0] sm:$0xff]
    %v2751 = vld [vmem:[%s911 + $0xb8] sm:$0xff]
    %v2752 = vld [vmem:[%s911 + $0xc0] sm:$0xff]
    %v2753 = vld [vmem:[%s911 + $0xc8] sm:$0xff]
    %v2754 = vld [vmem:[%s911 + $0xd0] sm:$0xff]
    %v2755 = vld [vmem:[%s911 + $0xd8] sm:$0xff]
    %v2756 = vld [vmem:[%s911 + $0xe0] sm:$0xff]
    %v2757 = vld [vmem:[%s911 + $0xe8] sm:$0xff]
    %v2758 = vld [vmem:[%s911 + $0xf0] sm:$0xff]
    %v2759 = vld [vmem:[%s911 + $0xf8] sm:$0xff]
    %v2760 = vld [vmem:[%s944] sm:$0xf]
    %v2762 = vlaneseq
    %v2763 = vshrl.u32 %v2762, 7
    %v2764 = vsub.s32 0, %v2763
    %v2765 = vrot.slane %v2760, %v2764
    %v2766 = vlaneseq
    %v2767 = vshrl.u32 %v2766, 7
    %v2768 = vsub.s32 1, %v2767
    %v2769 = vrot.slane %v2760, %v2768
    %v2770 = vlaneseq
    %v2771 = vshrl.u32 %v2770, 7
    %v2772 = vsub.s32 2, %v2771
    %v2773 = vrot.slane %v2760, %v2772
    %v2774 = vlaneseq
    %v2775 = vshrl.u32 %v2774, 7
    %v2776 = vsub.s32 3, %v2775
    %v2777 = vrot.slane %v2760, %v2776
    %v2814 = vunpack.c.l.b16 %v2728
    %v2815 = vunpack.c.h.b16 %v2728
    %v2816 = vunpack.c.l.b16 %v2729
    %v2817 = vunpack.c.h.b16 %v2729
    %v2818 = vunpack.c.l.b16 %v2730
    %v2819 = vunpack.c.h.b16 %v2730
    %v2820 = vunpack.c.l.b16 %v2731
    %v2821 = vunpack.c.h.b16 %v2731
    %v2822 = vunpack.c.l.b16 %v2732
    %v2823 = vunpack.c.h.b16 %v2732
    %v2824 = vunpack.c.l.b16 %v2733
    %v2825 = vunpack.c.h.b16 %v2733
    %v2826 = vunpack.c.l.b16 %v2734
    %v2827 = vunpack.c.h.b16 %v2734
    %v2828 = vunpack.c.l.b16 %v2735
    %v2829 = vunpack.c.h.b16 %v2735
    %v2830 = vunpack.c.l.b16 %v2736
    %v2831 = vunpack.c.h.b16 %v2736
    %v2832 = vunpack.c.l.b16 %v2737
    %v2833 = vunpack.c.h.b16 %v2737
    %v2834 = vunpack.c.l.b16 %v2738
    %v2835 = vunpack.c.h.b16 %v2738
    %v2836 = vunpack.c.l.b16 %v2739
    %v2837 = vunpack.c.h.b16 %v2739
    %v2838 = vunpack.c.l.b16 %v2740
    %v2839 = vunpack.c.h.b16 %v2740
    %v2840 = vunpack.c.l.b16 %v2741
    %v2841 = vunpack.c.h.b16 %v2741
    %v2842 = vunpack.c.l.b16 %v2742
    %v2843 = vunpack.c.h.b16 %v2742
    %v2844 = vunpack.c.l.b16 %v2743
    %v2845 = vunpack.c.h.b16 %v2743
    %v2846 = vunpack.c.l.b16 %v2744
    %v2847 = vunpack.c.h.b16 %v2744
    %v2848 = vunpack.c.l.b16 %v2745
    %v2849 = vunpack.c.h.b16 %v2745
    %v2850 = vunpack.c.l.b16 %v2746
    %v2851 = vunpack.c.h.b16 %v2746
    %v2852 = vunpack.c.l.b16 %v2747
    %v2853 = vunpack.c.h.b16 %v2747
    %v2854 = vunpack.c.l.b16 %v2748
    %v2855 = vunpack.c.h.b16 %v2748
    %v2856 = vunpack.c.l.b16 %v2749
    %v2857 = vunpack.c.h.b16 %v2749
    %v2858 = vunpack.c.l.b16 %v2750
    %v2859 = vunpack.c.h.b16 %v2750
    %v2860 = vunpack.c.l.b16 %v2751
    %v2861 = vunpack.c.h.b16 %v2751
    %v2862 = vunpack.c.l.b16 %v2752
    %v2863 = vunpack.c.h.b16 %v2752
    %v2864 = vunpack.c.l.b16 %v2753
    %v2865 = vunpack.c.h.b16 %v2753
    %v2866 = vunpack.c.l.b16 %v2754
    %v2867 = vunpack.c.h.b16 %v2754
    %v2868 = vunpack.c.l.b16 %v2755
    %v2869 = vunpack.c.h.b16 %v2755
    %v2870 = vunpack.c.l.b16 %v2756
    %v2871 = vunpack.c.h.b16 %v2756
    %v2872 = vunpack.c.l.b16 %v2757
    %v2873 = vunpack.c.h.b16 %v2757
    %v2874 = vunpack.c.l.b16 %v2758
    %v2875 = vunpack.c.h.b16 %v2758
    %v2876 = vunpack.c.l.b16 %v2759
    %v2877 = vunpack.c.h.b16 %v2759
    %v2878 = vpack.c.b16 %v2818, %v2814
    %v2879 = vpack.c.b16 %v2819, %v2815
    %v2880 = vpack.c.b16 %v2820, %v2816
    %v2881 = vpack.c.b16 %v2821, %v2817
    %v2882 = vpack.c.b16 %v2826, %v2822
    %v2883 = vpack.c.b16 %v2827, %v2823
    %v2884 = vpack.c.b16 %v2828, %v2824
    %v2885 = vpack.c.b16 %v2829, %v2825
    %v2886 = vpack.c.b16 %v2834, %v2830
    %v2887 = vpack.c.b16 %v2835, %v2831
    %v2888 = vpack.c.b16 %v2836, %v2832
    %v2889 = vpack.c.b16 %v2837, %v2833
    %v2890 = vpack.c.b16 %v2842, %v2838
    %v2891 = vpack.c.b16 %v2843, %v2839
    %v2892 = vpack.c.b16 %v2844, %v2840
    %v2893 = vpack.c.b16 %v2845, %v2841
    %v2894 = vpack.c.b16 %v2850, %v2846
    %v2895 = vpack.c.b16 %v2851, %v2847
    %v2896 = vpack.c.b16 %v2852, %v2848
    %v2897 = vpack.c.b16 %v2853, %v2849
    %v2898 = vpack.c.b16 %v2858, %v2854
    %v2899 = vpack.c.b16 %v2859, %v2855
    %v2900 = vpack.c.b16 %v2860, %v2856
    %v2901 = vpack.c.b16 %v2861, %v2857
    %v2902 = vpack.c.b16 %v2866, %v2862
    %v2903 = vpack.c.b16 %v2867, %v2863
    %v2904 = vpack.c.b16 %v2868, %v2864
    %v2905 = vpack.c.b16 %v2869, %v2865
    %v2906 = vpack.c.b16 %v2874, %v2870
    %v2907 = vpack.c.b16 %v2875, %v2871
    %v2908 = vpack.c.b16 %v2876, %v2872
    %v2909 = vpack.c.b16 %v2877, %v2873
    %2942 = vmatprep.subr.bf16.mxu0 %v2879
    %2943 = vmatpush1.bf16.msra.mxu0 %v2878
    %2944 = vmatprep.subr.bf16.mxu0 %v2883
    %2945 = vmatpush1.bf16.msra.mxu0 %v2882
    %2946 = vmatprep.subr.bf16.mxu0 %v2887
    %2947 = vmatpush1.bf16.msra.mxu0 %v2886
    %2948 = vmatprep.subr.bf16.mxu0 %v2891
    %2949 = vmatpush1.bf16.msra.mxu0 %v2890
    %2950 = vmatprep.subr.bf16.mxu0 %v2895
    %2951 = vmatpush1.bf16.msra.mxu0 %v2894
    %2952 = vmatprep.subr.bf16.mxu0 %v2899
    %2953 = vmatpush1.bf16.msra.mxu0 %v2898
    %2954 = vmatprep.subr.bf16.mxu0 %v2903
    %2955 = vmatpush1.bf16.msra.mxu0 %v2902
    %2956 = vmatprep.subr.bf16.mxu0 %v2907
    %2957 = vmatpush1.bf16.msra.mxu0 %v2906
    %2958 = vmatprep.subr.bf16.mxu0 0
    %2959 = vmatpush1.bf16.msra.mxu0 0
    %2960 = vmatprep.subr.bf16.mxu0 0
    %2961 = vmatpush1.bf16.msra.mxu0 0
    %2962 = vmatprep.subr.bf16.mxu0 0
    %2963 = vmatpush1.bf16.msra.mxu0 0
    %2964 = vmatprep.subr.bf16.mxu0 0
    %2965 = vmatpush1.bf16.msra.mxu0 0
    %2966 = vmatprep.subr.bf16.mxu0 0
    %2967 = vmatpush1.bf16.msra.mxu0 0
    %2968 = vmatprep.subr.bf16.mxu0 0
    %2969 = vmatpush1.bf16.msra.mxu0 0
    %2970 = vmatprep.subr.bf16.mxu0 0
    %2971 = vmatpush1.bf16.msra.mxu0 0
    %2972 = vmatprep.subr.bf16.mxu0 0
    %2973 = vmatpush1.bf16.msra.mxu0 0
    %2974 = vmatprep.mubr.bf16.mxu0 0
    %2975 = vmatmul.mubr.bf16.gmra.mrb[0].mxu0 %v2425
    %v2976 = vpop.f32.mrb[0].mxu0
    %v2977 = vadd.f32 %v2765, %v2976
    %v2978 = vpop.f32.mrb[0].mxu0
    %v2979 = vadd.f32 %v2769, %v2978
    %v2980 = vpop.f32.mrb[0].mxu0
    %v2981 = vpop.f32.mrb[0].mxu0
    %2982 = vdwg.mxu0
    %2983 = vmatprep.subr.bf16.mxu0 %v2881
    %2984 = vmatpush1.bf16.msra.mxu0 %v2880
    %2985 = vmatprep.subr.bf16.mxu0 %v2885
    %2986 = vmatpush1.bf16.msra.mxu0 %v2884
    %2987 = vmatprep.subr.bf16.mxu0 %v2889
    %2988 = vmatpush1.bf16.msra.mxu0 %v2888
    %2989 = vmatprep.subr.bf16.mxu0 %v2893
    %2990 = vmatpush1.bf16.msra.mxu0 %v2892
    %2991 = vmatprep.subr.bf16.mxu0 %v2897
    %2992 = vmatpush1.bf16.msra.mxu0 %v2896
    %2993 = vmatprep.subr.bf16.mxu0 %v2901
    %2994 = vmatpush1.bf16.msra.mxu0 %v2900
    %2995 = vmatprep.subr.bf16.mxu0 %v2905
    %2996 = vmatpush1.bf16.msra.mxu0 %v2904
    %2997 = vmatprep.subr.bf16.mxu0 %v2909
    %2998 = vmatpush1.bf16.msra.mxu0 %v2908
    %2999 = vmatprep.subr.bf16.mxu0 0
    %3000 = vmatpush1.bf16.msra.mxu0 0
    %3001 = vmatprep.subr.bf16.mxu0 0
    %3002 = vmatpush1.bf16.msra.mxu0 0
    %3003 = vmatprep.subr.bf16.mxu0 0
    %3004 = vmatpush1.bf16.msra.mxu0 0
    %3005 = vmatprep.subr.bf16.mxu0 0
    %3006 = vmatpush1.bf16.msra.mxu0 0
    %3007 = vmatprep.subr.bf16.mxu0 0
    %3008 = vmatpush1.bf16.msra.mxu0 0
    %3009 = vmatprep.subr.bf16.mxu0 0
    %3010 = vmatpush1.bf16.msra.mxu0 0
    %3011 = vmatprep.subr.bf16.mxu0 0
    %3012 = vmatpush1.bf16.msra.mxu0 0
    %3013 = vmatprep.subr.bf16.mxu0 0
    %3014 = vmatpush1.bf16.msra.mxu0 0
    %3015 = vmatprep.mubr.bf16.mxu0 0
    %3016 = vmatmul.mubr.bf16.gmra.mrb[0].mxu0 %v2425
    %v3017 = vpop.f32.mrb[0].mxu0
    %v3018 = vadd.f32 %v2773, %v3017
    %v3019 = vpop.f32.mrb[0].mxu0
    %v3020 = vadd.f32 %v2777, %v3019
    %v3021 = vpop.f32.mrb[0].mxu0
    %v3022 = vpop.f32.mrb[0].mxu0
    %3023 = vdwg.mxu0
    %v3024 = vpack.c.bf16 %v2419, %v2419
    %v3025 = vld [vmem:[%s1210] sm:$0xff]
    %v3026 = vld [vmem:[%s1210 + $0x8] sm:$0xff]
    %v3027 = vld [vmem:[%s1210 + $0x10] sm:$0xff]
    %v3028 = vld [vmem:[%s1210 + $0x18] sm:$0xff]
    %v3029 = vld [vmem:[%s1210 + $0x20] sm:$0xff]
    %v3030 = vld [vmem:[%s1210 + $0x28] sm:$0xff]
    %v3031 = vld [vmem:[%s1210 + $0x30] sm:$0xff]
    %v3032 = vld [vmem:[%s1210 + $0x38] sm:$0xff]
    %v3033 = vld [vmem:[%s1210 + $0x40] sm:$0xff]
    %v3034 = vld [vmem:[%s1210 + $0x48] sm:$0xff]
    %v3035 = vld [vmem:[%s1210 + $0x50] sm:$0xff]
    %v3036 = vld [vmem:[%s1210 + $0x58] sm:$0xff]
    %v3037 = vld [vmem:[%s1210 + $0x60] sm:$0xff]
    %v3038 = vld [vmem:[%s1210 + $0x68] sm:$0xff]
    %v3039 = vld [vmem:[%s1210 + $0x70] sm:$0xff]
    %v3040 = vld [vmem:[%s1210 + $0x78] sm:$0xff]
    %v3041 = vld [vmem:[%s1210 + $0x80] sm:$0xff]
    %v3042 = vld [vmem:[%s1210 + $0x88] sm:$0xff]
    %v3043 = vld [vmem:[%s1210 + $0x90] sm:$0xff]
    %v3044 = vld [vmem:[%s1210 + $0x98] sm:$0xff]
    %v3045 = vld [vmem:[%s1210 + $0xa0] sm:$0xff]
    %v3046 = vld [vmem:[%s1210 + $0xa8] sm:$0xff]
    %v3047 = vld [vmem:[%s1210 + $0xb0] sm:$0xff]
    %v3048 = vld [vmem:[%s1210 + $0xb8] sm:$0xff]
    %v3049 = vld [vmem:[%s1210 + $0xc0] sm:$0xff]
    %v3050 = vld [vmem:[%s1210 + $0xc8] sm:$0xff]
    %v3051 = vld [vmem:[%s1210 + $0xd0] sm:$0xff]
    %v3052 = vld [vmem:[%s1210 + $0xd8] sm:$0xff]
    %v3053 = vld [vmem:[%s1210 + $0xe0] sm:$0xff]
    %v3054 = vld [vmem:[%s1210 + $0xe8] sm:$0xff]
    %v3055 = vld [vmem:[%s1210 + $0xf0] sm:$0xff]
    %v3056 = vld [vmem:[%s1210 + $0xf8] sm:$0xff]
    %v3089 = vunpack.c.l.b16 %v3025
    %v3090 = vunpack.c.h.b16 %v3025
    %v3091 = vunpack.c.l.b16 %v3026
    %v3092 = vunpack.c.h.b16 %v3026
    %v3093 = vunpack.c.l.b16 %v3027
    %v3094 = vunpack.c.h.b16 %v3027
    %v3095 = vunpack.c.l.b16 %v3028
    %v3096 = vunpack.c.h.b16 %v3028
    %v3097 = vunpack.c.l.b16 %v3029
    %v3098 = vunpack.c.h.b16 %v3029
    %v3099 = vunpack.c.l.b16 %v3030
    %v3100 = vunpack.c.h.b16 %v3030
    %v3101 = vunpack.c.l.b16 %v3031
    %v3102 = vunpack.c.h.b16 %v3031
    %v3103 = vunpack.c.l.b16 %v3032
    %v3104 = vunpack.c.h.b16 %v3032
    %v3105 = vunpack.c.l.b16 %v3033
    %v3106 = vunpack.c.h.b16 %v3033
    %v3107 = vunpack.c.l.b16 %v3034
    %v3108 = vunpack.c.h.b16 %v3034
    %v3109 = vunpack.c.l.b16 %v3035
    %v3110 = vunpack.c.h.b16 %v3035
    %v3111 = vunpack.c.l.b16 %v3036
    %v3112 = vunpack.c.h.b16 %v3036
    %v3113 = vunpack.c.l.b16 %v3037
    %v3114 = vunpack.c.h.b16 %v3037
    %v3115 = vunpack.c.l.b16 %v3038
    %v3116 = vunpack.c.h.b16 %v3038
    %v3117 = vunpack.c.l.b16 %v3039
    %v3118 = vunpack.c.h.b16 %v3039
    %v3119 = vunpack.c.l.b16 %v3040
    %v3120 = vunpack.c.h.b16 %v3040
    %v3121 = vunpack.c.l.b16 %v3041
    %v3122 = vunpack.c.h.b16 %v3041
    %v3123 = vunpack.c.l.b16 %v3042
    %v3124 = vunpack.c.h.b16 %v3042
    %v3125 = vunpack.c.l.b16 %v3043
    %v3126 = vunpack.c.h.b16 %v3043
    %v3127 = vunpack.c.l.b16 %v3044
    %v3128 = vunpack.c.h.b16 %v3044
    %v3129 = vunpack.c.l.b16 %v3045
    %v3130 = vunpack.c.h.b16 %v3045
    %v3131 = vunpack.c.l.b16 %v3046
    %v3132 = vunpack.c.h.b16 %v3046
    %v3133 = vunpack.c.l.b16 %v3047
    %v3134 = vunpack.c.h.b16 %v3047
    %v3135 = vunpack.c.l.b16 %v3048
    %v3136 = vunpack.c.h.b16 %v3048
    %v3137 = vunpack.c.l.b16 %v3049
    %v3138 = vunpack.c.h.b16 %v3049
    %v3139 = vunpack.c.l.b16 %v3050
    %v3140 = vunpack.c.h.b16 %v3050
    %v3141 = vunpack.c.l.b16 %v3051
    %v3142 = vunpack.c.h.b16 %v3051
    %v3143 = vunpack.c.l.b16 %v3052
    %v3144 = vunpack.c.h.b16 %v3052
    %v3145 = vunpack.c.l.b16 %v3053
    %v3146 = vunpack.c.h.b16 %v3053
    %v3147 = vunpack.c.l.b16 %v3054
    %v3148 = vunpack.c.h.b16 %v3054
    %v3149 = vunpack.c.l.b16 %v3055
    %v3150 = vunpack.c.h.b16 %v3055
    %v3151 = vunpack.c.l.b16 %v3056
    %v3152 = vunpack.c.h.b16 %v3056
    %v3153 = vpack.c.b16 %v3093, %v3089
    %v3154 = vpack.c.b16 %v3094, %v3090
    %v3155 = vpack.c.b16 %v3095, %v3091
    %v3156 = vpack.c.b16 %v3096, %v3092
    %v3157 = vpack.c.b16 %v3101, %v3097
    %v3158 = vpack.c.b16 %v3102, %v3098
    %v3159 = vpack.c.b16 %v3103, %v3099
    %v3160 = vpack.c.b16 %v3104, %v3100
    %v3161 = vpack.c.b16 %v3109, %v3105
    %v3162 = vpack.c.b16 %v3110, %v3106
    %v3163 = vpack.c.b16 %v3111, %v3107
    %v3164 = vpack.c.b16 %v3112, %v3108
    %v3165 = vpack.c.b16 %v3117, %v3113
    %v3166 = vpack.c.b16 %v3118, %v3114
    %v3167 = vpack.c.b16 %v3119, %v3115
    %v3168 = vpack.c.b16 %v3120, %v3116
    %v3169 = vpack.c.b16 %v3125, %v3121
    %v3170 = vpack.c.b16 %v3126, %v3122
    %v3171 = vpack.c.b16 %v3127, %v3123
    %v3172 = vpack.c.b16 %v3128, %v3124
    %v3173 = vpack.c.b16 %v3133, %v3129
    %v3174 = vpack.c.b16 %v3134, %v3130
    %v3175 = vpack.c.b16 %v3135, %v3131
    %v3176 = vpack.c.b16 %v3136, %v3132
    %v3177 = vpack.c.b16 %v3141, %v3137
    %v3178 = vpack.c.b16 %v3142, %v3138
    %v3179 = vpack.c.b16 %v3143, %v3139
    %v3180 = vpack.c.b16 %v3144, %v3140
    %v3181 = vpack.c.b16 %v3149, %v3145
    %v3182 = vpack.c.b16 %v3150, %v3146
    %v3183 = vpack.c.b16 %v3151, %v3147
    %v3184 = vpack.c.b16 %v3152, %v3148
    %3217 = vmatprep.subr.bf16.mxu0 %v3154
    %3218 = vmatpush1.bf16.msra.mxu0 %v3153
    %3219 = vmatprep.subr.bf16.mxu0 %v3158
    %3220 = vmatpush1.bf16.msra.mxu0 %v3157
    %3221 = vmatprep.subr.bf16.mxu0 %v3162
    %3222 = vmatpush1.bf16.msra.mxu0 %v3161
    %3223 = vmatprep.subr.bf16.mxu0 %v3166
    %3224 = vmatpush1.bf16.msra.mxu0 %v3165
    %3225 = vmatprep.subr.bf16.mxu0 %v3170
    %3226 = vmatpush1.bf16.msra.mxu0 %v3169
    %3227 = vmatprep.subr.bf16.mxu0 %v3174
    %3228 = vmatpush1.bf16.msra.mxu0 %v3173
    %3229 = vmatprep.subr.bf16.mxu0 %v3178
    %3230 = vmatpush1.bf16.msra.mxu0 %v3177
    %3231 = vmatprep.subr.bf16.mxu0 %v3182
    %3232 = vmatpush1.bf16.msra.mxu0 %v3181
    %3233 = vmatprep.subr.bf16.mxu0 0
    %3234 = vmatpush1.bf16.msra.mxu0 0
    %3235 = vmatprep.subr.bf16.mxu0 0
    %3236 = vmatpush1.bf16.msra.mxu0 0
    %3237 = vmatprep.subr.bf16.mxu0 0
    %3238 = vmatpush1.bf16.msra.mxu0 0
    %3239 = vmatprep.subr.bf16.mxu0 0
    %3240 = vmatpush1.bf16.msra.mxu0 0
    %3241 = vmatprep.subr.bf16.mxu0 0
    %3242 = vmatpush1.bf16.msra.mxu0 0
    %3243 = vmatprep.subr.bf16.mxu0 0
    %3244 = vmatpush1.bf16.msra.mxu0 0
    %3245 = vmatprep.subr.bf16.mxu0 0
    %3246 = vmatpush1.bf16.msra.mxu0 0
    %3247 = vmatprep.subr.bf16.mxu0 0
    %3248 = vmatpush1.bf16.msra.mxu0 0
    %3249 = vmatprep.mubr.bf16.mxu0 0
    %3250 = vmatmul.mubr.bf16.gmra.mrb[0].mxu0 %v3024
    %v3251 = vpop.f32.mrb[0].mxu0
    %v3252 = vadd.f32 0.0, %v3251
    %v3253 = vpop.f32.mrb[0].mxu0
    %v3254 = vadd.f32 0.0, %v3253
    %v3255 = vpop.f32.mrb[0].mxu0
    %v3256 = vpop.f32.mrb[0].mxu0
    %3257 = vdwg.mxu0
    %3258 = vmatprep.subr.bf16.mxu0 %v3156
    %3259 = vmatpush1.bf16.msra.mxu0 %v3155
    %3260 = vmatprep.subr.bf16.mxu0 %v3160
    %3261 = vmatpush1.bf16.msra.mxu0 %v3159
    %3262 = vmatprep.subr.bf16.mxu0 %v3164
    %3263 = vmatpush1.bf16.msra.mxu0 %v3163
    %3264 = vmatprep.subr.bf16.mxu0 %v3168
    %3265 = vmatpush1.bf16.msra.mxu0 %v3167
    %3266 = vmatprep.subr.bf16.mxu0 %v3172
    %3267 = vmatpush1.bf16.msra.mxu0 %v3171
    %3268 = vmatprep.subr.bf16.mxu0 %v3176
    %3269 = vmatpush1.bf16.msra.mxu0 %v3175
    %3270 = vmatprep.subr.bf16.mxu0 %v3180
    %3271 = vmatpush1.bf16.msra.mxu0 %v3179
    %3272 = vmatprep.subr.bf16.mxu0 %v3184
    %3273 = vmatpush1.bf16.msra.mxu0 %v3183
    %3274 = vmatprep.subr.bf16.mxu0 0
    %3275 = vmatpush1.bf16.msra.mxu0 0
    %3276 = vmatprep.subr.bf16.mxu0 0
    %3277 = vmatpush1.bf16.msra.mxu0 0
    %3278 = vmatprep.subr.bf16.mxu0 0
    %3279 = vmatpush1.bf16.msra.mxu0 0
    %3280 = vmatprep.subr.bf16.mxu0 0
    %3281 = vmatpush1.bf16.msra.mxu0 0
    %3282 = vmatprep.subr.bf16.mxu0 0
    %3283 = vmatpush1.bf16.msra.mxu0 0
    %3284 = vmatprep.subr.bf16.mxu0 0
    %3285 = vmatpush1.bf16.msra.mxu0 0
    %3286 = vmatprep.subr.bf16.mxu0 0
    %3287 = vmatpush1.bf16.msra.mxu0 0
    %3288 = vmatprep.subr.bf16.mxu0 0
    %3289 = vmatpush1.bf16.msra.mxu0 0
    %3290 = vmatprep.mubr.bf16.mxu0 0
    %3291 = vmatmul.mubr.bf16.gmra.mrb[0].mxu0 %v3024
    %v3292 = vpop.f32.mrb[0].mxu0
    %v3293 = vadd.f32 0.0, %v3292
    %v3294 = vpop.f32.mrb[0].mxu0
    %v3295 = vadd.f32 0.0, %v3294
    %v3296 = vpop.f32.mrb[0].mxu0
    %v3297 = vpop.f32.mrb[0].mxu0
    %3298 = vdwg.mxu0
    %v3299 = vadd.f32 %v2977, %v3252
    %v3300 = vadd.f32 %v2979, %v3254
    %v3301 = vadd.f32 %v3018, %v3293
    %v3302 = vadd.f32 %v3020, %v3295
    %v3303 = vxor.u32 %v3299, 2147483648
    %v3304 = vxor.u32 %v3300, 2147483648
    %v3305 = vxor.u32 %v3301, 2147483648
    %v3306 = vmul.f32 %v3303, 1.442695
    %v3307 = vpow.pop %v3306
    %v3308 = vmul.f32 %v3304, 1.442695
    %v3309 = vpow.pop %v3308
    %v3310 = vmul.f32 %v3305, 1.442695
    %v3311 = vpow.pop %v3310
    %v3312 = vadd.f32 %v3307, 1.0
    %v3313 = vadd.f32 %v3309, 1.0
    %v3314 = vadd.f32 %v3311, 1.0
    %v3315 = vrcp.pop %v3312
    %v3316 = vmul.f32 1.0, %v3315
    %v3317 = vrcp.pop %v3313
    %v3318 = vmul.f32 1.0, %v3317
    %v3319 = vrcp.pop %v3314
    %v3320 = vmul.f32 1.0, %v3319
    %v3321 = vtanh.pop %v3302
    %v3322 = vmul.f32 %v3318, %v2417
    %v3323 = vmul.f32 %v3316, %v3321
    %v3324 = vadd.f32 %v3322, %v3323
    %v3325 = vtanh.pop %v3324
    %v3326 = vmul.f32 %v3320, %v3325
    %3327 = vst [vmem:[#allocation3 + $0x10] sm:$0xff] %v3326
    %v3328 = vld [vmem:[#allocation2 + $0x80] sm:$0xff]
    %v3329 = vld [vmem:[#allocation2 + $0x88] sm:$0xff]
    %v3330 = vld [vmem:[#allocation2 + $0x90] sm:$0xff]
    %v3331 = vld [vmem:[#allocation2 + $0x98] sm:$0xff]
    %v3332 = vpack.c.bf16 %v2727, %v2727
    %v3333 = vld [vmem:[#allocation6] sm:$0xff]
    %v3334 = vld [vmem:[#allocation6 + $0x8] sm:$0xff]
    %v3335 = vld [vmem:[#allocation6 + $0x10] sm:$0xff]
    %v3336 = vld [vmem:[#allocation6 + $0x18] sm:$0xff]
    %v3337 = vld [vmem:[#allocation6 + $0x20] sm:$0xff]
    %v3338 = vld [vmem:[#allocation6 + $0x28] sm:$0xff]
    %v3339 = vld [vmem:[#allocation6 + $0x30] sm:$0xff]
    %v3340 = vld [vmem:[#allocation6 + $0x38] sm:$0xff]
    %v3341 = vld [vmem:[#allocation6 + $0x40] sm:$0xff]
    %v3342 = vld [vmem:[#allocation6 + $0x48] sm:$0xff]
    %v3343 = vld [vmem:[#allocation6 + $0x50] sm:$0xff]
    %v3344 = vld [vmem:[#allocation6 + $0x58] sm:$0xff]
    %v3345 = vld [vmem:[#allocation6 + $0x60] sm:$0xff]
    %v3346 = vld [vmem:[#allocation6 + $0x68] sm:$0xff]
    %v3347 = vld [vmem:[#allocation6 + $0x70] sm:$0xff]
    %v3348 = vld [vmem:[#allocation6 + $0x78] sm:$0xff]
    %v3349 = vld [vmem:[#allocation6 + $0x80] sm:$0xff]
    %v3350 = vld [vmem:[#allocation6 + $0x88] sm:$0xff]
    %v3351 = vld [vmem:[#allocation6 + $0x90] sm:$0xff]
    %v3352 = vld [vmem:[#allocation6 + $0x98] sm:$0xff]
    %v3353 = vld [vmem:[#allocation6 + $0xa0] sm:$0xff]
    %v3354 = vld [vmem:[#allocation6 + $0xa8] sm:$0xff]
    %v3355 = vld [vmem:[#allocation6 + $0xb0] sm:$0xff]
    %v3356 = vld [vmem:[#allocation6 + $0xb8] sm:$0xff]
    %v3357 = vld [vmem:[#allocation6 + $0xc0] sm:$0xff]
    %v3358 = vld [vmem:[#allocation6 + $0xc8] sm:$0xff]
    %v3359 = vld [vmem:[#allocation6 + $0xd0] sm:$0xff]
    %v3360 = vld [vmem:[#allocation6 + $0xd8] sm:$0xff]
    %v3361 = vld [vmem:[#allocation6 + $0xe0] sm:$0xff]
    %v3362 = vld [vmem:[#allocation6 + $0xe8] sm:$0xff]
    %v3363 = vld [vmem:[#allocation6 + $0xf0] sm:$0xff]
    %v3364 = vld [vmem:[#allocation6 + $0xf8] sm:$0xff]
    %v3397 = vunpack.c.l.b16 %v3333
    %v3398 = vunpack.c.h.b16 %v3333
    %v3399 = vunpack.c.l.b16 %v3334
    %v3400 = vunpack.c.h.b16 %v3334
    %v3401 = vunpack.c.l.b16 %v3335
    %v3402 = vunpack.c.h.b16 %v3335
    %v3403 = vunpack.c.l.b16 %v3336
    %v3404 = vunpack.c.h.b16 %v3336
    %v3405 = vunpack.c.l.b16 %v3337
    %v3406 = vunpack.c.h.b16 %v3337
    %v3407 = vunpack.c.l.b16 %v3338
    %v3408 = vunpack.c.h.b16 %v3338
    %v3409 = vunpack.c.l.b16 %v3339
    %v3410 = vunpack.c.h.b16 %v3339
    %v3411 = vunpack.c.l.b16 %v3340
    %v3412 = vunpack.c.h.b16 %v3340
    %v3413 = vunpack.c.l.b16 %v3341
    %v3414 = vunpack.c.h.b16 %v3341
    %v3415 = vunpack.c.l.b16 %v3342
    %v3416 = vunpack.c.h.b16 %v3342
    %v3417 = vunpack.c.l.b16 %v3343
    %v3418 = vunpack.c.h.b16 %v3343
    %v3419 = vunpack.c.l.b16 %v3344
    %v3420 = vunpack.c.h.b16 %v3344
    %v3421 = vunpack.c.l.b16 %v3345
    %v3422 = vunpack.c.h.b16 %v3345
    %v3423 = vunpack.c.l.b16 %v3346
    %v3424 = vunpack.c.h.b16 %v3346
    %v3425 = vunpack.c.l.b16 %v3347
    %v3426 = vunpack.c.h.b16 %v3347
    %v3427 = vunpack.c.l.b16 %v3348
    %v3428 = vunpack.c.h.b16 %v3348
    %v3429 = vunpack.c.l.b16 %v3349
    %v3430 = vunpack.c.h.b16 %v3349
    %v3431 = vunpack.c.l.b16 %v3350
    %v3432 = vunpack.c.h.b16 %v3350
    %v3433 = vunpack.c.l.b16 %v3351
    %v3434 = vunpack.c.h.b16 %v3351
    %v3435 = vunpack.c.l.b16 %v3352
    %v3436 = vunpack.c.h.b16 %v3352
    %v3437 = vunpack.c.l.b16 %v3353
    %v3438 = vunpack.c.h.b16 %v3353
    %v3439 = vunpack.c.l.b16 %v3354
    %v3440 = vunpack.c.h.b16 %v3354
    %v3441 = vunpack.c.l.b16 %v3355
    %v3442 = vunpack.c.h.b16 %v3355
    %v3443 = vunpack.c.l.b16 %v3356
    %v3444 = vunpack.c.h.b16 %v3356
    %v3445 = vunpack.c.l.b16 %v3357
    %v3446 = vunpack.c.h.b16 %v3357
    %v3447 = vunpack.c.l.b16 %v3358
    %v3448 = vunpack.c.h.b16 %v3358
    %v3449 = vunpack.c.l.b16 %v3359
    %v3450 = vunpack.c.h.b16 %v3359
    %v3451 = vunpack.c.l.b16 %v3360
    %v3452 = vunpack.c.h.b16 %v3360
    %v3453 = vunpack.c.l.b16 %v3361
    %v3454 = vunpack.c.h.b16 %v3361
    %v3455 = vunpack.c.l.b16 %v3362
    %v3456 = vunpack.c.h.b16 %v3362
    %v3457 = vunpack.c.l.b16 %v3363
    %v3458 = vunpack.c.h.b16 %v3363
    %v3459 = vunpack.c.l.b16 %v3364
    %v3460 = vunpack.c.h.b16 %v3364
    %v3461 = vpack.c.b16 %v3401, %v3397
    %v3462 = vpack.c.b16 %v3402, %v3398
    %v3463 = vpack.c.b16 %v3403, %v3399
    %v3464 = vpack.c.b16 %v3404, %v3400
    %v3465 = vpack.c.b16 %v3409, %v3405
    %v3466 = vpack.c.b16 %v3410, %v3406
    %v3467 = vpack.c.b16 %v3411, %v3407
    %v3468 = vpack.c.b16 %v3412, %v3408
    %v3469 = vpack.c.b16 %v3417, %v3413
    %v3470 = vpack.c.b16 %v3418, %v3414
    %v3471 = vpack.c.b16 %v3419, %v3415
    %v3472 = vpack.c.b16 %v3420, %v3416
    %v3473 = vpack.c.b16 %v3425, %v3421
    %v3474 = vpack.c.b16 %v3426, %v3422
    %v3475 = vpack.c.b16 %v3427, %v3423
    %v3476 = vpack.c.b16 %v3428, %v3424
    %v3477 = vpack.c.b16 %v3433, %v3429
    %v3478 = vpack.c.b16 %v3434, %v3430
    %v3479 = vpack.c.b16 %v3435, %v3431
    %v3480 = vpack.c.b16 %v3436, %v3432
    %v3481 = vpack.c.b16 %v3441, %v3437
    %v3482 = vpack.c.b16 %v3442, %v3438
    %v3483 = vpack.c.b16 %v3443, %v3439
    %v3484 = vpack.c.b16 %v3444, %v3440
    %v3485 = vpack.c.b16 %v3449, %v3445
    %v3486 = vpack.c.b16 %v3450, %v3446
    %v3487 = vpack.c.b16 %v3451, %v3447
    %v3488 = vpack.c.b16 %v3452, %v3448
    %v3489 = vpack.c.b16 %v3457, %v3453
    %v3490 = vpack.c.b16 %v3458, %v3454
    %v3491 = vpack.c.b16 %v3459, %v3455
    %v3492 = vpack.c.b16 %v3460, %v3456
    %3525 = vmatprep.subr.bf16.mxu0 %v3462
    %3526 = vmatpush1.bf16.msra.mxu0 %v3461
    %3527 = vmatprep.subr.bf16.mxu0 %v3466
    %3528 = vmatpush1.bf16.msra.mxu0 %v3465
    %3529 = vmatprep.subr.bf16.mxu0 %v3470
    %3530 = vmatpush1.bf16.msra.mxu0 %v3469
    %3531 = vmatprep.subr.bf16.mxu0 %v3474
    %3532 = vmatpush1.bf16.msra.mxu0 %v3473
    %3533 = vmatprep.subr.bf16.mxu0 %v3478
    %3534 = vmatpush1.bf16.msra.mxu0 %v3477
    %3535 = vmatprep.subr.bf16.mxu0 %v3482
    %3536 = vmatpush1.bf16.msra.mxu0 %v3481
    %3537 = vmatprep.subr.bf16.mxu0 %v3486
    %3538 = vmatpush1.bf16.msra.mxu0 %v3485
    %3539 = vmatprep.subr.bf16.mxu0 %v3490
    %3540 = vmatpush1.bf16.msra.mxu0 %v3489
    %3541 = vmatprep.subr.bf16.mxu0 0
    %3542 = vmatpush1.bf16.msra.mxu0 0
    %3543 = vmatprep.subr.bf16.mxu0 0
    %3544 = vmatpush1.bf16.msra.mxu0 0
    %3545 = vmatprep.subr.bf16.mxu0 0
    %3546 = vmatpush1.bf16.msra.mxu0 0
    %3547 = vmatprep.subr.bf16.mxu0 0
    %3548 = vmatpush1.bf16.msra.mxu0 0
    %3549 = vmatprep.subr.bf16.mxu0 0
    %3550 = vmatpush1.bf16.msra.mxu0 0
    %3551 = vmatprep.subr.bf16.mxu0 0
    %3552 = vmatpush1.bf16.msra.mxu0 0
    %3553 = vmatprep.subr.bf16.mxu0 0
    %3554 = vmatpush1.bf16.msra.mxu0 0
    %3555 = vmatprep.subr.bf16.mxu0 0
    %3556 = vmatpush1.bf16.msra.mxu0 0
    %3557 = vmatprep.mubr.bf16.mxu0 0
    %3558 = vmatmul.mubr.bf16.gmra.mrb[0].mxu0 %v3332
    %v3559 = vpop.f32.mrb[0].mxu0
    %v3560 = vadd.f32 0.0, %v3559
    %v3561 = vpop.f32.mrb[0].mxu0
    %v3562 = vadd.f32 0.0, %v3561
    %v3563 = vpop.f32.mrb[0].mxu0
    %v3564 = vpop.f32.mrb[0].mxu0
    %3565 = vdwg.mxu0
    %3566 = vmatprep.subr.bf16.mxu0 %v3464
    %3567 = vmatpush1.bf16.msra.mxu0 %v3463
    %3568 = vmatprep.subr.bf16.mxu0 %v3468
    %3569 = vmatpush1.bf16.msra.mxu0 %v3467
    %3570 = vmatprep.subr.bf16.mxu0 %v3472
    %3571 = vmatpush1.bf16.msra.mxu0 %v3471
    %3572 = vmatprep.subr.bf16.mxu0 %v3476
    %3573 = vmatpush1.bf16.msra.mxu0 %v3475
    %3574 = vmatprep.subr.bf16.mxu0 %v3480
    %3575 = vmatpush1.bf16.msra.mxu0 %v3479
    %3576 = vmatprep.subr.bf16.mxu0 %v3484
    %3577 = vmatpush1.bf16.msra.mxu0 %v3483
    %3578 = vmatprep.subr.bf16.mxu0 %v3488
    %3579 = vmatpush1.bf16.msra.mxu0 %v3487
    %3580 = vmatprep.subr.bf16.mxu0 %v3492
    %3581 = vmatpush1.bf16.msra.mxu0 %v3491
    %3582 = vmatprep.subr.bf16.mxu0 0
    %3583 = vmatpush1.bf16.msra.mxu0 0
    %3584 = vmatprep.subr.bf16.mxu0 0
    %3585 = vmatpush1.bf16.msra.mxu0 0
    %3586 = vmatprep.subr.bf16.mxu0 0
    %3587 = vmatpush1.bf16.msra.mxu0 0
    %3588 = vmatprep.subr.bf16.mxu0 0
    %3589 = vmatpush1.bf16.msra.mxu0 0
    %3590 = vmatprep.subr.bf16.mxu0 0
    %3591 = vmatpush1.bf16.msra.mxu0 0
    %3592 = vmatprep.subr.bf16.mxu0 0
    %3593 = vmatpush1.bf16.msra.mxu0 0
    %3594 = vmatprep.subr.bf16.mxu0 0
    %3595 = vmatpush1.bf16.msra.mxu0 0
    %3596 = vmatprep.subr.bf16.mxu0 0
    %3597 = vmatpush1.bf16.msra.mxu0 0
    %3598 = vmatprep.mubr.bf16.mxu0 0
    %3599 = vmatmul.mubr.bf16.gmra.mrb[0].mxu0 %v3332
    %v3600 = vpop.f32.mrb[0].mxu0
    %v3601 = vadd.f32 0.0, %v3600
    %v3602 = vpop.f32.mrb[0].mxu0
    %v3603 = vadd.f32 0.0, %v3602
    %v3604 = vpop.f32.mrb[0].mxu0
    %v3605 = vpop.f32.mrb[0].mxu0
    %3606 = vdwg.mxu0
    %v3607 = vadd.f32 %v3328, %v3560
    %v3608 = vadd.f32 %v3329, %v3562
    %v3609 = vadd.f32 %v3330, %v3601
    %v3610 = vadd.f32 %v3331, %v3603
    %v3611 = vxor.u32 %v3607, 2147483648
    %v3612 = vxor.u32 %v3608, 2147483648
    %v3613 = vxor.u32 %v3609, 2147483648
    %v3614 = vmul.f32 %v3611, 1.442695
    %v3615 = vpow.pop %v3614
    %v3616 = vmul.f32 %v3612, 1.442695
    %v3617 = vpow.pop %v3616
    %v3618 = vmul.f32 %v3613, 1.442695
    %v3619 = vpow.pop %v3618
    %v3620 = vadd.f32 %v3615, 1.0
    %v3621 = vadd.f32 %v3617, 1.0
    %v3622 = vadd.f32 %v3619, 1.0
    %v3623 = vrcp.pop %v3620
    %v3624 = vmul.f32 1.0, %v3623
    %v3625 = vrcp.pop %v3621
    %v3626 = vmul.f32 1.0, %v3625
    %v3627 = vrcp.pop %v3622
    %v3628 = vmul.f32 1.0, %v3627
    %v3629 = vtanh.pop %v3610
    %v3630 = vmul.f32 %v3626, %v2725
    %v3631 = vmul.f32 %v3624, %v3629
    %v3632 = vadd.f32 %v3630, %v3631
    %v3633 = vtanh.pop %v3632
    %v3634 = vmul.f32 %v3628, %v3633
    %v3635 = vld [vmem:[%s911] sm:$0xff]
    %v3636 = vld [vmem:[%s911 + $0x8] sm:$0xff]
    %v3637 = vld [vmem:[%s911 + $0x10] sm:$0xff]
    %v3638 = vld [vmem:[%s911 + $0x18] sm:$0xff]
    %v3639 = vld [vmem:[%s911 + $0x20] sm:$0xff]
    %v3640 = vld [vmem:[%s911 + $0x28] sm:$0xff]
    %v3641 = vld [vmem:[%s911 + $0x30] sm:$0xff]
    %v3642 = vld [vmem:[%s911 + $0x38] sm:$0xff]
    %v3643 = vld [vmem:[%s911 + $0x40] sm:$0xff]
    %v3644 = vld [vmem:[%s911 + $0x48] sm:$0xff]
    %v3645 = vld [vmem:[%s911 + $0x50] sm:$0xff]
    %v3646 = vld [vmem:[%s911 + $0x58] sm:$0xff]
    %v3647 = vld [vmem:[%s911 + $0x60] sm:$0xff]
    %v3648 = vld [vmem:[%s911 + $0x68] sm:$0xff]
    %v3649 = vld [vmem:[%s911 + $0x70] sm:$0xff]
    %v3650 = vld [vmem:[%s911 + $0x78] sm:$0xff]
    %v3651 = vld [vmem:[%s911 + $0x80] sm:$0xff]
    %v3652 = vld [vmem:[%s911 + $0x88] sm:$0xff]
    %v3653 = vld [vmem:[%s911 + $0x90] sm:$0xff]
    %v3654 = vld [vmem:[%s911 + $0x98] sm:$0xff]
    %v3655 = vld [vmem:[%s911 + $0xa0] sm:$0xff]
    %v3656 = vld [vmem:[%s911 + $0xa8] sm:$0xff]
    %v3657 = vld [vmem:[%s911 + $0xb0] sm:$0xff]
    %v3658 = vld [vmem:[%s911 + $0xb8] sm:$0xff]
    %v3659 = vld [vmem:[%s911 + $0xc0] sm:$0xff]
    %v3660 = vld [vmem:[%s911 + $0xc8] sm:$0xff]
    %v3661 = vld [vmem:[%s911 + $0xd0] sm:$0xff]
    %v3662 = vld [vmem:[%s911 + $0xd8] sm:$0xff]
    %v3663 = vld [vmem:[%s911 + $0xe0] sm:$0xff]
    %v3664 = vld [vmem:[%s911 + $0xe8] sm:$0xff]
    %v3665 = vld [vmem:[%s911 + $0xf0] sm:$0xff]
    %v3666 = vld [vmem:[%s911 + $0xf8] sm:$0xff]
    %v3667 = vld [vmem:[%s944] sm:$0xf]
    %v3669 = vlaneseq
    %v3670 = vshrl.u32 %v3669, 7
    %v3671 = vsub.s32 0, %v3670
    %v3672 = vrot.slane %v3667, %v3671
    %v3673 = vlaneseq
    %v3674 = vshrl.u32 %v3673, 7
    %v3675 = vsub.s32 1, %v3674
    %v3676 = vrot.slane %v3667, %v3675
    %v3677 = vlaneseq
    %v3678 = vshrl.u32 %v3677, 7
    %v3679 = vsub.s32 2, %v3678
    %v3680 = vrot.slane %v3667, %v3679
    %v3681 = vlaneseq
    %v3682 = vshrl.u32 %v3681, 7
    %v3683 = vsub.s32 3, %v3682
    %v3684 = vrot.slane %v3667, %v3683
    %v3721 = vunpack.c.l.b16 %v3635
    %v3722 = vunpack.c.h.b16 %v3635
    %v3723 = vunpack.c.l.b16 %v3636
    %v3724 = vunpack.c.h.b16 %v3636
    %v3725 = vunpack.c.l.b16 %v3637
    %v3726 = vunpack.c.h.b16 %v3637
    %v3727 = vunpack.c.l.b16 %v3638
    %v3728 = vunpack.c.h.b16 %v3638
    %v3729 = vunpack.c.l.b16 %v3639
    %v3730 = vunpack.c.h.b16 %v3639
    %v3731 = vunpack.c.l.b16 %v3640
    %v3732 = vunpack.c.h.b16 %v3640
    %v3733 = vunpack.c.l.b16 %v3641
    %v3734 = vunpack.c.h.b16 %v3641
    %v3735 = vunpack.c.l.b16 %v3642
    %v3736 = vunpack.c.h.b16 %v3642
    %v3737 = vunpack.c.l.b16 %v3643
    %v3738 = vunpack.c.h.b16 %v3643
    %v3739 = vunpack.c.l.b16 %v3644
    %v3740 = vunpack.c.h.b16 %v3644
    %v3741 = vunpack.c.l.b16 %v3645
    %v3742 = vunpack.c.h.b16 %v3645
    %v3743 = vunpack.c.l.b16 %v3646
    %v3744 = vunpack.c.h.b16 %v3646
    %v3745 = vunpack.c.l.b16 %v3647
    %v3746 = vunpack.c.h.b16 %v3647
    %v3747 = vunpack.c.l.b16 %v3648
    %v3748 = vunpack.c.h.b16 %v3648
    %v3749 = vunpack.c.l.b16 %v3649
    %v3750 = vunpack.c.h.b16 %v3649
    %v3751 = vunpack.c.l.b16 %v3650
    %v3752 = vunpack.c.h.b16 %v3650
    %v3753 = vunpack.c.l.b16 %v3651
    %v3754 = vunpack.c.h.b16 %v3651
    %v3755 = vunpack.c.l.b16 %v3652
    %v3756 = vunpack.c.h.b16 %v3652
    %v3757 = vunpack.c.l.b16 %v3653
    %v3758 = vunpack.c.h.b16 %v3653
    %v3759 = vunpack.c.l.b16 %v3654
    %v3760 = vunpack.c.h.b16 %v3654
    %v3761 = vunpack.c.l.b16 %v3655
    %v3762 = vunpack.c.h.b16 %v3655
    %v3763 = vunpack.c.l.b16 %v3656
    %v3764 = vunpack.c.h.b16 %v3656
    %v3765 = vunpack.c.l.b16 %v3657
    %v3766 = vunpack.c.h.b16 %v3657
    %v3767 = vunpack.c.l.b16 %v3658
    %v3768 = vunpack.c.h.b16 %v3658
    %v3769 = vunpack.c.l.b16 %v3659
    %v3770 = vunpack.c.h.b16 %v3659
    %v3771 = vunpack.c.l.b16 %v3660
    %v3772 = vunpack.c.h.b16 %v3660
    %v3773 = vunpack.c.l.b16 %v3661
    %v3774 = vunpack.c.h.b16 %v3661
    %v3775 = vunpack.c.l.b16 %v3662
    %v3776 = vunpack.c.h.b16 %v3662
    %v3777 = vunpack.c.l.b16 %v3663
    %v3778 = vunpack.c.h.b16 %v3663
    %v3779 = vunpack.c.l.b16 %v3664
    %v3780 = vunpack.c.h.b16 %v3664
    %v3781 = vunpack.c.l.b16 %v3665
    %v3782 = vunpack.c.h.b16 %v3665
    %v3783 = vunpack.c.l.b16 %v3666
    %v3784 = vunpack.c.h.b16 %v3666
    %v3785 = vpack.c.b16 %v3725, %v3721
    %v3786 = vpack.c.b16 %v3726, %v3722
    %v3787 = vpack.c.b16 %v3727, %v3723
    %v3788 = vpack.c.b16 %v3728, %v3724
    %v3789 = vpack.c.b16 %v3733, %v3729
    %v3790 = vpack.c.b16 %v3734, %v3730
    %v3791 = vpack.c.b16 %v3735, %v3731
    %v3792 = vpack.c.b16 %v3736, %v3732
    %v3793 = vpack.c.b16 %v3741, %v3737
    %v3794 = vpack.c.b16 %v3742, %v3738
    %v3795 = vpack.c.b16 %v3743, %v3739
    %v3796 = vpack.c.b16 %v3744, %v3740
    %v3797 = vpack.c.b16 %v3749, %v3745
    %v3798 = vpack.c.b16 %v3750, %v3746
    %v3799 = vpack.c.b16 %v3751, %v3747
    %v3800 = vpack.c.b16 %v3752, %v3748
    %v3801 = vpack.c.b16 %v3757, %v3753
    %v3802 = vpack.c.b16 %v3758, %v3754
    %v3803 = vpack.c.b16 %v3759, %v3755
    %v3804 = vpack.c.b16 %v3760, %v3756
    %v3805 = vpack.c.b16 %v3765, %v3761
    %v3806 = vpack.c.b16 %v3766, %v3762
    %v3807 = vpack.c.b16 %v3767, %v3763
    %v3808 = vpack.c.b16 %v3768, %v3764
    %v3809 = vpack.c.b16 %v3773, %v3769
    %v3810 = vpack.c.b16 %v3774, %v3770
    %v3811 = vpack.c.b16 %v3775, %v3771
    %v3812 = vpack.c.b16 %v3776, %v3772
    %v3813 = vpack.c.b16 %v3781, %v3777
    %v3814 = vpack.c.b16 %v3782, %v3778
    %v3815 = vpack.c.b16 %v3783, %v3779
    %v3816 = vpack.c.b16 %v3784, %v3780
    %3849 = vmatprep.subr.bf16.mxu0 %v3786
    %3850 = vmatpush1.bf16.msra.mxu0 %v3785
    %3851 = vmatprep.subr.bf16.mxu0 %v3790
    %3852 = vmatpush1.bf16.msra.mxu0 %v3789
    %3853 = vmatprep.subr.bf16.mxu0 %v3794
    %3854 = vmatpush1.bf16.msra.mxu0 %v3793
    %3855 = vmatprep.subr.bf16.mxu0 %v3798
    %3856 = vmatpush1.bf16.msra.mxu0 %v3797
    %3857 = vmatprep.subr.bf16.mxu0 %v3802
    %3858 = vmatpush1.bf16.msra.mxu0 %v3801
    %3859 = vmatprep.subr.bf16.mxu0 %v3806
    %3860 = vmatpush1.bf16.msra.mxu0 %v3805
    %3861 = vmatprep.subr.bf16.mxu0 %v3810
    %3862 = vmatpush1.bf16.msra.mxu0 %v3809
    %3863 = vmatprep.subr.bf16.mxu0 %v3814
    %3864 = vmatpush1.bf16.msra.mxu0 %v3813
    %3865 = vmatprep.subr.bf16.mxu0 0
    %3866 = vmatpush1.bf16.msra.mxu0 0
    %3867 = vmatprep.subr.bf16.mxu0 0
    %3868 = vmatpush1.bf16.msra.mxu0 0
    %3869 = vmatprep.subr.bf16.mxu0 0
    %3870 = vmatpush1.bf16.msra.mxu0 0
    %3871 = vmatprep.subr.bf16.mxu0 0
    %3872 = vmatpush1.bf16.msra.mxu0 0
    %3873 = vmatprep.subr.bf16.mxu0 0
    %3874 = vmatpush1.bf16.msra.mxu0 0
    %3875 = vmatprep.subr.bf16.mxu0 0
    %3876 = vmatpush1.bf16.msra.mxu0 0
    %3877 = vmatprep.subr.bf16.mxu0 0
    %3878 = vmatpush1.bf16.msra.mxu0 0
    %3879 = vmatprep.subr.bf16.mxu0 0
    %3880 = vmatpush1.bf16.msra.mxu0 0
    %3881 = vmatprep.mubr.bf16.mxu0 0
    %3882 = vmatmul.mubr.bf16.gmra.mrb[0].mxu0 %v3332
    %v3883 = vpop.f32.mrb[0].mxu0
    %v3884 = vadd.f32 %v3672, %v3883
    %v3885 = vpop.f32.mrb[0].mxu0
    %v3886 = vadd.f32 %v3676, %v3885
    %v3887 = vpop.f32.mrb[0].mxu0
    %v3888 = vpop.f32.mrb[0].mxu0
    %3889 = vdwg.mxu0
    %3890 = vmatprep.subr.bf16.mxu0 %v3788
    %3891 = vmatpush1.bf16.msra.mxu0 %v3787
    %3892 = vmatprep.subr.bf16.mxu0 %v3792
    %3893 = vmatpush1.bf16.msra.mxu0 %v3791
    %3894 = vmatprep.subr.bf16.mxu0 %v3796
    %3895 = vmatpush1.bf16.msra.mxu0 %v3795
    %3896 = vmatprep.subr.bf16.mxu0 %v3800
    %3897 = vmatpush1.bf16.msra.mxu0 %v3799
    %3898 = vmatprep.subr.bf16.mxu0 %v3804
    %3899 = vmatpush1.bf16.msra.mxu0 %v3803
    %3900 = vmatprep.subr.bf16.mxu0 %v3808
    %3901 = vmatpush1.bf16.msra.mxu0 %v3807
    %3902 = vmatprep.subr.bf16.mxu0 %v3812
    %3903 = vmatpush1.bf16.msra.mxu0 %v3811
    %3904 = vmatprep.subr.bf16.mxu0 %v3816
    %3905 = vmatpush1.bf16.msra.mxu0 %v3815
    %3906 = vmatprep.subr.bf16.mxu0 0
    %3907 = vmatpush1.bf16.msra.mxu0 0
    %3908 = vmatprep.subr.bf16.mxu0 0
    %3909 = vmatpush1.bf16.msra.mxu0 0
    %3910 = vmatprep.subr.bf16.mxu0 0
    %3911 = vmatpush1.bf16.msra.mxu0 0
    %3912 = vmatprep.subr.bf16.mxu0 0
    %3913 = vmatpush1.bf16.msra.mxu0 0
    %3914 = vmatprep.subr.bf16.mxu0 0
    %3915 = vmatpush1.bf16.msra.mxu0 0
    %3916 = vmatprep.subr.bf16.mxu0 0
    %3917 = vmatpush1.bf16.msra.mxu0 0
    %3918 = vmatprep.subr.bf16.mxu0 0
    %3919 = vmatpush1.bf16.msra.mxu0 0
    %3920 = vmatprep.subr.bf16.mxu0 0
    %3921 = vmatpush1.bf16.msra.mxu0 0
    %3922 = vmatprep.mubr.bf16.mxu0 0
    %3923 = vmatmul.mubr.bf16.gmra.mrb[0].mxu0 %v3332
    %v3924 = vpop.f32.mrb[0].mxu0
    %v3925 = vadd.f32 %v3680, %v3924
    %v3926 = vpop.f32.mrb[0].mxu0
    %v3927 = vadd.f32 %v3684, %v3926
    %v3928 = vpop.f32.mrb[0].mxu0
    %v3929 = vpop.f32.mrb[0].mxu0
    %3930 = vdwg.mxu0
    %v3931 = vpack.c.bf16 %v3326, %v3326
    %v3932 = vld [vmem:[%s1210] sm:$0xff]
    %v3933 = vld [vmem:[%s1210 + $0x8] sm:$0xff]
    %v3934 = vld [vmem:[%s1210 + $0x10] sm:$0xff]
    %v3935 = vld [vmem:[%s1210 + $0x18] sm:$0xff]
    %v3936 = vld [vmem:[%s1210 + $0x20] sm:$0xff]
    %v3937 = vld [vmem:[%s1210 + $0x28] sm:$0xff]
    %v3938 = vld [vmem:[%s1210 + $0x30] sm:$0xff]
    %v3939 = vld [vmem:[%s1210 + $0x38] sm:$0xff]
    %v3940 = vld [vmem:[%s1210 + $0x40] sm:$0xff]
    %v3941 = vld [vmem:[%s1210 + $0x48] sm:$0xff]
    %v3942 = vld [vmem:[%s1210 + $0x50] sm:$0xff]
    %v3943 = vld [vmem:[%s1210 + $0x58] sm:$0xff]
    %v3944 = vld [vmem:[%s1210 + $0x60] sm:$0xff]
    %v3945 = vld [vmem:[%s1210 + $0x68] sm:$0xff]
    %v3946 = vld [vmem:[%s1210 + $0x70] sm:$0xff]
    %v3947 = vld [vmem:[%s1210 + $0x78] sm:$0xff]
    %v3948 = vld [vmem:[%s1210 + $0x80] sm:$0xff]
    %v3949 = vld [vmem:[%s1210 + $0x88] sm:$0xff]
    %v3950 = vld [vmem:[%s1210 + $0x90] sm:$0xff]
    %v3951 = vld [vmem:[%s1210 + $0x98] sm:$0xff]
    %v3952 = vld [vmem:[%s1210 + $0xa0] sm:$0xff]
    %v3953 = vld [vmem:[%s1210 + $0xa8] sm:$0xff]
    %v3954 = vld [vmem:[%s1210 + $0xb0] sm:$0xff]
    %v3955 = vld [vmem:[%s1210 + $0xb8] sm:$0xff]
    %v3956 = vld [vmem:[%s1210 + $0xc0] sm:$0xff]
    %v3957 = vld [vmem:[%s1210 + $0xc8] sm:$0xff]
    %v3958 = vld [vmem:[%s1210 + $0xd0] sm:$0xff]
    %v3959 = vld [vmem:[%s1210 + $0xd8] sm:$0xff]
    %v3960 = vld [vmem:[%s1210 + $0xe0] sm:$0xff]
    %v3961 = vld [vmem:[%s1210 + $0xe8] sm:$0xff]
    %v3962 = vld [vmem:[%s1210 + $0xf0] sm:$0xff]
    %v3963 = vld [vmem:[%s1210 + $0xf8] sm:$0xff]
    %v3996 = vunpack.c.l.b16 %v3932
    %v3997 = vunpack.c.h.b16 %v3932
    %v3998 = vunpack.c.l.b16 %v3933
    %v3999 = vunpack.c.h.b16 %v3933
    %v4000 = vunpack.c.l.b16 %v3934
    %v4001 = vunpack.c.h.b16 %v3934
    %v4002 = vunpack.c.l.b16 %v3935
    %v4003 = vunpack.c.h.b16 %v3935
    %v4004 = vunpack.c.l.b16 %v3936
    %v4005 = vunpack.c.h.b16 %v3936
    %v4006 = vunpack.c.l.b16 %v3937
    %v4007 = vunpack.c.h.b16 %v3937
    %v4008 = vunpack.c.l.b16 %v3938
    %v4009 = vunpack.c.h.b16 %v3938
    %v4010 = vunpack.c.l.b16 %v3939
    %v4011 = vunpack.c.h.b16 %v3939
    %v4012 = vunpack.c.l.b16 %v3940
    %v4013 = vunpack.c.h.b16 %v3940
    %v4014 = vunpack.c.l.b16 %v3941
    %v4015 = vunpack.c.h.b16 %v3941
    %v4016 = vunpack.c.l.b16 %v3942
    %v4017 = vunpack.c.h.b16 %v3942
    %v4018 = vunpack.c.l.b16 %v3943
    %v4019 = vunpack.c.h.b16 %v3943
    %v4020 = vunpack.c.l.b16 %v3944
    %v4021 = vunpack.c.h.b16 %v3944
    %v4022 = vunpack.c.l.b16 %v3945
    %v4023 = vunpack.c.h.b16 %v3945
    %v4024 = vunpack.c.l.b16 %v3946
    %v4025 = vunpack.c.h.b16 %v3946
    %v4026 = vunpack.c.l.b16 %v3947
    %v4027 = vunpack.c.h.b16 %v3947
    %v4028 = vunpack.c.l.b16 %v3948
    %v4029 = vunpack.c.h.b16 %v3948
    %v4030 = vunpack.c.l.b16 %v3949
    %v4031 = vunpack.c.h.b16 %v3949
    %v4032 = vunpack.c.l.b16 %v3950
    %v4033 = vunpack.c.h.b16 %v3950
    %v4034 = vunpack.c.l.b16 %v3951
    %v4035 = vunpack.c.h.b16 %v3951
    %v4036 = vunpack.c.l.b16 %v3952
    %v4037 = vunpack.c.h.b16 %v3952
    %v4038 = vunpack.c.l.b16 %v3953
    %v4039 = vunpack.c.h.b16 %v3953
    %v4040 = vunpack.c.l.b16 %v3954
    %v4041 = vunpack.c.h.b16 %v3954
    %v4042 = vunpack.c.l.b16 %v3955
    %v4043 = vunpack.c.h.b16 %v3955
    %v4044 = vunpack.c.l.b16 %v3956
    %v4045 = vunpack.c.h.b16 %v3956
    %v4046 = vunpack.c.l.b16 %v3957
    %v4047 = vunpack.c.h.b16 %v3957
    %v4048 = vunpack.c.l.b16 %v3958
    %v4049 = vunpack.c.h.b16 %v3958
    %v4050 = vunpack.c.l.b16 %v3959
    %v4051 = vunpack.c.h.b16 %v3959
    %v4052 = vunpack.c.l.b16 %v3960
    %v4053 = vunpack.c.h.b16 %v3960
    %v4054 = vunpack.c.l.b16 %v3961
    %v4055 = vunpack.c.h.b16 %v3961
    %v4056 = vunpack.c.l.b16 %v3962
    %v4057 = vunpack.c.h.b16 %v3962
    %v4058 = vunpack.c.l.b16 %v3963
    %v4059 = vunpack.c.h.b16 %v3963
    %v4060 = vpack.c.b16 %v4000, %v3996
    %v4061 = vpack.c.b16 %v4001, %v3997
    %v4062 = vpack.c.b16 %v4002, %v3998
    %v4063 = vpack.c.b16 %v4003, %v3999
    %v4064 = vpack.c.b16 %v4008, %v4004
    %v4065 = vpack.c.b16 %v4009, %v4005
    %v4066 = vpack.c.b16 %v4010, %v4006
    %v4067 = vpack.c.b16 %v4011, %v4007
    %v4068 = vpack.c.b16 %v4016, %v4012
    %v4069 = vpack.c.b16 %v4017, %v4013
    %v4070 = vpack.c.b16 %v4018, %v4014
    %v4071 = vpack.c.b16 %v4019, %v4015
    %v4072 = vpack.c.b16 %v4024, %v4020
    %v4073 = vpack.c.b16 %v4025, %v4021
    %v4074 = vpack.c.b16 %v4026, %v4022
    %v4075 = vpack.c.b16 %v4027, %v4023
    %v4076 = vpack.c.b16 %v4032, %v4028
    %v4077 = vpack.c.b16 %v4033, %v4029
    %v4078 = vpack.c.b16 %v4034, %v4030
    %v4079 = vpack.c.b16 %v4035, %v4031
    %v4080 = vpack.c.b16 %v4040, %v4036
    %v4081 = vpack.c.b16 %v4041, %v4037
    %v4082 = vpack.c.b16 %v4042, %v4038
    %v4083 = vpack.c.b16 %v4043, %v4039
    %v4084 = vpack.c.b16 %v4048, %v4044
    %v4085 = vpack.c.b16 %v4049, %v4045
    %v4086 = vpack.c.b16 %v4050, %v4046
    %v4087 = vpack.c.b16 %v4051, %v4047
    %v4088 = vpack.c.b16 %v4056, %v4052
    %v4089 = vpack.c.b16 %v4057, %v4053
    %v4090 = vpack.c.b16 %v4058, %v4054
    %v4091 = vpack.c.b16 %v4059, %v4055
    %4124 = vmatprep.subr.bf16.mxu0 %v4061
    %4125 = vmatpush1.bf16.msra.mxu0 %v4060
    %4126 = vmatprep.subr.bf16.mxu0 %v4065
    %4127 = vmatpush1.bf16.msra.mxu0 %v4064
    %4128 = vmatprep.subr.bf16.mxu0 %v4069
    %4129 = vmatpush1.bf16.msra.mxu0 %v4068
    %4130 = vmatprep.subr.bf16.mxu0 %v4073
    %4131 = vmatpush1.bf16.msra.mxu0 %v4072
    %4132 = vmatprep.subr.bf16.mxu0 %v4077
    %4133 = vmatpush1.bf16.msra.mxu0 %v4076
    %4134 = vmatprep.subr.bf16.mxu0 %v4081
    %4135 = vmatpush1.bf16.msra.mxu0 %v4080
    %4136 = vmatprep.subr.bf16.mxu0 %v4085
    %4137 = vmatpush1.bf16.msra.mxu0 %v4084
    %4138 = vmatprep.subr.bf16.mxu0 %v4089
    %4139 = vmatpush1.bf16.msra.mxu0 %v4088
    %4140 = vmatprep.subr.bf16.mxu0 0
    %4141 = vmatpush1.bf16.msra.mxu0 0
    %4142 = vmatprep.subr.bf16.mxu0 0
    %4143 = vmatpush1.bf16.msra.mxu0 0
    %4144 = vmatprep.subr.bf16.mxu0 0
    %4145 = vmatpush1.bf16.msra.mxu0 0
    %4146 = vmatprep.subr.bf16.mxu0 0
    %4147 = vmatpush1.bf16.msra.mxu0 0
    %4148 = vmatprep.subr.bf16.mxu0 0
    %4149 = vmatpush1.bf16.msra.mxu0 0
    %4150 = vmatprep.subr.bf16.mxu0 0
    %4151 = vmatpush1.bf16.msra.mxu0 0
    %4152 = vmatprep.subr.bf16.mxu0 0
    %4153 = vmatpush1.bf16.msra.mxu0 0
    %4154 = vmatprep.subr.bf16.mxu0 0
    %4155 = vmatpush1.bf16.msra.mxu0 0
    %4156 = vmatprep.mubr.bf16.mxu0 0
    %4157 = vmatmul.mubr.bf16.gmra.mrb[0].mxu0 %v3931
    %v4158 = vpop.f32.mrb[0].mxu0
    %v4159 = vadd.f32 0.0, %v4158
    %v4160 = vpop.f32.mrb[0].mxu0
    %v4161 = vadd.f32 0.0, %v4160
    %v4162 = vpop.f32.mrb[0].mxu0
    %v4163 = vpop.f32.mrb[0].mxu0
    %4164 = vdwg.mxu0
    %4165 = vmatprep.subr.bf16.mxu0 %v4063
    %4166 = vmatpush1.bf16.msra.mxu0 %v4062
    %4167 = vmatprep.subr.bf16.mxu0 %v4067
    %4168 = vmatpush1.bf16.msra.mxu0 %v4066
    %4169 = vmatprep.subr.bf16.mxu0 %v4071
    %4170 = vmatpush1.bf16.msra.mxu0 %v4070
    %4171 = vmatprep.subr.bf16.mxu0 %v4075
    %4172 = vmatpush1.bf16.msra.mxu0 %v4074
    %4173 = vmatprep.subr.bf16.mxu0 %v4079
    %4174 = vmatpush1.bf16.msra.mxu0 %v4078
    %4175 = vmatprep.subr.bf16.mxu0 %v4083
    %4176 = vmatpush1.bf16.msra.mxu0 %v4082
    %4177 = vmatprep.subr.bf16.mxu0 %v4087
    %4178 = vmatpush1.bf16.msra.mxu0 %v4086
    %4179 = vmatprep.subr.bf16.mxu0 %v4091
    %4180 = vmatpush1.bf16.msra.mxu0 %v4090
    %4181 = vmatprep.subr.bf16.mxu0 0
    %4182 = vmatpush1.bf16.msra.mxu0 0
    %4183 = vmatprep.subr.bf16.mxu0 0
    %4184 = vmatpush1.bf16.msra.mxu0 0
    %4185 = vmatprep.subr.bf16.mxu0 0
    %4186 = vmatpush1.bf16.msra.mxu0 0
    %4187 = vmatprep.subr.bf16.mxu0 0
    %4188 = vmatpush1.bf16.msra.mxu0 0
    %4189 = vmatprep.subr.bf16.mxu0 0
    %4190 = vmatpush1.bf16.msra.mxu0 0
    %4191 = vmatprep.subr.bf16.mxu0 0
    %4192 = vmatpush1.bf16.msra.mxu0 0
    %4193 = vmatprep.subr.bf16.mxu0 0
    %4194 = vmatpush1.bf16.msra.mxu0 0
    %4195 = vmatprep.subr.bf16.mxu0 0
    %4196 = vmatpush1.bf16.msra.mxu0 0
    %4197 = vmatprep.mubr.bf16.mxu0 0
    %4198 = vmatmul.mubr.bf16.gmra.mrb[0].mxu0 %v3931
    %v4199 = vpop.f32.mrb[0].mxu0
    %v4200 = vadd.f32 0.0, %v4199
    %v4201 = vpop.f32.mrb[0].mxu0
    %v4202 = vadd.f32 0.0, %v4201
    %v4203 = vpop.f32.mrb[0].mxu0
    %v4204 = vpop.f32.mrb[0].mxu0
    %4205 = vdwg.mxu0
    %v4206 = vadd.f32 %v3884, %v4159
    %v4207 = vadd.f32 %v3886, %v4161
    %v4208 = vadd.f32 %v3925, %v4200
    %v4209 = vadd.f32 %v3927, %v4202
    %v4210 = vxor.u32 %v4206, 2147483648
    %v4211 = vxor.u32 %v4207, 2147483648
    %v4212 = vxor.u32 %v4208, 2147483648
    %v4213 = vmul.f32 %v4210, 1.442695
    %v4214 = vpow.pop %v4213
    %v4215 = vmul.f32 %v4211, 1.442695
    %v4216 = vpow.pop %v4215
    %v4217 = vmul.f32 %v4212, 1.442695
    %v4218 = vpow.pop %v4217
    %v4219 = vadd.f32 %v4214, 1.0
    %v4220 = vadd.f32 %v4216, 1.0
    %v4221 = vadd.f32 %v4218, 1.0
    %v4222 = vrcp.pop %v4219
    %v4223 = vmul.f32 1.0, %v4222
    %v4224 = vrcp.pop %v4220
    %v4225 = vmul.f32 1.0, %v4224
    %v4226 = vrcp.pop %v4221
    %v4227 = vmul.f32 1.0, %v4226
    %v4228 = vtanh.pop %v4209
    %v4229 = vmul.f32 %v4225, %v3324
    %v4230 = vmul.f32 %v4223, %v4228
    %v4231 = vadd.f32 %v4229, %v4230
    %v4232 = vtanh.pop %v4231
    %v4233 = vmul.f32 %v4227, %v4232
    %4234 = vst [vmem:[#allocation3 + $0x18] sm:$0xff] %v4233
    %v4235 = vld [vmem:[#allocation2 + $0xa0] sm:$0xff]
    %v4236 = vld [vmem:[#allocation2 + $0xa8] sm:$0xff]
    %v4237 = vld [vmem:[#allocation2 + $0xb0] sm:$0xff]
    %v4238 = vld [vmem:[#allocation2 + $0xb8] sm:$0xff]
    %v4239 = vpack.c.bf16 %v3634, %v3634
    %v4240 = vld [vmem:[#allocation6] sm:$0xff]
    %v4241 = vld [vmem:[#allocation6 + $0x8] sm:$0xff]
    %v4242 = vld [vmem:[#allocation6 + $0x10] sm:$0xff]
    %v4243 = vld [vmem:[#allocation6 + $0x18] sm:$0xff]
    %v4244 = vld [vmem:[#allocation6 + $0x20] sm:$0xff]
    %v4245 = vld [vmem:[#allocation6 + $0x28] sm:$0xff]
    %v4246 = vld [vmem:[#allocation6 + $0x30] sm:$0xff]
    %v4247 = vld [vmem:[#allocation6 + $0x38] sm:$0xff]
    %v4248 = vld [vmem:[#allocation6 + $0x40] sm:$0xff]
    %v4249 = vld [vmem:[#allocation6 + $0x48] sm:$0xff]
    %v4250 = vld [vmem:[#allocation6 + $0x50] sm:$0xff]
    %v4251 = vld [vmem:[#allocation6 + $0x58] sm:$0xff]
    %v4252 = vld [vmem:[#allocation6 + $0x60] sm:$0xff]
    %v4253 = vld [vmem:[#allocation6 + $0x68] sm:$0xff]
    %v4254 = vld [vmem:[#allocation6 + $0x70] sm:$0xff]
    %v4255 = vld [vmem:[#allocation6 + $0x78] sm:$0xff]
    %v4256 = vld [vmem:[#allocation6 + $0x80] sm:$0xff]
    %v4257 = vld [vmem:[#allocation6 + $0x88] sm:$0xff]
    %v4258 = vld [vmem:[#allocation6 + $0x90] sm:$0xff]
    %v4259 = vld [vmem:[#allocation6 + $0x98] sm:$0xff]
    %v4260 = vld [vmem:[#allocation6 + $0xa0] sm:$0xff]
    %v4261 = vld [vmem:[#allocation6 + $0xa8] sm:$0xff]
    %v4262 = vld [vmem:[#allocation6 + $0xb0] sm:$0xff]
    %v4263 = vld [vmem:[#allocation6 + $0xb8] sm:$0xff]
    %v4264 = vld [vmem:[#allocation6 + $0xc0] sm:$0xff]
    %v4265 = vld [vmem:[#allocation6 + $0xc8] sm:$0xff]
    %v4266 = vld [vmem:[#allocation6 + $0xd0] sm:$0xff]
    %v4267 = vld [vmem:[#allocation6 + $0xd8] sm:$0xff]
    %v4268 = vld [vmem:[#allocation6 + $0xe0] sm:$0xff]
    %v4269 = vld [vmem:[#allocation6 + $0xe8] sm:$0xff]
    %v4270 = vld [vmem:[#allocation6 + $0xf0] sm:$0xff]
    %v4271 = vld [vmem:[#allocation6 + $0xf8] sm:$0xff]
    %v4304 = vunpack.c.l.b16 %v4240
    %v4305 = vunpack.c.h.b16 %v4240
    %v4306 = vunpack.c.l.b16 %v4241
    %v4307 = vunpack.c.h.b16 %v4241
    %v4308 = vunpack.c.l.b16 %v4242
    %v4309 = vunpack.c.h.b16 %v4242
    %v4310 = vunpack.c.l.b16 %v4243
    %v4311 = vunpack.c.h.b16 %v4243
    %v4312 = vunpack.c.l.b16 %v4244
    %v4313 = vunpack.c.h.b16 %v4244
    %v4314 = vunpack.c.l.b16 %v4245
    %v4315 = vunpack.c.h.b16 %v4245
    %v4316 = vunpack.c.l.b16 %v4246
    %v4317 = vunpack.c.h.b16 %v4246
    %v4318 = vunpack.c.l.b16 %v4247
    %v4319 = vunpack.c.h.b16 %v4247
    %v4320 = vunpack.c.l.b16 %v4248
    %v4321 = vunpack.c.h.b16 %v4248
    %v4322 = vunpack.c.l.b16 %v4249
    %v4323 = vunpack.c.h.b16 %v4249
    %v4324 = vunpack.c.l.b16 %v4250
    %v4325 = vunpack.c.h.b16 %v4250
    %v4326 = vunpack.c.l.b16 %v4251
    %v4327 = vunpack.c.h.b16 %v4251
    %v4328 = vunpack.c.l.b16 %v4252
    %v4329 = vunpack.c.h.b16 %v4252
    %v4330 = vunpack.c.l.b16 %v4253
    %v4331 = vunpack.c.h.b16 %v4253
    %v4332 = vunpack.c.l.b16 %v4254
    %v4333 = vunpack.c.h.b16 %v4254
    %v4334 = vunpack.c.l.b16 %v4255
    %v4335 = vunpack.c.h.b16 %v4255
    %v4336 = vunpack.c.l.b16 %v4256
    %v4337 = vunpack.c.h.b16 %v4256
    %v4338 = vunpack.c.l.b16 %v4257
    %v4339 = vunpack.c.h.b16 %v4257
    %v4340 = vunpack.c.l.b16 %v4258
    %v4341 = vunpack.c.h.b16 %v4258
    %v4342 = vunpack.c.l.b16 %v4259
    %v4343 = vunpack.c.h.b16 %v4259
    %v4344 = vunpack.c.l.b16 %v4260
    %v4345 = vunpack.c.h.b16 %v4260
    %v4346 = vunpack.c.l.b16 %v4261
    %v4347 = vunpack.c.h.b16 %v4261
    %v4348 = vunpack.c.l.b16 %v4262
    %v4349 = vunpack.c.h.b16 %v4262
    %v4350 = vunpack.c.l.b16 %v4263
    %v4351 = vunpack.c.h.b16 %v4263
    %v4352 = vunpack.c.l.b16 %v4264
    %v4353 = vunpack.c.h.b16 %v4264
    %v4354 = vunpack.c.l.b16 %v4265
    %v4355 = vunpack.c.h.b16 %v4265
    %v4356 = vunpack.c.l.b16 %v4266
    %v4357 = vunpack.c.h.b16 %v4266
    %v4358 = vunpack.c.l.b16 %v4267
    %v4359 = vunpack.c.h.b16 %v4267
    %v4360 = vunpack.c.l.b16 %v4268
    %v4361 = vunpack.c.h.b16 %v4268
    %v4362 = vunpack.c.l.b16 %v4269
    %v4363 = vunpack.c.h.b16 %v4269
    %v4364 = vunpack.c.l.b16 %v4270
    %v4365 = vunpack.c.h.b16 %v4270
    %v4366 = vunpack.c.l.b16 %v4271
    %v4367 = vunpack.c.h.b16 %v4271
    %v4368 = vpack.c.b16 %v4308, %v4304
    %v4369 = vpack.c.b16 %v4309, %v4305
    %v4370 = vpack.c.b16 %v4310, %v4306
    %v4371 = vpack.c.b16 %v4311, %v4307
    %v4372 = vpack.c.b16 %v4316, %v4312
    %v4373 = vpack.c.b16 %v4317, %v4313
    %v4374 = vpack.c.b16 %v4318, %v4314
    %v4375 = vpack.c.b16 %v4319, %v4315
    %v4376 = vpack.c.b16 %v4324, %v4320
    %v4377 = vpack.c.b16 %v4325, %v4321
    %v4378 = vpack.c.b16 %v4326, %v4322
    %v4379 = vpack.c.b16 %v4327, %v4323
    %v4380 = vpack.c.b16 %v4332, %v4328
    %v4381 = vpack.c.b16 %v4333, %v4329
    %v4382 = vpack.c.b16 %v4334, %v4330
    %v4383 = vpack.c.b16 %v4335, %v4331
    %v4384 = vpack.c.b16 %v4340, %v4336
    %v4385 = vpack.c.b16 %v4341, %v4337
    %v4386 = vpack.c.b16 %v4342, %v4338
    %v4387 = vpack.c.b16 %v4343, %v4339
    %v4388 = vpack.c.b16 %v4348, %v4344
    %v4389 = vpack.c.b16 %v4349, %v4345
    %v4390 = vpack.c.b16 %v4350, %v4346
    %v4391 = vpack.c.b16 %v4351, %v4347
    %v4392 = vpack.c.b16 %v4356, %v4352
    %v4393 = vpack.c.b16 %v4357, %v4353
    %v4394 = vpack.c.b16 %v4358, %v4354
    %v4395 = vpack.c.b16 %v4359, %v4355
    %v4396 = vpack.c.b16 %v4364, %v4360
    %v4397 = vpack.c.b16 %v4365, %v4361
    %v4398 = vpack.c.b16 %v4366, %v4362
    %v4399 = vpack.c.b16 %v4367, %v4363
    %4432 = vmatprep.subr.bf16.mxu0 %v4369
    %4433 = vmatpush1.bf16.msra.mxu0 %v4368
    %4434 = vmatprep.subr.bf16.mxu0 %v4373
    %4435 = vmatpush1.bf16.msra.mxu0 %v4372
    %4436 = vmatprep.subr.bf16.mxu0 %v4377
    %4437 = vmatpush1.bf16.msra.mxu0 %v4376
    %4438 = vmatprep.subr.bf16.mxu0 %v4381
    %4439 = vmatpush1.bf16.msra.mxu0 %v4380
    %4440 = vmatprep.subr.bf16.mxu0 %v4385
    %4441 = vmatpush1.bf16.msra.mxu0 %v4384
    %4442 = vmatprep.subr.bf16.mxu0 %v4389
    %4443 = vmatpush1.bf16.msra.mxu0 %v4388
    %4444 = vmatprep.subr.bf16.mxu0 %v4393
    %4445 = vmatpush1.bf16.msra.mxu0 %v4392
    %4446 = vmatprep.subr.bf16.mxu0 %v4397
    %4447 = vmatpush1.bf16.msra.mxu0 %v4396
    %4448 = vmatprep.subr.bf16.mxu0 0
    %4449 = vmatpush1.bf16.msra.mxu0 0
    %4450 = vmatprep.subr.bf16.mxu0 0
    %4451 = vmatpush1.bf16.msra.mxu0 0
    %4452 = vmatprep.subr.bf16.mxu0 0
    %4453 = vmatpush1.bf16.msra.mxu0 0
    %4454 = vmatprep.subr.bf16.mxu0 0
    %4455 = vmatpush1.bf16.msra.mxu0 0
    %4456 = vmatprep.subr.bf16.mxu0 0
    %4457 = vmatpush1.bf16.msra.mxu0 0
    %4458 = vmatprep.subr.bf16.mxu0 0
    %4459 = vmatpush1.bf16.msra.mxu0 0
    %4460 = vmatprep.subr.bf16.mxu0 0
    %4461 = vmatpush1.bf16.msra.mxu0 0
    %4462 = vmatprep.subr.bf16.mxu0 0
    %4463 = vmatpush1.bf16.msra.mxu0 0
    %4464 = vmatprep.mubr.bf16.mxu0 0
    %4465 = vmatmul.mubr.bf16.gmra.mrb[0].mxu0 %v4239
    %v4466 = vpop.f32.mrb[0].mxu0
    %v4467 = vadd.f32 0.0, %v4466
    %v4468 = vpop.f32.mrb[0].mxu0
    %v4469 = vadd.f32 0.0, %v4468
    %v4470 = vpop.f32.mrb[0].mxu0
    %v4471 = vpop.f32.mrb[0].mxu0
    %4472 = vdwg.mxu0
    %4473 = vmatprep.subr.bf16.mxu0 %v4371
    %4474 = vmatpush1.bf16.msra.mxu0 %v4370
    %4475 = vmatprep.subr.bf16.mxu0 %v4375
    %4476 = vmatpush1.bf16.msra.mxu0 %v4374
    %4477 = vmatprep.subr.bf16.mxu0 %v4379
    %4478 = vmatpush1.bf16.msra.mxu0 %v4378
    %4479 = vmatprep.subr.bf16.mxu0 %v4383
    %4480 = vmatpush1.bf16.msra.mxu0 %v4382
    %4481 = vmatprep.subr.bf16.mxu0 %v4387
    %4482 = vmatpush1.bf16.msra.mxu0 %v4386
    %4483 = vmatprep.subr.bf16.mxu0 %v4391
    %4484 = vmatpush1.bf16.msra.mxu0 %v4390
    %4485 = vmatprep.subr.bf16.mxu0 %v4395
    %4486 = vmatpush1.bf16.msra.mxu0 %v4394
    %4487 = vmatprep.subr.bf16.mxu0 %v4399
    %4488 = vmatpush1.bf16.msra.mxu0 %v4398
    %4489 = vmatprep.subr.bf16.mxu0 0
    %4490 = vmatpush1.bf16.msra.mxu0 0
    %4491 = vmatprep.subr.bf16.mxu0 0
    %4492 = vmatpush1.bf16.msra.mxu0 0
    %4493 = vmatprep.subr.bf16.mxu0 0
    %4494 = vmatpush1.bf16.msra.mxu0 0
    %4495 = vmatprep.subr.bf16.mxu0 0
    %4496 = vmatpush1.bf16.msra.mxu0 0
    %4497 = vmatprep.subr.bf16.mxu0 0
    %4498 = vmatpush1.bf16.msra.mxu0 0
    %4499 = vmatprep.subr.bf16.mxu0 0
    %4500 = vmatpush1.bf16.msra.mxu0 0
    %4501 = vmatprep.subr.bf16.mxu0 0
    %4502 = vmatpush1.bf16.msra.mxu0 0
    %4503 = vmatprep.subr.bf16.mxu0 0
    %4504 = vmatpush1.bf16.msra.mxu0 0
    %4505 = vmatprep.mubr.bf16.mxu0 0
    %4506 = vmatmul.mubr.bf16.gmra.mrb[0].mxu0 %v4239
    %v4507 = vpop.f32.mrb[0].mxu0
    %v4508 = vadd.f32 0.0, %v4507
    %v4509 = vpop.f32.mrb[0].mxu0
    %v4510 = vadd.f32 0.0, %v4509
    %v4511 = vpop.f32.mrb[0].mxu0
    %v4512 = vpop.f32.mrb[0].mxu0
    %4513 = vdwg.mxu0
    %v4514 = vadd.f32 %v4235, %v4467
    %v4515 = vadd.f32 %v4236, %v4469
    %v4516 = vadd.f32 %v4237, %v4508
    %v4517 = vadd.f32 %v4238, %v4510
    %v4518 = vxor.u32 %v4514, 2147483648
    %v4519 = vxor.u32 %v4515, 2147483648
    %v4520 = vxor.u32 %v4516, 2147483648
    %v4521 = vmul.f32 %v4518, 1.442695
    %v4522 = vpow.pop %v4521
    %v4523 = vmul.f32 %v4519, 1.442695
    %v4524 = vpow.pop %v4523
    %v4525 = vmul.f32 %v4520, 1.442695
    %v4526 = vpow.pop %v4525
    %v4527 = vadd.f32 %v4522, 1.0
    %v4528 = vadd.f32 %v4524, 1.0
    %v4529 = vadd.f32 %v4526, 1.0
    %v4530 = vrcp.pop %v4527
    %v4531 = vmul.f32 1.0, %v4530
    %v4532 = vrcp.pop %v4528
    %v4533 = vmul.f32 1.0, %v4532
    %v4534 = vrcp.pop %v4529
    %v4535 = vmul.f32 1.0, %v4534
    %v4536 = vtanh.pop %v4517
    %v4537 = vmul.f32 %v4533, %v3632
    %v4538 = vmul.f32 %v4531, %v4536
    %v4539 = vadd.f32 %v4537, %v4538
    %v4540 = vtanh.pop %v4539
    %v4541 = vmul.f32 %v4535, %v4540
    %v4542 = vld [vmem:[%s911] sm:$0xff]
    %v4543 = vld [vmem:[%s911 + $0x8] sm:$0xff]
    %v4544 = vld [vmem:[%s911 + $0x10] sm:$0xff]
    %v4545 = vld [vmem:[%s911 + $0x18] sm:$0xff]
    %v4546 = vld [vmem:[%s911 + $0x20] sm:$0xff]
    %v4547 = vld [vmem:[%s911 + $0x28] sm:$0xff]
    %v4548 = vld [vmem:[%s911 + $0x30] sm:$0xff]
    %v4549 = vld [vmem:[%s911 + $0x38] sm:$0xff]
    %v4550 = vld [vmem:[%s911 + $0x40] sm:$0xff]
    %v4551 = vld [vmem:[%s911 + $0x48] sm:$0xff]
    %v4552 = vld [vmem:[%s911 + $0x50] sm:$0xff]
    %v4553 = vld [vmem:[%s911 + $0x58] sm:$0xff]
    %v4554 = vld [vmem:[%s911 + $0x60] sm:$0xff]
    %v4555 = vld [vmem:[%s911 + $0x68] sm:$0xff]
    %v4556 = vld [vmem:[%s911 + $0x70] sm:$0xff]
    %v4557 = vld [vmem:[%s911 + $0x78] sm:$0xff]
    %v4558 = vld [vmem:[%s911 + $0x80] sm:$0xff]
    %v4559 = vld [vmem:[%s911 + $0x88] sm:$0xff]
    %v4560 = vld [vmem:[%s911 + $0x90] sm:$0xff]
    %v4561 = vld [vmem:[%s911 + $0x98] sm:$0xff]
    %v4562 = vld [vmem:[%s911 + $0xa0] sm:$0xff]
    %v4563 = vld [vmem:[%s911 + $0xa8] sm:$0xff]
    %v4564 = vld [vmem:[%s911 + $0xb0] sm:$0xff]
    %v4565 = vld [vmem:[%s911 + $0xb8] sm:$0xff]
    %v4566 = vld [vmem:[%s911 + $0xc0] sm:$0xff]
    %v4567 = vld [vmem:[%s911 + $0xc8] sm:$0xff]
    %v4568 = vld [vmem:[%s911 + $0xd0] sm:$0xff]
    %v4569 = vld [vmem:[%s911 + $0xd8] sm:$0xff]
    %v4570 = vld [vmem:[%s911 + $0xe0] sm:$0xff]
    %v4571 = vld [vmem:[%s911 + $0xe8] sm:$0xff]
    %v4572 = vld [vmem:[%s911 + $0xf0] sm:$0xff]
    %v4573 = vld [vmem:[%s911 + $0xf8] sm:$0xff]
    %v4574 = vld [vmem:[%s944] sm:$0xf]
    %v4576 = vlaneseq
    %v4577 = vshrl.u32 %v4576, 7
    %v4578 = vsub.s32 0, %v4577
    %v4579 = vrot.slane %v4574, %v4578
    %v4580 = vlaneseq
    %v4581 = vshrl.u32 %v4580, 7
    %v4582 = vsub.s32 1, %v4581
    %v4583 = vrot.slane %v4574, %v4582
    %v4584 = vlaneseq
    %v4585 = vshrl.u32 %v4584, 7
    %v4586 = vsub.s32 2, %v4585
    %v4587 = vrot.slane %v4574, %v4586
    %v4588 = vlaneseq
    %v4589 = vshrl.u32 %v4588, 7
    %v4590 = vsub.s32 3, %v4589
    %v4591 = vrot.slane %v4574, %v4590
    %v4628 = vunpack.c.l.b16 %v4542
    %v4629 = vunpack.c.h.b16 %v4542
    %v4630 = vunpack.c.l.b16 %v4543
    %v4631 = vunpack.c.h.b16 %v4543
    %v4632 = vunpack.c.l.b16 %v4544
    %v4633 = vunpack.c.h.b16 %v4544
    %v4634 = vunpack.c.l.b16 %v4545
    %v4635 = vunpack.c.h.b16 %v4545
    %v4636 = vunpack.c.l.b16 %v4546
    %v4637 = vunpack.c.h.b16 %v4546
    %v4638 = vunpack.c.l.b16 %v4547
    %v4639 = vunpack.c.h.b16 %v4547
    %v4640 = vunpack.c.l.b16 %v4548
    %v4641 = vunpack.c.h.b16 %v4548
    %v4642 = vunpack.c.l.b16 %v4549
    %v4643 = vunpack.c.h.b16 %v4549
    %v4644 = vunpack.c.l.b16 %v4550
    %v4645 = vunpack.c.h.b16 %v4550
    %v4646 = vunpack.c.l.b16 %v4551
    %v4647 = vunpack.c.h.b16 %v4551
    %v4648 = vunpack.c.l.b16 %v4552
    %v4649 = vunpack.c.h.b16 %v4552
    %v4650 = vunpack.c.l.b16 %v4553
    %v4651 = vunpack.c.h.b16 %v4553
    %v4652 = vunpack.c.l.b16 %v4554
    %v4653 = vunpack.c.h.b16 %v4554
    %v4654 = vunpack.c.l.b16 %v4555
    %v4655 = vunpack.c.h.b16 %v4555
    %v4656 = vunpack.c.l.b16 %v4556
    %v4657 = vunpack.c.h.b16 %v4556
    %v4658 = vunpack.c.l.b16 %v4557
    %v4659 = vunpack.c.h.b16 %v4557
    %v4660 = vunpack.c.l.b16 %v4558
    %v4661 = vunpack.c.h.b16 %v4558
    %v4662 = vunpack.c.l.b16 %v4559
    %v4663 = vunpack.c.h.b16 %v4559
    %v4664 = vunpack.c.l.b16 %v4560
    %v4665 = vunpack.c.h.b16 %v4560
    %v4666 = vunpack.c.l.b16 %v4561
    %v4667 = vunpack.c.h.b16 %v4561
    %v4668 = vunpack.c.l.b16 %v4562
    %v4669 = vunpack.c.h.b16 %v4562
    %v4670 = vunpack.c.l.b16 %v4563
    %v4671 = vunpack.c.h.b16 %v4563
    %v4672 = vunpack.c.l.b16 %v4564
    %v4673 = vunpack.c.h.b16 %v4564
    %v4674 = vunpack.c.l.b16 %v4565
    %v4675 = vunpack.c.h.b16 %v4565
    %v4676 = vunpack.c.l.b16 %v4566
    %v4677 = vunpack.c.h.b16 %v4566
    %v4678 = vunpack.c.l.b16 %v4567
    %v4679 = vunpack.c.h.b16 %v4567
    %v4680 = vunpack.c.l.b16 %v4568
    %v4681 = vunpack.c.h.b16 %v4568
    %v4682 = vunpack.c.l.b16 %v4569
    %v4683 = vunpack.c.h.b16 %v4569
    %v4684 = vunpack.c.l.b16 %v4570
    %v4685 = vunpack.c.h.b16 %v4570
    %v4686 = vunpack.c.l.b16 %v4571
    %v4687 = vunpack.c.h.b16 %v4571
    %v4688 = vunpack.c.l.b16 %v4572
    %v4689 = vunpack.c.h.b16 %v4572
    %v4690 = vunpack.c.l.b16 %v4573
    %v4691 = vunpack.c.h.b16 %v4573
    %v4692 = vpack.c.b16 %v4632, %v4628
    %v4693 = vpack.c.b16 %v4633, %v4629
    %v4694 = vpack.c.b16 %v4634, %v4630
    %v4695 = vpack.c.b16 %v4635, %v4631
    %v4696 = vpack.c.b16 %v4640, %v4636
    %v4697 = vpack.c.b16 %v4641, %v4637
    %v4698 = vpack.c.b16 %v4642, %v4638
    %v4699 = vpack.c.b16 %v4643, %v4639
    %v4700 = vpack.c.b16 %v4648, %v4644
    %v4701 = vpack.c.b16 %v4649, %v4645
    %v4702 = vpack.c.b16 %v4650, %v4646
    %v4703 = vpack.c.b16 %v4651, %v4647
    %v4704 = vpack.c.b16 %v4656, %v4652
    %v4705 = vpack.c.b16 %v4657, %v4653
    %v4706 = vpack.c.b16 %v4658, %v4654
    %v4707 = vpack.c.b16 %v4659, %v4655
    %v4708 = vpack.c.b16 %v4664, %v4660
    %v4709 = vpack.c.b16 %v4665, %v4661
    %v4710 = vpack.c.b16 %v4666, %v4662
    %v4711 = vpack.c.b16 %v4667, %v4663
    %v4712 = vpack.c.b16 %v4672, %v4668
    %v4713 = vpack.c.b16 %v4673, %v4669
    %v4714 = vpack.c.b16 %v4674, %v4670
    %v4715 = vpack.c.b16 %v4675, %v4671
    %v4716 = vpack.c.b16 %v4680, %v4676
    %v4717 = vpack.c.b16 %v4681, %v4677
    %v4718 = vpack.c.b16 %v4682, %v4678
    %v4719 = vpack.c.b16 %v4683, %v4679
    %v4720 = vpack.c.b16 %v4688, %v4684
    %v4721 = vpack.c.b16 %v4689, %v4685
    %v4722 = vpack.c.b16 %v4690, %v4686
    %v4723 = vpack.c.b16 %v4691, %v4687
    %4756 = vmatprep.subr.bf16.mxu0 %v4693
    %4757 = vmatpush1.bf16.msra.mxu0 %v4692
    %4758 = vmatprep.subr.bf16.mxu0 %v4697
    %4759 = vmatpush1.bf16.msra.mxu0 %v4696
    %4760 = vmatprep.subr.bf16.mxu0 %v4701
    %4761 = vmatpush1.bf16.msra.mxu0 %v4700
    %4762 = vmatprep.subr.bf16.mxu0 %v4705
    %4763 = vmatpush1.bf16.msra.mxu0 %v4704
    %4764 = vmatprep.subr.bf16.mxu0 %v4709
    %4765 = vmatpush1.bf16.msra.mxu0 %v4708
    %4766 = vmatprep.subr.bf16.mxu0 %v4713
    %4767 = vmatpush1.bf16.msra.mxu0 %v4712
    %4768 = vmatprep.subr.bf16.mxu0 %v4717
    %4769 = vmatpush1.bf16.msra.mxu0 %v4716
    %4770 = vmatprep.subr.bf16.mxu0 %v4721
    %4771 = vmatpush1.bf16.msra.mxu0 %v4720
    %4772 = vmatprep.subr.bf16.mxu0 0
    %4773 = vmatpush1.bf16.msra.mxu0 0
    %4774 = vmatprep.subr.bf16.mxu0 0
    %4775 = vmatpush1.bf16.msra.mxu0 0
    %4776 = vmatprep.subr.bf16.mxu0 0
    %4777 = vmatpush1.bf16.msra.mxu0 0
    %4778 = vmatprep.subr.bf16.mxu0 0
    %4779 = vmatpush1.bf16.msra.mxu0 0
    %4780 = vmatprep.subr.bf16.mxu0 0
    %4781 = vmatpush1.bf16.msra.mxu0 0
    %4782 = vmatprep.subr.bf16.mxu0 0
    %4783 = vmatpush1.bf16.msra.mxu0 0
    %4784 = vmatprep.subr.bf16.mxu0 0
    %4785 = vmatpush1.bf16.msra.mxu0 0
    %4786 = vmatprep.subr.bf16.mxu0 0
    %4787 = vmatpush1.bf16.msra.mxu0 0
    %4788 = vmatprep.mubr.bf16.mxu0 0
    %4789 = vmatmul.mubr.bf16.gmra.mrb[0].mxu0 %v4239
    %v4790 = vpop.f32.mrb[0].mxu0
    %v4791 = vadd.f32 %v4579, %v4790
    %v4792 = vpop.f32.mrb[0].mxu0
    %v4793 = vadd.f32 %v4583, %v4792
    %v4794 = vpop.f32.mrb[0].mxu0
    %v4795 = vpop.f32.mrb[0].mxu0
    %4796 = vdwg.mxu0
    %4797 = vmatprep.subr.bf16.mxu0 %v4695
    %4798 = vmatpush1.bf16.msra.mxu0 %v4694
    %4799 = vmatprep.subr.bf16.mxu0 %v4699
    %4800 = vmatpush1.bf16.msra.mxu0 %v4698
    %4801 = vmatprep.subr.bf16.mxu0 %v4703
    %4802 = vmatpush1.bf16.msra.mxu0 %v4702
    %4803 = vmatprep.subr.bf16.mxu0 %v4707
    %4804 = vmatpush1.bf16.msra.mxu0 %v4706
    %4805 = vmatprep.subr.bf16.mxu0 %v4711
    %4806 = vmatpush1.bf16.msra.mxu0 %v4710
    %4807 = vmatprep.subr.bf16.mxu0 %v4715
    %4808 = vmatpush1.bf16.msra.mxu0 %v4714
    %4809 = vmatprep.subr.bf16.mxu0 %v4719
    %4810 = vmatpush1.bf16.msra.mxu0 %v4718
    %4811 = vmatprep.subr.bf16.mxu0 %v4723
    %4812 = vmatpush1.bf16.msra.mxu0 %v4722
    %4813 = vmatprep.subr.bf16.mxu0 0
    %4814 = vmatpush1.bf16.msra.mxu0 0
    %4815 = vmatprep.subr.bf16.mxu0 0
    %4816 = vmatpush1.bf16.msra.mxu0 0
    %4817 = vmatprep.subr.bf16.mxu0 0
    %4818 = vmatpush1.bf16.msra.mxu0 0
    %4819 = vmatprep.subr.bf16.mxu0 0
    %4820 = vmatpush1.bf16.msra.mxu0 0
    %4821 = vmatprep.subr.bf16.mxu0 0
    %4822 = vmatpush1.bf16.msra.mxu0 0
    %4823 = vmatprep.subr.bf16.mxu0 0
    %4824 = vmatpush1.bf16.msra.mxu0 0
    %4825 = vmatprep.subr.bf16.mxu0 0
    %4826 = vmatpush1.bf16.msra.mxu0 0
    %4827 = vmatprep.subr.bf16.mxu0 0
    %4828 = vmatpush1.bf16.msra.mxu0 0
    %4829 = vmatprep.mubr.bf16.mxu0 0
    %4830 = vmatmul.mubr.bf16.gmra.mrb[0].mxu0 %v4239
    %v4831 = vpop.f32.mrb[0].mxu0
    %v4832 = vadd.f32 %v4587, %v4831
    %v4833 = vpop.f32.mrb[0].mxu0
    %v4834 = vadd.f32 %v4591, %v4833
    %v4835 = vpop.f32.mrb[0].mxu0
    %v4836 = vpop.f32.mrb[0].mxu0
    %4837 = vdwg.mxu0
    %v4838 = vpack.c.bf16 %v4233, %v4233
    %v4839 = vld [vmem:[%s1210] sm:$0xff]
    %v4840 = vld [vmem:[%s1210 + $0x8] sm:$0xff]
    %v4841 = vld [vmem:[%s1210 + $0x10] sm:$0xff]
    %v4842 = vld [vmem:[%s1210 + $0x18] sm:$0xff]
    %v4843 = vld [vmem:[%s1210 + $0x20] sm:$0xff]
    %v4844 = vld [vmem:[%s1210 + $0x28] sm:$0xff]
    %v4845 = vld [vmem:[%s1210 + $0x30] sm:$0xff]
    %v4846 = vld [vmem:[%s1210 + $0x38] sm:$0xff]
    %v4847 = vld [vmem:[%s1210 + $0x40] sm:$0xff]
    %v4848 = vld [vmem:[%s1210 + $0x48] sm:$0xff]
    %v4849 = vld [vmem:[%s1210 + $0x50] sm:$0xff]
    %v4850 = vld [vmem:[%s1210 + $0x58] sm:$0xff]
    %v4851 = vld [vmem:[%s1210 + $0x60] sm:$0xff]
    %v4852 = vld [vmem:[%s1210 + $0x68] sm:$0xff]
    %v4853 = vld [vmem:[%s1210 + $0x70] sm:$0xff]
    %v4854 = vld [vmem:[%s1210 + $0x78] sm:$0xff]
    %v4855 = vld [vmem:[%s1210 + $0x80] sm:$0xff]
    %v4856 = vld [vmem:[%s1210 + $0x88] sm:$0xff]
    %v4857 = vld [vmem:[%s1210 + $0x90] sm:$0xff]
    %v4858 = vld [vmem:[%s1210 + $0x98] sm:$0xff]
    %v4859 = vld [vmem:[%s1210 + $0xa0] sm:$0xff]
    %v4860 = vld [vmem:[%s1210 + $0xa8] sm:$0xff]
    %v4861 = vld [vmem:[%s1210 + $0xb0] sm:$0xff]
    %v4862 = vld [vmem:[%s1210 + $0xb8] sm:$0xff]
    %v4863 = vld [vmem:[%s1210 + $0xc0] sm:$0xff]
    %v4864 = vld [vmem:[%s1210 + $0xc8] sm:$0xff]
    %v4865 = vld [vmem:[%s1210 + $0xd0] sm:$0xff]
    %v4866 = vld [vmem:[%s1210 + $0xd8] sm:$0xff]
    %v4867 = vld [vmem:[%s1210 + $0xe0] sm:$0xff]
    %v4868 = vld [vmem:[%s1210 + $0xe8] sm:$0xff]
    %v4869 = vld [vmem:[%s1210 + $0xf0] sm:$0xff]
    %v4870 = vld [vmem:[%s1210 + $0xf8] sm:$0xff]
    %v4903 = vunpack.c.l.b16 %v4839
    %v4904 = vunpack.c.h.b16 %v4839
    %v4905 = vunpack.c.l.b16 %v4840
    %v4906 = vunpack.c.h.b16 %v4840
    %v4907 = vunpack.c.l.b16 %v4841
    %v4908 = vunpack.c.h.b16 %v4841
    %v4909 = vunpack.c.l.b16 %v4842
    %v4910 = vunpack.c.h.b16 %v4842
    %v4911 = vunpack.c.l.b16 %v4843
    %v4912 = vunpack.c.h.b16 %v4843
    %v4913 = vunpack.c.l.b16 %v4844
    %v4914 = vunpack.c.h.b16 %v4844
    %v4915 = vunpack.c.l.b16 %v4845
    %v4916 = vunpack.c.h.b16 %v4845
    %v4917 = vunpack.c.l.b16 %v4846
    %v4918 = vunpack.c.h.b16 %v4846
    %v4919 = vunpack.c.l.b16 %v4847
    %v4920 = vunpack.c.h.b16 %v4847
    %v4921 = vunpack.c.l.b16 %v4848
    %v4922 = vunpack.c.h.b16 %v4848
    %v4923 = vunpack.c.l.b16 %v4849
    %v4924 = vunpack.c.h.b16 %v4849
    %v4925 = vunpack.c.l.b16 %v4850
    %v4926 = vunpack.c.h.b16 %v4850
    %v4927 = vunpack.c.l.b16 %v4851
    %v4928 = vunpack.c.h.b16 %v4851
    %v4929 = vunpack.c.l.b16 %v4852
    %v4930 = vunpack.c.h.b16 %v4852
    %v4931 = vunpack.c.l.b16 %v4853
    %v4932 = vunpack.c.h.b16 %v4853
    %v4933 = vunpack.c.l.b16 %v4854
    %v4934 = vunpack.c.h.b16 %v4854
    %v4935 = vunpack.c.l.b16 %v4855
    %v4936 = vunpack.c.h.b16 %v4855
    %v4937 = vunpack.c.l.b16 %v4856
    %v4938 = vunpack.c.h.b16 %v4856
    %v4939 = vunpack.c.l.b16 %v4857
    %v4940 = vunpack.c.h.b16 %v4857
    %v4941 = vunpack.c.l.b16 %v4858
    %v4942 = vunpack.c.h.b16 %v4858
    %v4943 = vunpack.c.l.b16 %v4859
    %v4944 = vunpack.c.h.b16 %v4859
    %v4945 = vunpack.c.l.b16 %v4860
    %v4946 = vunpack.c.h.b16 %v4860
    %v4947 = vunpack.c.l.b16 %v4861
    %v4948 = vunpack.c.h.b16 %v4861
    %v4949 = vunpack.c.l.b16 %v4862
    %v4950 = vunpack.c.h.b16 %v4862
    %v4951 = vunpack.c.l.b16 %v4863
    %v4952 = vunpack.c.h.b16 %v4863
    %v4953 = vunpack.c.l.b16 %v4864
    %v4954 = vunpack.c.h.b16 %v4864
    %v4955 = vunpack.c.l.b16 %v4865
    %v4956 = vunpack.c.h.b16 %v4865
    %v4957 = vunpack.c.l.b16 %v4866
    %v4958 = vunpack.c.h.b16 %v4866
    %v4959 = vunpack.c.l.b16 %v4867
    %v4960 = vunpack.c.h.b16 %v4867
    %v4961 = vunpack.c.l.b16 %v4868
    %v4962 = vunpack.c.h.b16 %v4868
    %v4963 = vunpack.c.l.b16 %v4869
    %v4964 = vunpack.c.h.b16 %v4869
    %v4965 = vunpack.c.l.b16 %v4870
    %v4966 = vunpack.c.h.b16 %v4870
    %v4967 = vpack.c.b16 %v4907, %v4903
    %v4968 = vpack.c.b16 %v4908, %v4904
    %v4969 = vpack.c.b16 %v4909, %v4905
    %v4970 = vpack.c.b16 %v4910, %v4906
    %v4971 = vpack.c.b16 %v4915, %v4911
    %v4972 = vpack.c.b16 %v4916, %v4912
    %v4973 = vpack.c.b16 %v4917, %v4913
    %v4974 = vpack.c.b16 %v4918, %v4914
    %v4975 = vpack.c.b16 %v4923, %v4919
    %v4976 = vpack.c.b16 %v4924, %v4920
    %v4977 = vpack.c.b16 %v4925, %v4921
    %v4978 = vpack.c.b16 %v4926, %v4922
    %v4979 = vpack.c.b16 %v4931, %v4927
    %v4980 = vpack.c.b16 %v4932, %v4928
    %v4981 = vpack.c.b16 %v4933, %v4929
    %v4982 = vpack.c.b16 %v4934, %v4930
    %v4983 = vpack.c.b16 %v4939, %v4935
    %v4984 = vpack.c.b16 %v4940, %v4936
    %v4985 = vpack.c.b16 %v4941, %v4937
    %v4986 = vpack.c.b16 %v4942, %v4938
    %v4987 = vpack.c.b16 %v4947, %v4943
    %v4988 = vpack.c.b16 %v4948, %v4944
    %v4989 = vpack.c.b16 %v4949, %v4945
    %v4990 = vpack.c.b16 %v4950, %v4946
    %v4991 = vpack.c.b16 %v4955, %v4951
    %v4992 = vpack.c.b16 %v4956, %v4952
    %v4993 = vpack.c.b16 %v4957, %v4953
    %v4994 = vpack.c.b16 %v4958, %v4954
    %v4995 = vpack.c.b16 %v4963, %v4959
    %v4996 = vpack.c.b16 %v4964, %v4960
    %v4997 = vpack.c.b16 %v4965, %v4961
    %v4998 = vpack.c.b16 %v4966, %v4962
    %5031 = vmatprep.subr.bf16.mxu0 %v4968
    %5032 = vmatpush1.bf16.msra.mxu0 %v4967
    %5033 = vmatprep.subr.bf16.mxu0 %v4972
    %5034 = vmatpush1.bf16.msra.mxu0 %v4971
    %5035 = vmatprep.subr.bf16.mxu0 %v4976
    %5036 = vmatpush1.bf16.msra.mxu0 %v4975
    %5037 = vmatprep.subr.bf16.mxu0 %v4980
    %5038 = vmatpush1.bf16.msra.mxu0 %v4979
    %5039 = vmatprep.subr.bf16.mxu0 %v4984
    %5040 = vmatpush1.bf16.msra.mxu0 %v4983
    %5041 = vmatprep.subr.bf16.mxu0 %v4988
    %5042 = vmatpush1.bf16.msra.mxu0 %v4987
    %5043 = vmatprep.subr.bf16.mxu0 %v4992
    %5044 = vmatpush1.bf16.msra.mxu0 %v4991
    %5045 = vmatprep.subr.bf16.mxu0 %v4996
    %5046 = vmatpush1.bf16.msra.mxu0 %v4995
    %5047 = vmatprep.subr.bf16.mxu0 0
    %5048 = vmatpush1.bf16.msra.mxu0 0
    %5049 = vmatprep.subr.bf16.mxu0 0
    %5050 = vmatpush1.bf16.msra.mxu0 0
    %5051 = vmatprep.subr.bf16.mxu0 0
    %5052 = vmatpush1.bf16.msra.mxu0 0
    %5053 = vmatprep.subr.bf16.mxu0 0
    %5054 = vmatpush1.bf16.msra.mxu0 0
    %5055 = vmatprep.subr.bf16.mxu0 0
    %5056 = vmatpush1.bf16.msra.mxu0 0
    %5057 = vmatprep.subr.bf16.mxu0 0
    %5058 = vmatpush1.bf16.msra.mxu0 0
    %5059 = vmatprep.subr.bf16.mxu0 0
    %5060 = vmatpush1.bf16.msra.mxu0 0
    %5061 = vmatprep.subr.bf16.mxu0 0
    %5062 = vmatpush1.bf16.msra.mxu0 0
    %5063 = vmatprep.mubr.bf16.mxu0 0
    %5064 = vmatmul.mubr.bf16.gmra.mrb[0].mxu0 %v4838
    %v5065 = vpop.f32.mrb[0].mxu0
    %v5066 = vadd.f32 0.0, %v5065
    %v5067 = vpop.f32.mrb[0].mxu0
    %v5068 = vadd.f32 0.0, %v5067
    %v5069 = vpop.f32.mrb[0].mxu0
    %v5070 = vpop.f32.mrb[0].mxu0
    %5071 = vdwg.mxu0
    %5072 = vmatprep.subr.bf16.mxu0 %v4970
    %5073 = vmatpush1.bf16.msra.mxu0 %v4969
    %5074 = vmatprep.subr.bf16.mxu0 %v4974
    %5075 = vmatpush1.bf16.msra.mxu0 %v4973
    %5076 = vmatprep.subr.bf16.mxu0 %v4978
    %5077 = vmatpush1.bf16.msra.mxu0 %v4977
    %5078 = vmatprep.subr.bf16.mxu0 %v4982
    %5079 = vmatpush1.bf16.msra.mxu0 %v4981
    %5080 = vmatprep.subr.bf16.mxu0 %v4986
    %5081 = vmatpush1.bf16.msra.mxu0 %v4985
    %5082 = vmatprep.subr.bf16.mxu0 %v4990
    %5083 = vmatpush1.bf16.msra.mxu0 %v4989
    %5084 = vmatprep.subr.bf16.mxu0 %v4994
    %5085 = vmatpush1.bf16.msra.mxu0 %v4993
    %5086 = vmatprep.subr.bf16.mxu0 %v4998
    %5087 = vmatpush1.bf16.msra.mxu0 %v4997
    %5088 = vmatprep.subr.bf16.mxu0 0
    %5089 = vmatpush1.bf16.msra.mxu0 0
    %5090 = vmatprep.subr.bf16.mxu0 0
    %5091 = vmatpush1.bf16.msra.mxu0 0
    %5092 = vmatprep.subr.bf16.mxu0 0
    %5093 = vmatpush1.bf16.msra.mxu0 0
    %5094 = vmatprep.subr.bf16.mxu0 0
    %5095 = vmatpush1.bf16.msra.mxu0 0
    %5096 = vmatprep.subr.bf16.mxu0 0
    %5097 = vmatpush1.bf16.msra.mxu0 0
    %5098 = vmatprep.subr.bf16.mxu0 0
    %5099 = vmatpush1.bf16.msra.mxu0 0
    %5100 = vmatprep.subr.bf16.mxu0 0
    %5101 = vmatpush1.bf16.msra.mxu0 0
    %5102 = vmatprep.subr.bf16.mxu0 0
    %5103 = vmatpush1.bf16.msra.mxu0 0
    %5104 = vmatprep.mubr.bf16.mxu0 0
    %5105 = vmatmul.mubr.bf16.gmra.mrb[0].mxu0 %v4838
    %v5106 = vpop.f32.mrb[0].mxu0
    %v5107 = vadd.f32 0.0, %v5106
    %v5108 = vpop.f32.mrb[0].mxu0
    %v5109 = vadd.f32 0.0, %v5108
    %v5110 = vpop.f32.mrb[0].mxu0
    %v5111 = vpop.f32.mrb[0].mxu0
    %5112 = vdwg.mxu0
    %v5113 = vadd.f32 %v4791, %v5066
    %v5114 = vadd.f32 %v4793, %v5068
    %v5115 = vadd.f32 %v4832, %v5107
    %v5116 = vadd.f32 %v4834, %v5109
    %v5117 = vxor.u32 %v5113, 2147483648
    %v5118 = vxor.u32 %v5114, 2147483648
    %v5119 = vxor.u32 %v5115, 2147483648
    %v5120 = vmul.f32 %v5117, 1.442695
    %v5121 = vpow.pop %v5120
    %v5122 = vmul.f32 %v5118, 1.442695
    %v5123 = vpow.pop %v5122
    %v5124 = vmul.f32 %v5119, 1.442695
    %v5125 = vpow.pop %v5124
    %v5126 = vadd.f32 %v5121, 1.0
    %v5127 = vadd.f32 %v5123, 1.0
    %v5128 = vadd.f32 %v5125, 1.0
    %v5129 = vrcp.pop %v5126
    %v5130 = vmul.f32 1.0, %v5129
    %v5131 = vrcp.pop %v5127
    %v5132 = vmul.f32 1.0, %v5131
    %v5133 = vrcp.pop %v5128
    %v5134 = vmul.f32 1.0, %v5133
    %v5135 = vtanh.pop %v5116
    %v5136 = vmul.f32 %v5132, %v4231
    %v5137 = vmul.f32 %v5130, %v5135
    %v5138 = vadd.f32 %v5136, %v5137
    %v5139 = vtanh.pop %v5138
    %v5140 = vmul.f32 %v5134, %v5139
    %5141 = vst [vmem:[#allocation3 + $0x20] sm:$0xff] %v5140
    %v5142 = vld [vmem:[#allocation2 + $0xc0] sm:$0xff]
    %v5143 = vld [vmem:[#allocation2 + $0xc8] sm:$0xff]
    %v5144 = vld [vmem:[#allocation2 + $0xd0] sm:$0xff]
    %v5145 = vld [vmem:[#allocation2 + $0xd8] sm:$0xff]
    %v5146 = vpack.c.bf16 %v4541, %v4541
    %v5147 = vld [vmem:[#allocation6] sm:$0xff]
    %v5148 = vld [vmem:[#allocation6 + $0x8] sm:$0xff]
    %v5149 = vld [vmem:[#allocation6 + $0x10] sm:$0xff]
    %v5150 = vld [vmem:[#allocation6 + $0x18] sm:$0xff]
    %v5151 = vld [vmem:[#allocation6 + $0x20] sm:$0xff]
    %v5152 = vld [vmem:[#allocation6 + $0x28] sm:$0xff]
    %v5153 = vld [vmem:[#allocation6 + $0x30] sm:$0xff]
    %v5154 = vld [vmem:[#allocation6 + $0x38] sm:$0xff]
    %v5155 = vld [vmem:[#allocation6 + $0x40] sm:$0xff]
    %v5156 = vld [vmem:[#allocation6 + $0x48] sm:$0xff]
    %v5157 = vld [vmem:[#allocation6 + $0x50] sm:$0xff]
    %v5158 = vld [vmem:[#allocation6 + $0x58] sm:$0xff]
    %v5159 = vld [vmem:[#allocation6 + $0x60] sm:$0xff]
    %v5160 = vld [vmem:[#allocation6 + $0x68] sm:$0xff]
    %v5161 = vld [vmem:[#allocation6 + $0x70] sm:$0xff]
    %v5162 = vld [vmem:[#allocation6 + $0x78] sm:$0xff]
    %v5163 = vld [vmem:[#allocation6 + $0x80] sm:$0xff]
    %v5164 = vld [vmem:[#allocation6 + $0x88] sm:$0xff]
    %v5165 = vld [vmem:[#allocation6 + $0x90] sm:$0xff]
    %v5166 = vld [vmem:[#allocation6 + $0x98] sm:$0xff]
    %v5167 = vld [vmem:[#allocation6 + $0xa0] sm:$0xff]
    %v5168 = vld [vmem:[#allocation6 + $0xa8] sm:$0xff]
    %v5169 = vld [vmem:[#allocation6 + $0xb0] sm:$0xff]
    %v5170 = vld [vmem:[#allocation6 + $0xb8] sm:$0xff]
    %v5171 = vld [vmem:[#allocation6 + $0xc0] sm:$0xff]
    %v5172 = vld [vmem:[#allocation6 + $0xc8] sm:$0xff]
    %v5173 = vld [vmem:[#allocation6 + $0xd0] sm:$0xff]
    %v5174 = vld [vmem:[#allocation6 + $0xd8] sm:$0xff]
    %v5175 = vld [vmem:[#allocation6 + $0xe0] sm:$0xff]
    %v5176 = vld [vmem:[#allocation6 + $0xe8] sm:$0xff]
    %v5177 = vld [vmem:[#allocation6 + $0xf0] sm:$0xff]
    %v5178 = vld [vmem:[#allocation6 + $0xf8] sm:$0xff]
    %v5211 = vunpack.c.l.b16 %v5147
    %v5212 = vunpack.c.h.b16 %v5147
    %v5213 = vunpack.c.l.b16 %v5148
    %v5214 = vunpack.c.h.b16 %v5148
    %v5215 = vunpack.c.l.b16 %v5149
    %v5216 = vunpack.c.h.b16 %v5149
    %v5217 = vunpack.c.l.b16 %v5150
    %v5218 = vunpack.c.h.b16 %v5150
    %v5219 = vunpack.c.l.b16 %v5151
    %v5220 = vunpack.c.h.b16 %v5151
    %v5221 = vunpack.c.l.b16 %v5152
    %v5222 = vunpack.c.h.b16 %v5152
    %v5223 = vunpack.c.l.b16 %v5153
    %v5224 = vunpack.c.h.b16 %v5153
    %v5225 = vunpack.c.l.b16 %v5154
    %v5226 = vunpack.c.h.b16 %v5154
    %v5227 = vunpack.c.l.b16 %v5155
    %v5228 = vunpack.c.h.b16 %v5155
    %v5229 = vunpack.c.l.b16 %v5156
    %v5230 = vunpack.c.h.b16 %v5156
    %v5231 = vunpack.c.l.b16 %v5157
    %v5232 = vunpack.c.h.b16 %v5157
    %v5233 = vunpack.c.l.b16 %v5158
    %v5234 = vunpack.c.h.b16 %v5158
    %v5235 = vunpack.c.l.b16 %v5159
    %v5236 = vunpack.c.h.b16 %v5159
    %v5237 = vunpack.c.l.b16 %v5160
    %v5238 = vunpack.c.h.b16 %v5160
    %v5239 = vunpack.c.l.b16 %v5161
    %v5240 = vunpack.c.h.b16 %v5161
    %v5241 = vunpack.c.l.b16 %v5162
    %v5242 = vunpack.c.h.b16 %v5162
    %v5243 = vunpack.c.l.b16 %v5163
    %v5244 = vunpack.c.h.b16 %v5163
    %v5245 = vunpack.c.l.b16 %v5164
    %v5246 = vunpack.c.h.b16 %v5164
    %v5247 = vunpack.c.l.b16 %v5165
    %v5248 = vunpack.c.h.b16 %v5165
    %v5249 = vunpack.c.l.b16 %v5166
    %v5250 = vunpack.c.h.b16 %v5166
    %v5251 = vunpack.c.l.b16 %v5167
    %v5252 = vunpack.c.h.b16 %v5167
    %v5253 = vunpack.c.l.b16 %v5168
    %v5254 = vunpack.c.h.b16 %v5168
    %v5255 = vunpack.c.l.b16 %v5169
    %v5256 = vunpack.c.h.b16 %v5169
    %v5257 = vunpack.c.l.b16 %v5170
    %v5258 = vunpack.c.h.b16 %v5170
    %v5259 = vunpack.c.l.b16 %v5171
    %v5260 = vunpack.c.h.b16 %v5171
    %v5261 = vunpack.c.l.b16 %v5172
    %v5262 = vunpack.c.h.b16 %v5172
    %v5263 = vunpack.c.l.b16 %v5173
    %v5264 = vunpack.c.h.b16 %v5173
    %v5265 = vunpack.c.l.b16 %v5174
    %v5266 = vunpack.c.h.b16 %v5174
    %v5267 = vunpack.c.l.b16 %v5175
    %v5268 = vunpack.c.h.b16 %v5175
    %v5269 = vunpack.c.l.b16 %v5176
    %v5270 = vunpack.c.h.b16 %v5176
    %v5271 = vunpack.c.l.b16 %v5177
    %v5272 = vunpack.c.h.b16 %v5177
    %v5273 = vunpack.c.l.b16 %v5178
    %v5274 = vunpack.c.h.b16 %v5178
    %v5275 = vpack.c.b16 %v5215, %v5211
    %v5276 = vpack.c.b16 %v5216, %v5212
    %v5277 = vpack.c.b16 %v5217, %v5213
    %v5278 = vpack.c.b16 %v5218, %v5214
    %v5279 = vpack.c.b16 %v5223, %v5219
    %v5280 = vpack.c.b16 %v5224, %v5220
    %v5281 = vpack.c.b16 %v5225, %v5221
    %v5282 = vpack.c.b16 %v5226, %v5222
    %v5283 = vpack.c.b16 %v5231, %v5227
    %v5284 = vpack.c.b16 %v5232, %v5228
    %v5285 = vpack.c.b16 %v5233, %v5229
    %v5286 = vpack.c.b16 %v5234, %v5230
    %v5287 = vpack.c.b16 %v5239, %v5235
    %v5288 = vpack.c.b16 %v5240, %v5236
    %v5289 = vpack.c.b16 %v5241, %v5237
    %v5290 = vpack.c.b16 %v5242, %v5238
    %v5291 = vpack.c.b16 %v5247, %v5243
    %v5292 = vpack.c.b16 %v5248, %v5244
    %v5293 = vpack.c.b16 %v5249, %v5245
    %v5294 = vpack.c.b16 %v5250, %v5246
    %v5295 = vpack.c.b16 %v5255, %v5251
    %v5296 = vpack.c.b16 %v5256, %v5252
    %v5297 = vpack.c.b16 %v5257, %v5253
    %v5298 = vpack.c.b16 %v5258, %v5254
    %v5299 = vpack.c.b16 %v5263, %v5259
    %v5300 = vpack.c.b16 %v5264, %v5260
    %v5301 = vpack.c.b16 %v5265, %v5261
    %v5302 = vpack.c.b16 %v5266, %v5262
    %v5303 = vpack.c.b16 %v5271, %v5267
    %v5304 = vpack.c.b16 %v5272, %v5268
    %v5305 = vpack.c.b16 %v5273, %v5269
    %v5306 = vpack.c.b16 %v5274, %v5270
    %5339 = vmatprep.subr.bf16.mxu0 %v5276
    %5340 = vmatpush1.bf16.msra.mxu0 %v5275
    %5341 = vmatprep.subr.bf16.mxu0 %v5280
    %5342 = vmatpush1.bf16.msra.mxu0 %v5279
    %5343 = vmatprep.subr.bf16.mxu0 %v5284
    %5344 = vmatpush1.bf16.msra.mxu0 %v5283
    %5345 = vmatprep.subr.bf16.mxu0 %v5288
    %5346 = vmatpush1.bf16.msra.mxu0 %v5287
    %5347 = vmatprep.subr.bf16.mxu0 %v5292
    %5348 = vmatpush1.bf16.msra.mxu0 %v5291
    %5349 = vmatprep.subr.bf16.mxu0 %v5296
    %5350 = vmatpush1.bf16.msra.mxu0 %v5295
    %5351 = vmatprep.subr.bf16.mxu0 %v5300
    %5352 = vmatpush1.bf16.msra.mxu0 %v5299
    %5353 = vmatprep.subr.bf16.mxu0 %v5304
    %5354 = vmatpush1.bf16.msra.mxu0 %v5303
    %5355 = vmatprep.subr.bf16.mxu0 0
    %5356 = vmatpush1.bf16.msra.mxu0 0
    %5357 = vmatprep.subr.bf16.mxu0 0
    %5358 = vmatpush1.bf16.msra.mxu0 0
    %5359 = vmatprep.subr.bf16.mxu0 0
    %5360 = vmatpush1.bf16.msra.mxu0 0
    %5361 = vmatprep.subr.bf16.mxu0 0
    %5362 = vmatpush1.bf16.msra.mxu0 0
    %5363 = vmatprep.subr.bf16.mxu0 0
    %5364 = vmatpush1.bf16.msra.mxu0 0
    %5365 = vmatprep.subr.bf16.mxu0 0
    %5366 = vmatpush1.bf16.msra.mxu0 0
    %5367 = vmatprep.subr.bf16.mxu0 0
    %5368 = vmatpush1.bf16.msra.mxu0 0
    %5369 = vmatprep.subr.bf16.mxu0 0
    %5370 = vmatpush1.bf16.msra.mxu0 0
    %5371 = vmatprep.mubr.bf16.mxu0 0
    %5372 = vmatmul.mubr.bf16.gmra.mrb[0].mxu0 %v5146
    %v5373 = vpop.f32.mrb[0].mxu0
    %v5374 = vadd.f32 0.0, %v5373
    %v5375 = vpop.f32.mrb[0].mxu0
    %v5376 = vadd.f32 0.0, %v5375
    %v5377 = vpop.f32.mrb[0].mxu0
    %v5378 = vpop.f32.mrb[0].mxu0
    %5379 = vdwg.mxu0
    %5380 = vmatprep.subr.bf16.mxu0 %v5278
    %5381 = vmatpush1.bf16.msra.mxu0 %v5277
    %5382 = vmatprep.subr.bf16.mxu0 %v5282
    %5383 = vmatpush1.bf16.msra.mxu0 %v5281
    %5384 = vmatprep.subr.bf16.mxu0 %v5286
    %5385 = vmatpush1.bf16.msra.mxu0 %v5285
    %5386 = vmatprep.subr.bf16.mxu0 %v5290
    %5387 = vmatpush1.bf16.msra.mxu0 %v5289
    %5388 = vmatprep.subr.bf16.mxu0 %v5294
    %5389 = vmatpush1.bf16.msra.mxu0 %v5293
    %5390 = vmatprep.subr.bf16.mxu0 %v5298
    %5391 = vmatpush1.bf16.msra.mxu0 %v5297
    %5392 = vmatprep.subr.bf16.mxu0 %v5302
    %5393 = vmatpush1.bf16.msra.mxu0 %v5301
    %5394 = vmatprep.subr.bf16.mxu0 %v5306
    %5395 = vmatpush1.bf16.msra.mxu0 %v5305
    %5396 = vmatprep.subr.bf16.mxu0 0
    %5397 = vmatpush1.bf16.msra.mxu0 0
    %5398 = vmatprep.subr.bf16.mxu0 0
    %5399 = vmatpush1.bf16.msra.mxu0 0
    %5400 = vmatprep.subr.bf16.mxu0 0
    %5401 = vmatpush1.bf16.msra.mxu0 0
    %5402 = vmatprep.subr.bf16.mxu0 0
    %5403 = vmatpush1.bf16.msra.mxu0 0
    %5404 = vmatprep.subr.bf16.mxu0 0
    %5405 = vmatpush1.bf16.msra.mxu0 0
    %5406 = vmatprep.subr.bf16.mxu0 0
    %5407 = vmatpush1.bf16.msra.mxu0 0
    %5408 = vmatprep.subr.bf16.mxu0 0
    %5409 = vmatpush1.bf16.msra.mxu0 0
    %5410 = vmatprep.subr.bf16.mxu0 0
    %5411 = vmatpush1.bf16.msra.mxu0 0
    %5412 = vmatprep.mubr.bf16.mxu0 0
    %5413 = vmatmul.mubr.bf16.gmra.mrb[0].mxu0 %v5146
    %v5414 = vpop.f32.mrb[0].mxu0
    %v5415 = vadd.f32 0.0, %v5414
    %v5416 = vpop.f32.mrb[0].mxu0
    %v5417 = vadd.f32 0.0, %v5416
    %v5418 = vpop.f32.mrb[0].mxu0
    %v5419 = vpop.f32.mrb[0].mxu0
    %5420 = vdwg.mxu0
    %v5421 = vadd.f32 %v5142, %v5374
    %v5422 = vadd.f32 %v5143, %v5376
    %v5423 = vadd.f32 %v5144, %v5415
    %v5424 = vadd.f32 %v5145, %v5417
    %v5425 = vxor.u32 %v5421, 2147483648
    %v5426 = vxor.u32 %v5422, 2147483648
    %v5427 = vxor.u32 %v5423, 2147483648
    %v5428 = vmul.f32 %v5425, 1.442695
    %v5429 = vpow.pop %v5428
    %v5430 = vmul.f32 %v5426, 1.442695
    %v5431 = vpow.pop %v5430
    %v5432 = vmul.f32 %v5427, 1.442695
    %v5433 = vpow.pop %v5432
    %v5434 = vadd.f32 %v5429, 1.0
    %v5435 = vadd.f32 %v5431, 1.0
    %v5436 = vadd.f32 %v5433, 1.0
    %v5437 = vrcp.pop %v5434
    %v5438 = vmul.f32 1.0, %v5437
    %v5439 = vrcp.pop %v5435
    %v5440 = vmul.f32 1.0, %v5439
    %v5441 = vrcp.pop %v5436
    %v5442 = vmul.f32 1.0, %v5441
    %v5443 = vtanh.pop %v5424
    %v5444 = vmul.f32 %v5440, %v4539
    %v5445 = vmul.f32 %v5438, %v5443
    %v5446 = vadd.f32 %v5444, %v5445
    %v5447 = vtanh.pop %v5446
    %v5448 = vmul.f32 %v5442, %v5447
    %v5449 = vld [vmem:[%s911] sm:$0xff]
    %v5450 = vld [vmem:[%s911 + $0x8] sm:$0xff]
    %v5451 = vld [vmem:[%s911 + $0x10] sm:$0xff]
    %v5452 = vld [vmem:[%s911 + $0x18] sm:$0xff]
    %v5453 = vld [vmem:[%s911 + $0x20] sm:$0xff]
    %v5454 = vld [vmem:[%s911 + $0x28] sm:$0xff]
    %v5455 = vld [vmem:[%s911 + $0x30] sm:$0xff]
    %v5456 = vld [vmem:[%s911 + $0x38] sm:$0xff]
    %v5457 = vld [vmem:[%s911 + $0x40] sm:$0xff]
    %v5458 = vld [vmem:[%s911 + $0x48] sm:$0xff]
    %v5459 = vld [vmem:[%s911 + $0x50] sm:$0xff]
    %v5460 = vld [vmem:[%s911 + $0x58] sm:$0xff]
    %v5461 = vld [vmem:[%s911 + $0x60] sm:$0xff]
    %v5462 = vld [vmem:[%s911 + $0x68] sm:$0xff]
    %v5463 = vld [vmem:[%s911 + $0x70] sm:$0xff]
    %v5464 = vld [vmem:[%s911 + $0x78] sm:$0xff]
    %v5465 = vld [vmem:[%s911 + $0x80] sm:$0xff]
    %v5466 = vld [vmem:[%s911 + $0x88] sm:$0xff]
    %v5467 = vld [vmem:[%s911 + $0x90] sm:$0xff]
    %v5468 = vld [vmem:[%s911 + $0x98] sm:$0xff]
    %v5469 = vld [vmem:[%s911 + $0xa0] sm:$0xff]
    %v5470 = vld [vmem:[%s911 + $0xa8] sm:$0xff]
    %v5471 = vld [vmem:[%s911 + $0xb0] sm:$0xff]
    %v5472 = vld [vmem:[%s911 + $0xb8] sm:$0xff]
    %v5473 = vld [vmem:[%s911 + $0xc0] sm:$0xff]
    %v5474 = vld [vmem:[%s911 + $0xc8] sm:$0xff]
    %v5475 = vld [vmem:[%s911 + $0xd0] sm:$0xff]
    %v5476 = vld [vmem:[%s911 + $0xd8] sm:$0xff]
    %v5477 = vld [vmem:[%s911 + $0xe0] sm:$0xff]
    %v5478 = vld [vmem:[%s911 + $0xe8] sm:$0xff]
    %v5479 = vld [vmem:[%s911 + $0xf0] sm:$0xff]
    %v5480 = vld [vmem:[%s911 + $0xf8] sm:$0xff]
    %v5481 = vld [vmem:[%s944] sm:$0xf]
    %v5483 = vlaneseq
    %v5484 = vshrl.u32 %v5483, 7
    %v5485 = vsub.s32 0, %v5484
    %v5486 = vrot.slane %v5481, %v5485
    %v5487 = vlaneseq
    %v5488 = vshrl.u32 %v5487, 7
    %v5489 = vsub.s32 1, %v5488
    %v5490 = vrot.slane %v5481, %v5489
    %v5491 = vlaneseq
    %v5492 = vshrl.u32 %v5491, 7
    %v5493 = vsub.s32 2, %v5492
    %v5494 = vrot.slane %v5481, %v5493
    %v5495 = vlaneseq
    %v5496 = vshrl.u32 %v5495, 7
    %v5497 = vsub.s32 3, %v5496
    %v5498 = vrot.slane %v5481, %v5497
    %v5535 = vunpack.c.l.b16 %v5449
    %v5536 = vunpack.c.h.b16 %v5449
    %v5537 = vunpack.c.l.b16 %v5450
    %v5538 = vunpack.c.h.b16 %v5450
    %v5539 = vunpack.c.l.b16 %v5451
    %v5540 = vunpack.c.h.b16 %v5451
    %v5541 = vunpack.c.l.b16 %v5452
    %v5542 = vunpack.c.h.b16 %v5452
    %v5543 = vunpack.c.l.b16 %v5453
    %v5544 = vunpack.c.h.b16 %v5453
    %v5545 = vunpack.c.l.b16 %v5454
    %v5546 = vunpack.c.h.b16 %v5454
    %v5547 = vunpack.c.l.b16 %v5455
    %v5548 = vunpack.c.h.b16 %v5455
    %v5549 = vunpack.c.l.b16 %v5456
    %v5550 = vunpack.c.h.b16 %v5456
    %v5551 = vunpack.c.l.b16 %v5457
    %v5552 = vunpack.c.h.b16 %v5457
    %v5553 = vunpack.c.l.b16 %v5458
    %v5554 = vunpack.c.h.b16 %v5458
    %v5555 = vunpack.c.l.b16 %v5459
    %v5556 = vunpack.c.h.b16 %v5459
    %v5557 = vunpack.c.l.b16 %v5460
    %v5558 = vunpack.c.h.b16 %v5460
    %v5559 = vunpack.c.l.b16 %v5461
    %v5560 = vunpack.c.h.b16 %v5461
    %v5561 = vunpack.c.l.b16 %v5462
    %v5562 = vunpack.c.h.b16 %v5462
    %v5563 = vunpack.c.l.b16 %v5463
    %v5564 = vunpack.c.h.b16 %v5463
    %v5565 = vunpack.c.l.b16 %v5464
    %v5566 = vunpack.c.h.b16 %v5464
    %v5567 = vunpack.c.l.b16 %v5465
    %v5568 = vunpack.c.h.b16 %v5465
    %v5569 = vunpack.c.l.b16 %v5466
    %v5570 = vunpack.c.h.b16 %v5466
    %v5571 = vunpack.c.l.b16 %v5467
    %v5572 = vunpack.c.h.b16 %v5467
    %v5573 = vunpack.c.l.b16 %v5468
    %v5574 = vunpack.c.h.b16 %v5468
    %v5575 = vunpack.c.l.b16 %v5469
    %v5576 = vunpack.c.h.b16 %v5469
    %v5577 = vunpack.c.l.b16 %v5470
    %v5578 = vunpack.c.h.b16 %v5470
    %v5579 = vunpack.c.l.b16 %v5471
    %v5580 = vunpack.c.h.b16 %v5471
    %v5581 = vunpack.c.l.b16 %v5472
    %v5582 = vunpack.c.h.b16 %v5472
    %v5583 = vunpack.c.l.b16 %v5473
    %v5584 = vunpack.c.h.b16 %v5473
    %v5585 = vunpack.c.l.b16 %v5474
    %v5586 = vunpack.c.h.b16 %v5474
    %v5587 = vunpack.c.l.b16 %v5475
    %v5588 = vunpack.c.h.b16 %v5475
    %v5589 = vunpack.c.l.b16 %v5476
    %v5590 = vunpack.c.h.b16 %v5476
    %v5591 = vunpack.c.l.b16 %v5477
    %v5592 = vunpack.c.h.b16 %v5477
    %v5593 = vunpack.c.l.b16 %v5478
    %v5594 = vunpack.c.h.b16 %v5478
    %v5595 = vunpack.c.l.b16 %v5479
    %v5596 = vunpack.c.h.b16 %v5479
    %v5597 = vunpack.c.l.b16 %v5480
    %v5598 = vunpack.c.h.b16 %v5480
    %v5599 = vpack.c.b16 %v5539, %v5535
    %v5600 = vpack.c.b16 %v5540, %v5536
    %v5601 = vpack.c.b16 %v5541, %v5537
    %v5602 = vpack.c.b16 %v5542, %v5538
    %v5603 = vpack.c.b16 %v5547, %v5543
    %v5604 = vpack.c.b16 %v5548, %v5544
    %v5605 = vpack.c.b16 %v5549, %v5545
    %v5606 = vpack.c.b16 %v5550, %v5546
    %v5607 = vpack.c.b16 %v5555, %v5551
    %v5608 = vpack.c.b16 %v5556, %v5552
    %v5609 = vpack.c.b16 %v5557, %v5553
    %v5610 = vpack.c.b16 %v5558, %v5554
    %v5611 = vpack.c.b16 %v5563, %v5559
    %v5612 = vpack.c.b16 %v5564, %v5560
    %v5613 = vpack.c.b16 %v5565, %v5561
    %v5614 = vpack.c.b16 %v5566, %v5562
    %v5615 = vpack.c.b16 %v5571, %v5567
    %v5616 = vpack.c.b16 %v5572, %v5568
    %v5617 = vpack.c.b16 %v5573, %v5569
    %v5618 = vpack.c.b16 %v5574, %v5570
    %v5619 = vpack.c.b16 %v5579, %v5575
    %v5620 = vpack.c.b16 %v5580, %v5576
    %v5621 = vpack.c.b16 %v5581, %v5577
    %v5622 = vpack.c.b16 %v5582, %v5578
    %v5623 = vpack.c.b16 %v5587, %v5583
    %v5624 = vpack.c.b16 %v5588, %v5584
    %v5625 = vpack.c.b16 %v5589, %v5585
    %v5626 = vpack.c.b16 %v5590, %v5586
    %v5627 = vpack.c.b16 %v5595, %v5591
    %v5628 = vpack.c.b16 %v5596, %v5592
    %v5629 = vpack.c.b16 %v5597, %v5593
    %v5630 = vpack.c.b16 %v5598, %v5594
    %5663 = vmatprep.subr.bf16.mxu0 %v5600
    %5664 = vmatpush1.bf16.msra.mxu0 %v5599
    %5665 = vmatprep.subr.bf16.mxu0 %v5604
    %5666 = vmatpush1.bf16.msra.mxu0 %v5603
    %5667 = vmatprep.subr.bf16.mxu0 %v5608
    %5668 = vmatpush1.bf16.msra.mxu0 %v5607
    %5669 = vmatprep.subr.bf16.mxu0 %v5612
    %5670 = vmatpush1.bf16.msra.mxu0 %v5611
    %5671 = vmatprep.subr.bf16.mxu0 %v5616
    %5672 = vmatpush1.bf16.msra.mxu0 %v5615
    %5673 = vmatprep.subr.bf16.mxu0 %v5620
    %5674 = vmatpush1.bf16.msra.mxu0 %v5619
    %5675 = vmatprep.subr.bf16.mxu0 %v5624
    %5676 = vmatpush1.bf16.msra.mxu0 %v5623
    %5677 = vmatprep.subr.bf16.mxu0 %v5628
    %5678 = vmatpush1.bf16.msra.mxu0 %v5627
    %5679 = vmatprep.subr.bf16.mxu0 0
    %5680 = vmatpush1.bf16.msra.mxu0 0
    %5681 = vmatprep.subr.bf16.mxu0 0
    %5682 = vmatpush1.bf16.msra.mxu0 0
    %5683 = vmatprep.subr.bf16.mxu0 0
    %5684 = vmatpush1.bf16.msra.mxu0 0
    %5685 = vmatprep.subr.bf16.mxu0 0
    %5686 = vmatpush1.bf16.msra.mxu0 0
    %5687 = vmatprep.subr.bf16.mxu0 0
    %5688 = vmatpush1.bf16.msra.mxu0 0
    %5689 = vmatprep.subr.bf16.mxu0 0
    %5690 = vmatpush1.bf16.msra.mxu0 0
    %5691 = vmatprep.subr.bf16.mxu0 0
    %5692 = vmatpush1.bf16.msra.mxu0 0
    %5693 = vmatprep.subr.bf16.mxu0 0
    %5694 = vmatpush1.bf16.msra.mxu0 0
    %5695 = vmatprep.mubr.bf16.mxu0 0
    %5696 = vmatmul.mubr.bf16.gmra.mrb[0].mxu0 %v5146
    %v5697 = vpop.f32.mrb[0].mxu0
    %v5698 = vadd.f32 %v5486, %v5697
    %v5699 = vpop.f32.mrb[0].mxu0
    %v5700 = vadd.f32 %v5490, %v5699
    %v5701 = vpop.f32.mrb[0].mxu0
    %v5702 = vpop.f32.mrb[0].mxu0
    %5703 = vdwg.mxu0
    %5704 = vmatprep.subr.bf16.mxu0 %v5602
    %5705 = vmatpush1.bf16.msra.mxu0 %v5601
    %5706 = vmatprep.subr.bf16.mxu0 %v5606
    %5707 = vmatpush1.bf16.msra.mxu0 %v5605
    %5708 = vmatprep.subr.bf16.mxu0 %v5610
    %5709 = vmatpush1.bf16.msra.mxu0 %v5609
    %5710 = vmatprep.subr.bf16.mxu0 %v5614
    %5711 = vmatpush1.bf16.msra.mxu0 %v5613
    %5712 = vmatprep.subr.bf16.mxu0 %v5618
    %5713 = vmatpush1.bf16.msra.mxu0 %v5617
    %5714 = vmatprep.subr.bf16.mxu0 %v5622
    %5715 = vmatpush1.bf16.msra.mxu0 %v5621
    %5716 = vmatprep.subr.bf16.mxu0 %v5626
    %5717 = vmatpush1.bf16.msra.mxu0 %v5625
    %5718 = vmatprep.subr.bf16.mxu0 %v5630
    %5719 = vmatpush1.bf16.msra.mxu0 %v5629
    %5720 = vmatprep.subr.bf16.mxu0 0
    %5721 = vmatpush1.bf16.msra.mxu0 0
    %5722 = vmatprep.subr.bf16.mxu0 0
    %5723 = vmatpush1.bf16.msra.mxu0 0
    %5724 = vmatprep.subr.bf16.mxu0 0
    %5725 = vmatpush1.bf16.msra.mxu0 0
    %5726 = vmatprep.subr.bf16.mxu0 0
    %5727 = vmatpush1.bf16.msra.mxu0 0
    %5728 = vmatprep.subr.bf16.mxu0 0
    %5729 = vmatpush1.bf16.msra.mxu0 0
    %5730 = vmatprep.subr.bf16.mxu0 0
    %5731 = vmatpush1.bf16.msra.mxu0 0
    %5732 = vmatprep.subr.bf16.mxu0 0
    %5733 = vmatpush1.bf16.msra.mxu0 0
    %5734 = vmatprep.subr.bf16.mxu0 0
    %5735 = vmatpush1.bf16.msra.mxu0 0
    %5736 = vmatprep.mubr.bf16.mxu0 0
    %5737 = vmatmul.mubr.bf16.gmra.mrb[0].mxu0 %v5146
    %v5738 = vpop.f32.mrb[0].mxu0
    %v5739 = vadd.f32 %v5494, %v5738
    %v5740 = vpop.f32.mrb[0].mxu0
    %v5741 = vadd.f32 %v5498, %v5740
    %v5742 = vpop.f32.mrb[0].mxu0
    %v5743 = vpop.f32.mrb[0].mxu0
    %5744 = vdwg.mxu0
    %v5745 = vpack.c.bf16 %v5140, %v5140
    %v5746 = vld [vmem:[%s1210] sm:$0xff]
    %v5747 = vld [vmem:[%s1210 + $0x8] sm:$0xff]
    %v5748 = vld [vmem:[%s1210 + $0x10] sm:$0xff]
    %v5749 = vld [vmem:[%s1210 + $0x18] sm:$0xff]
    %v5750 = vld [vmem:[%s1210 + $0x20] sm:$0xff]
    %v5751 = vld [vmem:[%s1210 + $0x28] sm:$0xff]
    %v5752 = vld [vmem:[%s1210 + $0x30] sm:$0xff]
    %v5753 = vld [vmem:[%s1210 + $0x38] sm:$0xff]
    %v5754 = vld [vmem:[%s1210 + $0x40] sm:$0xff]
    %v5755 = vld [vmem:[%s1210 + $0x48] sm:$0xff]
    %v5756 = vld [vmem:[%s1210 + $0x50] sm:$0xff]
    %v5757 = vld [vmem:[%s1210 + $0x58] sm:$0xff]
    %v5758 = vld [vmem:[%s1210 + $0x60] sm:$0xff]
    %v5759 = vld [vmem:[%s1210 + $0x68] sm:$0xff]
    %v5760 = vld [vmem:[%s1210 + $0x70] sm:$0xff]
    %v5761 = vld [vmem:[%s1210 + $0x78] sm:$0xff]
    %v5762 = vld [vmem:[%s1210 + $0x80] sm:$0xff]
    %v5763 = vld [vmem:[%s1210 + $0x88] sm:$0xff]
    %v5764 = vld [vmem:[%s1210 + $0x90] sm:$0xff]
    %v5765 = vld [vmem:[%s1210 + $0x98] sm:$0xff]
    %v5766 = vld [vmem:[%s1210 + $0xa0] sm:$0xff]
    %v5767 = vld [vmem:[%s1210 + $0xa8] sm:$0xff]
    %v5768 = vld [vmem:[%s1210 + $0xb0] sm:$0xff]
    %v5769 = vld [vmem:[%s1210 + $0xb8] sm:$0xff]
    %v5770 = vld [vmem:[%s1210 + $0xc0] sm:$0xff]
    %v5771 = vld [vmem:[%s1210 + $0xc8] sm:$0xff]
    %v5772 = vld [vmem:[%s1210 + $0xd0] sm:$0xff]
    %v5773 = vld [vmem:[%s1210 + $0xd8] sm:$0xff]
    %v5774 = vld [vmem:[%s1210 + $0xe0] sm:$0xff]
    %v5775 = vld [vmem:[%s1210 + $0xe8] sm:$0xff]
    %v5776 = vld [vmem:[%s1210 + $0xf0] sm:$0xff]
    %v5777 = vld [vmem:[%s1210 + $0xf8] sm:$0xff]
    %v5810 = vunpack.c.l.b16 %v5746
    %v5811 = vunpack.c.h.b16 %v5746
    %v5812 = vunpack.c.l.b16 %v5747
    %v5813 = vunpack.c.h.b16 %v5747
    %v5814 = vunpack.c.l.b16 %v5748
    %v5815 = vunpack.c.h.b16 %v5748
    %v5816 = vunpack.c.l.b16 %v5749
    %v5817 = vunpack.c.h.b16 %v5749
    %v5818 = vunpack.c.l.b16 %v5750
    %v5819 = vunpack.c.h.b16 %v5750
    %v5820 = vunpack.c.l.b16 %v5751
    %v5821 = vunpack.c.h.b16 %v5751
    %v5822 = vunpack.c.l.b16 %v5752
    %v5823 = vunpack.c.h.b16 %v5752
    %v5824 = vunpack.c.l.b16 %v5753
    %v5825 = vunpack.c.h.b16 %v5753
    %v5826 = vunpack.c.l.b16 %v5754
    %v5827 = vunpack.c.h.b16 %v5754
    %v5828 = vunpack.c.l.b16 %v5755
    %v5829 = vunpack.c.h.b16 %v5755
    %v5830 = vunpack.c.l.b16 %v5756
    %v5831 = vunpack.c.h.b16 %v5756
    %v5832 = vunpack.c.l.b16 %v5757
    %v5833 = vunpack.c.h.b16 %v5757
    %v5834 = vunpack.c.l.b16 %v5758
    %v5835 = vunpack.c.h.b16 %v5758
    %v5836 = vunpack.c.l.b16 %v5759
    %v5837 = vunpack.c.h.b16 %v5759
    %v5838 = vunpack.c.l.b16 %v5760
    %v5839 = vunpack.c.h.b16 %v5760
    %v5840 = vunpack.c.l.b16 %v5761
    %v5841 = vunpack.c.h.b16 %v5761
    %v5842 = vunpack.c.l.b16 %v5762
    %v5843 = vunpack.c.h.b16 %v5762
    %v5844 = vunpack.c.l.b16 %v5763
    %v5845 = vunpack.c.h.b16 %v5763
    %v5846 = vunpack.c.l.b16 %v5764
    %v5847 = vunpack.c.h.b16 %v5764
    %v5848 = vunpack.c.l.b16 %v5765
    %v5849 = vunpack.c.h.b16 %v5765
    %v5850 = vunpack.c.l.b16 %v5766
    %v5851 = vunpack.c.h.b16 %v5766
    %v5852 = vunpack.c.l.b16 %v5767
    %v5853 = vunpack.c.h.b16 %v5767
    %v5854 = vunpack.c.l.b16 %v5768
    %v5855 = vunpack.c.h.b16 %v5768
    %v5856 = vunpack.c.l.b16 %v5769
    %v5857 = vunpack.c.h.b16 %v5769
    %v5858 = vunpack.c.l.b16 %v5770
    %v5859 = vunpack.c.h.b16 %v5770
    %v5860 = vunpack.c.l.b16 %v5771
    %v5861 = vunpack.c.h.b16 %v5771
    %v5862 = vunpack.c.l.b16 %v5772
    %v5863 = vunpack.c.h.b16 %v5772
    %v5864 = vunpack.c.l.b16 %v5773
    %v5865 = vunpack.c.h.b16 %v5773
    %v5866 = vunpack.c.l.b16 %v5774
    %v5867 = vunpack.c.h.b16 %v5774
    %v5868 = vunpack.c.l.b16 %v5775
    %v5869 = vunpack.c.h.b16 %v5775
    %v5870 = vunpack.c.l.b16 %v5776
    %v5871 = vunpack.c.h.b16 %v5776
    %v5872 = vunpack.c.l.b16 %v5777
    %v5873 = vunpack.c.h.b16 %v5777
    %v5874 = vpack.c.b16 %v5814, %v5810
    %v5875 = vpack.c.b16 %v5815, %v5811
    %v5876 = vpack.c.b16 %v5816, %v5812
    %v5877 = vpack.c.b16 %v5817, %v5813
    %v5878 = vpack.c.b16 %v5822, %v5818
    %v5879 = vpack.c.b16 %v5823, %v5819
    %v5880 = vpack.c.b16 %v5824, %v5820
    %v5881 = vpack.c.b16 %v5825, %v5821
    %v5882 = vpack.c.b16 %v5830, %v5826
    %v5883 = vpack.c.b16 %v5831, %v5827
    %v5884 = vpack.c.b16 %v5832, %v5828
    %v5885 = vpack.c.b16 %v5833, %v5829
    %v5886 = vpack.c.b16 %v5838, %v5834
    %v5887 = vpack.c.b16 %v5839, %v5835
    %v5888 = vpack.c.b16 %v5840, %v5836
    %v5889 = vpack.c.b16 %v5841, %v5837
    %v5890 = vpack.c.b16 %v5846, %v5842
    %v5891 = vpack.c.b16 %v5847, %v5843
    %v5892 = vpack.c.b16 %v5848, %v5844
    %v5893 = vpack.c.b16 %v5849, %v5845
    %v5894 = vpack.c.b16 %v5854, %v5850
    %v5895 = vpack.c.b16 %v5855, %v5851
    %v5896 = vpack.c.b16 %v5856, %v5852
    %v5897 = vpack.c.b16 %v5857, %v5853
    %v5898 = vpack.c.b16 %v5862, %v5858
    %v5899 = vpack.c.b16 %v5863, %v5859
    %v5900 = vpack.c.b16 %v5864, %v5860
    %v5901 = vpack.c.b16 %v5865, %v5861
    %v5902 = vpack.c.b16 %v5870, %v5866
    %v5903 = vpack.c.b16 %v5871, %v5867
    %v5904 = vpack.c.b16 %v5872, %v5868
    %v5905 = vpack.c.b16 %v5873, %v5869
    %5938 = vmatprep.subr.bf16.mxu0 %v5875
    %5939 = vmatpush1.bf16.msra.mxu0 %v5874
    %5940 = vmatprep.subr.bf16.mxu0 %v5879
    %5941 = vmatpush1.bf16.msra.mxu0 %v5878
    %5942 = vmatprep.subr.bf16.mxu0 %v5883
    %5943 = vmatpush1.bf16.msra.mxu0 %v5882
    %5944 = vmatprep.subr.bf16.mxu0 %v5887
    %5945 = vmatpush1.bf16.msra.mxu0 %v5886
    %5946 = vmatprep.subr.bf16.mxu0 %v5891
    %5947 = vmatpush1.bf16.msra.mxu0 %v5890
    %5948 = vmatprep.subr.bf16.mxu0 %v5895
    %5949 = vmatpush1.bf16.msra.mxu0 %v5894
    %5950 = vmatprep.subr.bf16.mxu0 %v5899
    %5951 = vmatpush1.bf16.msra.mxu0 %v5898
    %5952 = vmatprep.subr.bf16.mxu0 %v5903
    %5953 = vmatpush1.bf16.msra.mxu0 %v5902
    %5954 = vmatprep.subr.bf16.mxu0 0
    %5955 = vmatpush1.bf16.msra.mxu0 0
    %5956 = vmatprep.subr.bf16.mxu0 0
    %5957 = vmatpush1.bf16.msra.mxu0 0
    %5958 = vmatprep.subr.bf16.mxu0 0
    %5959 = vmatpush1.bf16.msra.mxu0 0
    %5960 = vmatprep.subr.bf16.mxu0 0
    %5961 = vmatpush1.bf16.msra.mxu0 0
    %5962 = vmatprep.subr.bf16.mxu0 0
    %5963 = vmatpush1.bf16.msra.mxu0 0
    %5964 = vmatprep.subr.bf16.mxu0 0
    %5965 = vmatpush1.bf16.msra.mxu0 0
    %5966 = vmatprep.subr.bf16.mxu0 0
    %5967 = vmatpush1.bf16.msra.mxu0 0
    %5968 = vmatprep.subr.bf16.mxu0 0
    %5969 = vmatpush1.bf16.msra.mxu0 0
    %5970 = vmatprep.mubr.bf16.mxu0 0
    %5971 = vmatmul.mubr.bf16.gmra.mrb[0].mxu0 %v5745
    %v5972 = vpop.f32.mrb[0].mxu0
    %v5973 = vadd.f32 0.0, %v5972
    %v5974 = vpop.f32.mrb[0].mxu0
    %v5975 = vadd.f32 0.0, %v5974
    %v5976 = vpop.f32.mrb[0].mxu0
    %v5977 = vpop.f32.mrb[0].mxu0
    %5978 = vdwg.mxu0
    %5979 = vmatprep.subr.bf16.mxu0 %v5877
    %5980 = vmatpush1.bf16.msra.mxu0 %v5876
    %5981 = vmatprep.subr.bf16.mxu0 %v5881
    %5982 = vmatpush1.bf16.msra.mxu0 %v5880
    %5983 = vmatprep.subr.bf16.mxu0 %v5885
    %5984 = vmatpush1.bf16.msra.mxu0 %v5884
    %5985 = vmatprep.subr.bf16.mxu0 %v5889
    %5986 = vmatpush1.bf16.msra.mxu0 %v5888
    %5987 = vmatprep.subr.bf16.mxu0 %v5893
    %5988 = vmatpush1.bf16.msra.mxu0 %v5892
    %5989 = vmatprep.subr.bf16.mxu0 %v5897
    %5990 = vmatpush1.bf16.msra.mxu0 %v5896
    %5991 = vmatprep.subr.bf16.mxu0 %v5901
    %5992 = vmatpush1.bf16.msra.mxu0 %v5900
    %5993 = vmatprep.subr.bf16.mxu0 %v5905
    %5994 = vmatpush1.bf16.msra.mxu0 %v5904
    %5995 = vmatprep.subr.bf16.mxu0 0
    %5996 = vmatpush1.bf16.msra.mxu0 0
    %5997 = vmatprep.subr.bf16.mxu0 0
    %5998 = vmatpush1.bf16.msra.mxu0 0
    %5999 = vmatprep.subr.bf16.mxu0 0
    %6000 = vmatpush1.bf16.msra.mxu0 0
    %6001 = vmatprep.subr.bf16.mxu0 0
    %6002 = vmatpush1.bf16.msra.mxu0 0
    %6003 = vmatprep.subr.bf16.mxu0 0
    %6004 = vmatpush1.bf16.msra.mxu0 0
    %6005 = vmatprep.subr.bf16.mxu0 0
    %6006 = vmatpush1.bf16.msra.mxu0 0
    %6007 = vmatprep.subr.bf16.mxu0 0
    %6008 = vmatpush1.bf16.msra.mxu0 0
    %6009 = vmatprep.subr.bf16.mxu0 0
    %6010 = vmatpush1.bf16.msra.mxu0 0
    %6011 = vmatprep.mubr.bf16.mxu0 0
    %6012 = vmatmul.mubr.bf16.gmra.mrb[0].mxu0 %v5745
    %v6013 = vpop.f32.mrb[0].mxu0
    %v6014 = vadd.f32 0.0, %v6013
    %v6015 = vpop.f32.mrb[0].mxu0
    %v6016 = vadd.f32 0.0, %v6015
    %v6017 = vpop.f32.mrb[0].mxu0
    %v6018 = vpop.f32.mrb[0].mxu0
    %6019 = vdwg.mxu0
    %v6020 = vadd.f32 %v5698, %v5973
    %v6021 = vadd.f32 %v5700, %v5975
    %v6022 = vadd.f32 %v5739, %v6014
    %v6023 = vadd.f32 %v5741, %v6016
    %v6024 = vxor.u32 %v6020, 2147483648
    %v6025 = vxor.u32 %v6021, 2147483648
    %v6026 = vxor.u32 %v6022, 2147483648
    %v6027 = vmul.f32 %v6024, 1.442695
    %v6028 = vpow.pop %v6027
    %v6029 = vmul.f32 %v6025, 1.442695
    %v6030 = vpow.pop %v6029
    %v6031 = vmul.f32 %v6026, 1.442695
    %v6032 = vpow.pop %v6031
    %v6033 = vadd.f32 %v6028, 1.0
    %v6034 = vadd.f32 %v6030, 1.0
    %v6035 = vadd.f32 %v6032, 1.0
    %v6036 = vrcp.pop %v6033
    %v6037 = vmul.f32 1.0, %v6036
    %v6038 = vrcp.pop %v6034
    %v6039 = vmul.f32 1.0, %v6038
    %v6040 = vrcp.pop %v6035
    %v6041 = vmul.f32 1.0, %v6040
    %v6042 = vtanh.pop %v6023
    %v6043 = vmul.f32 %v6039, %v5138
    %v6044 = vmul.f32 %v6037, %v6042
    %v6045 = vadd.f32 %v6043, %v6044
    %v6046 = vtanh.pop %v6045
    %v6047 = vmul.f32 %v6041, %v6046
    %6048 = vst [vmem:[#allocation3 + $0x28] sm:$0xff] %v6047
    %v6049 = vld [vmem:[#allocation2 + $0xe0] sm:$0xff]
    %v6050 = vld [vmem:[#allocation2 + $0xe8] sm:$0xff]
    %v6051 = vld [vmem:[#allocation2 + $0xf0] sm:$0xff]
    %v6052 = vld [vmem:[#allocation2 + $0xf8] sm:$0xff]
    %v6053 = vpack.c.bf16 %v5448, %v5448
    %v6054 = vld [vmem:[#allocation6] sm:$0xff]
    %v6055 = vld [vmem:[#allocation6 + $0x8] sm:$0xff]
    %v6056 = vld [vmem:[#allocation6 + $0x10] sm:$0xff]
    %v6057 = vld [vmem:[#allocation6 + $0x18] sm:$0xff]
    %v6058 = vld [vmem:[#allocation6 + $0x20] sm:$0xff]
    %v6059 = vld [vmem:[#allocation6 + $0x28] sm:$0xff]
    %v6060 = vld [vmem:[#allocation6 + $0x30] sm:$0xff]
    %v6061 = vld [vmem:[#allocation6 + $0x38] sm:$0xff]
    %v6062 = vld [vmem:[#allocation6 + $0x40] sm:$0xff]
    %v6063 = vld [vmem:[#allocation6 + $0x48] sm:$0xff]
    %v6064 = vld [vmem:[#allocation6 + $0x50] sm:$0xff]
    %v6065 = vld [vmem:[#allocation6 + $0x58] sm:$0xff]
    %v6066 = vld [vmem:[#allocation6 + $0x60] sm:$0xff]
    %v6067 = vld [vmem:[#allocation6 + $0x68] sm:$0xff]
    %v6068 = vld [vmem:[#allocation6 + $0x70] sm:$0xff]
    %v6069 = vld [vmem:[#allocation6 + $0x78] sm:$0xff]
    %v6070 = vld [vmem:[#allocation6 + $0x80] sm:$0xff]
    %v6071 = vld [vmem:[#allocation6 + $0x88] sm:$0xff]
    %v6072 = vld [vmem:[#allocation6 + $0x90] sm:$0xff]
    %v6073 = vld [vmem:[#allocation6 + $0x98] sm:$0xff]
    %v6074 = vld [vmem:[#allocation6 + $0xa0] sm:$0xff]
    %v6075 = vld [vmem:[#allocation6 + $0xa8] sm:$0xff]
    %v6076 = vld [vmem:[#allocation6 + $0xb0] sm:$0xff]
    %v6077 = vld [vmem:[#allocation6 + $0xb8] sm:$0xff]
    %v6078 = vld [vmem:[#allocation6 + $0xc0] sm:$0xff]
    %v6079 = vld [vmem:[#allocation6 + $0xc8] sm:$0xff]
    %v6080 = vld [vmem:[#allocation6 + $0xd0] sm:$0xff]
    %v6081 = vld [vmem:[#allocation6 + $0xd8] sm:$0xff]
    %v6082 = vld [vmem:[#allocation6 + $0xe0] sm:$0xff]
    %v6083 = vld [vmem:[#allocation6 + $0xe8] sm:$0xff]
    %v6084 = vld [vmem:[#allocation6 + $0xf0] sm:$0xff]
    %v6085 = vld [vmem:[#allocation6 + $0xf8] sm:$0xff]
    %v6118 = vunpack.c.l.b16 %v6054
    %v6119 = vunpack.c.h.b16 %v6054
    %v6120 = vunpack.c.l.b16 %v6055
    %v6121 = vunpack.c.h.b16 %v6055
    %v6122 = vunpack.c.l.b16 %v6056
    %v6123 = vunpack.c.h.b16 %v6056
    %v6124 = vunpack.c.l.b16 %v6057
    %v6125 = vunpack.c.h.b16 %v6057
    %v6126 = vunpack.c.l.b16 %v6058
    %v6127 = vunpack.c.h.b16 %v6058
    %v6128 = vunpack.c.l.b16 %v6059
    %v6129 = vunpack.c.h.b16 %v6059
    %v6130 = vunpack.c.l.b16 %v6060
    %v6131 = vunpack.c.h.b16 %v6060
    %v6132 = vunpack.c.l.b16 %v6061
    %v6133 = vunpack.c.h.b16 %v6061
    %v6134 = vunpack.c.l.b16 %v6062
    %v6135 = vunpack.c.h.b16 %v6062
    %v6136 = vunpack.c.l.b16 %v6063
    %v6137 = vunpack.c.h.b16 %v6063
    %v6138 = vunpack.c.l.b16 %v6064
    %v6139 = vunpack.c.h.b16 %v6064
    %v6140 = vunpack.c.l.b16 %v6065
    %v6141 = vunpack.c.h.b16 %v6065
    %v6142 = vunpack.c.l.b16 %v6066
    %v6143 = vunpack.c.h.b16 %v6066
    %v6144 = vunpack.c.l.b16 %v6067
    %v6145 = vunpack.c.h.b16 %v6067
    %v6146 = vunpack.c.l.b16 %v6068
    %v6147 = vunpack.c.h.b16 %v6068
    %v6148 = vunpack.c.l.b16 %v6069
    %v6149 = vunpack.c.h.b16 %v6069
    %v6150 = vunpack.c.l.b16 %v6070
    %v6151 = vunpack.c.h.b16 %v6070
    %v6152 = vunpack.c.l.b16 %v6071
    %v6153 = vunpack.c.h.b16 %v6071
    %v6154 = vunpack.c.l.b16 %v6072
    %v6155 = vunpack.c.h.b16 %v6072
    %v6156 = vunpack.c.l.b16 %v6073
    %v6157 = vunpack.c.h.b16 %v6073
    %v6158 = vunpack.c.l.b16 %v6074
    %v6159 = vunpack.c.h.b16 %v6074
    %v6160 = vunpack.c.l.b16 %v6075
    %v6161 = vunpack.c.h.b16 %v6075
    %v6162 = vunpack.c.l.b16 %v6076
    %v6163 = vunpack.c.h.b16 %v6076
    %v6164 = vunpack.c.l.b16 %v6077
    %v6165 = vunpack.c.h.b16 %v6077
    %v6166 = vunpack.c.l.b16 %v6078
    %v6167 = vunpack.c.h.b16 %v6078
    %v6168 = vunpack.c.l.b16 %v6079
    %v6169 = vunpack.c.h.b16 %v6079
    %v6170 = vunpack.c.l.b16 %v6080
    %v6171 = vunpack.c.h.b16 %v6080
    %v6172 = vunpack.c.l.b16 %v6081
    %v6173 = vunpack.c.h.b16 %v6081
    %v6174 = vunpack.c.l.b16 %v6082
    %v6175 = vunpack.c.h.b16 %v6082
    %v6176 = vunpack.c.l.b16 %v6083
    %v6177 = vunpack.c.h.b16 %v6083
    %v6178 = vunpack.c.l.b16 %v6084
    %v6179 = vunpack.c.h.b16 %v6084
    %v6180 = vunpack.c.l.b16 %v6085
    %v6181 = vunpack.c.h.b16 %v6085
    %v6182 = vpack.c.b16 %v6122, %v6118
    %v6183 = vpack.c.b16 %v6123, %v6119
    %v6184 = vpack.c.b16 %v6124, %v6120
    %v6185 = vpack.c.b16 %v6125, %v6121
    %v6186 = vpack.c.b16 %v6130, %v6126
    %v6187 = vpack.c.b16 %v6131, %v6127
    %v6188 = vpack.c.b16 %v6132, %v6128
    %v6189 = vpack.c.b16 %v6133, %v6129
    %v6190 = vpack.c.b16 %v6138, %v6134
    %v6191 = vpack.c.b16 %v6139, %v6135
    %v6192 = vpack.c.b16 %v6140, %v6136
    %v6193 = vpack.c.b16 %v6141, %v6137
    %v6194 = vpack.c.b16 %v6146, %v6142
    %v6195 = vpack.c.b16 %v6147, %v6143
    %v6196 = vpack.c.b16 %v6148, %v6144
    %v6197 = vpack.c.b16 %v6149, %v6145
    %v6198 = vpack.c.b16 %v6154, %v6150
    %v6199 = vpack.c.b16 %v6155, %v6151
    %v6200 = vpack.c.b16 %v6156, %v6152
    %v6201 = vpack.c.b16 %v6157, %v6153
    %v6202 = vpack.c.b16 %v6162, %v6158
    %v6203 = vpack.c.b16 %v6163, %v6159
    %v6204 = vpack.c.b16 %v6164, %v6160
    %v6205 = vpack.c.b16 %v6165, %v6161
    %v6206 = vpack.c.b16 %v6170, %v6166
    %v6207 = vpack.c.b16 %v6171, %v6167
    %v6208 = vpack.c.b16 %v6172, %v6168
    %v6209 = vpack.c.b16 %v6173, %v6169
    %v6210 = vpack.c.b16 %v6178, %v6174
    %v6211 = vpack.c.b16 %v6179, %v6175
    %v6212 = vpack.c.b16 %v6180, %v6176
    %v6213 = vpack.c.b16 %v6181, %v6177
    %6246 = vmatprep.subr.bf16.mxu0 %v6183
    %6247 = vmatpush1.bf16.msra.mxu0 %v6182
    %6248 = vmatprep.subr.bf16.mxu0 %v6187
    %6249 = vmatpush1.bf16.msra.mxu0 %v6186
    %6250 = vmatprep.subr.bf16.mxu0 %v6191
    %6251 = vmatpush1.bf16.msra.mxu0 %v6190
    %6252 = vmatprep.subr.bf16.mxu0 %v6195
    %6253 = vmatpush1.bf16.msra.mxu0 %v6194
    %6254 = vmatprep.subr.bf16.mxu0 %v6199
    %6255 = vmatpush1.bf16.msra.mxu0 %v6198
    %6256 = vmatprep.subr.bf16.mxu0 %v6203
    %6257 = vmatpush1.bf16.msra.mxu0 %v6202
    %6258 = vmatprep.subr.bf16.mxu0 %v6207
    %6259 = vmatpush1.bf16.msra.mxu0 %v6206
    %6260 = vmatprep.subr.bf16.mxu0 %v6211
    %6261 = vmatpush1.bf16.msra.mxu0 %v6210
    %6262 = vmatprep.subr.bf16.mxu0 0
    %6263 = vmatpush1.bf16.msra.mxu0 0
    %6264 = vmatprep.subr.bf16.mxu0 0
    %6265 = vmatpush1.bf16.msra.mxu0 0
    %6266 = vmatprep.subr.bf16.mxu0 0
    %6267 = vmatpush1.bf16.msra.mxu0 0
    %6268 = vmatprep.subr.bf16.mxu0 0
    %6269 = vmatpush1.bf16.msra.mxu0 0
    %6270 = vmatprep.subr.bf16.mxu0 0
    %6271 = vmatpush1.bf16.msra.mxu0 0
    %6272 = vmatprep.subr.bf16.mxu0 0
    %6273 = vmatpush1.bf16.msra.mxu0 0
    %6274 = vmatprep.subr.bf16.mxu0 0
    %6275 = vmatpush1.bf16.msra.mxu0 0
    %6276 = vmatprep.subr.bf16.mxu0 0
    %6277 = vmatpush1.bf16.msra.mxu0 0
    %6278 = vmatprep.mubr.bf16.mxu0 0
    %6279 = vmatmul.mubr.bf16.gmra.mrb[0].mxu0 %v6053
    %v6280 = vpop.f32.mrb[0].mxu0
    %v6281 = vadd.f32 0.0, %v6280
    %v6282 = vpop.f32.mrb[0].mxu0
    %v6283 = vadd.f32 0.0, %v6282
    %v6284 = vpop.f32.mrb[0].mxu0
    %v6285 = vpop.f32.mrb[0].mxu0
    %6286 = vdwg.mxu0
    %6287 = vmatprep.subr.bf16.mxu0 %v6185
    %6288 = vmatpush1.bf16.msra.mxu0 %v6184
    %6289 = vmatprep.subr.bf16.mxu0 %v6189
    %6290 = vmatpush1.bf16.msra.mxu0 %v6188
    %6291 = vmatprep.subr.bf16.mxu0 %v6193
    %6292 = vmatpush1.bf16.msra.mxu0 %v6192
    %6293 = vmatprep.subr.bf16.mxu0 %v6197
    %6294 = vmatpush1.bf16.msra.mxu0 %v6196
    %6295 = vmatprep.subr.bf16.mxu0 %v6201
    %6296 = vmatpush1.bf16.msra.mxu0 %v6200
    %6297 = vmatprep.subr.bf16.mxu0 %v6205
    %6298 = vmatpush1.bf16.msra.mxu0 %v6204
    %6299 = vmatprep.subr.bf16.mxu0 %v6209
    %6300 = vmatpush1.bf16.msra.mxu0 %v6208
    %6301 = vmatprep.subr.bf16.mxu0 %v6213
    %6302 = vmatpush1.bf16.msra.mxu0 %v6212
    %6303 = vmatprep.subr.bf16.mxu0 0
    %6304 = vmatpush1.bf16.msra.mxu0 0
    %6305 = vmatprep.subr.bf16.mxu0 0
    %6306 = vmatpush1.bf16.msra.mxu0 0
    %6307 = vmatprep.subr.bf16.mxu0 0
    %6308 = vmatpush1.bf16.msra.mxu0 0
    %6309 = vmatprep.subr.bf16.mxu0 0
    %6310 = vmatpush1.bf16.msra.mxu0 0
    %6311 = vmatprep.subr.bf16.mxu0 0
    %6312 = vmatpush1.bf16.msra.mxu0 0
    %6313 = vmatprep.subr.bf16.mxu0 0
    %6314 = vmatpush1.bf16.msra.mxu0 0
    %6315 = vmatprep.subr.bf16.mxu0 0
    %6316 = vmatpush1.bf16.msra.mxu0 0
    %6317 = vmatprep.subr.bf16.mxu0 0
    %6318 = vmatpush1.bf16.msra.mxu0 0
    %6319 = vmatprep.mubr.bf16.mxu0 0
    %6320 = vmatmul.mubr.bf16.gmra.mrb[0].mxu0 %v6053
    %v6321 = vpop.f32.mrb[0].mxu0
    %v6322 = vadd.f32 0.0, %v6321
    %v6323 = vpop.f32.mrb[0].mxu0
    %v6324 = vadd.f32 0.0, %v6323
    %v6325 = vpop.f32.mrb[0].mxu0
    %v6326 = vpop.f32.mrb[0].mxu0
    %6327 = vdwg.mxu0
    %v6328 = vadd.f32 %v6049, %v6281
    %v6329 = vadd.f32 %v6050, %v6283
    %v6330 = vadd.f32 %v6051, %v6322
    %v6331 = vadd.f32 %v6052, %v6324
    %v6332 = vxor.u32 %v6328, 2147483648
    %v6333 = vxor.u32 %v6329, 2147483648
    %v6334 = vxor.u32 %v6330, 2147483648
    %v6335 = vmul.f32 %v6332, 1.442695
    %v6336 = vpow.pop %v6335
    %v6337 = vmul.f32 %v6333, 1.442695
    %v6338 = vpow.pop %v6337
    %v6339 = vmul.f32 %v6334, 1.442695
    %v6340 = vpow.pop %v6339
    %v6341 = vadd.f32 %v6336, 1.0
    %v6342 = vadd.f32 %v6338, 1.0
    %v6343 = vadd.f32 %v6340, 1.0
    %v6344 = vrcp.pop %v6341
    %v6345 = vmul.f32 1.0, %v6344
    %v6346 = vrcp.pop %v6342
    %v6347 = vmul.f32 1.0, %v6346
    %v6348 = vrcp.pop %v6343
    %v6349 = vmul.f32 1.0, %v6348
    %v6350 = vtanh.pop %v6331
    %v6351 = vmul.f32 %v6347, %v5446
    %v6352 = vmul.f32 %v6345, %v6350
    %v6353 = vadd.f32 %v6351, %v6352
    %v6354 = vtanh.pop %v6353
    %v6355 = vmul.f32 %v6349, %v6354
    %v6356 = vld [vmem:[%s911] sm:$0xff]
    %v6357 = vld [vmem:[%s911 + $0x8] sm:$0xff]
    %v6358 = vld [vmem:[%s911 + $0x10] sm:$0xff]
    %v6359 = vld [vmem:[%s911 + $0x18] sm:$0xff]
    %v6360 = vld [vmem:[%s911 + $0x20] sm:$0xff]
    %v6361 = vld [vmem:[%s911 + $0x28] sm:$0xff]
    %v6362 = vld [vmem:[%s911 + $0x30] sm:$0xff]
    %v6363 = vld [vmem:[%s911 + $0x38] sm:$0xff]
    %v6364 = vld [vmem:[%s911 + $0x40] sm:$0xff]
    %v6365 = vld [vmem:[%s911 + $0x48] sm:$0xff]
    %v6366 = vld [vmem:[%s911 + $0x50] sm:$0xff]
    %v6367 = vld [vmem:[%s911 + $0x58] sm:$0xff]
    %v6368 = vld [vmem:[%s911 + $0x60] sm:$0xff]
    %v6369 = vld [vmem:[%s911 + $0x68] sm:$0xff]
    %v6370 = vld [vmem:[%s911 + $0x70] sm:$0xff]
    %v6371 = vld [vmem:[%s911 + $0x78] sm:$0xff]
    %v6372 = vld [vmem:[%s911 + $0x80] sm:$0xff]
    %v6373 = vld [vmem:[%s911 + $0x88] sm:$0xff]
    %v6374 = vld [vmem:[%s911 + $0x90] sm:$0xff]
    %v6375 = vld [vmem:[%s911 + $0x98] sm:$0xff]
    %v6376 = vld [vmem:[%s911 + $0xa0] sm:$0xff]
    %v6377 = vld [vmem:[%s911 + $0xa8] sm:$0xff]
    %v6378 = vld [vmem:[%s911 + $0xb0] sm:$0xff]
    %v6379 = vld [vmem:[%s911 + $0xb8] sm:$0xff]
    %v6380 = vld [vmem:[%s911 + $0xc0] sm:$0xff]
    %v6381 = vld [vmem:[%s911 + $0xc8] sm:$0xff]
    %v6382 = vld [vmem:[%s911 + $0xd0] sm:$0xff]
    %v6383 = vld [vmem:[%s911 + $0xd8] sm:$0xff]
    %v6384 = vld [vmem:[%s911 + $0xe0] sm:$0xff]
    %v6385 = vld [vmem:[%s911 + $0xe8] sm:$0xff]
    %v6386 = vld [vmem:[%s911 + $0xf0] sm:$0xff]
    %v6387 = vld [vmem:[%s911 + $0xf8] sm:$0xff]
    %v6388 = vld [vmem:[%s944] sm:$0xf]
    %v6390 = vlaneseq
    %v6391 = vshrl.u32 %v6390, 7
    %v6392 = vsub.s32 0, %v6391
    %v6393 = vrot.slane %v6388, %v6392
    %v6394 = vlaneseq
    %v6395 = vshrl.u32 %v6394, 7
    %v6396 = vsub.s32 1, %v6395
    %v6397 = vrot.slane %v6388, %v6396
    %v6398 = vlaneseq
    %v6399 = vshrl.u32 %v6398, 7
    %v6400 = vsub.s32 2, %v6399
    %v6401 = vrot.slane %v6388, %v6400
    %v6402 = vlaneseq
    %v6403 = vshrl.u32 %v6402, 7
    %v6404 = vsub.s32 3, %v6403
    %v6405 = vrot.slane %v6388, %v6404
    %v6442 = vunpack.c.l.b16 %v6356
    %v6443 = vunpack.c.h.b16 %v6356
    %v6444 = vunpack.c.l.b16 %v6357
    %v6445 = vunpack.c.h.b16 %v6357
    %v6446 = vunpack.c.l.b16 %v6358
    %v6447 = vunpack.c.h.b16 %v6358
    %v6448 = vunpack.c.l.b16 %v6359
    %v6449 = vunpack.c.h.b16 %v6359
    %v6450 = vunpack.c.l.b16 %v6360
    %v6451 = vunpack.c.h.b16 %v6360
    %v6452 = vunpack.c.l.b16 %v6361
    %v6453 = vunpack.c.h.b16 %v6361
    %v6454 = vunpack.c.l.b16 %v6362
    %v6455 = vunpack.c.h.b16 %v6362
    %v6456 = vunpack.c.l.b16 %v6363
    %v6457 = vunpack.c.h.b16 %v6363
    %v6458 = vunpack.c.l.b16 %v6364
    %v6459 = vunpack.c.h.b16 %v6364
    %v6460 = vunpack.c.l.b16 %v6365
    %v6461 = vunpack.c.h.b16 %v6365
    %v6462 = vunpack.c.l.b16 %v6366
    %v6463 = vunpack.c.h.b16 %v6366
    %v6464 = vunpack.c.l.b16 %v6367
    %v6465 = vunpack.c.h.b16 %v6367
    %v6466 = vunpack.c.l.b16 %v6368
    %v6467 = vunpack.c.h.b16 %v6368
    %v6468 = vunpack.c.l.b16 %v6369
    %v6469 = vunpack.c.h.b16 %v6369
    %v6470 = vunpack.c.l.b16 %v6370
    %v6471 = vunpack.c.h.b16 %v6370
    %v6472 = vunpack.c.l.b16 %v6371
    %v6473 = vunpack.c.h.b16 %v6371
    %v6474 = vunpack.c.l.b16 %v6372
    %v6475 = vunpack.c.h.b16 %v6372
    %v6476 = vunpack.c.l.b16 %v6373
    %v6477 = vunpack.c.h.b16 %v6373
    %v6478 = vunpack.c.l.b16 %v6374
    %v6479 = vunpack.c.h.b16 %v6374
    %v6480 = vunpack.c.l.b16 %v6375
    %v6481 = vunpack.c.h.b16 %v6375
    %v6482 = vunpack.c.l.b16 %v6376
    %v6483 = vunpack.c.h.b16 %v6376
    %v6484 = vunpack.c.l.b16 %v6377
    %v6485 = vunpack.c.h.b16 %v6377
    %v6486 = vunpack.c.l.b16 %v6378
    %v6487 = vunpack.c.h.b16 %v6378
    %v6488 = vunpack.c.l.b16 %v6379
    %v6489 = vunpack.c.h.b16 %v6379
    %v6490 = vunpack.c.l.b16 %v6380
    %v6491 = vunpack.c.h.b16 %v6380
    %v6492 = vunpack.c.l.b16 %v6381
    %v6493 = vunpack.c.h.b16 %v6381
    %v6494 = vunpack.c.l.b16 %v6382
    %v6495 = vunpack.c.h.b16 %v6382
    %v6496 = vunpack.c.l.b16 %v6383
    %v6497 = vunpack.c.h.b16 %v6383
    %v6498 = vunpack.c.l.b16 %v6384
    %v6499 = vunpack.c.h.b16 %v6384
    %v6500 = vunpack.c.l.b16 %v6385
    %v6501 = vunpack.c.h.b16 %v6385
    %v6502 = vunpack.c.l.b16 %v6386
    %v6503 = vunpack.c.h.b16 %v6386
    %v6504 = vunpack.c.l.b16 %v6387
    %v6505 = vunpack.c.h.b16 %v6387
    %v6506 = vpack.c.b16 %v6446, %v6442
    %v6507 = vpack.c.b16 %v6447, %v6443
    %v6508 = vpack.c.b16 %v6448, %v6444
    %v6509 = vpack.c.b16 %v6449, %v6445
    %v6510 = vpack.c.b16 %v6454, %v6450
    %v6511 = vpack.c.b16 %v6455, %v6451
    %v6512 = vpack.c.b16 %v6456, %v6452
    %v6513 = vpack.c.b16 %v6457, %v6453
    %v6514 = vpack.c.b16 %v6462, %v6458
    %v6515 = vpack.c.b16 %v6463, %v6459
    %v6516 = vpack.c.b16 %v6464, %v6460
    %v6517 = vpack.c.b16 %v6465, %v6461
    %v6518 = vpack.c.b16 %v6470, %v6466
    %v6519 = vpack.c.b16 %v6471, %v6467
    %v6520 = vpack.c.b16 %v6472, %v6468
    %v6521 = vpack.c.b16 %v6473, %v6469
    %v6522 = vpack.c.b16 %v6478, %v6474
    %v6523 = vpack.c.b16 %v6479, %v6475
    %v6524 = vpack.c.b16 %v6480, %v6476
    %v6525 = vpack.c.b16 %v6481, %v6477
    %v6526 = vpack.c.b16 %v6486, %v6482
    %v6527 = vpack.c.b16 %v6487, %v6483
    %v6528 = vpack.c.b16 %v6488, %v6484
    %v6529 = vpack.c.b16 %v6489, %v6485
    %v6530 = vpack.c.b16 %v6494, %v6490
    %v6531 = vpack.c.b16 %v6495, %v6491
    %v6532 = vpack.c.b16 %v6496, %v6492
    %v6533 = vpack.c.b16 %v6497, %v6493
    %v6534 = vpack.c.b16 %v6502, %v6498
    %v6535 = vpack.c.b16 %v6503, %v6499
    %v6536 = vpack.c.b16 %v6504, %v6500
    %v6537 = vpack.c.b16 %v6505, %v6501
    %6570 = vmatprep.subr.bf16.mxu0 %v6507
    %6571 = vmatpush1.bf16.msra.mxu0 %v6506
    %6572 = vmatprep.subr.bf16.mxu0 %v6511
    %6573 = vmatpush1.bf16.msra.mxu0 %v6510
    %6574 = vmatprep.subr.bf16.mxu0 %v6515
    %6575 = vmatpush1.bf16.msra.mxu0 %v6514
    %6576 = vmatprep.subr.bf16.mxu0 %v6519
    %6577 = vmatpush1.bf16.msra.mxu0 %v6518
    %6578 = vmatprep.subr.bf16.mxu0 %v6523
    %6579 = vmatpush1.bf16.msra.mxu0 %v6522
    %6580 = vmatprep.subr.bf16.mxu0 %v6527
    %6581 = vmatpush1.bf16.msra.mxu0 %v6526
    %6582 = vmatprep.subr.bf16.mxu0 %v6531
    %6583 = vmatpush1.bf16.msra.mxu0 %v6530
    %6584 = vmatprep.subr.bf16.mxu0 %v6535
    %6585 = vmatpush1.bf16.msra.mxu0 %v6534
    %6586 = vmatprep.subr.bf16.mxu0 0
    %6587 = vmatpush1.bf16.msra.mxu0 0
    %6588 = vmatprep.subr.bf16.mxu0 0
    %6589 = vmatpush1.bf16.msra.mxu0 0
    %6590 = vmatprep.subr.bf16.mxu0 0
    %6591 = vmatpush1.bf16.msra.mxu0 0
    %6592 = vmatprep.subr.bf16.mxu0 0
    %6593 = vmatpush1.bf16.msra.mxu0 0
    %6594 = vmatprep.subr.bf16.mxu0 0
    %6595 = vmatpush1.bf16.msra.mxu0 0
    %6596 = vmatprep.subr.bf16.mxu0 0
    %6597 = vmatpush1.bf16.msra.mxu0 0
    %6598 = vmatprep.subr.bf16.mxu0 0
    %6599 = vmatpush1.bf16.msra.mxu0 0
    %6600 = vmatprep.subr.bf16.mxu0 0
    %6601 = vmatpush1.bf16.msra.mxu0 0
    %6602 = vmatprep.mubr.bf16.mxu0 0
    %6603 = vmatmul.mubr.bf16.gmra.mrb[0].mxu0 %v6053
    %v6604 = vpop.f32.mrb[0].mxu0
    %v6605 = vadd.f32 %v6393, %v6604
    %v6606 = vpop.f32.mrb[0].mxu0
    %v6607 = vadd.f32 %v6397, %v6606
    %v6608 = vpop.f32.mrb[0].mxu0
    %v6609 = vpop.f32.mrb[0].mxu0
    %6610 = vdwg.mxu0
    %6611 = vmatprep.subr.bf16.mxu0 %v6509
    %6612 = vmatpush1.bf16.msra.mxu0 %v6508
    %6613 = vmatprep.subr.bf16.mxu0 %v6513
    %6614 = vmatpush1.bf16.msra.mxu0 %v6512
    %6615 = vmatprep.subr.bf16.mxu0 %v6517
    %6616 = vmatpush1.bf16.msra.mxu0 %v6516
    %6617 = vmatprep.subr.bf16.mxu0 %v6521
    %6618 = vmatpush1.bf16.msra.mxu0 %v6520
    %6619 = vmatprep.subr.bf16.mxu0 %v6525
    %6620 = vmatpush1.bf16.msra.mxu0 %v6524
    %6621 = vmatprep.subr.bf16.mxu0 %v6529
    %6622 = vmatpush1.bf16.msra.mxu0 %v6528
    %6623 = vmatprep.subr.bf16.mxu0 %v6533
    %6624 = vmatpush1.bf16.msra.mxu0 %v6532
    %6625 = vmatprep.subr.bf16.mxu0 %v6537
    %6626 = vmatpush1.bf16.msra.mxu0 %v6536
    %6627 = vmatprep.subr.bf16.mxu0 0
    %6628 = vmatpush1.bf16.msra.mxu0 0
    %6629 = vmatprep.subr.bf16.mxu0 0
    %6630 = vmatpush1.bf16.msra.mxu0 0
    %6631 = vmatprep.subr.bf16.mxu0 0
    %6632 = vmatpush1.bf16.msra.mxu0 0
    %6633 = vmatprep.subr.bf16.mxu0 0
    %6634 = vmatpush1.bf16.msra.mxu0 0
    %6635 = vmatprep.subr.bf16.mxu0 0
    %6636 = vmatpush1.bf16.msra.mxu0 0
    %6637 = vmatprep.subr.bf16.mxu0 0
    %6638 = vmatpush1.bf16.msra.mxu0 0
    %6639 = vmatprep.subr.bf16.mxu0 0
    %6640 = vmatpush1.bf16.msra.mxu0 0
    %6641 = vmatprep.subr.bf16.mxu0 0
    %6642 = vmatpush1.bf16.msra.mxu0 0
    %6643 = vmatprep.mubr.bf16.mxu0 0
    %6644 = vmatmul.mubr.bf16.gmra.mrb[0].mxu0 %v6053
    %v6645 = vpop.f32.mrb[0].mxu0
    %v6646 = vadd.f32 %v6401, %v6645
    %v6647 = vpop.f32.mrb[0].mxu0
    %v6648 = vadd.f32 %v6405, %v6647
    %v6649 = vpop.f32.mrb[0].mxu0
    %v6650 = vpop.f32.mrb[0].mxu0
    %6651 = vdwg.mxu0
    %v6652 = vpack.c.bf16 %v6047, %v6047
    %v6653 = vld [vmem:[%s1210] sm:$0xff]
    %v6654 = vld [vmem:[%s1210 + $0x8] sm:$0xff]
    %v6655 = vld [vmem:[%s1210 + $0x10] sm:$0xff]
    %v6656 = vld [vmem:[%s1210 + $0x18] sm:$0xff]
    %v6657 = vld [vmem:[%s1210 + $0x20] sm:$0xff]
    %v6658 = vld [vmem:[%s1210 + $0x28] sm:$0xff]
    %v6659 = vld [vmem:[%s1210 + $0x30] sm:$0xff]
    %v6660 = vld [vmem:[%s1210 + $0x38] sm:$0xff]
    %v6661 = vld [vmem:[%s1210 + $0x40] sm:$0xff]
    %v6662 = vld [vmem:[%s1210 + $0x48] sm:$0xff]
    %v6663 = vld [vmem:[%s1210 + $0x50] sm:$0xff]
    %v6664 = vld [vmem:[%s1210 + $0x58] sm:$0xff]
    %v6665 = vld [vmem:[%s1210 + $0x60] sm:$0xff]
    %v6666 = vld [vmem:[%s1210 + $0x68] sm:$0xff]
    %v6667 = vld [vmem:[%s1210 + $0x70] sm:$0xff]
    %v6668 = vld [vmem:[%s1210 + $0x78] sm:$0xff]
    %v6669 = vld [vmem:[%s1210 + $0x80] sm:$0xff]
    %v6670 = vld [vmem:[%s1210 + $0x88] sm:$0xff]
    %v6671 = vld [vmem:[%s1210 + $0x90] sm:$0xff]
    %v6672 = vld [vmem:[%s1210 + $0x98] sm:$0xff]
    %v6673 = vld [vmem:[%s1210 + $0xa0] sm:$0xff]
    %v6674 = vld [vmem:[%s1210 + $0xa8] sm:$0xff]
    %v6675 = vld [vmem:[%s1210 + $0xb0] sm:$0xff]
    %v6676 = vld [vmem:[%s1210 + $0xb8] sm:$0xff]
    %v6677 = vld [vmem:[%s1210 + $0xc0] sm:$0xff]
    %v6678 = vld [vmem:[%s1210 + $0xc8] sm:$0xff]
    %v6679 = vld [vmem:[%s1210 + $0xd0] sm:$0xff]
    %v6680 = vld [vmem:[%s1210 + $0xd8] sm:$0xff]
    %v6681 = vld [vmem:[%s1210 + $0xe0] sm:$0xff]
    %v6682 = vld [vmem:[%s1210 + $0xe8] sm:$0xff]
    %v6683 = vld [vmem:[%s1210 + $0xf0] sm:$0xff]
    %v6684 = vld [vmem:[%s1210 + $0xf8] sm:$0xff]
    %v6717 = vunpack.c.l.b16 %v6653
    %v6718 = vunpack.c.h.b16 %v6653
    %v6719 = vunpack.c.l.b16 %v6654
    %v6720 = vunpack.c.h.b16 %v6654
    %v6721 = vunpack.c.l.b16 %v6655
    %v6722 = vunpack.c.h.b16 %v6655
    %v6723 = vunpack.c.l.b16 %v6656
    %v6724 = vunpack.c.h.b16 %v6656
    %v6725 = vunpack.c.l.b16 %v6657
    %v6726 = vunpack.c.h.b16 %v6657
    %v6727 = vunpack.c.l.b16 %v6658
    %v6728 = vunpack.c.h.b16 %v6658
    %v6729 = vunpack.c.l.b16 %v6659
    %v6730 = vunpack.c.h.b16 %v6659
    %v6731 = vunpack.c.l.b16 %v6660
    %v6732 = vunpack.c.h.b16 %v6660
    %v6733 = vunpack.c.l.b16 %v6661
    %v6734 = vunpack.c.h.b16 %v6661
    %v6735 = vunpack.c.l.b16 %v6662
    %v6736 = vunpack.c.h.b16 %v6662
    %v6737 = vunpack.c.l.b16 %v6663
    %v6738 = vunpack.c.h.b16 %v6663
    %v6739 = vunpack.c.l.b16 %v6664
    %v6740 = vunpack.c.h.b16 %v6664
    %v6741 = vunpack.c.l.b16 %v6665
    %v6742 = vunpack.c.h.b16 %v6665
    %v6743 = vunpack.c.l.b16 %v6666
    %v6744 = vunpack.c.h.b16 %v6666
    %v6745 = vunpack.c.l.b16 %v6667
    %v6746 = vunpack.c.h.b16 %v6667
    %v6747 = vunpack.c.l.b16 %v6668
    %v6748 = vunpack.c.h.b16 %v6668
    %v6749 = vunpack.c.l.b16 %v6669
    %v6750 = vunpack.c.h.b16 %v6669
    %v6751 = vunpack.c.l.b16 %v6670
    %v6752 = vunpack.c.h.b16 %v6670
    %v6753 = vunpack.c.l.b16 %v6671
    %v6754 = vunpack.c.h.b16 %v6671
    %v6755 = vunpack.c.l.b16 %v6672
    %v6756 = vunpack.c.h.b16 %v6672
    %v6757 = vunpack.c.l.b16 %v6673
    %v6758 = vunpack.c.h.b16 %v6673
    %v6759 = vunpack.c.l.b16 %v6674
    %v6760 = vunpack.c.h.b16 %v6674
    %v6761 = vunpack.c.l.b16 %v6675
    %v6762 = vunpack.c.h.b16 %v6675
    %v6763 = vunpack.c.l.b16 %v6676
    %v6764 = vunpack.c.h.b16 %v6676
    %v6765 = vunpack.c.l.b16 %v6677
    %v6766 = vunpack.c.h.b16 %v6677
    %v6767 = vunpack.c.l.b16 %v6678
    %v6768 = vunpack.c.h.b16 %v6678
    %v6769 = vunpack.c.l.b16 %v6679
    %v6770 = vunpack.c.h.b16 %v6679
    %v6771 = vunpack.c.l.b16 %v6680
    %v6772 = vunpack.c.h.b16 %v6680
    %v6773 = vunpack.c.l.b16 %v6681
    %v6774 = vunpack.c.h.b16 %v6681
    %v6775 = vunpack.c.l.b16 %v6682
    %v6776 = vunpack.c.h.b16 %v6682
    %v6777 = vunpack.c.l.b16 %v6683
    %v6778 = vunpack.c.h.b16 %v6683
    %v6779 = vunpack.c.l.b16 %v6684
    %v6780 = vunpack.c.h.b16 %v6684
    %v6781 = vpack.c.b16 %v6721, %v6717
    %v6782 = vpack.c.b16 %v6722, %v6718
    %v6783 = vpack.c.b16 %v6723, %v6719
    %v6784 = vpack.c.b16 %v6724, %v6720
    %v6785 = vpack.c.b16 %v6729, %v6725
    %v6786 = vpack.c.b16 %v6730, %v6726
    %v6787 = vpack.c.b16 %v6731, %v6727
    %v6788 = vpack.c.b16 %v6732, %v6728
    %v6789 = vpack.c.b16 %v6737, %v6733
    %v6790 = vpack.c.b16 %v6738, %v6734
    %v6791 = vpack.c.b16 %v6739, %v6735
    %v6792 = vpack.c.b16 %v6740, %v6736
    %v6793 = vpack.c.b16 %v6745, %v6741
    %v6794 = vpack.c.b16 %v6746, %v6742
    %v6795 = vpack.c.b16 %v6747, %v6743
    %v6796 = vpack.c.b16 %v6748, %v6744
    %v6797 = vpack.c.b16 %v6753, %v6749
    %v6798 = vpack.c.b16 %v6754, %v6750
    %v6799 = vpack.c.b16 %v6755, %v6751
    %v6800 = vpack.c.b16 %v6756, %v6752
    %v6801 = vpack.c.b16 %v6761, %v6757
    %v6802 = vpack.c.b16 %v6762, %v6758
    %v6803 = vpack.c.b16 %v6763, %v6759
    %v6804 = vpack.c.b16 %v6764, %v6760
    %v6805 = vpack.c.b16 %v6769, %v6765
    %v6806 = vpack.c.b16 %v6770, %v6766
    %v6807 = vpack.c.b16 %v6771, %v6767
    %v6808 = vpack.c.b16 %v6772, %v6768
    %v6809 = vpack.c.b16 %v6777, %v6773
    %v6810 = vpack.c.b16 %v6778, %v6774
    %v6811 = vpack.c.b16 %v6779, %v6775
    %v6812 = vpack.c.b16 %v6780, %v6776
    %6845 = vmatprep.subr.bf16.mxu0 %v6782
    %6846 = vmatpush1.bf16.msra.mxu0 %v6781
    %6847 = vmatprep.subr.bf16.mxu0 %v6786
    %6848 = vmatpush1.bf16.msra.mxu0 %v6785
    %6849 = vmatprep.subr.bf16.mxu0 %v6790
    %6850 = vmatpush1.bf16.msra.mxu0 %v6789
    %6851 = vmatprep.subr.bf16.mxu0 %v6794
    %6852 = vmatpush1.bf16.msra.mxu0 %v6793
    %6853 = vmatprep.subr.bf16.mxu0 %v6798
    %6854 = vmatpush1.bf16.msra.mxu0 %v6797
    %6855 = vmatprep.subr.bf16.mxu0 %v6802
    %6856 = vmatpush1.bf16.msra.mxu0 %v6801
    %6857 = vmatprep.subr.bf16.mxu0 %v6806
    %6858 = vmatpush1.bf16.msra.mxu0 %v6805
    %6859 = vmatprep.subr.bf16.mxu0 %v6810
    %6860 = vmatpush1.bf16.msra.mxu0 %v6809
    %6861 = vmatprep.subr.bf16.mxu0 0
    %6862 = vmatpush1.bf16.msra.mxu0 0
    %6863 = vmatprep.subr.bf16.mxu0 0
    %6864 = vmatpush1.bf16.msra.mxu0 0
    %6865 = vmatprep.subr.bf16.mxu0 0
    %6866 = vmatpush1.bf16.msra.mxu0 0
    %6867 = vmatprep.subr.bf16.mxu0 0
    %6868 = vmatpush1.bf16.msra.mxu0 0
    %6869 = vmatprep.subr.bf16.mxu0 0
    %6870 = vmatpush1.bf16.msra.mxu0 0
    %6871 = vmatprep.subr.bf16.mxu0 0
    %6872 = vmatpush1.bf16.msra.mxu0 0
    %6873 = vmatprep.subr.bf16.mxu0 0
    %6874 = vmatpush1.bf16.msra.mxu0 0
    %6875 = vmatprep.subr.bf16.mxu0 0
    %6876 = vmatpush1.bf16.msra.mxu0 0
    %6877 = vmatprep.mubr.bf16.mxu0 0
    %6878 = vmatmul.mubr.bf16.gmra.mrb[0].mxu0 %v6652
    %v6879 = vpop.f32.mrb[0].mxu0
    %v6880 = vadd.f32 0.0, %v6879
    %v6881 = vpop.f32.mrb[0].mxu0
    %v6882 = vadd.f32 0.0, %v6881
    %v6883 = vpop.f32.mrb[0].mxu0
    %v6884 = vpop.f32.mrb[0].mxu0
    %6885 = vdwg.mxu0
    %6886 = vmatprep.subr.bf16.mxu0 %v6784
    %6887 = vmatpush1.bf16.msra.mxu0 %v6783
    %6888 = vmatprep.subr.bf16.mxu0 %v6788
    %6889 = vmatpush1.bf16.msra.mxu0 %v6787
    %6890 = vmatprep.subr.bf16.mxu0 %v6792
    %6891 = vmatpush1.bf16.msra.mxu0 %v6791
    %6892 = vmatprep.subr.bf16.mxu0 %v6796
    %6893 = vmatpush1.bf16.msra.mxu0 %v6795
    %6894 = vmatprep.subr.bf16.mxu0 %v6800
    %6895 = vmatpush1.bf16.msra.mxu0 %v6799
    %6896 = vmatprep.subr.bf16.mxu0 %v6804
    %6897 = vmatpush1.bf16.msra.mxu0 %v6803
    %6898 = vmatprep.subr.bf16.mxu0 %v6808
    %6899 = vmatpush1.bf16.msra.mxu0 %v6807
    %6900 = vmatprep.subr.bf16.mxu0 %v6812
    %6901 = vmatpush1.bf16.msra.mxu0 %v6811
    %6902 = vmatprep.subr.bf16.mxu0 0
    %6903 = vmatpush1.bf16.msra.mxu0 0
    %6904 = vmatprep.subr.bf16.mxu0 0
    %6905 = vmatpush1.bf16.msra.mxu0 0
    %6906 = vmatprep.subr.bf16.mxu0 0
    %6907 = vmatpush1.bf16.msra.mxu0 0
    %6908 = vmatprep.subr.bf16.mxu0 0
    %6909 = vmatpush1.bf16.msra.mxu0 0
    %6910 = vmatprep.subr.bf16.mxu0 0
    %6911 = vmatpush1.bf16.msra.mxu0 0
    %6912 = vmatprep.subr.bf16.mxu0 0
    %6913 = vmatpush1.bf16.msra.mxu0 0
    %6914 = vmatprep.subr.bf16.mxu0 0
    %6915 = vmatpush1.bf16.msra.mxu0 0
    %6916 = vmatprep.subr.bf16.mxu0 0
    %6917 = vmatpush1.bf16.msra.mxu0 0
    %6918 = vmatprep.mubr.bf16.mxu0 0
    %6919 = vmatmul.mubr.bf16.gmra.mrb[0].mxu0 %v6652
    %v6920 = vpop.f32.mrb[0].mxu0
    %v6921 = vadd.f32 0.0, %v6920
    %v6922 = vpop.f32.mrb[0].mxu0
    %v6923 = vadd.f32 0.0, %v6922
    %v6924 = vpop.f32.mrb[0].mxu0
    %v6925 = vpop.f32.mrb[0].mxu0
    %6926 = vdwg.mxu0
    %v6927 = vadd.f32 %v6605, %v6880
    %v6928 = vadd.f32 %v6607, %v6882
    %v6929 = vadd.f32 %v6646, %v6921
    %v6930 = vadd.f32 %v6648, %v6923
    %v6931 = vxor.u32 %v6927, 2147483648
    %v6932 = vxor.u32 %v6928, 2147483648
    %v6933 = vxor.u32 %v6929, 2147483648
    %v6934 = vmul.f32 %v6931, 1.442695
    %v6935 = vpow.pop %v6934
    %v6936 = vmul.f32 %v6932, 1.442695
    %v6937 = vpow.pop %v6936
    %v6938 = vmul.f32 %v6933, 1.442695
    %v6939 = vpow.pop %v6938
    %v6940 = vadd.f32 %v6935, 1.0
    %v6941 = vadd.f32 %v6937, 1.0
    %v6942 = vadd.f32 %v6939, 1.0
    %v6943 = vrcp.pop %v6940
    %v6944 = vmul.f32 1.0, %v6943
    %v6945 = vrcp.pop %v6941
    %v6946 = vmul.f32 1.0, %v6945
    %v6947 = vrcp.pop %v6942
    %v6948 = vmul.f32 1.0, %v6947
    %v6949 = vtanh.pop %v6930
    %v6950 = vmul.f32 %v6946, %v6045
    %v6951 = vmul.f32 %v6944, %v6949
    %v6952 = vadd.f32 %v6950, %v6951
    %v6953 = vtanh.pop %v6952
    %v6954 = vmul.f32 %v6948, %v6953
    %6955 = vst [vmem:[#allocation3 + $0x30] sm:$0xff] %v6954
    %v6956 = vpack.c.bf16 %v6355, %v6355
    %v6957 = vld [vmem:[%s911] sm:$0xff]
    %v6958 = vld [vmem:[%s911 + $0x8] sm:$0xff]
    %v6959 = vld [vmem:[%s911 + $0x10] sm:$0xff]
    %v6960 = vld [vmem:[%s911 + $0x18] sm:$0xff]
    %v6961 = vld [vmem:[%s911 + $0x20] sm:$0xff]
    %v6962 = vld [vmem:[%s911 + $0x28] sm:$0xff]
    %v6963 = vld [vmem:[%s911 + $0x30] sm:$0xff]
    %v6964 = vld [vmem:[%s911 + $0x38] sm:$0xff]
    %v6965 = vld [vmem:[%s911 + $0x40] sm:$0xff]
    %v6966 = vld [vmem:[%s911 + $0x48] sm:$0xff]
    %v6967 = vld [vmem:[%s911 + $0x50] sm:$0xff]
    %v6968 = vld [vmem:[%s911 + $0x58] sm:$0xff]
    %v6969 = vld [vmem:[%s911 + $0x60] sm:$0xff]
    %v6970 = vld [vmem:[%s911 + $0x68] sm:$0xff]
    %v6971 = vld [vmem:[%s911 + $0x70] sm:$0xff]
    %v6972 = vld [vmem:[%s911 + $0x78] sm:$0xff]
    %v6973 = vld [vmem:[%s911 + $0x80] sm:$0xff]
    %v6974 = vld [vmem:[%s911 + $0x88] sm:$0xff]
    %v6975 = vld [vmem:[%s911 + $0x90] sm:$0xff]
    %v6976 = vld [vmem:[%s911 + $0x98] sm:$0xff]
    %v6977 = vld [vmem:[%s911 + $0xa0] sm:$0xff]
    %v6978 = vld [vmem:[%s911 + $0xa8] sm:$0xff]
    %v6979 = vld [vmem:[%s911 + $0xb0] sm:$0xff]
    %v6980 = vld [vmem:[%s911 + $0xb8] sm:$0xff]
    %v6981 = vld [vmem:[%s911 + $0xc0] sm:$0xff]
    %v6982 = vld [vmem:[%s911 + $0xc8] sm:$0xff]
    %v6983 = vld [vmem:[%s911 + $0xd0] sm:$0xff]
    %v6984 = vld [vmem:[%s911 + $0xd8] sm:$0xff]
    %v6985 = vld [vmem:[%s911 + $0xe0] sm:$0xff]
    %v6986 = vld [vmem:[%s911 + $0xe8] sm:$0xff]
    %v6987 = vld [vmem:[%s911 + $0xf0] sm:$0xff]
    %v6988 = vld [vmem:[%s911 + $0xf8] sm:$0xff]
    %v6989 = vld [vmem:[%s944] sm:$0xf]
    %v6991 = vlaneseq
    %v6992 = vshrl.u32 %v6991, 7
    %v6993 = vsub.s32 0, %v6992
    %v6994 = vrot.slane %v6989, %v6993
    %v6995 = vlaneseq
    %v6996 = vshrl.u32 %v6995, 7
    %v6997 = vsub.s32 1, %v6996
    %v6998 = vrot.slane %v6989, %v6997
    %v6999 = vlaneseq
    %v7000 = vshrl.u32 %v6999, 7
    %v7001 = vsub.s32 2, %v7000
    %v7002 = vrot.slane %v6989, %v7001
    %v7003 = vlaneseq
    %v7004 = vshrl.u32 %v7003, 7
    %v7005 = vsub.s32 3, %v7004
    %v7006 = vrot.slane %v6989, %v7005
    %v7043 = vunpack.c.l.b16 %v6957
    %v7044 = vunpack.c.h.b16 %v6957
    %v7045 = vunpack.c.l.b16 %v6958
    %v7046 = vunpack.c.h.b16 %v6958
    %v7047 = vunpack.c.l.b16 %v6959
    %v7048 = vunpack.c.h.b16 %v6959
    %v7049 = vunpack.c.l.b16 %v6960
    %v7050 = vunpack.c.h.b16 %v6960
    %v7051 = vunpack.c.l.b16 %v6961
    %v7052 = vunpack.c.h.b16 %v6961
    %v7053 = vunpack.c.l.b16 %v6962
    %v7054 = vunpack.c.h.b16 %v6962
    %v7055 = vunpack.c.l.b16 %v6963
    %v7056 = vunpack.c.h.b16 %v6963
    %v7057 = vunpack.c.l.b16 %v6964
    %v7058 = vunpack.c.h.b16 %v6964
    %v7059 = vunpack.c.l.b16 %v6965
    %v7060 = vunpack.c.h.b16 %v6965
    %v7061 = vunpack.c.l.b16 %v6966
    %v7062 = vunpack.c.h.b16 %v6966
    %v7063 = vunpack.c.l.b16 %v6967
    %v7064 = vunpack.c.h.b16 %v6967
    %v7065 = vunpack.c.l.b16 %v6968
    %v7066 = vunpack.c.h.b16 %v6968
    %v7067 = vunpack.c.l.b16 %v6969
    %v7068 = vunpack.c.h.b16 %v6969
    %v7069 = vunpack.c.l.b16 %v6970
    %v7070 = vunpack.c.h.b16 %v6970
    %v7071 = vunpack.c.l.b16 %v6971
    %v7072 = vunpack.c.h.b16 %v6971
    %v7073 = vunpack.c.l.b16 %v6972
    %v7074 = vunpack.c.h.b16 %v6972
    %v7075 = vunpack.c.l.b16 %v6973
    %v7076 = vunpack.c.h.b16 %v6973
    %v7077 = vunpack.c.l.b16 %v6974
    %v7078 = vunpack.c.h.b16 %v6974
    %v7079 = vunpack.c.l.b16 %v6975
    %v7080 = vunpack.c.h.b16 %v6975
    %v7081 = vunpack.c.l.b16 %v6976
    %v7082 = vunpack.c.h.b16 %v6976
    %v7083 = vunpack.c.l.b16 %v6977
    %v7084 = vunpack.c.h.b16 %v6977
    %v7085 = vunpack.c.l.b16 %v6978
    %v7086 = vunpack.c.h.b16 %v6978
    %v7087 = vunpack.c.l.b16 %v6979
    %v7088 = vunpack.c.h.b16 %v6979
    %v7089 = vunpack.c.l.b16 %v6980
    %v7090 = vunpack.c.h.b16 %v6980
    %v7091 = vunpack.c.l.b16 %v6981
    %v7092 = vunpack.c.h.b16 %v6981
    %v7093 = vunpack.c.l.b16 %v6982
    %v7094 = vunpack.c.h.b16 %v6982
    %v7095 = vunpack.c.l.b16 %v6983
    %v7096 = vunpack.c.h.b16 %v6983
    %v7097 = vunpack.c.l.b16 %v6984
    %v7098 = vunpack.c.h.b16 %v6984
    %v7099 = vunpack.c.l.b16 %v6985
    %v7100 = vunpack.c.h.b16 %v6985
    %v7101 = vunpack.c.l.b16 %v6986
    %v7102 = vunpack.c.h.b16 %v6986
    %v7103 = vunpack.c.l.b16 %v6987
    %v7104 = vunpack.c.h.b16 %v6987
    %v7105 = vunpack.c.l.b16 %v6988
    %v7106 = vunpack.c.h.b16 %v6988
    %v7107 = vpack.c.b16 %v7047, %v7043
    %v7108 = vpack.c.b16 %v7048, %v7044
    %v7109 = vpack.c.b16 %v7049, %v7045
    %v7110 = vpack.c.b16 %v7050, %v7046
    %v7111 = vpack.c.b16 %v7055, %v7051
    %v7112 = vpack.c.b16 %v7056, %v7052
    %v7113 = vpack.c.b16 %v7057, %v7053
    %v7114 = vpack.c.b16 %v7058, %v7054
    %v7115 = vpack.c.b16 %v7063, %v7059
    %v7116 = vpack.c.b16 %v7064, %v7060
    %v7117 = vpack.c.b16 %v7065, %v7061
    %v7118 = vpack.c.b16 %v7066, %v7062
    %v7119 = vpack.c.b16 %v7071, %v7067
    %v7120 = vpack.c.b16 %v7072, %v7068
    %v7121 = vpack.c.b16 %v7073, %v7069
    %v7122 = vpack.c.b16 %v7074, %v7070
    %v7123 = vpack.c.b16 %v7079, %v7075
    %v7124 = vpack.c.b16 %v7080, %v7076
    %v7125 = vpack.c.b16 %v7081, %v7077
    %v7126 = vpack.c.b16 %v7082, %v7078
    %v7127 = vpack.c.b16 %v7087, %v7083
    %v7128 = vpack.c.b16 %v7088, %v7084
    %v7129 = vpack.c.b16 %v7089, %v7085
    %v7130 = vpack.c.b16 %v7090, %v7086
    %v7131 = vpack.c.b16 %v7095, %v7091
    %v7132 = vpack.c.b16 %v7096, %v7092
    %v7133 = vpack.c.b16 %v7097, %v7093
    %v7134 = vpack.c.b16 %v7098, %v7094
    %v7135 = vpack.c.b16 %v7103, %v7099
    %v7136 = vpack.c.b16 %v7104, %v7100
    %v7137 = vpack.c.b16 %v7105, %v7101
    %v7138 = vpack.c.b16 %v7106, %v7102
    %7171 = vmatprep.subr.bf16.mxu0 %v7108
    %7172 = vmatpush1.bf16.msra.mxu0 %v7107
    %7173 = vmatprep.subr.bf16.mxu0 %v7112
    %7174 = vmatpush1.bf16.msra.mxu0 %v7111
    %7175 = vmatprep.subr.bf16.mxu0 %v7116
    %7176 = vmatpush1.bf16.msra.mxu0 %v7115
    %7177 = vmatprep.subr.bf16.mxu0 %v7120
    %7178 = vmatpush1.bf16.msra.mxu0 %v7119
    %7179 = vmatprep.subr.bf16.mxu0 %v7124
    %7180 = vmatpush1.bf16.msra.mxu0 %v7123
    %7181 = vmatprep.subr.bf16.mxu0 %v7128
    %7182 = vmatpush1.bf16.msra.mxu0 %v7127
    %7183 = vmatprep.subr.bf16.mxu0 %v7132
    %7184 = vmatpush1.bf16.msra.mxu0 %v7131
    %7185 = vmatprep.subr.bf16.mxu0 %v7136
    %7186 = vmatpush1.bf16.msra.mxu0 %v7135
    %7187 = vmatprep.subr.bf16.mxu0 0
    %7188 = vmatpush1.bf16.msra.mxu0 0
    %7189 = vmatprep.subr.bf16.mxu0 0
    %7190 = vmatpush1.bf16.msra.mxu0 0
    %7191 = vmatprep.subr.bf16.mxu0 0
    %7192 = vmatpush1.bf16.msra.mxu0 0
    %7193 = vmatprep.subr.bf16.mxu0 0
    %7194 = vmatpush1.bf16.msra.mxu0 0
    %7195 = vmatprep.subr.bf16.mxu0 0
    %7196 = vmatpush1.bf16.msra.mxu0 0
    %7197 = vmatprep.subr.bf16.mxu0 0
    %7198 = vmatpush1.bf16.msra.mxu0 0
    %7199 = vmatprep.subr.bf16.mxu0 0
    %7200 = vmatpush1.bf16.msra.mxu0 0
    %7201 = vmatprep.subr.bf16.mxu0 0
    %7202 = vmatpush1.bf16.msra.mxu0 0
    %7203 = vmatprep.mubr.bf16.mxu0 0
    %7204 = vmatmul.mubr.bf16.gmra.mrb[0].mxu0 %v6956
    %v7205 = vpop.f32.mrb[0].mxu0
    %v7206 = vadd.f32 %v6994, %v7205
    %v7207 = vpop.f32.mrb[0].mxu0
    %v7208 = vadd.f32 %v6998, %v7207
    %v7209 = vpop.f32.mrb[0].mxu0
    %v7210 = vpop.f32.mrb[0].mxu0
    %7211 = vdwg.mxu0
    %7212 = vmatprep.subr.bf16.mxu0 %v7110
    %7213 = vmatpush1.bf16.msra.mxu0 %v7109
    %7214 = vmatprep.subr.bf16.mxu0 %v7114
    %7215 = vmatpush1.bf16.msra.mxu0 %v7113
    %7216 = vmatprep.subr.bf16.mxu0 %v7118
    %7217 = vmatpush1.bf16.msra.mxu0 %v7117
    %7218 = vmatprep.subr.bf16.mxu0 %v7122
    %7219 = vmatpush1.bf16.msra.mxu0 %v7121
    %7220 = vmatprep.subr.bf16.mxu0 %v7126
    %7221 = vmatpush1.bf16.msra.mxu0 %v7125
    %7222 = vmatprep.subr.bf16.mxu0 %v7130
    %7223 = vmatpush1.bf16.msra.mxu0 %v7129
    %7224 = vmatprep.subr.bf16.mxu0 %v7134
    %7225 = vmatpush1.bf16.msra.mxu0 %v7133
    %7226 = vmatprep.subr.bf16.mxu0 %v7138
    %7227 = vmatpush1.bf16.msra.mxu0 %v7137
    %7228 = vmatprep.subr.bf16.mxu0 0
    %7229 = vmatpush1.bf16.msra.mxu0 0
    %7230 = vmatprep.subr.bf16.mxu0 0
    %7231 = vmatpush1.bf16.msra.mxu0 0
    %7232 = vmatprep.subr.bf16.mxu0 0
    %7233 = vmatpush1.bf16.msra.mxu0 0
    %7234 = vmatprep.subr.bf16.mxu0 0
    %7235 = vmatpush1.bf16.msra.mxu0 0
    %7236 = vmatprep.subr.bf16.mxu0 0
    %7237 = vmatpush1.bf16.msra.mxu0 0
    %7238 = vmatprep.subr.bf16.mxu0 0
    %7239 = vmatpush1.bf16.msra.mxu0 0
    %7240 = vmatprep.subr.bf16.mxu0 0
    %7241 = vmatpush1.bf16.msra.mxu0 0
    %7242 = vmatprep.subr.bf16.mxu0 0
    %7243 = vmatpush1.bf16.msra.mxu0 0
    %7244 = vmatprep.mubr.bf16.mxu0 0
    %7245 = vmatmul.mubr.bf16.gmra.mrb[0].mxu0 %v6956
    %v7246 = vpop.f32.mrb[0].mxu0
    %v7247 = vadd.f32 %v7002, %v7246
    %v7248 = vpop.f32.mrb[0].mxu0
    %v7249 = vadd.f32 %v7006, %v7248
    %v7250 = vpop.f32.mrb[0].mxu0
    %v7251 = vpop.f32.mrb[0].mxu0
    %7252 = vdwg.mxu0
    %v7253 = vpack.c.bf16 %v6954, %v6954
    %v7254 = vld [vmem:[%s1210] sm:$0xff]
    %v7255 = vld [vmem:[%s1210 + $0x8] sm:$0xff]
    %v7256 = vld [vmem:[%s1210 + $0x10] sm:$0xff]
    %v7257 = vld [vmem:[%s1210 + $0x18] sm:$0xff]
    %v7258 = vld [vmem:[%s1210 + $0x20] sm:$0xff]
    %v7259 = vld [vmem:[%s1210 + $0x28] sm:$0xff]
    %v7260 = vld [vmem:[%s1210 + $0x30] sm:$0xff]
    %v7261 = vld [vmem:[%s1210 + $0x38] sm:$0xff]
    %v7262 = vld [vmem:[%s1210 + $0x40] sm:$0xff]
    %v7263 = vld [vmem:[%s1210 + $0x48] sm:$0xff]
    %v7264 = vld [vmem:[%s1210 + $0x50] sm:$0xff]
    %v7265 = vld [vmem:[%s1210 + $0x58] sm:$0xff]
    %v7266 = vld [vmem:[%s1210 + $0x60] sm:$0xff]
    %v7267 = vld [vmem:[%s1210 + $0x68] sm:$0xff]
    %v7268 = vld [vmem:[%s1210 + $0x70] sm:$0xff]
    %v7269 = vld [vmem:[%s1210 + $0x78] sm:$0xff]
    %v7270 = vld [vmem:[%s1210 + $0x80] sm:$0xff]
    %v7271 = vld [vmem:[%s1210 + $0x88] sm:$0xff]
    %v7272 = vld [vmem:[%s1210 + $0x90] sm:$0xff]
    %v7273 = vld [vmem:[%s1210 + $0x98] sm:$0xff]
    %v7274 = vld [vmem:[%s1210 + $0xa0] sm:$0xff]
    %v7275 = vld [vmem:[%s1210 + $0xa8] sm:$0xff]
    %v7276 = vld [vmem:[%s1210 + $0xb0] sm:$0xff]
    %v7277 = vld [vmem:[%s1210 + $0xb8] sm:$0xff]
    %v7278 = vld [vmem:[%s1210 + $0xc0] sm:$0xff]
    %v7279 = vld [vmem:[%s1210 + $0xc8] sm:$0xff]
    %v7280 = vld [vmem:[%s1210 + $0xd0] sm:$0xff]
    %v7281 = vld [vmem:[%s1210 + $0xd8] sm:$0xff]
    %v7282 = vld [vmem:[%s1210 + $0xe0] sm:$0xff]
    %v7283 = vld [vmem:[%s1210 + $0xe8] sm:$0xff]
    %v7284 = vld [vmem:[%s1210 + $0xf0] sm:$0xff]
    %v7285 = vld [vmem:[%s1210 + $0xf8] sm:$0xff]
    %v7318 = vunpack.c.l.b16 %v7254
    %v7319 = vunpack.c.h.b16 %v7254
    %v7320 = vunpack.c.l.b16 %v7255
    %v7321 = vunpack.c.h.b16 %v7255
    %v7322 = vunpack.c.l.b16 %v7256
    %v7323 = vunpack.c.h.b16 %v7256
    %v7324 = vunpack.c.l.b16 %v7257
    %v7325 = vunpack.c.h.b16 %v7257
    %v7326 = vunpack.c.l.b16 %v7258
    %v7327 = vunpack.c.h.b16 %v7258
    %v7328 = vunpack.c.l.b16 %v7259
    %v7329 = vunpack.c.h.b16 %v7259
    %v7330 = vunpack.c.l.b16 %v7260
    %v7331 = vunpack.c.h.b16 %v7260
    %v7332 = vunpack.c.l.b16 %v7261
    %v7333 = vunpack.c.h.b16 %v7261
    %v7334 = vunpack.c.l.b16 %v7262
    %v7335 = vunpack.c.h.b16 %v7262
    %v7336 = vunpack.c.l.b16 %v7263
    %v7337 = vunpack.c.h.b16 %v7263
    %v7338 = vunpack.c.l.b16 %v7264
    %v7339 = vunpack.c.h.b16 %v7264
    %v7340 = vunpack.c.l.b16 %v7265
    %v7341 = vunpack.c.h.b16 %v7265
    %v7342 = vunpack.c.l.b16 %v7266
    %v7343 = vunpack.c.h.b16 %v7266
    %v7344 = vunpack.c.l.b16 %v7267
    %v7345 = vunpack.c.h.b16 %v7267
    %v7346 = vunpack.c.l.b16 %v7268
    %v7347 = vunpack.c.h.b16 %v7268
    %v7348 = vunpack.c.l.b16 %v7269
    %v7349 = vunpack.c.h.b16 %v7269
    %v7350 = vunpack.c.l.b16 %v7270
    %v7351 = vunpack.c.h.b16 %v7270
    %v7352 = vunpack.c.l.b16 %v7271
    %v7353 = vunpack.c.h.b16 %v7271
    %v7354 = vunpack.c.l.b16 %v7272
    %v7355 = vunpack.c.h.b16 %v7272
    %v7356 = vunpack.c.l.b16 %v7273
    %v7357 = vunpack.c.h.b16 %v7273
    %v7358 = vunpack.c.l.b16 %v7274
    %v7359 = vunpack.c.h.b16 %v7274
    %v7360 = vunpack.c.l.b16 %v7275
    %v7361 = vunpack.c.h.b16 %v7275
    %v7362 = vunpack.c.l.b16 %v7276
    %v7363 = vunpack.c.h.b16 %v7276
    %v7364 = vunpack.c.l.b16 %v7277
    %v7365 = vunpack.c.h.b16 %v7277
    %v7366 = vunpack.c.l.b16 %v7278
    %v7367 = vunpack.c.h.b16 %v7278
    %v7368 = vunpack.c.l.b16 %v7279
    %v7369 = vunpack.c.h.b16 %v7279
    %v7370 = vunpack.c.l.b16 %v7280
    %v7371 = vunpack.c.h.b16 %v7280
    %v7372 = vunpack.c.l.b16 %v7281
    %v7373 = vunpack.c.h.b16 %v7281
    %v7374 = vunpack.c.l.b16 %v7282
    %v7375 = vunpack.c.h.b16 %v7282
    %v7376 = vunpack.c.l.b16 %v7283
    %v7377 = vunpack.c.h.b16 %v7283
    %v7378 = vunpack.c.l.b16 %v7284
    %v7379 = vunpack.c.h.b16 %v7284
    %v7380 = vunpack.c.l.b16 %v7285
    %v7381 = vunpack.c.h.b16 %v7285
    %v7382 = vpack.c.b16 %v7322, %v7318
    %v7383 = vpack.c.b16 %v7323, %v7319
    %v7384 = vpack.c.b16 %v7324, %v7320
    %v7385 = vpack.c.b16 %v7325, %v7321
    %v7386 = vpack.c.b16 %v7330, %v7326
    %v7387 = vpack.c.b16 %v7331, %v7327
    %v7388 = vpack.c.b16 %v7332, %v7328
    %v7389 = vpack.c.b16 %v7333, %v7329
    %v7390 = vpack.c.b16 %v7338, %v7334
    %v7391 = vpack.c.b16 %v7339, %v7335
    %v7392 = vpack.c.b16 %v7340, %v7336
    %v7393 = vpack.c.b16 %v7341, %v7337
    %v7394 = vpack.c.b16 %v7346, %v7342
    %v7395 = vpack.c.b16 %v7347, %v7343
    %v7396 = vpack.c.b16 %v7348, %v7344
    %v7397 = vpack.c.b16 %v7349, %v7345
    %v7398 = vpack.c.b16 %v7354, %v7350
    %v7399 = vpack.c.b16 %v7355, %v7351
    %v7400 = vpack.c.b16 %v7356, %v7352
    %v7401 = vpack.c.b16 %v7357, %v7353
    %v7402 = vpack.c.b16 %v7362, %v7358
    %v7403 = vpack.c.b16 %v7363, %v7359
    %v7404 = vpack.c.b16 %v7364, %v7360
    %v7405 = vpack.c.b16 %v7365, %v7361
    %v7406 = vpack.c.b16 %v7370, %v7366
    %v7407 = vpack.c.b16 %v7371, %v7367
    %v7408 = vpack.c.b16 %v7372, %v7368
    %v7409 = vpack.c.b16 %v7373, %v7369
    %v7410 = vpack.c.b16 %v7378, %v7374
    %v7411 = vpack.c.b16 %v7379, %v7375
    %v7412 = vpack.c.b16 %v7380, %v7376
    %v7413 = vpack.c.b16 %v7381, %v7377
    %7446 = vmatprep.subr.bf16.mxu0 %v7383
    %7447 = vmatpush1.bf16.msra.mxu0 %v7382
    %7448 = vmatprep.subr.bf16.mxu0 %v7387
    %7449 = vmatpush1.bf16.msra.mxu0 %v7386
    %7450 = vmatprep.subr.bf16.mxu0 %v7391
    %7451 = vmatpush1.bf16.msra.mxu0 %v7390
    %7452 = vmatprep.subr.bf16.mxu0 %v7395
    %7453 = vmatpush1.bf16.msra.mxu0 %v7394
    %7454 = vmatprep.subr.bf16.mxu0 %v7399
    %7455 = vmatpush1.bf16.msra.mxu0 %v7398
    %7456 = vmatprep.subr.bf16.mxu0 %v7403
    %7457 = vmatpush1.bf16.msra.mxu0 %v7402
    %7458 = vmatprep.subr.bf16.mxu0 %v7407
    %7459 = vmatpush1.bf16.msra.mxu0 %v7406
    %7460 = vmatprep.subr.bf16.mxu0 %v7411
    %7461 = vmatpush1.bf16.msra.mxu0 %v7410
    %7462 = vmatprep.subr.bf16.mxu0 0
    %7463 = vmatpush1.bf16.msra.mxu0 0
    %7464 = vmatprep.subr.bf16.mxu0 0
    %7465 = vmatpush1.bf16.msra.mxu0 0
    %7466 = vmatprep.subr.bf16.mxu0 0
    %7467 = vmatpush1.bf16.msra.mxu0 0
    %7468 = vmatprep.subr.bf16.mxu0 0
    %7469 = vmatpush1.bf16.msra.mxu0 0
    %7470 = vmatprep.subr.bf16.mxu0 0
    %7471 = vmatpush1.bf16.msra.mxu0 0
    %7472 = vmatprep.subr.bf16.mxu0 0
    %7473 = vmatpush1.bf16.msra.mxu0 0
    %7474 = vmatprep.subr.bf16.mxu0 0
    %7475 = vmatpush1.bf16.msra.mxu0 0
    %7476 = vmatprep.subr.bf16.mxu0 0
    %7477 = vmatpush1.bf16.msra.mxu0 0
    %7478 = vmatprep.mubr.bf16.mxu0 0
    %7479 = vmatmul.mubr.bf16.gmra.mrb[0].mxu0 %v7253
    %v7480 = vpop.f32.mrb[0].mxu0
    %v7481 = vadd.f32 0.0, %v7480
    %v7482 = vpop.f32.mrb[0].mxu0
    %v7483 = vadd.f32 0.0, %v7482
    %v7484 = vpop.f32.mrb[0].mxu0
    %v7485 = vpop.f32.mrb[0].mxu0
    %7486 = vdwg.mxu0
    %7487 = vmatprep.subr.bf16.mxu0 %v7385
    %7488 = vmatpush1.bf16.msra.mxu0 %v7384
    %7489 = vmatprep.subr.bf16.mxu0 %v7389
    %7490 = vmatpush1.bf16.msra.mxu0 %v7388
    %7491 = vmatprep.subr.bf16.mxu0 %v7393
    %7492 = vmatpush1.bf16.msra.mxu0 %v7392
    %7493 = vmatprep.subr.bf16.mxu0 %v7397
    %7494 = vmatpush1.bf16.msra.mxu0 %v7396
    %7495 = vmatprep.subr.bf16.mxu0 %v7401
    %7496 = vmatpush1.bf16.msra.mxu0 %v7400
    %7497 = vmatprep.subr.bf16.mxu0 %v7405
    %7498 = vmatpush1.bf16.msra.mxu0 %v7404
    %7499 = vmatprep.subr.bf16.mxu0 %v7409
    %7500 = vmatpush1.bf16.msra.mxu0 %v7408
    %7501 = vmatprep.subr.bf16.mxu0 %v7413
    %7502 = vmatpush1.bf16.msra.mxu0 %v7412
    %7503 = vmatprep.subr.bf16.mxu0 0
    %7504 = vmatpush1.bf16.msra.mxu0 0
    %7505 = vmatprep.subr.bf16.mxu0 0
    %7506 = vmatpush1.bf16.msra.mxu0 0
    %7507 = vmatprep.subr.bf16.mxu0 0
    %7508 = vmatpush1.bf16.msra.mxu0 0
    %7509 = vmatprep.subr.bf16.mxu0 0
    %7510 = vmatpush1.bf16.msra.mxu0 0
    %7511 = vmatprep.subr.bf16.mxu0 0
    %7512 = vmatpush1.bf16.msra.mxu0 0
    %7513 = vmatprep.subr.bf16.mxu0 0
    %7514 = vmatpush1.bf16.msra.mxu0 0
    %7515 = vmatprep.subr.bf16.mxu0 0
    %7516 = vmatpush1.bf16.msra.mxu0 0
    %7517 = vmatprep.subr.bf16.mxu0 0
    %7518 = vmatpush1.bf16.msra.mxu0 0
    %7519 = vmatprep.mubr.bf16.mxu0 0
    %7520 = vmatmul.mubr.bf16.gmra.mrb[0].mxu0 %v7253
    %v7521 = vpop.f32.mrb[0].mxu0
    %v7522 = vadd.f32 0.0, %v7521
    %v7523 = vpop.f32.mrb[0].mxu0
    %v7524 = vadd.f32 0.0, %v7523
    %v7525 = vpop.f32.mrb[0].mxu0
    %v7526 = vpop.f32.mrb[0].mxu0
    %7527 = vdwg.mxu0
    %v7528 = vadd.f32 %v7206, %v7481
    %v7529 = vadd.f32 %v7208, %v7483
    %v7530 = vadd.f32 %v7247, %v7522
    %v7531 = vadd.f32 %v7249, %v7524
    %v7532 = vxor.u32 %v7528, 2147483648
    %v7533 = vxor.u32 %v7529, 2147483648
    %v7534 = vxor.u32 %v7530, 2147483648
    %v7535 = vmul.f32 %v7532, 1.442695
    %v7536 = vpow.pop %v7535
    %v7537 = vmul.f32 %v7533, 1.442695
    %v7538 = vpow.pop %v7537
    %v7539 = vmul.f32 %v7534, 1.442695
    %v7540 = vpow.pop %v7539
    %v7541 = vadd.f32 %v7536, 1.0
    %v7542 = vadd.f32 %v7538, 1.0
    %v7543 = vadd.f32 %v7540, 1.0
    %v7544 = vrcp.pop %v7541
    %v7545 = vmul.f32 1.0, %v7544
    %v7546 = vrcp.pop %v7542
    %v7547 = vmul.f32 1.0, %v7546
    %v7548 = vrcp.pop %v7543
    %v7549 = vmul.f32 1.0, %v7548
    %v7550 = vtanh.pop %v7531
    %v7551 = vmul.f32 %v7547, %v6952
    %v7552 = vmul.f32 %v7545, %v7550
    %v7553 = vadd.f32 %v7551, %v7552
    %v7554 = vtanh.pop %v7553
    %v7555 = vmul.f32 %v7549, %v7554
    %7556 = vst [vmem:[#allocation3 + $0x38] sm:$0xff] %v7555
    %7557 = vst [vmem:[%s9] sm:$0xff] %v6355
    %7558 = vst [vmem:[%s9 + $0x8] sm:$0xff] %v7555
    %7559 = vst [vmem:[%s10] sm:$0xff] %v6353
    %7560 = vst [vmem:[%s10 + $0x8] sm:$0xff] %v7553
    %v7561 = vld [vmem:[#allocation3] sm:$0xff]
    %v7562 = vld [vmem:[#allocation3 + $0x8] sm:$0xff]
    %v7563 = vld [vmem:[#allocation3 + $0x10] sm:$0xff]
    %v7564 = vld [vmem:[#allocation3 + $0x18] sm:$0xff]
    %v7565 = vld [vmem:[#allocation3 + $0x20] sm:$0xff]
    %v7566 = vld [vmem:[#allocation3 + $0x28] sm:$0xff]
    %v7567 = vld [vmem:[#allocation3 + $0x30] sm:$0xff]
    %v7568 = vld [vmem:[#allocation3 + $0x38] sm:$0xff]
    %v7569 = vpack.c.bf16 %v7562, %v7561
    %v7570 = vpack.c.bf16 %v7564, %v7563
    %v7571 = vpack.c.bf16 %v7566, %v7565
    %v7572 = vpack.c.bf16 %v7568, %v7567
    %v7573 = vld [vmem:[%s6] sm:$0xff]
    %v7574 = vld [vmem:[%s6 + $0x8] sm:$0xff]
    %v7575 = vld [vmem:[%s6 + $0x10] sm:$0xff]
    %v7576 = vld [vmem:[%s6 + $0x18] sm:$0xff]
    %v7577 = vld [vmem:[%s6 + $0x20] sm:$0xff]
    %v7578 = vld [vmem:[%s6 + $0x28] sm:$0xff]
    %v7579 = vld [vmem:[%s6 + $0x30] sm:$0xff]
    %v7580 = vld [vmem:[%s6 + $0x38] sm:$0xff]
    %v7581 = vld [vmem:[%s6 + $0x40] sm:$0xff]
    %v7582 = vld [vmem:[%s6 + $0x48] sm:$0xff]
    %v7583 = vld [vmem:[%s6 + $0x50] sm:$0xff]
    %v7584 = vld [vmem:[%s6 + $0x58] sm:$0xff]
    %v7585 = vld [vmem:[%s6 + $0x60] sm:$0xff]
    %v7586 = vld [vmem:[%s6 + $0x68] sm:$0xff]
    %v7587 = vld [vmem:[%s6 + $0x70] sm:$0xff]
    %v7588 = vld [vmem:[%s6 + $0x78] sm:$0xff]
    %v7589 = vld [vmem:[%s7] sm:$0x3]
    %v7591 = vlaneseq
    %v7592 = vshrl.u32 %v7591, 7
    %v7593 = vsub.s32 0, %v7592
    %v7594 = vrot.slane %v7589, %v7593
    %v7595 = vlaneseq
    %v7596 = vshrl.u32 %v7595, 7
    %v7597 = vsub.s32 1, %v7596
    %v7598 = vrot.slane %v7589, %v7597
    %v7617 = vunpack.c.l.b16 %v7573
    %v7618 = vunpack.c.h.b16 %v7573
    %v7619 = vunpack.c.l.b16 %v7574
    %v7620 = vunpack.c.h.b16 %v7574
    %v7621 = vunpack.c.l.b16 %v7575
    %v7622 = vunpack.c.h.b16 %v7575
    %v7623 = vunpack.c.l.b16 %v7576
    %v7624 = vunpack.c.h.b16 %v7576
    %v7625 = vunpack.c.l.b16 %v7577
    %v7626 = vunpack.c.h.b16 %v7577
    %v7627 = vunpack.c.l.b16 %v7578
    %v7628 = vunpack.c.h.b16 %v7578
    %v7629 = vunpack.c.l.b16 %v7579
    %v7630 = vunpack.c.h.b16 %v7579
    %v7631 = vunpack.c.l.b16 %v7580
    %v7632 = vunpack.c.h.b16 %v7580
    %v7633 = vunpack.c.l.b16 %v7581
    %v7634 = vunpack.c.h.b16 %v7581
    %v7635 = vunpack.c.l.b16 %v7582
    %v7636 = vunpack.c.h.b16 %v7582
    %v7637 = vunpack.c.l.b16 %v7583
    %v7638 = vunpack.c.h.b16 %v7583
    %v7639 = vunpack.c.l.b16 %v7584
    %v7640 = vunpack.c.h.b16 %v7584
    %v7641 = vunpack.c.l.b16 %v7585
    %v7642 = vunpack.c.h.b16 %v7585
    %v7643 = vunpack.c.l.b16 %v7586
    %v7644 = vunpack.c.h.b16 %v7586
    %v7645 = vunpack.c.l.b16 %v7587
    %v7646 = vunpack.c.h.b16 %v7587
    %v7647 = vunpack.c.l.b16 %v7588
    %v7648 = vunpack.c.h.b16 %v7588
    %v7649 = vpack.c.b16 %v7619, %v7617
    %v7650 = vpack.c.b16 %v7620, %v7618
    %v7651 = vpack.c.b16 %v7623, %v7621
    %v7652 = vpack.c.b16 %v7624, %v7622
    %v7653 = vpack.c.b16 %v7627, %v7625
    %v7654 = vpack.c.b16 %v7628, %v7626
    %v7655 = vpack.c.b16 %v7631, %v7629
    %v7656 = vpack.c.b16 %v7632, %v7630
    %v7657 = vpack.c.b16 %v7635, %v7633
    %v7658 = vpack.c.b16 %v7636, %v7634
    %v7659 = vpack.c.b16 %v7639, %v7637
    %v7660 = vpack.c.b16 %v7640, %v7638
    %v7661 = vpack.c.b16 %v7643, %v7641
    %v7662 = vpack.c.b16 %v7644, %v7642
    %v7663 = vpack.c.b16 %v7647, %v7645
    %v7664 = vpack.c.b16 %v7648, %v7646
    %7681 = vmatprep.subr.bf16.mxu0 %v7650
    %7682 = vmatpush1.bf16.msra.mxu0 %v7649
    %7683 = vmatprep.subr.bf16.mxu0 %v7652
    %7684 = vmatpush1.bf16.msra.mxu0 %v7651
    %7685 = vmatprep.subr.bf16.mxu0 %v7654
    %7686 = vmatpush1.bf16.msra.mxu0 %v7653
    %7687 = vmatprep.subr.bf16.mxu0 %v7656
    %7688 = vmatpush1.bf16.msra.mxu0 %v7655
    %7689 = vmatprep.subr.bf16.mxu0 %v7658
    %7690 = vmatpush1.bf16.msra.mxu0 %v7657
    %7691 = vmatprep.subr.bf16.mxu0 %v7660
    %7692 = vmatpush1.bf16.msra.mxu0 %v7659
    %7693 = vmatprep.subr.bf16.mxu0 %v7662
    %7694 = vmatpush1.bf16.msra.mxu0 %v7661
    %7695 = vmatprep.subr.bf16.mxu0 %v7664
    %7696 = vmatpush1.bf16.msra.mxu0 %v7663
    %7697 = vmatprep.subr.bf16.mxu0 0
    %7698 = vmatpush1.bf16.msra.mxu0 0
    %7699 = vmatprep.subr.bf16.mxu0 0
    %7700 = vmatpush1.bf16.msra.mxu0 0
    %7701 = vmatprep.subr.bf16.mxu0 0
    %7702 = vmatpush1.bf16.msra.mxu0 0
    %7703 = vmatprep.subr.bf16.mxu0 0
    %7704 = vmatpush1.bf16.msra.mxu0 0
    %7705 = vmatprep.subr.bf16.mxu0 0
    %7706 = vmatpush1.bf16.msra.mxu0 0
    %7707 = vmatprep.subr.bf16.mxu0 0
    %7708 = vmatpush1.bf16.msra.mxu0 0
    %7709 = vmatprep.subr.bf16.mxu0 0
    %7710 = vmatpush1.bf16.msra.mxu0 0
    %7711 = vmatprep.subr.bf16.mxu0 0
    %7712 = vmatpush1.bf16.msra.mxu0 0
    %7713 = vmatprep.mubr.bf16.mxu0 0
    %7714 = vmatmul.mubr.bf16.gmra.mrb[0].mxu0 %v7569
    %v7715 = vpop.f32.mrb[0].mxu0
    %v7716 = vadd.f32 %v7594, %v7715
    %v7717 = vpop.f32.mrb[0].mxu0
    %v7718 = vadd.f32 %v7598, %v7717
    %v7719 = vpop.f32.mrb[0].mxu0
    %v7720 = vadd.f32 %v7594, %v7719
    %v7721 = vpop.f32.mrb[0].mxu0
    %v7722 = vadd.f32 %v7598, %v7721
    %7723 = vmatprep.mubr.bf16.mxu0 0
    %7724 = vmatmul.mubr.bf16.gmra.mrb[0].mxu0 %v7570
    %v7725 = vpop.f32.mrb[0].mxu0
    %v7726 = vadd.f32 %v7594, %v7725
    %v7727 = vpop.f32.mrb[0].mxu0
    %v7728 = vadd.f32 %v7598, %v7727
    %v7729 = vpop.f32.mrb[0].mxu0
    %v7730 = vadd.f32 %v7594, %v7729
    %v7731 = vpop.f32.mrb[0].mxu0
    %v7732 = vadd.f32 %v7598, %v7731
    %7733 = vmatprep.mubr.bf16.mxu0 0
    %7734 = vmatmul.mubr.bf16.gmra.mrb[0].mxu0 %v7571
    %v7735 = vpop.f32.mrb[0].mxu0
    %v7736 = vadd.f32 %v7594, %v7735
    %v7737 = vpop.f32.mrb[0].mxu0
    %v7738 = vadd.f32 %v7598, %v7737
    %v7739 = vpop.f32.mrb[0].mxu0
    %v7740 = vadd.f32 %v7594, %v7739
    %v7741 = vpop.f32.mrb[0].mxu0
    %v7742 = vadd.f32 %v7598, %v7741
    %7743 = vmatprep.mubr.bf16.mxu0 0
    %7744 = vmatmul.mubr.bf16.gmra.mrb[0].mxu0 %v7572
    %v7745 = vpop.f32.mrb[0].mxu0
    %v7746 = vadd.f32 %v7594, %v7745
    %v7747 = vpop.f32.mrb[0].mxu0
    %v7748 = vadd.f32 %v7598, %v7747
    %v7749 = vpop.f32.mrb[0].mxu0
    %v7750 = vadd.f32 %v7594, %v7749
    %v7751 = vpop.f32.mrb[0].mxu0
    %v7752 = vadd.f32 %v7598, %v7751
    %7753 = vdwg.mxu0
    %7754 = vst [vmem:[%s8] sm:$0xff] %v7716
    %7755 = vst [vmem:[%s8 + $0x8] sm:$0xff] %v7718
    %7756 = vst [vmem:[%s8 + $0x10] sm:$0xff] %v7720
    %7757 = vst [vmem:[%s8 + $0x18] sm:$0xff] %v7722
    %7758 = vst [vmem:[%s8 + $0x20] sm:$0xff] %v7726
    %7759 = vst [vmem:[%s8 + $0x28] sm:$0xff] %v7728
    %7760 = vst [vmem:[%s8 + $0x30] sm:$0xff] %v7730
    %7761 = vst [vmem:[%s8 + $0x38] sm:$0xff] %v7732
    %7762 = vst [vmem:[%s8 + $0x40] sm:$0xff] %v7736
    %7763 = vst [vmem:[%s8 + $0x48] sm:$0xff] %v7738
    %7764 = vst [vmem:[%s8 + $0x50] sm:$0xff] %v7740
    %7765 = vst [vmem:[%s8 + $0x58] sm:$0xff] %v7742
    %7766 = vst [vmem:[%s8 + $0x60] sm:$0xff] %v7746
    %7767 = vst [vmem:[%s8 + $0x68] sm:$0xff] %v7748
    %7768 = vst [vmem:[%s8 + $0x70] sm:$0xff] %v7750
    %7769 = vst [vmem:[%s8 + $0x78] sm:$0xff] %v7752
    // Predicated region
    $region42: #{lstm_lm_forward.1} parent=1 // pred_check
      _
    $region43: #{lstm_lm_forward.1} parent=1 // pred_check_branch
      %7771 = sbr.rel (0) target = $region45
    $region44: #{lstm_lm_forward.1} parent=1 // pred_region
      _
    $region45: #{lstm_lm_forward.1} parent=1 // pred_fallthru
      _
    // Predicated region
    $region46: #{lstm_lm_forward.1} parent=1 // pred_check
      _
    $region47: #{lstm_lm_forward.1} parent=1 // pred_check_branch
      %7773 = sbr.rel (0) target = $region49
    $region48: #{lstm_lm_forward.1} parent=1 // pred_region
      _
    $region49: #{lstm_lm_forward.1} parent=1 // pred_fallthru
      _
    // Predicated region
    $region50: #{lstm_lm_forward.1} parent=1 // pred_check
      _
    $region51: #{lstm_lm_forward.1} parent=1 // pred_check_branch
      %7775 = sbr.rel (0) target = $region53
    $region52: #{lstm_lm_forward.1} parent=1 // pred_region
      _
    $region53: #{lstm_lm_forward.1} parent=1 // pred_fallthru
      _
    // Predicated region
    $region54: #{lstm_lm_forward.1} parent=1 // pred_check
      _
    $region55: #{lstm_lm_forward.1} parent=1 // pred_check_branch
      %7777 = sbr.rel (0) target = $region57
    $region56: #{lstm_lm_forward.1} parent=1 // pred_region
      _
    $region57: #{lstm_lm_forward.1} parent=1 // pred_fallthru
      _
    // Predicated region
    $region58: #{lstm_lm_forward.1} parent=1 // pred_check
      _
    $region59: #{lstm_lm_forward.1} parent=1 // pred_check_branch
      %7779 = sbr.rel (0) target = $region61
    $region60: #{lstm_lm_forward.1} parent=1 // pred_region
      _
    $region61: #{lstm_lm_forward.1} parent=1 // pred_fallthru
      _
    // Predicated region
    $region62: #{lstm_lm_forward.1} parent=1 // pred_check
      _
    $region63: #{lstm_lm_forward.1} parent=1 // pred_check_branch
      %7781 = sbr.rel (0) target = $region65
    $region64: #{lstm_lm_forward.1} parent=1 // pred_region
      _
    $region65: #{lstm_lm_forward.1} parent=1 // pred_fallthru
      _
    %7782 = vsyncpa [#allocation5], 1
    %7783 = vsyncpa [#allocation7], 1

</llo_original>
